<compile_context>
chip_gen: v5e
topology: v5e:2x2
jax: 0.10.0
libtpu: 0.0.40
codegen_flags: <defaults>
</compile_context>

<pallas_src>
import jax
import jax.numpy as jnp
from jax import lax
from jax.experimental import pallas as pl
from jax.experimental.pallas import tpu as pltpu


# ---------------------------------------------------------------------------
# Static model configuration
# ---------------------------------------------------------------------------
CONV_DIM = 8
C1, C2, C4 = CONV_DIM, CONV_DIM * 2, CONV_DIM * 4      # 8, 16, 32
H0 = W0 = 16                                           # input spatial size
LIN_OUT = 300

# NeuralODE.forward default t = [0., 1.]; ode_solve: h_max = 0.05
#   n_steps = ceil(|t1 - t0| / h_max) = 20 ; h = (t1 - t0) / n_steps = 0.05
ODE_T0, ODE_T1 = 0.0, 1.0
ODE_N_STEPS = 20
ODE_H = (ODE_T1 - ODE_T0) / ODE_N_STEPS


# ---------------------------------------------------------------------------
# In-kernel helpers (traced inside the fused kernel body)
# ---------------------------------------------------------------------------
def _conv3x3_im2col(x, w_bf16, H, W, Cin, Cout):
    """'same' 3x3 conv as one im2col MXU matmul.

    x       : (H, W, Cin) f32 value (activations stay f32 in VMEM).
    w_bf16  : (9*Cin, Cout) bf16 value (rows ordered (ky, kx, cin)).
    returns : (H*W, Cout) f32 pre-activation.
    Zero padding is built in-kernel (no HBM pad copy).
    """
    zc = jnp.zeros((H, 1, Cin), jnp.float32)
    xp = jnp.concatenate([zc, x, zc], axis=1)                 # (H, W+2, Cin)
    zr = jnp.zeros((1, W + 2, Cin), jnp.float32)
    xp = jnp.concatenate([zr, xp, zr], axis=0)                # (H+2, W+2, Cin)
    # im2col: 9 shifted views concatenated along the lane (channel) axis.
    taps = [xp[dy:dy + H, dx:dx + W, :] for dy in range(3) for dx in range(3)]
    patches = jnp.concatenate(taps, axis=-1)                  # (H, W, 9*Cin)
    patches = patches.reshape(H * W, 9 * Cin).astype(jnp.bfloat16)
    return jnp.dot(patches, w_bf16, preferred_element_type=jnp.float32)


def _maxpool2(v, H, W, C):
    """2x2 / stride-2 max pool on an (H, W, C) value held in vregs."""
    v = jnp.max(v.reshape(H, W // 2, 2, C), axis=2)           # pool along W
    v = jnp.max(v.reshape(H // 2, 2, W // 2, C), axis=1)      # pool along H
    return v                                                  # (H//2, W//2, C)


# ---------------------------------------------------------------------------
# Single fused kernel: whole forward pass for one image (grid over batch)
# ---------------------------------------------------------------------------
def _fused_forward_kernel(x_ref,
                          w1, sb1, w2, sb2, w3, sb3, w4, sb4, w5, sb5,
                          ow1, osb1, ow2, osb2,
                          sbn, lw, lb,
                          o_ref):
    x = x_ref[0]                                              # (16, 16, 3) f32

    def conv_bn_relu(v, w_ref, sb_ref, H, W, Cin, Cout):
        # conv (+bias folded) -> BN(eval, folded) -> ReLU
        acc = _conv3x3_im2col(v, w_ref[...], H, W, Cin, Cout)
        s, b = sb_ref[0:1, :], sb_ref[1:2, :]
        return jnp.maximum(acc * s + b, 0.0).reshape(H, W, Cout)

    # ----- downsampling stack (pools fused into the epilogue path) -----
    v = conv_bn_relu(x, w1, sb1, H0, W0, 3, C1)               # (16,16, 8)
    v = conv_bn_relu(v, w2, sb2, H0, W0, C1, C1)              # (16,16, 8)
    # Dropout(0.2): identity in eval mode.
    v = _maxpool2(v, H0, W0, C1)                              # ( 8, 8, 8)
    v = conv_bn_relu(v, w3, sb3, H0 // 2, W0 // 2, C1, C2)    # ( 8, 8,16)
    v = conv_bn_relu(v, w4, sb4, H0 // 2, W0 // 2, C2, C2)    # ( 8, 8,16)
    v = _maxpool2(v, H0 // 2, W0 // 2, C2)                    # ( 4, 4,16)
    v = conv_bn_relu(v, w5, sb5, H0 // 4, W0 // 4, C2, C4)    # ( 4, 4,32) (sb5 = [1, bias])

    # ----- NeuralODE feature block: ODEAdjoint.forward == explicit Euler -----
    Hf, Wf = H0 // 4, W0 // 4
    ow1v, ow2v = ow1[...], ow2[...]
    os1, ob1 = osb1[0:1, :], osb1[1:2, :]
    os2, ob2 = osb2[0:1, :], osb2[1:2, :]

    def ode_func(z, t):
        # ConvODEF: time-augmented conv3x3 -> ReLU -> BN, twice (eval-mode BN).
        tpl = jnp.full((Hf, Wf, 1), t, jnp.float32)
        zt = jnp.concatenate([z, tpl], axis=-1)               # (4,4,33)
        h1 = _conv3x3_im2col(zt, ow1v, Hf, Wf, C4 + 1, C4)
        h1 = (jnp.maximum(h1, 0.0) * os1 + ob1).reshape(Hf, Wf, C4)
        ht = jnp.concatenate([h1, tpl], axis=-1)              # (4,4,33)
        dz = _conv3x3_im2col(ht, ow2v, Hf, Wf, C4 + 1, C4)
        dz = (jnp.maximum(dz, 0.0) * os2 + ob2).reshape(Hf, Wf, C4)
        return dz

    def euler_step(i, z):
        t = ODE_T0 + ODE_H * i.astype(jnp.float32)
        return z + ODE_H * ode_func(z, t)

    z = lax.fori_loop(0, ODE_N_STEPS, euler_step, v)          # z(t1) == z[-1]

    # ----- head: BatchNorm2d -> global average pool -> Linear(C4, 300) -----
    pooled = jnp.mean(z.reshape(Hf * Wf, C4), axis=0, keepdims=True)   # (1, 32)
    pooled = pooled * sbn[0:1, :] + sbn[1:2, :]    # per-channel affine commutes with mean
    out = jnp.dot(pooled.astype(jnp.bfloat16), lw[...],
                  preferred_element_type=jnp.float32) + lb[...]        # (1, 300)
    o_ref[0] = out


# ---------------------------------------------------------------------------
# Wrapper
# ---------------------------------------------------------------------------
_WEIGHT_ORDER = ("w1", "sb1", "w2", "sb2", "w3", "sb3", "w4", "sb4",
                 "w5", "sb5", "ow1", "osb1", "ow2", "osb2", "sbn", "lw", "lb")


def _full_spec(arr):
    n = arr.ndim
    return pl.BlockSpec(arr.shape, lambda b: (0,) * n)


def forward(x_nchw, params):
    """Forward pass (eval mode). x_nchw: (B, 3, 16, 16) -> (B, 300)."""
    x = jnp.transpose(x_nchw, (0, 2, 3, 1)).astype(jnp.float32)   # NCHW -> NHWC (glue)
    B = x.shape[0]
    weights = [params[k] for k in _WEIGHT_ORDER]

    out = pl.pallas_call(
        _fused_forward_kernel,
        out_shape=jax.ShapeDtypeStruct((B, 1, LIN_OUT), jnp.float32),
        grid=(B,),
        in_specs=[pl.BlockSpec((1, H0, W0, 3), lambda b: (b, 0, 0, 0))]
                 + [_full_spec(w) for w in weights],
        out_specs=pl.BlockSpec((1, 1, LIN_OUT), lambda b: (b, 0, 0)),
        compiler_params=pltpu.CompilerParams(
            dimension_semantics=("parallel",),          # v7x: one image per TensorCore
            vmem_limit_bytes=16 * 1024 * 1024),
    )(x, *weights)
    return out.reshape(B, LIN_OUT)


# ---------------------------------------------------------------------------
# Deterministic synthetic parameters, pre-reshaped / pre-cast for the kernel
# ---------------------------------------------------------------------------
def make_params(key):
    ks = jax.random.split(key, 20)
    eps = 1e-5

    def conv_w(k, cin, cout, scale=1.0):
        w = jax.random.normal(k, (3, 3, cin, cout), jnp.float32)
        return w * (scale / jnp.sqrt(9.0 * cin))

    def bn(k, c):   # (gamma, beta, running_mean, running_var)
        g = 1.0 + 0.1 * jax.random.normal(k, (c,), jnp.float32)
        b = 0.1 * jax.random.normal(jax.random.fold_in(k, 1), (c,), jnp.float32)
        m = 0.05 * jax.random.normal(jax.random.fold_in(k, 2), (c,), jnp.float32)
        v = 1.0 + 0.1 * jax.random.uniform(jax.random.fold_in(k, 3), (c,), jnp.float32)
        return g, b, m, v

    def prep_w(w):  # (3,3,Cin,Cout) -> (9*Cin, Cout) bf16, rows ordered (ky,kx,cin)
        kh, kw, cin, cout = w.shape
        return w.reshape(kh * kw * cin, cout).astype(jnp.bfloat16)

    p = {}
    # conv1..conv4: Conv2d(bias) -> BatchNorm2d -> ReLU, BN folded with conv bias
    for i, (name, cin, cout) in enumerate(
            [("1", 3, C1), ("2", C1, C1), ("3", C1, C2), ("4", C2, C2)]):
        w = conv_w(ks[i], cin, cout)
        cb = 0.01 * jax.random.normal(jax.random.fold_in(ks[i], 7), (cout,), jnp.float32)
        g, b, m, v = bn(ks[8 + i], cout)
        s = g / jnp.sqrt(v + eps)
        p["w" + name] = prep_w(w)
        p["sb" + name] = jnp.stack([s, b + (cb - m) * s]).astype(jnp.float32)   # (2, C)
    # conv5: Conv2d(bias) -> ReLU (no BN)
    w5 = conv_w(ks[4], C2, C4)
    b5 = 0.01 * jax.random.normal(jax.random.fold_in(ks[4], 7), (C4,), jnp.float32)
    p["w5"] = prep_w(w5)
    p["sb5"] = jnp.stack([jnp.ones((C4,), jnp.float32), b5])
    # ConvODEF dynamics: conv3x3(C4+1 -> C4, no bias) -> ReLU -> BN, twice
    for j in range(2):
        w = conv_w(ks[5 + j], C4 + 1, C4, scale=0.3)
        g, b, m, v = bn(ks[12 + j], C4)
        s = g / jnp.sqrt(v + eps)
        p[f"ow{j + 1}"] = prep_w(w)
        p[f"osb{j + 1}"] = jnp.stack([s, b - m * s]).astype(jnp.float32)
    # final BatchNorm2d(C4)
    g, b, m, v = bn(ks[14], C4)
    s = g / jnp.sqrt(v + eps)
    p["sbn"] = jnp.stack([s, b - m * s]).astype(jnp.float32)
    # Linear(C4 -> 300)
    p["lw"] = (jax.random.normal(ks[15], (C4, LIN_OUT), jnp.float32)
               * (1.0 / jnp.sqrt(float(C4)))).astype(jnp.bfloat16)
    p["lb"] = 0.01 * jax.random.normal(ks[16], (1, LIN_OUT), jnp.float32)
    return p


if __name__ == "__main__":
    key = jax.random.PRNGKey(0)
    k_x, k_p = jax.random.split(key)
    x = jax.random.normal(k_x, (2, 3, H0, W0), jnp.float32)   # NCHW, like PyTorch
    params = make_params(k_p)

    out = jax.jit(forward)(x, params)
    out = jax.block_until_ready(out)
    assert out.shape == (2, LIN_OUT) and out.dtype == jnp.float32
    assert bool(jnp.all(jnp.isfinite(out)))
    print("KERNEL_OK")
</pallas_src>

<mosaic_0001>
module attributes {stable_mosaic.version = 11 : i64} {
  func.func @_fused_forward_kernel(%arg0: i32, %arg1: memref<1x16x16x3xf32, #tpu.memory_space<vmem>>, %arg2: memref<27x8xbf16, #tpu.memory_space<vmem>>, %arg3: memref<2x8xf32, #tpu.memory_space<vmem>>, %arg4: memref<72x8xbf16, #tpu.memory_space<vmem>>, %arg5: memref<2x8xf32, #tpu.memory_space<vmem>>, %arg6: memref<72x16xbf16, #tpu.memory_space<vmem>>, %arg7: memref<2x16xf32, #tpu.memory_space<vmem>>, %arg8: memref<144x16xbf16, #tpu.memory_space<vmem>>, %arg9: memref<2x16xf32, #tpu.memory_space<vmem>>, %arg10: memref<144x32xbf16, #tpu.memory_space<vmem>>, %arg11: memref<2x32xf32, #tpu.memory_space<vmem>>, %arg12: memref<297x32xbf16, #tpu.memory_space<vmem>>, %arg13: memref<2x32xf32, #tpu.memory_space<vmem>>, %arg14: memref<297x32xbf16, #tpu.memory_space<vmem>>, %arg15: memref<2x32xf32, #tpu.memory_space<vmem>>, %arg16: memref<2x32xf32, #tpu.memory_space<vmem>>, %arg17: memref<32x300xbf16, #tpu.memory_space<vmem>>, %arg18: memref<1x300xf32, #tpu.memory_space<vmem>>, %arg19: memref<1x1x300xf32, #tpu.memory_space<vmem>>) attributes {dimension_semantics = [#tpu.dimension_semantics<parallel>], iteration_bounds = array<i64: 2>, scalar_prefetch = 0 : i64, scratch_operands = 0 : i64, tpu.core_type = #tpu.core_type<tc>, window_params = [{transform_indices = @transform_0, window_bounds = array<i64: 1, 16, 16, 3>}, {pipeline_mode = #tpu.pipeline_mode<synchronous>, transform_indices = @transform_1, window_bounds = array<i64: 27, 8>}, {pipeline_mode = #tpu.pipeline_mode<synchronous>, transform_indices = @transform_2, window_bounds = array<i64: 2, 8>}, {pipeline_mode = #tpu.pipeline_mode<synchronous>, transform_indices = @transform_3, window_bounds = array<i64: 72, 8>}, {pipeline_mode = #tpu.pipeline_mode<synchronous>, transform_indices = @transform_4, window_bounds = array<i64: 2, 8>}, {pipeline_mode = #tpu.pipeline_mode<synchronous>, transform_indices = @transform_5, window_bounds = array<i64: 72, 16>}, {pipeline_mode = #tpu.pipeline_mode<synchronous>, transform_indices = @transform_6, window_bounds = array<i64: 2, 16>}, {pipeline_mode = #tpu.pipeline_mode<synchronous>, transform_indices = @transform_7, window_bounds = array<i64: 144, 16>}, {pipeline_mode = #tpu.pipeline_mode<synchronous>, transform_indices = @transform_8, window_bounds = array<i64: 2, 16>}, {pipeline_mode = #tpu.pipeline_mode<synchronous>, transform_indices = @transform_9, window_bounds = array<i64: 144, 32>}, {pipeline_mode = #tpu.pipeline_mode<synchronous>, transform_indices = @transform_10, window_bounds = array<i64: 2, 32>}, {pipeline_mode = #tpu.pipeline_mode<synchronous>, transform_indices = @transform_11, window_bounds = array<i64: 297, 32>}, {pipeline_mode = #tpu.pipeline_mode<synchronous>, transform_indices = @transform_12, window_bounds = array<i64: 2, 32>}, {pipeline_mode = #tpu.pipeline_mode<synchronous>, transform_indices = @transform_13, window_bounds = array<i64: 297, 32>}, {pipeline_mode = #tpu.pipeline_mode<synchronous>, transform_indices = @transform_14, window_bounds = array<i64: 2, 32>}, {pipeline_mode = #tpu.pipeline_mode<synchronous>, transform_indices = @transform_15, window_bounds = array<i64: 2, 32>}, {pipeline_mode = #tpu.pipeline_mode<synchronous>, transform_indices = @transform_16, window_bounds = array<i64: 32, 300>}, {pipeline_mode = #tpu.pipeline_mode<synchronous>, transform_indices = @transform_17, window_bounds = array<i64: 1, 300>}, {transform_indices = @transform_18, window_bounds = array<i64: 1, 1, 300>}]} {
    %c0 = arith.constant 0 : index
    %c0_0 = arith.constant 0 : index
    %c0_1 = arith.constant 0 : index
    %c0_2 = arith.constant 0 : index
    %0 = vector.load %arg1[%c0, %c0_0, %c0_1, %c0_2] : memref<1x16x16x3xf32, #tpu.memory_space<vmem>>, vector<1x16x16x3xf32>
    %1 = vector.shape_cast %0 : vector<1x16x16x3xf32> to vector<16x16x3xf32>
    %c0_3 = arith.constant 0 : index
    %c0_4 = arith.constant 0 : index
    %2 = vector.load %arg2[%c0_3, %c0_4] : memref<27x8xbf16, #tpu.memory_space<vmem>>, vector<27x8xbf16>
    %cst = arith.constant 0.000000e+00 : f32
    %3 = vector.broadcast %cst : f32 to vector<16x1x3xf32>
    %4 = tpu.concatenate %3, %1, %3 in 1 : vector<16x1x3xf32>, vector<16x16x3xf32>, vector<16x1x3xf32> -> vector<16x18x3xf32>
    %cst_5 = arith.constant 0.000000e+00 : f32
    %5 = vector.broadcast %cst_5 : f32 to vector<1x18x3xf32>
    %6 = tpu.concatenate %5, %4, %5 in 0 : vector<1x18x3xf32>, vector<16x18x3xf32>, vector<1x18x3xf32> -> vector<18x18x3xf32>
    %7 = vector.extract_strided_slice %6 {offsets = [0, 0, 0], sizes = [16, 16, 3], strides = [1, 1, 1]} : vector<18x18x3xf32> to vector<16x16x3xf32>
    %8 = vector.extract_strided_slice %6 {offsets = [0, 1, 0], sizes = [16, 16, 3], strides = [1, 1, 1]} : vector<18x18x3xf32> to vector<16x16x3xf32>
    %9 = vector.extract_strided_slice %6 {offsets = [0, 2, 0], sizes = [16, 16, 3], strides = [1, 1, 1]} : vector<18x18x3xf32> to vector<16x16x3xf32>
    %10 = vector.extract_strided_slice %6 {offsets = [1, 0, 0], sizes = [16, 16, 3], strides = [1, 1, 1]} : vector<18x18x3xf32> to vector<16x16x3xf32>
    %11 = vector.extract_strided_slice %6 {offsets = [1, 1, 0], sizes = [16, 16, 3], strides = [1, 1, 1]} : vector<18x18x3xf32> to vector<16x16x3xf32>
    %12 = vector.extract_strided_slice %6 {offsets = [1, 2, 0], sizes = [16, 16, 3], strides = [1, 1, 1]} : vector<18x18x3xf32> to vector<16x16x3xf32>
    %13 = vector.extract_strided_slice %6 {offsets = [2, 0, 0], sizes = [16, 16, 3], strides = [1, 1, 1]} : vector<18x18x3xf32> to vector<16x16x3xf32>
    %14 = vector.extract_strided_slice %6 {offsets = [2, 1, 0], sizes = [16, 16, 3], strides = [1, 1, 1]} : vector<18x18x3xf32> to vector<16x16x3xf32>
    %15 = vector.extract_strided_slice %6 {offsets = [2, 2, 0], sizes = [16, 16, 3], strides = [1, 1, 1]} : vector<18x18x3xf32> to vector<16x16x3xf32>
    %16 = tpu.concatenate %7, %8, %9, %10, %11, %12, %13, %14, %15 in 2 : vector<16x16x3xf32>, vector<16x16x3xf32>, vector<16x16x3xf32>, vector<16x16x3xf32>, vector<16x16x3xf32>, vector<16x16x3xf32>, vector<16x16x3xf32>, vector<16x16x3xf32>, vector<16x16x3xf32> -> vector<16x16x27xf32>
    %17 = vector.shape_cast %16 : vector<16x16x27xf32> to vector<256x27xf32>
    %18 = arith.truncf %17 : vector<256x27xf32> to vector<256x27xbf16>
    %cst_6 = arith.constant dense<0.000000e+00> : vector<256x8xf32>
    %19 = tpu.matmul %18, %2, %cst_6 {dimension_numbers = #tpu.dot_dimension_numbers<[1], [0], [0], [1], [0, 0, 1, 1], [], []>} : vector<256x27xbf16>, vector<27x8xbf16>, vector<256x8xf32> -> vector<256x8xf32>
    %c0_7 = arith.constant 0 : index
    %c0_8 = arith.constant 0 : index
    %20 = vector.load %arg3[%c0_7, %c0_8] : memref<2x8xf32, #tpu.memory_space<vmem>>, vector<1x8xf32>
    %c1 = arith.constant 1 : index
    %c0_9 = arith.constant 0 : index
    %21 = vector.load %arg3[%c1, %c0_9] : memref<2x8xf32, #tpu.memory_space<vmem>>, vector<1x8xf32>
    %22 = vector.broadcast %20 : vector<1x8xf32> to vector<256x8xf32>
    %23 = arith.mulf %19, %22 : vector<256x8xf32>
    %24 = vector.broadcast %21 : vector<1x8xf32> to vector<256x8xf32>
    %25 = arith.addf %23, %24 : vector<256x8xf32>
    %cst_10 = arith.constant 0.000000e+00 : f32
    %26 = vector.broadcast %cst_10 : f32 to vector<256x8xf32>
    %27 = arith.maximumf %25, %26 : vector<256x8xf32>
    %28 = vector.shape_cast %27 : vector<256x8xf32> to vector<16x16x8xf32>
    %c0_11 = arith.constant 0 : index
    %c0_12 = arith.constant 0 : index
    %29 = vector.load %arg4[%c0_11, %c0_12] : memref<72x8xbf16, #tpu.memory_space<vmem>>, vector<72x8xbf16>
    %cst_13 = arith.constant 0.000000e+00 : f32
    %30 = vector.broadcast %cst_13 : f32 to vector<16x1x8xf32>
    %31 = tpu.concatenate %30, %28, %30 in 1 : vector<16x1x8xf32>, vector<16x16x8xf32>, vector<16x1x8xf32> -> vector<16x18x8xf32>
    %cst_14 = arith.constant 0.000000e+00 : f32
    %32 = vector.broadcast %cst_14 : f32 to vector<1x18x8xf32>
    %33 = tpu.concatenate %32, %31, %32 in 0 : vector<1x18x8xf32>, vector<16x18x8xf32>, vector<1x18x8xf32> -> vector<18x18x8xf32>
    %34 = vector.extract_strided_slice %33 {offsets = [0, 0, 0], sizes = [16, 16, 8], strides = [1, 1, 1]} : vector<18x18x8xf32> to vector<16x16x8xf32>
    %35 = vector.extract_strided_slice %33 {offsets = [0, 1, 0], sizes = [16, 16, 8], strides = [1, 1, 1]} : vector<18x18x8xf32> to vector<16x16x8xf32>
    %36 = vector.extract_strided_slice %33 {offsets = [0, 2, 0], sizes = [16, 16, 8], strides = [1, 1, 1]} : vector<18x18x8xf32> to vector<16x16x8xf32>
    %37 = vector.extract_strided_slice %33 {offsets = [1, 0, 0], sizes = [16, 16, 8], strides = [1, 1, 1]} : vector<18x18x8xf32> to vector<16x16x8xf32>
    %38 = vector.extract_strided_slice %33 {offsets = [1, 1, 0], sizes = [16, 16, 8], strides = [1, 1, 1]} : vector<18x18x8xf32> to vector<16x16x8xf32>
    %39 = vector.extract_strided_slice %33 {offsets = [1, 2, 0], sizes = [16, 16, 8], strides = [1, 1, 1]} : vector<18x18x8xf32> to vector<16x16x8xf32>
    %40 = vector.extract_strided_slice %33 {offsets = [2, 0, 0], sizes = [16, 16, 8], strides = [1, 1, 1]} : vector<18x18x8xf32> to vector<16x16x8xf32>
    %41 = vector.extract_strided_slice %33 {offsets = [2, 1, 0], sizes = [16, 16, 8], strides = [1, 1, 1]} : vector<18x18x8xf32> to vector<16x16x8xf32>
    %42 = vector.extract_strided_slice %33 {offsets = [2, 2, 0], sizes = [16, 16, 8], strides = [1, 1, 1]} : vector<18x18x8xf32> to vector<16x16x8xf32>
    %43 = tpu.concatenate %34, %35, %36, %37, %38, %39, %40, %41, %42 in 2 : vector<16x16x8xf32>, vector<16x16x8xf32>, vector<16x16x8xf32>, vector<16x16x8xf32>, vector<16x16x8xf32>, vector<16x16x8xf32>, vector<16x16x8xf32>, vector<16x16x8xf32>, vector<16x16x8xf32> -> vector<16x16x72xf32>
    %44 = vector.shape_cast %43 : vector<16x16x72xf32> to vector<256x72xf32>
    %45 = arith.truncf %44 : vector<256x72xf32> to vector<256x72xbf16>
    %cst_15 = arith.constant dense<0.000000e+00> : vector<256x8xf32>
    %46 = tpu.matmul %45, %29, %cst_15 {dimension_numbers = #tpu.dot_dimension_numbers<[1], [0], [0], [1], [0, 0, 1, 1], [], []>} : vector<256x72xbf16>, vector<72x8xbf16>, vector<256x8xf32> -> vector<256x8xf32>
    %c0_16 = arith.constant 0 : index
    %c0_17 = arith.constant 0 : index
    %47 = vector.load %arg5[%c0_16, %c0_17] : memref<2x8xf32, #tpu.memory_space<vmem>>, vector<1x8xf32>
    %c1_18 = arith.constant 1 : index
    %c0_19 = arith.constant 0 : index
    %48 = vector.load %arg5[%c1_18, %c0_19] : memref<2x8xf32, #tpu.memory_space<vmem>>, vector<1x8xf32>
    %49 = vector.broadcast %47 : vector<1x8xf32> to vector<256x8xf32>
    %50 = arith.mulf %46, %49 : vector<256x8xf32>
    %51 = vector.broadcast %48 : vector<1x8xf32> to vector<256x8xf32>
    %52 = arith.addf %50, %51 : vector<256x8xf32>
    %cst_20 = arith.constant 0.000000e+00 : f32
    %53 = vector.broadcast %cst_20 : f32 to vector<256x8xf32>
    %54 = arith.maximumf %52, %53 : vector<256x8xf32>
    %55 = vector.shape_cast %54 : vector<256x8xf32> to vector<16x16x8xf32>
    %56 = vector.shape_cast %55 : vector<16x16x8xf32> to vector<16x8x2x8xf32>
    %cst_21 = arith.constant dense<0xFF800000> : vector<16x8x8xf32>
    %57 = vector.multi_reduction <maximumf>, %56, %cst_21 [2] : vector<16x8x2x8xf32> to vector<16x8x8xf32>
    %58 = vector.shape_cast %57 : vector<16x8x8xf32> to vector<8x2x8x8xf32>
    %cst_22 = arith.constant dense<0xFF800000> : vector<8x8x8xf32>
    %59 = vector.multi_reduction <maximumf>, %58, %cst_22 [1] : vector<8x2x8x8xf32> to vector<8x8x8xf32>
    %c0_23 = arith.constant 0 : index
    %c0_24 = arith.constant 0 : index
    %60 = vector.load %arg6[%c0_23, %c0_24] : memref<72x16xbf16, #tpu.memory_space<vmem>>, vector<72x16xbf16>
    %cst_25 = arith.constant 0.000000e+00 : f32
    %61 = vector.broadcast %cst_25 : f32 to vector<8x1x8xf32>
    %62 = tpu.concatenate %61, %59, %61 in 1 : vector<8x1x8xf32>, vector<8x8x8xf32>, vector<8x1x8xf32> -> vector<8x10x8xf32>
    %cst_26 = arith.constant 0.000000e+00 : f32
    %63 = vector.broadcast %cst_26 : f32 to vector<1x10x8xf32>
    %64 = tpu.concatenate %63, %62, %63 in 0 : vector<1x10x8xf32>, vector<8x10x8xf32>, vector<1x10x8xf32> -> vector<10x10x8xf32>
    %65 = vector.extract_strided_slice %64 {offsets = [0, 0, 0], sizes = [8, 8, 8], strides = [1, 1, 1]} : vector<10x10x8xf32> to vector<8x8x8xf32>
    %66 = vector.extract_strided_slice %64 {offsets = [0, 1, 0], sizes = [8, 8, 8], strides = [1, 1, 1]} : vector<10x10x8xf32> to vector<8x8x8xf32>
    %67 = vector.extract_strided_slice %64 {offsets = [0, 2, 0], sizes = [8, 8, 8], strides = [1, 1, 1]} : vector<10x10x8xf32> to vector<8x8x8xf32>
    %68 = vector.extract_strided_slice %64 {offsets = [1, 0, 0], sizes = [8, 8, 8], strides = [1, 1, 1]} : vector<10x10x8xf32> to vector<8x8x8xf32>
    %69 = vector.extract_strided_slice %64 {offsets = [1, 1, 0], sizes = [8, 8, 8], strides = [1, 1, 1]} : vector<10x10x8xf32> to vector<8x8x8xf32>
    %70 = vector.extract_strided_slice %64 {offsets = [1, 2, 0], sizes = [8, 8, 8], strides = [1, 1, 1]} : vector<10x10x8xf32> to vector<8x8x8xf32>
    %71 = vector.extract_strided_slice %64 {offsets = [2, 0, 0], sizes = [8, 8, 8], strides = [1, 1, 1]} : vector<10x10x8xf32> to vector<8x8x8xf32>
    %72 = vector.extract_strided_slice %64 {offsets = [2, 1, 0], sizes = [8, 8, 8], strides = [1, 1, 1]} : vector<10x10x8xf32> to vector<8x8x8xf32>
    %73 = vector.extract_strided_slice %64 {offsets = [2, 2, 0], sizes = [8, 8, 8], strides = [1, 1, 1]} : vector<10x10x8xf32> to vector<8x8x8xf32>
    %74 = tpu.concatenate %65, %66, %67, %68, %69, %70, %71, %72, %73 in 2 : vector<8x8x8xf32>, vector<8x8x8xf32>, vector<8x8x8xf32>, vector<8x8x8xf32>, vector<8x8x8xf32>, vector<8x8x8xf32>, vector<8x8x8xf32>, vector<8x8x8xf32>, vector<8x8x8xf32> -> vector<8x8x72xf32>
    %75 = vector.shape_cast %74 : vector<8x8x72xf32> to vector<64x72xf32>
    %76 = arith.truncf %75 : vector<64x72xf32> to vector<64x72xbf16>
    %cst_27 = arith.constant dense<0.000000e+00> : vector<64x16xf32>
    %77 = tpu.matmul %76, %60, %cst_27 {dimension_numbers = #tpu.dot_dimension_numbers<[1], [0], [0], [1], [0, 0, 1, 1], [], []>} : vector<64x72xbf16>, vector<72x16xbf16>, vector<64x16xf32> -> vector<64x16xf32>
    %c0_28 = arith.constant 0 : index
    %c0_29 = arith.constant 0 : index
    %78 = vector.load %arg7[%c0_28, %c0_29] : memref<2x16xf32, #tpu.memory_space<vmem>>, vector<1x16xf32>
    %c1_30 = arith.constant 1 : index
    %c0_31 = arith.constant 0 : index
    %79 = vector.load %arg7[%c1_30, %c0_31] : memref<2x16xf32, #tpu.memory_space<vmem>>, vector<1x16xf32>
    %80 = vector.broadcast %78 : vector<1x16xf32> to vector<64x16xf32>
    %81 = arith.mulf %77, %80 : vector<64x16xf32>
    %82 = vector.broadcast %79 : vector<1x16xf32> to vector<64x16xf32>
    %83 = arith.addf %81, %82 : vector<64x16xf32>
    %cst_32 = arith.constant 0.000000e+00 : f32
    %84 = vector.broadcast %cst_32 : f32 to vector<64x16xf32>
    %85 = arith.maximumf %83, %84 : vector<64x16xf32>
    %86 = vector.shape_cast %85 : vector<64x16xf32> to vector<8x8x16xf32>
    %c0_33 = arith.constant 0 : index
    %c0_34 = arith.constant 0 : index
    %87 = vector.load %arg8[%c0_33, %c0_34] : memref<144x16xbf16, #tpu.memory_space<vmem>>, vector<144x16xbf16>
    %cst_35 = arith.constant 0.000000e+00 : f32
    %88 = vector.broadcast %cst_35 : f32 to vector<8x1x16xf32>
    %89 = tpu.concatenate %88, %86, %88 in 1 : vector<8x1x16xf32>, vector<8x8x16xf32>, vector<8x1x16xf32> -> vector<8x10x16xf32>
    %cst_36 = arith.constant 0.000000e+00 : f32
    %90 = vector.broadcast %cst_36 : f32 to vector<1x10x16xf32>
    %91 = tpu.concatenate %90, %89, %90 in 0 : vector<1x10x16xf32>, vector<8x10x16xf32>, vector<1x10x16xf32> -> vector<10x10x16xf32>
    %92 = vector.extract_strided_slice %91 {offsets = [0, 0, 0], sizes = [8, 8, 16], strides = [1, 1, 1]} : vector<10x10x16xf32> to vector<8x8x16xf32>
    %93 = vector.extract_strided_slice %91 {offsets = [0, 1, 0], sizes = [8, 8, 16], strides = [1, 1, 1]} : vector<10x10x16xf32> to vector<8x8x16xf32>
    %94 = vector.extract_strided_slice %91 {offsets = [0, 2, 0], sizes = [8, 8, 16], strides = [1, 1, 1]} : vector<10x10x16xf32> to vector<8x8x16xf32>
    %95 = vector.extract_strided_slice %91 {offsets = [1, 0, 0], sizes = [8, 8, 16], strides = [1, 1, 1]} : vector<10x10x16xf32> to vector<8x8x16xf32>
    %96 = vector.extract_strided_slice %91 {offsets = [1, 1, 0], sizes = [8, 8, 16], strides = [1, 1, 1]} : vector<10x10x16xf32> to vector<8x8x16xf32>
    %97 = vector.extract_strided_slice %91 {offsets = [1, 2, 0], sizes = [8, 8, 16], strides = [1, 1, 1]} : vector<10x10x16xf32> to vector<8x8x16xf32>
    %98 = vector.extract_strided_slice %91 {offsets = [2, 0, 0], sizes = [8, 8, 16], strides = [1, 1, 1]} : vector<10x10x16xf32> to vector<8x8x16xf32>
    %99 = vector.extract_strided_slice %91 {offsets = [2, 1, 0], sizes = [8, 8, 16], strides = [1, 1, 1]} : vector<10x10x16xf32> to vector<8x8x16xf32>
    %100 = vector.extract_strided_slice %91 {offsets = [2, 2, 0], sizes = [8, 8, 16], strides = [1, 1, 1]} : vector<10x10x16xf32> to vector<8x8x16xf32>
    %101 = tpu.concatenate %92, %93, %94, %95, %96, %97, %98, %99, %100 in 2 : vector<8x8x16xf32>, vector<8x8x16xf32>, vector<8x8x16xf32>, vector<8x8x16xf32>, vector<8x8x16xf32>, vector<8x8x16xf32>, vector<8x8x16xf32>, vector<8x8x16xf32>, vector<8x8x16xf32> -> vector<8x8x144xf32>
    %102 = vector.shape_cast %101 : vector<8x8x144xf32> to vector<64x144xf32>
    %103 = arith.truncf %102 : vector<64x144xf32> to vector<64x144xbf16>
    %cst_37 = arith.constant dense<0.000000e+00> : vector<64x16xf32>
    %104 = tpu.matmul %103, %87, %cst_37 {dimension_numbers = #tpu.dot_dimension_numbers<[1], [0], [0], [1], [0, 0, 1, 1], [], []>} : vector<64x144xbf16>, vector<144x16xbf16>, vector<64x16xf32> -> vector<64x16xf32>
    %c0_38 = arith.constant 0 : index
    %c0_39 = arith.constant 0 : index
    %105 = vector.load %arg9[%c0_38, %c0_39] : memref<2x16xf32, #tpu.memory_space<vmem>>, vector<1x16xf32>
    %c1_40 = arith.constant 1 : index
    %c0_41 = arith.constant 0 : index
    %106 = vector.load %arg9[%c1_40, %c0_41] : memref<2x16xf32, #tpu.memory_space<vmem>>, vector<1x16xf32>
    %107 = vector.broadcast %105 : vector<1x16xf32> to vector<64x16xf32>
    %108 = arith.mulf %104, %107 : vector<64x16xf32>
    %109 = vector.broadcast %106 : vector<1x16xf32> to vector<64x16xf32>
    %110 = arith.addf %108, %109 : vector<64x16xf32>
    %cst_42 = arith.constant 0.000000e+00 : f32
    %111 = vector.broadcast %cst_42 : f32 to vector<64x16xf32>
    %112 = arith.maximumf %110, %111 : vector<64x16xf32>
    %113 = vector.shape_cast %112 : vector<64x16xf32> to vector<8x8x16xf32>
    %114 = vector.shape_cast %113 : vector<8x8x16xf32> to vector<8x4x2x16xf32>
    %cst_43 = arith.constant dense<0xFF800000> : vector<8x4x16xf32>
    %115 = vector.multi_reduction <maximumf>, %114, %cst_43 [2] : vector<8x4x2x16xf32> to vector<8x4x16xf32>
    %116 = vector.shape_cast %115 : vector<8x4x16xf32> to vector<4x2x4x16xf32>
    %cst_44 = arith.constant dense<0xFF800000> : vector<4x4x16xf32>
    %117 = vector.multi_reduction <maximumf>, %116, %cst_44 [1] : vector<4x2x4x16xf32> to vector<4x4x16xf32>
    %c0_45 = arith.constant 0 : index
    %c0_46 = arith.constant 0 : index
    %118 = vector.load %arg10[%c0_45, %c0_46] : memref<144x32xbf16, #tpu.memory_space<vmem>>, vector<144x32xbf16>
    %cst_47 = arith.constant 0.000000e+00 : f32
    %119 = vector.broadcast %cst_47 : f32 to vector<4x1x16xf32>
    %120 = tpu.concatenate %119, %117, %119 in 1 : vector<4x1x16xf32>, vector<4x4x16xf32>, vector<4x1x16xf32> -> vector<4x6x16xf32>
    %cst_48 = arith.constant 0.000000e+00 : f32
    %121 = vector.broadcast %cst_48 : f32 to vector<1x6x16xf32>
    %122 = tpu.concatenate %121, %120, %121 in 0 : vector<1x6x16xf32>, vector<4x6x16xf32>, vector<1x6x16xf32> -> vector<6x6x16xf32>
    %123 = vector.extract_strided_slice %122 {offsets = [0, 0, 0], sizes = [4, 4, 16], strides = [1, 1, 1]} : vector<6x6x16xf32> to vector<4x4x16xf32>
    %124 = vector.extract_strided_slice %122 {offsets = [0, 1, 0], sizes = [4, 4, 16], strides = [1, 1, 1]} : vector<6x6x16xf32> to vector<4x4x16xf32>
    %125 = vector.extract_strided_slice %122 {offsets = [0, 2, 0], sizes = [4, 4, 16], strides = [1, 1, 1]} : vector<6x6x16xf32> to vector<4x4x16xf32>
    %126 = vector.extract_strided_slice %122 {offsets = [1, 0, 0], sizes = [4, 4, 16], strides = [1, 1, 1]} : vector<6x6x16xf32> to vector<4x4x16xf32>
    %127 = vector.extract_strided_slice %122 {offsets = [1, 1, 0], sizes = [4, 4, 16], strides = [1, 1, 1]} : vector<6x6x16xf32> to vector<4x4x16xf32>
    %128 = vector.extract_strided_slice %122 {offsets = [1, 2, 0], sizes = [4, 4, 16], strides = [1, 1, 1]} : vector<6x6x16xf32> to vector<4x4x16xf32>
    %129 = vector.extract_strided_slice %122 {offsets = [2, 0, 0], sizes = [4, 4, 16], strides = [1, 1, 1]} : vector<6x6x16xf32> to vector<4x4x16xf32>
    %130 = vector.extract_strided_slice %122 {offsets = [2, 1, 0], sizes = [4, 4, 16], strides = [1, 1, 1]} : vector<6x6x16xf32> to vector<4x4x16xf32>
    %131 = vector.extract_strided_slice %122 {offsets = [2, 2, 0], sizes = [4, 4, 16], strides = [1, 1, 1]} : vector<6x6x16xf32> to vector<4x4x16xf32>
    %132 = tpu.concatenate %123, %124, %125, %126, %127, %128, %129, %130, %131 in 2 : vector<4x4x16xf32>, vector<4x4x16xf32>, vector<4x4x16xf32>, vector<4x4x16xf32>, vector<4x4x16xf32>, vector<4x4x16xf32>, vector<4x4x16xf32>, vector<4x4x16xf32>, vector<4x4x16xf32> -> vector<4x4x144xf32>
    %133 = vector.shape_cast %132 : vector<4x4x144xf32> to vector<16x144xf32>
    %134 = arith.truncf %133 : vector<16x144xf32> to vector<16x144xbf16>
    %cst_49 = arith.constant dense<0.000000e+00> : vector<16x32xf32>
    %135 = tpu.matmul %134, %118, %cst_49 {dimension_numbers = #tpu.dot_dimension_numbers<[1], [0], [0], [1], [0, 0, 1, 1], [], []>} : vector<16x144xbf16>, vector<144x32xbf16>, vector<16x32xf32> -> vector<16x32xf32>
    %c0_50 = arith.constant 0 : index
    %c0_51 = arith.constant 0 : index
    %136 = vector.load %arg11[%c0_50, %c0_51] : memref<2x32xf32, #tpu.memory_space<vmem>>, vector<1x32xf32>
    %c1_52 = arith.constant 1 : index
    %c0_53 = arith.constant 0 : index
    %137 = vector.load %arg11[%c1_52, %c0_53] : memref<2x32xf32, #tpu.memory_space<vmem>>, vector<1x32xf32>
    %138 = vector.broadcast %136 : vector<1x32xf32> to vector<16x32xf32>
    %139 = arith.mulf %135, %138 : vector<16x32xf32>
    %140 = vector.broadcast %137 : vector<1x32xf32> to vector<16x32xf32>
    %141 = arith.addf %139, %140 : vector<16x32xf32>
    %cst_54 = arith.constant 0.000000e+00 : f32
    %142 = vector.broadcast %cst_54 : f32 to vector<16x32xf32>
    %143 = arith.maximumf %141, %142 : vector<16x32xf32>
    %144 = vector.shape_cast %143 : vector<16x32xf32> to vector<4x4x32xf32>
    %c0_55 = arith.constant 0 : index
    %c0_56 = arith.constant 0 : index
    %145 = vector.load %arg12[%c0_55, %c0_56] : memref<297x32xbf16, #tpu.memory_space<vmem>>, vector<297x32xbf16>
    %c0_57 = arith.constant 0 : index
    %c0_58 = arith.constant 0 : index
    %146 = vector.load %arg14[%c0_57, %c0_58] : memref<297x32xbf16, #tpu.memory_space<vmem>>, vector<297x32xbf16>
    %c0_59 = arith.constant 0 : index
    %c0_60 = arith.constant 0 : index
    %147 = vector.load %arg13[%c0_59, %c0_60] : memref<2x32xf32, #tpu.memory_space<vmem>>, vector<1x32xf32>
    %c1_61 = arith.constant 1 : index
    %c0_62 = arith.constant 0 : index
    %148 = vector.load %arg13[%c1_61, %c0_62] : memref<2x32xf32, #tpu.memory_space<vmem>>, vector<1x32xf32>
    %c0_63 = arith.constant 0 : index
    %c0_64 = arith.constant 0 : index
    %149 = vector.load %arg15[%c0_63, %c0_64] : memref<2x32xf32, #tpu.memory_space<vmem>>, vector<1x32xf32>
    %c1_65 = arith.constant 1 : index
    %c0_66 = arith.constant 0 : index
    %150 = vector.load %arg15[%c1_65, %c0_66] : memref<2x32xf32, #tpu.memory_space<vmem>>, vector<1x32xf32>
    %c0_i32 = arith.constant 0 : i32
    %c20_i32 = arith.constant 20 : i32
    %151 = arith.addi %c0_i32, %c20_i32 : i32
    %c1_i32 = arith.constant 1 : i32
    %152 = scf.for %arg20 = %c0_i32 to %151 step %c1_i32 iter_args(%arg21 = %144) -> (vector<4x4x32xf32>)  : i32 {
      %170 = arith.sitofp %arg20 : i32 to f32
      %cst_82 = arith.constant 5.000000e-02 : f32
      %171 = arith.mulf %cst_82, %170 : f32
      %cst_83 = arith.constant 0.000000e+00 : f32
      %172 = arith.addf %cst_83, %171 : f32
      %173 = vector.broadcast %172 : f32 to vector<4x4x1xf32>
      %174 = tpu.concatenate %arg21, %173 in 2 : vector<4x4x32xf32>, vector<4x4x1xf32> -> vector<4x4x33xf32>
      %cst_84 = arith.constant 0.000000e+00 : f32
      %175 = vector.broadcast %cst_84 : f32 to vector<4x1x33xf32>
      %176 = tpu.concatenate %175, %174, %175 in 1 : vector<4x1x33xf32>, vector<4x4x33xf32>, vector<4x1x33xf32> -> vector<4x6x33xf32>
      %cst_85 = arith.constant 0.000000e+00 : f32
      %177 = vector.broadcast %cst_85 : f32 to vector<1x6x33xf32>
      %178 = tpu.concatenate %177, %176, %177 in 0 : vector<1x6x33xf32>, vector<4x6x33xf32>, vector<1x6x33xf32> -> vector<6x6x33xf32>
      %179 = vector.extract_strided_slice %178 {offsets = [0, 0, 0], sizes = [4, 4, 33], strides = [1, 1, 1]} : vector<6x6x33xf32> to vector<4x4x33xf32>
      %180 = vector.extract_strided_slice %178 {offsets = [0, 1, 0], sizes = [4, 4, 33], strides = [1, 1, 1]} : vector<6x6x33xf32> to vector<4x4x33xf32>
      %181 = vector.extract_strided_slice %178 {offsets = [0, 2, 0], sizes = [4, 4, 33], strides = [1, 1, 1]} : vector<6x6x33xf32> to vector<4x4x33xf32>
      %182 = vector.extract_strided_slice %178 {offsets = [1, 0, 0], sizes = [4, 4, 33], strides = [1, 1, 1]} : vector<6x6x33xf32> to vector<4x4x33xf32>
      %183 = vector.extract_strided_slice %178 {offsets = [1, 1, 0], sizes = [4, 4, 33], strides = [1, 1, 1]} : vector<6x6x33xf32> to vector<4x4x33xf32>
      %184 = vector.extract_strided_slice %178 {offsets = [1, 2, 0], sizes = [4, 4, 33], strides = [1, 1, 1]} : vector<6x6x33xf32> to vector<4x4x33xf32>
      %185 = vector.extract_strided_slice %178 {offsets = [2, 0, 0], sizes = [4, 4, 33], strides = [1, 1, 1]} : vector<6x6x33xf32> to vector<4x4x33xf32>
      %186 = vector.extract_strided_slice %178 {offsets = [2, 1, 0], sizes = [4, 4, 33], strides = [1, 1, 1]} : vector<6x6x33xf32> to vector<4x4x33xf32>
      %187 = vector.extract_strided_slice %178 {offsets = [2, 2, 0], sizes = [4, 4, 33], strides = [1, 1, 1]} : vector<6x6x33xf32> to vector<4x4x33xf32>
      %188 = tpu.concatenate %179, %180, %181, %182, %183, %184, %185, %186, %187 in 2 : vector<4x4x33xf32>, vector<4x4x33xf32>, vector<4x4x33xf32>, vector<4x4x33xf32>, vector<4x4x33xf32>, vector<4x4x33xf32>, vector<4x4x33xf32>, vector<4x4x33xf32>, vector<4x4x33xf32> -> vector<4x4x297xf32>
      %189 = vector.shape_cast %188 : vector<4x4x297xf32> to vector<16x297xf32>
      %190 = arith.truncf %189 : vector<16x297xf32> to vector<16x297xbf16>
      %cst_86 = arith.constant dense<0.000000e+00> : vector<16x32xf32>
      %191 = tpu.matmul %190, %145, %cst_86 {dimension_numbers = #tpu.dot_dimension_numbers<[1], [0], [0], [1], [0, 0, 1, 1], [], []>} : vector<16x297xbf16>, vector<297x32xbf16>, vector<16x32xf32> -> vector<16x32xf32>
      %cst_87 = arith.constant 0.000000e+00 : f32
      %192 = vector.broadcast %cst_87 : f32 to vector<16x32xf32>
      %193 = arith.maximumf %191, %192 : vector<16x32xf32>
      %194 = vector.broadcast %147 : vector<1x32xf32> to vector<16x32xf32>
      %195 = arith.mulf %193, %194 : vector<16x32xf32>
      %196 = vector.broadcast %148 : vector<1x32xf32> to vector<16x32xf32>
      %197 = arith.addf %195, %196 : vector<16x32xf32>
      %198 = vector.shape_cast %197 : vector<16x32xf32> to vector<4x4x32xf32>
      %199 = tpu.concatenate %198, %173 in 2 : vector<4x4x32xf32>, vector<4x4x1xf32> -> vector<4x4x33xf32>
      %cst_88 = arith.constant 0.000000e+00 : f32
      %200 = vector.broadcast %cst_88 : f32 to vector<4x1x33xf32>
      %201 = tpu.concatenate %200, %199, %200 in 1 : vector<4x1x33xf32>, vector<4x4x33xf32>, vector<4x1x33xf32> -> vector<4x6x33xf32>
      %cst_89 = arith.constant 0.000000e+00 : f32
      %202 = vector.broadcast %cst_89 : f32 to vector<1x6x33xf32>
      %203 = tpu.concatenate %202, %201, %202 in 0 : vector<1x6x33xf32>, vector<4x6x33xf32>, vector<1x6x33xf32> -> vector<6x6x33xf32>
      %204 = vector.extract_strided_slice %203 {offsets = [0, 0, 0], sizes = [4, 4, 33], strides = [1, 1, 1]} : vector<6x6x33xf32> to vector<4x4x33xf32>
      %205 = vector.extract_strided_slice %203 {offsets = [0, 1, 0], sizes = [4, 4, 33], strides = [1, 1, 1]} : vector<6x6x33xf32> to vector<4x4x33xf32>
      %206 = vector.extract_strided_slice %203 {offsets = [0, 2, 0], sizes = [4, 4, 33], strides = [1, 1, 1]} : vector<6x6x33xf32> to vector<4x4x33xf32>
      %207 = vector.extract_strided_slice %203 {offsets = [1, 0, 0], sizes = [4, 4, 33], strides = [1, 1, 1]} : vector<6x6x33xf32> to vector<4x4x33xf32>
      %208 = vector.extract_strided_slice %203 {offsets = [1, 1, 0], sizes = [4, 4, 33], strides = [1, 1, 1]} : vector<6x6x33xf32> to vector<4x4x33xf32>
      %209 = vector.extract_strided_slice %203 {offsets = [1, 2, 0], sizes = [4, 4, 33], strides = [1, 1, 1]} : vector<6x6x33xf32> to vector<4x4x33xf32>
      %210 = vector.extract_strided_slice %203 {offsets = [2, 0, 0], sizes = [4, 4, 33], strides = [1, 1, 1]} : vector<6x6x33xf32> to vector<4x4x33xf32>
      %211 = vector.extract_strided_slice %203 {offsets = [2, 1, 0], sizes = [4, 4, 33], strides = [1, 1, 1]} : vector<6x6x33xf32> to vector<4x4x33xf32>
      %212 = vector.extract_strided_slice %203 {offsets = [2, 2, 0], sizes = [4, 4, 33], strides = [1, 1, 1]} : vector<6x6x33xf32> to vector<4x4x33xf32>
      %213 = tpu.concatenate %204, %205, %206, %207, %208, %209, %210, %211, %212 in 2 : vector<4x4x33xf32>, vector<4x4x33xf32>, vector<4x4x33xf32>, vector<4x4x33xf32>, vector<4x4x33xf32>, vector<4x4x33xf32>, vector<4x4x33xf32>, vector<4x4x33xf32>, vector<4x4x33xf32> -> vector<4x4x297xf32>
      %214 = vector.shape_cast %213 : vector<4x4x297xf32> to vector<16x297xf32>
      %215 = arith.truncf %214 : vector<16x297xf32> to vector<16x297xbf16>
      %cst_90 = arith.constant dense<0.000000e+00> : vector<16x32xf32>
      %216 = tpu.matmul %215, %146, %cst_90 {dimension_numbers = #tpu.dot_dimension_numbers<[1], [0], [0], [1], [0, 0, 1, 1], [], []>} : vector<16x297xbf16>, vector<297x32xbf16>, vector<16x32xf32> -> vector<16x32xf32>
      %cst_91 = arith.constant 0.000000e+00 : f32
      %217 = vector.broadcast %cst_91 : f32 to vector<16x32xf32>
      %218 = arith.maximumf %216, %217 : vector<16x32xf32>
      %219 = vector.broadcast %149 : vector<1x32xf32> to vector<16x32xf32>
      %220 = arith.mulf %218, %219 : vector<16x32xf32>
      %221 = vector.broadcast %150 : vector<1x32xf32> to vector<16x32xf32>
      %222 = arith.addf %220, %221 : vector<16x32xf32>
      %223 = vector.shape_cast %222 : vector<16x32xf32> to vector<4x4x32xf32>
      %cst_92 = arith.constant 5.000000e-02 : f32
      %224 = vector.broadcast %cst_92 : f32 to vector<4x4x32xf32>
      %225 = arith.mulf %224, %223 : vector<4x4x32xf32>
      %226 = arith.addf %arg21, %225 : vector<4x4x32xf32>
      scf.yield %226 : vector<4x4x32xf32>
    }
    %c20_i32_67 = arith.constant 20 : i32
    %153 = vector.shape_cast %152 : vector<4x4x32xf32> to vector<16x32xf32>
    %cst_68 = arith.constant dense<0.000000e+00> : vector<32xf32>
    %154 = vector.multi_reduction <add>, %153, %cst_68 [0] : vector<16x32xf32> to vector<32xf32>
    %155 = vector.shape_cast %154 : vector<32xf32> to vector<1x32xf32>
    %cst_69 = arith.constant 1.600000e+01 : f32
    %156 = vector.broadcast %cst_69 : f32 to vector<1x32xf32>
    %157 = arith.divf %155, %156 : vector<1x32xf32>
    %c0_70 = arith.constant 0 : index
    %c0_71 = arith.constant 0 : index
    %158 = vector.load %arg16[%c0_70, %c0_71] : memref<2x32xf32, #tpu.memory_space<vmem>>, vector<1x32xf32>
    %159 = arith.mulf %157, %158 : vector<1x32xf32>
    %c1_72 = arith.constant 1 : index
    %c0_73 = arith.constant 0 : index
    %160 = vector.load %arg16[%c1_72, %c0_73] : memref<2x32xf32, #tpu.memory_space<vmem>>, vector<1x32xf32>
    %161 = arith.addf %159, %160 : vector<1x32xf32>
    %162 = arith.truncf %161 : vector<1x32xf32> to vector<1x32xbf16>
    %c0_74 = arith.constant 0 : index
    %c0_75 = arith.constant 0 : index
    %163 = vector.load %arg17[%c0_74, %c0_75] : memref<32x300xbf16, #tpu.memory_space<vmem>>, vector<32x300xbf16>
    %cst_76 = arith.constant dense<0.000000e+00> : vector<1x300xf32>
    %164 = tpu.matmul %162, %163, %cst_76 {dimension_numbers = #tpu.dot_dimension_numbers<[1], [0], [0], [1], [0, 0, 1, 1], [], []>} : vector<1x32xbf16>, vector<32x300xbf16>, vector<1x300xf32> -> vector<1x300xf32>
    %c0_77 = arith.constant 0 : index
    %c0_78 = arith.constant 0 : index
    %165 = vector.load %arg18[%c0_77, %c0_78] : memref<1x300xf32, #tpu.memory_space<vmem>>, vector<1x300xf32>
    %166 = arith.addf %164, %165 : vector<1x300xf32>
    %c0_79 = arith.constant 0 : index
    %c0_80 = arith.constant 0 : index
    %c0_81 = arith.constant 0 : index
    %167 = vector.load %arg19[%c0_79, %c0_80, %c0_81] : memref<1x1x300xf32, #tpu.memory_space<vmem>>, vector<1x1x300xf32>
    %168 = vector.shape_cast %167 : vector<1x1x300xf32> to vector<1x300xf32>
    %169 = vector.shape_cast %166 : vector<1x300xf32> to vector<1x1x300xf32>
    tpu.vector_store %arg19[%c0_79, %c0_80, %c0_81], %169 {strides = array<i32>} : memref<1x1x300xf32, #tpu.memory_space<vmem>>, vector<1x1x300xf32>,
    return
  }
  func.func @transform_0(%arg0: i32) -> (i32, i32, i32, i32) {
    %c0_i32 = arith.constant 0 : i32
    %c0_i32_0 = arith.constant 0 : i32
    %c0_i32_1 = arith.constant 0 : i32
    %c0_i32_2 = arith.constant 0 : i32
    return %arg0, %c0_i32, %c0_i32_0, %c0_i32_1 : i32, i32, i32, i32
  }
  func.func @transform_1(%arg0: i32) -> (i32, i32) {
    %c0_i32 = arith.constant 0 : i32
    %c0_i32_0 = arith.constant 0 : i32
    %c0_i32_1 = arith.constant 0 : i32
    return %c0_i32, %c0_i32_0 : i32, i32
  }
  func.func @transform_2(%arg0: i32) -> (i32, i32) {
    %c0_i32 = arith.constant 0 : i32
    %c0_i32_0 = arith.constant 0 : i32
    %c0_i32_1 = arith.constant 0 : i32
    return %c0_i32, %c0_i32_0 : i32, i32
  }
  func.func @transform_3(%arg0: i32) -> (i32, i32) {
    %c0_i32 = arith.constant 0 : i32
    %c0_i32_0 = arith.constant 0 : i32
    %c0_i32_1 = arith.constant 0 : i32
    return %c0_i32, %c0_i32_0 : i32, i32
  }
  func.func @transform_4(%arg0: i32) -> (i32, i32) {
    %c0_i32 = arith.constant 0 : i32
    %c0_i32_0 = arith.constant 0 : i32
    %c0_i32_1 = arith.constant 0 : i32
    return %c0_i32, %c0_i32_0 : i32, i32
  }
  func.func @transform_5(%arg0: i32) -> (i32, i32) {
    %c0_i32 = arith.constant 0 : i32
    %c0_i32_0 = arith.constant 0 : i32
    %c0_i32_1 = arith.constant 0 : i32
    return %c0_i32, %c0_i32_0 : i32, i32
  }
  func.func @transform_6(%arg0: i32) -> (i32, i32) {
    %c0_i32 = arith.constant 0 : i32
    %c0_i32_0 = arith.constant 0 : i32
    %c0_i32_1 = arith.constant 0 : i32
    return %c0_i32, %c0_i32_0 : i32, i32
  }
  func.func @transform_7(%arg0: i32) -> (i32, i32) {
    %c0_i32 = arith.constant 0 : i32
    %c0_i32_0 = arith.constant 0 : i32
    %c0_i32_1 = arith.constant 0 : i32
    return %c0_i32, %c0_i32_0 : i32, i32
  }
  func.func @transform_8(%arg0: i32) -> (i32, i32) {
    %c0_i32 = arith.constant 0 : i32
    %c0_i32_0 = arith.constant 0 : i32
    %c0_i32_1 = arith.constant 0 : i32
    return %c0_i32, %c0_i32_0 : i32, i32
  }
  func.func @transform_9(%arg0: i32) -> (i32, i32) {
    %c0_i32 = arith.constant 0 : i32
    %c0_i32_0 = arith.constant 0 : i32
    %c0_i32_1 = arith.constant 0 : i32
    return %c0_i32, %c0_i32_0 : i32, i32
  }
  func.func @transform_10(%arg0: i32) -> (i32, i32) {
    %c0_i32 = arith.constant 0 : i32
    %c0_i32_0 = arith.constant 0 : i32
    %c0_i32_1 = arith.constant 0 : i32
    return %c0_i32, %c0_i32_0 : i32, i32
  }
  func.func @transform_11(%arg0: i32) -> (i32, i32) {
    %c0_i32 = arith.constant 0 : i32
    %c0_i32_0 = arith.constant 0 : i32
    %c0_i32_1 = arith.constant 0 : i32
    return %c0_i32, %c0_i32_0 : i32, i32
  }
  func.func @transform_12(%arg0: i32) -> (i32, i32) {
    %c0_i32 = arith.constant 0 : i32
    %c0_i32_0 = arith.constant 0 : i32
    %c0_i32_1 = arith.constant 0 : i32
    return %c0_i32, %c0_i32_0 : i32, i32
  }
  func.func @transform_13(%arg0: i32) -> (i32, i32) {
    %c0_i32 = arith.constant 0 : i32
    %c0_i32_0 = arith.constant 0 : i32
    %c0_i32_1 = arith.constant 0 : i32
    return %c0_i32, %c0_i32_0 : i32, i32
  }
  func.func @transform_14(%arg0: i32) -> (i32, i32) {
    %c0_i32 = arith.constant 0 : i32
    %c0_i32_0 = arith.constant 0 : i32
    %c0_i32_1 = arith.constant 0 : i32
    return %c0_i32, %c0_i32_0 : i32, i32
  }
  func.func @transform_15(%arg0: i32) -> (i32, i32) {
    %c0_i32 = arith.constant 0 : i32
    %c0_i32_0 = arith.constant 0 : i32
    %c0_i32_1 = arith.constant 0 : i32
    return %c0_i32, %c0_i32_0 : i32, i32
  }
  func.func @transform_16(%arg0: i32) -> (i32, i32) {
    %c0_i32 = arith.constant 0 : i32
    %c0_i32_0 = arith.constant 0 : i32
    %c0_i32_1 = arith.constant 0 : i32
    return %c0_i32, %c0_i32_0 : i32, i32
  }
  func.func @transform_17(%arg0: i32) -> (i32, i32) {
    %c0_i32 = arith.constant 0 : i32
    %c0_i32_0 = arith.constant 0 : i32
    %c0_i32_1 = arith.constant 0 : i32
    return %c0_i32, %c0_i32_0 : i32, i32
  }
  func.func @transform_18(%arg0: i32) -> (i32, i32, i32) {
    %c0_i32 = arith.constant 0 : i32
    %c0_i32_0 = arith.constant 0 : i32
    %c0_i32_1 = arith.constant 0 : i32
    return %arg0, %c0_i32, %c0_i32_0 : i32, i32, i32
  }
}

</mosaic_0001>

<llo_original>
// kernel: forward.1
$region0: #{forward.1}
  #allocation0 [shape = 'u32[]', space=smem, size = 0x4, offset = 0x4, fixed_abs, tag = 'smem constant byte address 0x4 - core index']
  #allocation1 [shape = 'u32[72,128]{1,0:T(1,128)}', space=vmem, size = 0x9000, scoped, tag = 'internal scratch']
  %s0 = inlined_call_operand.vmem [shape: f32[2,16,16,3], index: 0, kind: input, shape index: {}]
  %s1 = inlined_call_operand.vmem [shape: bf16[27,8], index: 1, kind: input, shape index: {}]
  %s2 = inlined_call_operand.vmem [shape: f32[2,8], index: 2, kind: input, shape index: {}]
  %s3 = inlined_call_operand.vmem [shape: bf16[72,8], index: 3, kind: input, shape index: {}]
  %s4 = inlined_call_operand.vmem [shape: f32[2,8], index: 4, kind: input, shape index: {}]
  %s5 = inlined_call_operand.vmem [shape: bf16[72,16], index: 5, kind: input, shape index: {}]
  %s6 = inlined_call_operand.vmem [shape: f32[2,16], index: 6, kind: input, shape index: {}]
  %s7 = inlined_call_operand.vmem [shape: bf16[144,16], index: 7, kind: input, shape index: {}]
  %s8 = inlined_call_operand.vmem [shape: f32[2,16], index: 8, kind: input, shape index: {}]
  %s9 = inlined_call_operand.vmem [shape: bf16[144,32], index: 9, kind: input, shape index: {}]
  %s10 = inlined_call_operand.vmem [shape: f32[2,32], index: 10, kind: input, shape index: {}]
  %s11 = inlined_call_operand.vmem [shape: bf16[297,32], index: 11, kind: input, shape index: {}]
  %s12 = inlined_call_operand.vmem [shape: f32[2,32], index: 12, kind: input, shape index: {}]
  %s13 = inlined_call_operand.vmem [shape: bf16[297,32], index: 13, kind: input, shape index: {}]
  %s14 = inlined_call_operand.vmem [shape: f32[2,32], index: 14, kind: input, shape index: {}]
  %s15 = inlined_call_operand.vmem [shape: f32[2,32], index: 15, kind: input, shape index: {}]
  %s16 = inlined_call_operand.vmem [shape: bf16[32,300], index: 16, kind: input, shape index: {}]
  %s17 = inlined_call_operand.vmem [shape: f32[1,300], index: 17, kind: input, shape index: {}]
  %s18 = inlined_call_operand.vmem [shape: f32[2,1,300], index: 18, kind: output, shape index: {}]
  %s19 = sld [smem:[#allocation0]]
  $region112: #{forward.1} parent=0
    _
  %s21 = ssub.s32 1, %s19
  %s22 = scalar_select 0, %s21, %s19
  loop: start=0, step=1, limit=4
  $region2: #{forward.1} parent=0 // loop_pre_header
    _
  $region3: #{forward.1} parent=0 // loop_header
    %s24 = sphi 0, %s28
    %p25 = scmp.ge.s32.totalorder %s24, 4
    %s34 = sphi 0, %s36
    %s37 = sphi 0, %s34
    %s38 = sphi 0, %s37
    %s54 = sphi 0, %s38
    %s58 = sphi 0, %s58
    %s60 = sphi 0, %s58
    %s61 = sphi 0, %s60
    %s75 = sphi 0, %s61
    %s79 = sphi 0, %s79
    %s81 = sphi 0, %s79
    %s82 = sphi 0, %s81
    %s96 = sphi 0, %s82
    %s100 = sphi 0, %s100
    %s102 = sphi 0, %s100
    %s103 = sphi 0, %s102
    %s117 = sphi 0, %s103
    %s121 = sphi 0, %s121
    %s123 = sphi 0, %s121
    %s124 = sphi 0, %s123
    %s138 = sphi 0, %s124
    %s142 = sphi 0, %s142
    %s144 = sphi 0, %s142
    %s145 = sphi 0, %s144
    %s159 = sphi 0, %s145
    %s163 = sphi 0, %s163
    %s165 = sphi 0, %s163
    %s166 = sphi 0, %s165
    %s180 = sphi 0, %s166
    %s184 = sphi 0, %s184
    %s186 = sphi 0, %s184
    %s187 = sphi 0, %s186
    %s201 = sphi 0, %s187
    %s205 = sphi 0, %s205
    %s207 = sphi 0, %s205
    %s208 = sphi 0, %s207
    %s222 = sphi 0, %s208
    %s226 = sphi 0, %s226
    %s228 = sphi 0, %s226
    %s229 = sphi 0, %s228
    %s243 = sphi 0, %s229
    %s247 = sphi 0, %s247
    %s249 = sphi 0, %s247
    %s250 = sphi 0, %s249
    %s264 = sphi 0, %s250
    %s268 = sphi 0, %s268
    %s270 = sphi 0, %s268
    %s271 = sphi 0, %s270
    %s285 = sphi 0, %s271
    %s289 = sphi 0, %s289
    %s291 = sphi 0, %s289
    %s292 = sphi 0, %s291
    %s306 = sphi 0, %s292
    %s310 = sphi 0, %s310
    %s312 = sphi 0, %s310
    %s313 = sphi 0, %s312
    %s327 = sphi 0, %s313
    %s331 = sphi 0, %s331
    %s333 = sphi 0, %s331
    %s334 = sphi 0, %s333
    %s348 = sphi 0, %s334
    %s352 = sphi 0, %s352
    %s354 = sphi 0, %s352
    %s355 = sphi 0, %s354
    %s369 = sphi 0, %s355
    %s373 = sphi 0, %s373
    %s375 = sphi 0, %s373
    %s376 = sphi 0, %s375
    %s390 = sphi 0, %s376
    %s394 = sphi 0, %s394
    %s396 = sphi 0, %s394
    %s397 = sphi 0, %s396
    %s411 = sphi 0, %s397
    %s417 = sphi 0, %s419
    %s420 = sphi 0, %s417
    %s421 = sphi 0, %s420
    %s437 = sphi 0, %s421
  $region4: #{forward.1} parent=0 // loop_header_branch
    %27 = sbr.rel (%p25) target = $region8
  $region5: #{forward.1} parent=0 // loop_body
    %s29 = ssub.s32 %s24, 1
    %s30 = ssub.s32 %s24, 2
    %s31 = sadd.s32 %s24, 1
    %s32 = ssub.s32 %s24, %s31
    %p33 = scmp.eq.s32.totalorder %s32, 0
    %s35 = sadd.s32 %s34, 1
    %s36 = scalar_select %p33, %s34, %s35
    %p39 = pneg %p33
    %p40 = scmp.eq.s32.totalorder %s24, 1
    %p41 = por %p39, %p40
    %p42 = scmp.ne.s32.totalorder %s34, %s37
    %p43 = scmp.eq.s32.totalorder %s24, 0
    %p44 = por %p42, %p43
    %p45 = scmp.ne.s32.totalorder %s34, %s37
    %p46 = scmp.eq.s32.totalorder %s29, 1
    %p47 = por %p45, %p46
    %p48 = scmp.ne.s32.totalorder %s37, %s38
    %p49 = scmp.eq.s32.totalorder %s29, 0
    %p50 = por %p48, %p49
    %p51 = scmp.ne.s32.totalorder %s37, %s38
    %p52 = scmp.eq.s32.totalorder %s30, 1
    %p53 = por %p51, %p52
    %p55 = scmp.ne.s32.totalorder %s38, %s54
    %p56 = scmp.eq.s32.totalorder %s30, 0
    %p57 = por %p55, %p56
    %s59 = sadd.s32 %s58, 1
    %p62 = scmp.eq.s32.totalorder %s24, 1
    %p63 = scmp.ne.s32.totalorder %s58, %s60
    %p64 = scmp.eq.s32.totalorder %s24, 0
    %p65 = por %p63, %p64
    %p66 = scmp.ne.s32.totalorder %s58, %s60
    %p67 = scmp.eq.s32.totalorder %s29, 1
    %p68 = por %p66, %p67
    %p69 = scmp.ne.s32.totalorder %s60, %s61
    %p70 = scmp.eq.s32.totalorder %s29, 0
    %p71 = por %p69, %p70
    %p72 = scmp.ne.s32.totalorder %s60, %s61
    %p73 = scmp.eq.s32.totalorder %s30, 1
    %p74 = por %p72, %p73
    %p76 = scmp.ne.s32.totalorder %s61, %s75
    %p77 = scmp.eq.s32.totalorder %s30, 0
    %p78 = por %p76, %p77
    %s80 = sadd.s32 %s79, 1
    %p83 = scmp.eq.s32.totalorder %s24, 1
    %p84 = scmp.ne.s32.totalorder %s79, %s81
    %p85 = scmp.eq.s32.totalorder %s24, 0
    %p86 = por %p84, %p85
    %p87 = scmp.ne.s32.totalorder %s79, %s81
    %p88 = scmp.eq.s32.totalorder %s29, 1
    %p89 = por %p87, %p88
    %p90 = scmp.ne.s32.totalorder %s81, %s82
    %p91 = scmp.eq.s32.totalorder %s29, 0
    %p92 = por %p90, %p91
    %p93 = scmp.ne.s32.totalorder %s81, %s82
    %p94 = scmp.eq.s32.totalorder %s30, 1
    %p95 = por %p93, %p94
    %p97 = scmp.ne.s32.totalorder %s82, %s96
    %p98 = scmp.eq.s32.totalorder %s30, 0
    %p99 = por %p97, %p98
    %s101 = sadd.s32 %s100, 1
    %p104 = scmp.eq.s32.totalorder %s24, 1
    %p105 = scmp.ne.s32.totalorder %s100, %s102
    %p106 = scmp.eq.s32.totalorder %s24, 0
    %p107 = por %p105, %p106
    %p108 = scmp.ne.s32.totalorder %s100, %s102
    %p109 = scmp.eq.s32.totalorder %s29, 1
    %p110 = por %p108, %p109
    %p111 = scmp.ne.s32.totalorder %s102, %s103
    %p112 = scmp.eq.s32.totalorder %s29, 0
    %p113 = por %p111, %p112
    %p114 = scmp.ne.s32.totalorder %s102, %s103
    %p115 = scmp.eq.s32.totalorder %s30, 1
    %p116 = por %p114, %p115
    %p118 = scmp.ne.s32.totalorder %s103, %s117
    %p119 = scmp.eq.s32.totalorder %s30, 0
    %p120 = por %p118, %p119
    %s122 = sadd.s32 %s121, 1
    %p125 = scmp.eq.s32.totalorder %s24, 1
    %p126 = scmp.ne.s32.totalorder %s121, %s123
    %p127 = scmp.eq.s32.totalorder %s24, 0
    %p128 = por %p126, %p127
    %p129 = scmp.ne.s32.totalorder %s121, %s123
    %p130 = scmp.eq.s32.totalorder %s29, 1
    %p131 = por %p129, %p130
    %p132 = scmp.ne.s32.totalorder %s123, %s124
    %p133 = scmp.eq.s32.totalorder %s29, 0
    %p134 = por %p132, %p133
    %p135 = scmp.ne.s32.totalorder %s123, %s124
    %p136 = scmp.eq.s32.totalorder %s30, 1
    %p137 = por %p135, %p136
    %p139 = scmp.ne.s32.totalorder %s124, %s138
    %p140 = scmp.eq.s32.totalorder %s30, 0
    %p141 = por %p139, %p140
    %s143 = sadd.s32 %s142, 1
    %p146 = scmp.eq.s32.totalorder %s24, 1
    %p147 = scmp.ne.s32.totalorder %s142, %s144
    %p148 = scmp.eq.s32.totalorder %s24, 0
    %p149 = por %p147, %p148
    %p150 = scmp.ne.s32.totalorder %s142, %s144
    %p151 = scmp.eq.s32.totalorder %s29, 1
    %p152 = por %p150, %p151
    %p153 = scmp.ne.s32.totalorder %s144, %s145
    %p154 = scmp.eq.s32.totalorder %s29, 0
    %p155 = por %p153, %p154
    %p156 = scmp.ne.s32.totalorder %s144, %s145
    %p157 = scmp.eq.s32.totalorder %s30, 1
    %p158 = por %p156, %p157
    %p160 = scmp.ne.s32.totalorder %s145, %s159
    %p161 = scmp.eq.s32.totalorder %s30, 0
    %p162 = por %p160, %p161
    %s164 = sadd.s32 %s163, 1
    %p167 = scmp.eq.s32.totalorder %s24, 1
    %p168 = scmp.ne.s32.totalorder %s163, %s165
    %p169 = scmp.eq.s32.totalorder %s24, 0
    %p170 = por %p168, %p169
    %p171 = scmp.ne.s32.totalorder %s163, %s165
    %p172 = scmp.eq.s32.totalorder %s29, 1
    %p173 = por %p171, %p172
    %p174 = scmp.ne.s32.totalorder %s165, %s166
    %p175 = scmp.eq.s32.totalorder %s29, 0
    %p176 = por %p174, %p175
    %p177 = scmp.ne.s32.totalorder %s165, %s166
    %p178 = scmp.eq.s32.totalorder %s30, 1
    %p179 = por %p177, %p178
    %p181 = scmp.ne.s32.totalorder %s166, %s180
    %p182 = scmp.eq.s32.totalorder %s30, 0
    %p183 = por %p181, %p182
    %s185 = sadd.s32 %s184, 1
    %p188 = scmp.eq.s32.totalorder %s24, 1
    %p189 = scmp.ne.s32.totalorder %s184, %s186
    %p190 = scmp.eq.s32.totalorder %s24, 0
    %p191 = por %p189, %p190
    %p192 = scmp.ne.s32.totalorder %s184, %s186
    %p193 = scmp.eq.s32.totalorder %s29, 1
    %p194 = por %p192, %p193
    %p195 = scmp.ne.s32.totalorder %s186, %s187
    %p196 = scmp.eq.s32.totalorder %s29, 0
    %p197 = por %p195, %p196
    %p198 = scmp.ne.s32.totalorder %s186, %s187
    %p199 = scmp.eq.s32.totalorder %s30, 1
    %p200 = por %p198, %p199
    %p202 = scmp.ne.s32.totalorder %s187, %s201
    %p203 = scmp.eq.s32.totalorder %s30, 0
    %p204 = por %p202, %p203
    %s206 = sadd.s32 %s205, 1
    %p209 = scmp.eq.s32.totalorder %s24, 1
    %p210 = scmp.ne.s32.totalorder %s205, %s207
    %p211 = scmp.eq.s32.totalorder %s24, 0
    %p212 = por %p210, %p211
    %p213 = scmp.ne.s32.totalorder %s205, %s207
    %p214 = scmp.eq.s32.totalorder %s29, 1
    %p215 = por %p213, %p214
    %p216 = scmp.ne.s32.totalorder %s207, %s208
    %p217 = scmp.eq.s32.totalorder %s29, 0
    %p218 = por %p216, %p217
    %p219 = scmp.ne.s32.totalorder %s207, %s208
    %p220 = scmp.eq.s32.totalorder %s30, 1
    %p221 = por %p219, %p220
    %p223 = scmp.ne.s32.totalorder %s208, %s222
    %p224 = scmp.eq.s32.totalorder %s30, 0
    %p225 = por %p223, %p224
    %s227 = sadd.s32 %s226, 1
    %p230 = scmp.eq.s32.totalorder %s24, 1
    %p231 = scmp.ne.s32.totalorder %s226, %s228
    %p232 = scmp.eq.s32.totalorder %s24, 0
    %p233 = por %p231, %p232
    %p234 = scmp.ne.s32.totalorder %s226, %s228
    %p235 = scmp.eq.s32.totalorder %s29, 1
    %p236 = por %p234, %p235
    %p237 = scmp.ne.s32.totalorder %s228, %s229
    %p238 = scmp.eq.s32.totalorder %s29, 0
    %p239 = por %p237, %p238
    %p240 = scmp.ne.s32.totalorder %s228, %s229
    %p241 = scmp.eq.s32.totalorder %s30, 1
    %p242 = por %p240, %p241
    %p244 = scmp.ne.s32.totalorder %s229, %s243
    %p245 = scmp.eq.s32.totalorder %s30, 0
    %p246 = por %p244, %p245
    %s248 = sadd.s32 %s247, 1
    %p251 = scmp.eq.s32.totalorder %s24, 1
    %p252 = scmp.ne.s32.totalorder %s247, %s249
    %p253 = scmp.eq.s32.totalorder %s24, 0
    %p254 = por %p252, %p253
    %p255 = scmp.ne.s32.totalorder %s247, %s249
    %p256 = scmp.eq.s32.totalorder %s29, 1
    %p257 = por %p255, %p256
    %p258 = scmp.ne.s32.totalorder %s249, %s250
    %p259 = scmp.eq.s32.totalorder %s29, 0
    %p260 = por %p258, %p259
    %p261 = scmp.ne.s32.totalorder %s249, %s250
    %p262 = scmp.eq.s32.totalorder %s30, 1
    %p263 = por %p261, %p262
    %p265 = scmp.ne.s32.totalorder %s250, %s264
    %p266 = scmp.eq.s32.totalorder %s30, 0
    %p267 = por %p265, %p266
    %s269 = sadd.s32 %s268, 1
    %p272 = scmp.eq.s32.totalorder %s24, 1
    %p273 = scmp.ne.s32.totalorder %s268, %s270
    %p274 = scmp.eq.s32.totalorder %s24, 0
    %p275 = por %p273, %p274
    %p276 = scmp.ne.s32.totalorder %s268, %s270
    %p277 = scmp.eq.s32.totalorder %s29, 1
    %p278 = por %p276, %p277
    %p279 = scmp.ne.s32.totalorder %s270, %s271
    %p280 = scmp.eq.s32.totalorder %s29, 0
    %p281 = por %p279, %p280
    %p282 = scmp.ne.s32.totalorder %s270, %s271
    %p283 = scmp.eq.s32.totalorder %s30, 1
    %p284 = por %p282, %p283
    %p286 = scmp.ne.s32.totalorder %s271, %s285
    %p287 = scmp.eq.s32.totalorder %s30, 0
    %p288 = por %p286, %p287
    %s290 = sadd.s32 %s289, 1
    %p293 = scmp.eq.s32.totalorder %s24, 1
    %p294 = scmp.ne.s32.totalorder %s289, %s291
    %p295 = scmp.eq.s32.totalorder %s24, 0
    %p296 = por %p294, %p295
    %p297 = scmp.ne.s32.totalorder %s289, %s291
    %p298 = scmp.eq.s32.totalorder %s29, 1
    %p299 = por %p297, %p298
    %p300 = scmp.ne.s32.totalorder %s291, %s292
    %p301 = scmp.eq.s32.totalorder %s29, 0
    %p302 = por %p300, %p301
    %p303 = scmp.ne.s32.totalorder %s291, %s292
    %p304 = scmp.eq.s32.totalorder %s30, 1
    %p305 = por %p303, %p304
    %p307 = scmp.ne.s32.totalorder %s292, %s306
    %p308 = scmp.eq.s32.totalorder %s30, 0
    %p309 = por %p307, %p308
    %s311 = sadd.s32 %s310, 1
    %p314 = scmp.eq.s32.totalorder %s24, 1
    %p315 = scmp.ne.s32.totalorder %s310, %s312
    %p316 = scmp.eq.s32.totalorder %s24, 0
    %p317 = por %p315, %p316
    %p318 = scmp.ne.s32.totalorder %s310, %s312
    %p319 = scmp.eq.s32.totalorder %s29, 1
    %p320 = por %p318, %p319
    %p321 = scmp.ne.s32.totalorder %s312, %s313
    %p322 = scmp.eq.s32.totalorder %s29, 0
    %p323 = por %p321, %p322
    %p324 = scmp.ne.s32.totalorder %s312, %s313
    %p325 = scmp.eq.s32.totalorder %s30, 1
    %p326 = por %p324, %p325
    %p328 = scmp.ne.s32.totalorder %s313, %s327
    %p329 = scmp.eq.s32.totalorder %s30, 0
    %p330 = por %p328, %p329
    %s332 = sadd.s32 %s331, 1
    %p335 = scmp.eq.s32.totalorder %s24, 1
    %p336 = scmp.ne.s32.totalorder %s331, %s333
    %p337 = scmp.eq.s32.totalorder %s24, 0
    %p338 = por %p336, %p337
    %p339 = scmp.ne.s32.totalorder %s331, %s333
    %p340 = scmp.eq.s32.totalorder %s29, 1
    %p341 = por %p339, %p340
    %p342 = scmp.ne.s32.totalorder %s333, %s334
    %p343 = scmp.eq.s32.totalorder %s29, 0
    %p344 = por %p342, %p343
    %p345 = scmp.ne.s32.totalorder %s333, %s334
    %p346 = scmp.eq.s32.totalorder %s30, 1
    %p347 = por %p345, %p346
    %p349 = scmp.ne.s32.totalorder %s334, %s348
    %p350 = scmp.eq.s32.totalorder %s30, 0
    %p351 = por %p349, %p350
    %s353 = sadd.s32 %s352, 1
    %p356 = scmp.eq.s32.totalorder %s24, 1
    %p357 = scmp.ne.s32.totalorder %s352, %s354
    %p358 = scmp.eq.s32.totalorder %s24, 0
    %p359 = por %p357, %p358
    %p360 = scmp.ne.s32.totalorder %s352, %s354
    %p361 = scmp.eq.s32.totalorder %s29, 1
    %p362 = por %p360, %p361
    %p363 = scmp.ne.s32.totalorder %s354, %s355
    %p364 = scmp.eq.s32.totalorder %s29, 0
    %p365 = por %p363, %p364
    %p366 = scmp.ne.s32.totalorder %s354, %s355
    %p367 = scmp.eq.s32.totalorder %s30, 1
    %p368 = por %p366, %p367
    %p370 = scmp.ne.s32.totalorder %s355, %s369
    %p371 = scmp.eq.s32.totalorder %s30, 0
    %p372 = por %p370, %p371
    %s374 = sadd.s32 %s373, 1
    %p377 = scmp.eq.s32.totalorder %s24, 1
    %p378 = scmp.ne.s32.totalorder %s373, %s375
    %p379 = scmp.eq.s32.totalorder %s24, 0
    %p380 = por %p378, %p379
    %p381 = scmp.ne.s32.totalorder %s373, %s375
    %p382 = scmp.eq.s32.totalorder %s29, 1
    %p383 = por %p381, %p382
    %p384 = scmp.ne.s32.totalorder %s375, %s376
    %p385 = scmp.eq.s32.totalorder %s29, 0
    %p386 = por %p384, %p385
    %p387 = scmp.ne.s32.totalorder %s375, %s376
    %p388 = scmp.eq.s32.totalorder %s30, 1
    %p389 = por %p387, %p388
    %p391 = scmp.ne.s32.totalorder %s376, %s390
    %p392 = scmp.eq.s32.totalorder %s30, 0
    %p393 = por %p391, %p392
    %s395 = sadd.s32 %s394, 1
    %p398 = scmp.eq.s32.totalorder %s24, 1
    %p399 = scmp.ne.s32.totalorder %s394, %s396
    %p400 = scmp.eq.s32.totalorder %s24, 0
    %p401 = por %p399, %p400
    %p402 = scmp.ne.s32.totalorder %s394, %s396
    %p403 = scmp.eq.s32.totalorder %s29, 1
    %p404 = por %p402, %p403
    %p405 = scmp.ne.s32.totalorder %s396, %s397
    %p406 = scmp.eq.s32.totalorder %s29, 0
    %p407 = por %p405, %p406
    %p408 = scmp.ne.s32.totalorder %s396, %s397
    %p409 = scmp.eq.s32.totalorder %s30, 1
    %p410 = por %p408, %p409
    %p412 = scmp.ne.s32.totalorder %s397, %s411
    %p413 = scmp.eq.s32.totalorder %s30, 0
    %p414 = por %p412, %p413
    %s415 = ssub.s32 %s24, %s31
    %p416 = scmp.eq.s32.totalorder %s415, 0
    %s418 = sadd.s32 %s417, 1
    %s419 = scalar_select %p416, %s417, %s418
    %p422 = pneg %p416
    %p423 = scmp.eq.s32.totalorder %s24, 1
    %p424 = por %p422, %p423
    %p425 = scmp.ne.s32.totalorder %s417, %s420
    %p426 = scmp.eq.s32.totalorder %s24, 0
    %p427 = por %p425, %p426
    %p428 = scmp.ne.s32.totalorder %s417, %s420
    %p429 = scmp.eq.s32.totalorder %s29, 1
    %p430 = por %p428, %p429
    %p431 = scmp.ne.s32.totalorder %s420, %s421
    %p432 = scmp.eq.s32.totalorder %s29, 0
    %p433 = por %p431, %p432
    %p434 = scmp.ne.s32.totalorder %s420, %s421
    %p435 = scmp.eq.s32.totalorder %s30, 1
    %p436 = por %p434, %p435
    %p438 = scmp.ne.s32.totalorder %s421, %s437
    %p439 = scmp.eq.s32.totalorder %s30, 0
    %p440 = por %p438, %p439
    %p441 = scmp.le.s32.totalorder 1, %s24
    %p442 = scmp.lt.s32.totalorder %s24, 3
    %p443 = pnand %p441, %p442
    %p444 = pneg %p443
    // Predicated region
    $region9: #{forward.1} parent=5 // pred_check
      _
    $region10: #{forward.1} parent=5 // pred_check_branch
      %446 = sbr.rel (%p443) target = $region12
    $region11: #{forward.1} parent=5 // pred_region
      %s447 = ssub.s32 %s24, 1
      // Predicated region
      $region13: #{forward.1} parent=11 // pred_check
        %p448 = pneg %p71
      $region14: #{forward.1} parent=11 // pred_check_branch
        %450 = sbr.rel (%p448) target = $region16
      $region15: #{forward.1} parent=11 // pred_region
        _
      $region16: #{forward.1} parent=11 // pred_fallthru
        _
      // Predicated region
      $region17: #{forward.1} parent=11 // pred_check
        %p451 = pneg %p92
      $region18: #{forward.1} parent=11 // pred_check_branch
        %453 = sbr.rel (%p451) target = $region20
      $region19: #{forward.1} parent=11 // pred_region
        _
      $region20: #{forward.1} parent=11 // pred_fallthru
        _
      // Predicated region
      $region21: #{forward.1} parent=11 // pred_check
        %p454 = pneg %p113
      $region22: #{forward.1} parent=11 // pred_check_branch
        %456 = sbr.rel (%p454) target = $region24
      $region23: #{forward.1} parent=11 // pred_region
        _
      $region24: #{forward.1} parent=11 // pred_fallthru
        _
      // Predicated region
      $region25: #{forward.1} parent=11 // pred_check
        %p457 = pneg %p134
      $region26: #{forward.1} parent=11 // pred_check_branch
        %459 = sbr.rel (%p457) target = $region28
      $region27: #{forward.1} parent=11 // pred_region
        _
      $region28: #{forward.1} parent=11 // pred_fallthru
        _
      // Predicated region
      $region29: #{forward.1} parent=11 // pred_check
        %p460 = pneg %p155
      $region30: #{forward.1} parent=11 // pred_check_branch
        %462 = sbr.rel (%p460) target = $region32
      $region31: #{forward.1} parent=11 // pred_region
        _
      $region32: #{forward.1} parent=11 // pred_fallthru
        _
      // Predicated region
      $region33: #{forward.1} parent=11 // pred_check
        %p463 = pneg %p176
      $region34: #{forward.1} parent=11 // pred_check_branch
        %465 = sbr.rel (%p463) target = $region36
      $region35: #{forward.1} parent=11 // pred_region
        _
      $region36: #{forward.1} parent=11 // pred_fallthru
        _
      // Predicated region
      $region37: #{forward.1} parent=11 // pred_check
        %p466 = pneg %p197
      $region38: #{forward.1} parent=11 // pred_check_branch
        %468 = sbr.rel (%p466) target = $region40
      $region39: #{forward.1} parent=11 // pred_region
        _
      $region40: #{forward.1} parent=11 // pred_fallthru
        _
      // Predicated region
      $region41: #{forward.1} parent=11 // pred_check
        %p469 = pneg %p218
      $region42: #{forward.1} parent=11 // pred_check_branch
        %471 = sbr.rel (%p469) target = $region44
      $region43: #{forward.1} parent=11 // pred_region
        _
      $region44: #{forward.1} parent=11 // pred_fallthru
        _
      // Predicated region
      $region45: #{forward.1} parent=11 // pred_check
        %p472 = pneg %p239
      $region46: #{forward.1} parent=11 // pred_check_branch
        %474 = sbr.rel (%p472) target = $region48
      $region47: #{forward.1} parent=11 // pred_region
        _
      $region48: #{forward.1} parent=11 // pred_fallthru
        _
      // Predicated region
      $region49: #{forward.1} parent=11 // pred_check
        %p475 = pneg %p260
      $region50: #{forward.1} parent=11 // pred_check_branch
        %477 = sbr.rel (%p475) target = $region52
      $region51: #{forward.1} parent=11 // pred_region
        _
      $region52: #{forward.1} parent=11 // pred_fallthru
        _
      // Predicated region
      $region53: #{forward.1} parent=11 // pred_check
        %p478 = pneg %p281
      $region54: #{forward.1} parent=11 // pred_check_branch
        %480 = sbr.rel (%p478) target = $region56
      $region55: #{forward.1} parent=11 // pred_region
        _
      $region56: #{forward.1} parent=11 // pred_fallthru
        _
      // Predicated region
      $region57: #{forward.1} parent=11 // pred_check
        %p481 = pneg %p302
      $region58: #{forward.1} parent=11 // pred_check_branch
        %483 = sbr.rel (%p481) target = $region60
      $region59: #{forward.1} parent=11 // pred_region
        _
      $region60: #{forward.1} parent=11 // pred_fallthru
        _
      // Predicated region
      $region61: #{forward.1} parent=11 // pred_check
        %p484 = pneg %p323
      $region62: #{forward.1} parent=11 // pred_check_branch
        %486 = sbr.rel (%p484) target = $region64
      $region63: #{forward.1} parent=11 // pred_region
        _
      $region64: #{forward.1} parent=11 // pred_fallthru
        _
      // Predicated region
      $region65: #{forward.1} parent=11 // pred_check
        %p487 = pneg %p344
      $region66: #{forward.1} parent=11 // pred_check_branch
        %489 = sbr.rel (%p487) target = $region68
      $region67: #{forward.1} parent=11 // pred_region
        _
      $region68: #{forward.1} parent=11 // pred_fallthru
        _
      // Predicated region
      $region69: #{forward.1} parent=11 // pred_check
        %p490 = pneg %p365
      $region70: #{forward.1} parent=11 // pred_check_branch
        %492 = sbr.rel (%p490) target = $region72
      $region71: #{forward.1} parent=11 // pred_region
        _
      $region72: #{forward.1} parent=11 // pred_fallthru
        _
      // Predicated region
      $region73: #{forward.1} parent=11 // pred_check
        %p493 = pneg %p386
      $region74: #{forward.1} parent=11 // pred_check_branch
        %495 = sbr.rel (%p493) target = $region76
      $region75: #{forward.1} parent=11 // pred_region
        _
      $region76: #{forward.1} parent=11 // pred_fallthru
        _
      // Predicated region
      $region77: #{forward.1} parent=11 // pred_check
        %p496 = pneg %p407
      $region78: #{forward.1} parent=11 // pred_check_branch
        %498 = sbr.rel (%p496) target = $region80
      $region79: #{forward.1} parent=11 // pred_region
        _
      $region80: #{forward.1} parent=11 // pred_fallthru
        _
    $region12: #{forward.1} parent=5 // pred_fallthru
      _
    %p499 = scmp.lt.s32.totalorder %s24, 2
    // Predicated region
    $region81: #{forward.1} parent=5 // pred_check
      %p500 = pneg %p499
    $region82: #{forward.1} parent=5 // pred_check_branch
      %502 = sbr.rel (%p500) target = $region84
    $region83: #{forward.1} parent=5 // pred_region
      // Predicated region
      $region85: #{forward.1} parent=83 // pred_check
        %p503 = pneg %p44
      $region86: #{forward.1} parent=83 // pred_check_branch
        %505 = sbr.rel (%p503) target = $region88
      $region87: #{forward.1} parent=83 // pred_region
        %p506 = scmp.lt.s32.totalorder %s24, 1
        %s507 = scalar_select %p506, %s24, 1
        %s508 = smul.addr %s507, 32
        %s509 = smul.addr %s508, 8
        %s510 = scalar_lea.vmem %s0, %s509
      $region88: #{forward.1} parent=83 // pred_fallthru
        _
    $region84: #{forward.1} parent=5 // pred_fallthru
      _
    %p511 = scmp.le.s32.totalorder 1, %s24
    %p512 = scmp.lt.s32.totalorder %s24, 3
    %p513 = pnand %p511, %p512
    %p514 = pneg %p513
    // Predicated region
    $region89: #{forward.1} parent=5 // pred_check
      _
    $region90: #{forward.1} parent=5 // pred_check_branch
      %516 = sbr.rel (%p513) target = $region92
    $region91: #{forward.1} parent=5 // pred_region
      %s517 = ssub.s32 %s24, 1
      %p518 = scmp.lt.s32.totalorder %s29, 1
      %s519 = scalar_select %p518, %s29, 1
      %s520 = smul.addr %s519, 32
      %s521 = smul.addr %s520, 8
      %s522 = scalar_lea.vmem %s0, %s521
      %p523 = pneg %p50
      %p524 = pneg %p47
      %p525 = pneg %p71
      %p526 = pneg %p68
      %p527 = pneg %p92
      %p528 = pneg %p89
      %p529 = pneg %p113
      %p530 = pneg %p110
      %p531 = pneg %p134
      %p532 = pneg %p131
      %p533 = pneg %p155
      %p534 = pneg %p152
      %p535 = pneg %p176
      %p536 = pneg %p173
      %p537 = pneg %p197
      %p538 = pneg %p194
      %p539 = pneg %p218
      %p540 = pneg %p215
      %p541 = pneg %p239
      %p542 = pneg %p236
      %p543 = pneg %p260
      %p544 = pneg %p257
      %p545 = pneg %p281
      %p546 = pneg %p278
      %p547 = pneg %p302
      %p548 = pneg %p299
      %p549 = pneg %p323
      %p550 = pneg %p320
      %p551 = pneg %p344
      %p552 = pneg %p341
      %p553 = pneg %p365
      %p554 = pneg %p362
      %p555 = pneg %p386
      %p556 = pneg %p383
      %p557 = pneg %p407
      %p558 = pneg %p404
      %p559 = pneg %p433
      %p560 = pneg %p430
      %p561 = scmp.lt.s32.totalorder %s29, 1
      %s562 = scalar_select %p561, %s29, 1
      %s563 = smul.addr %s562, 3
      %s564 = scalar_lea.vmem %s18, %s563
      %p565 = scmp.lt.s32.totalorder %s29, 1
      %s566 = scalar_select %p565, %s29, 1
      %s567 = smul.addr %s566, 32
      %s568 = smul.addr %s567, 8
      %s569 = scalar_lea.vmem %s0, %s568
      %p570 = scmp.lt.s32.totalorder %s29, 1
      %s571 = scalar_select %p570, %s29, 1
      %s572 = smul.addr %s571, 3
      %s573 = scalar_lea.vmem %s18, %s572
      %v575 = vld [vmem:[%s569] sm:$0xff]
      %v576 = vld [vmem:[%s569 + $0x8] sm:$0xff]
      %v577 = vld [vmem:[%s569 + $0x10] sm:$0xff]
      %v578 = vld [vmem:[%s569 + $0x18] sm:$0xff]
      %v579 = vld [vmem:[%s569 + $0x20] sm:$0xff]
      %v580 = vld [vmem:[%s569 + $0x28] sm:$0xff]
      %v581 = vld [vmem:[%s569 + $0x30] sm:$0xff]
      %v582 = vld [vmem:[%s569 + $0x38] sm:$0xff]
      %v583 = vld [vmem:[%s569 + $0x40] sm:$0xff]
      %v584 = vld [vmem:[%s569 + $0x48] sm:$0xff]
      %v585 = vld [vmem:[%s569 + $0x50] sm:$0xff]
      %v586 = vld [vmem:[%s569 + $0x58] sm:$0xff]
      %v587 = vld [vmem:[%s569 + $0x60] sm:$0xff]
      %v588 = vld [vmem:[%s569 + $0x68] sm:$0xff]
      %v589 = vld [vmem:[%s569 + $0x70] sm:$0xff]
      %v590 = vld [vmem:[%s569 + $0x78] sm:$0xff]
      %v591 = vld [vmem:[%s569 + $0x80] sm:$0xff]
      %v592 = vld [vmem:[%s569 + $0x88] sm:$0xff]
      %v593 = vld [vmem:[%s569 + $0x90] sm:$0xff]
      %v594 = vld [vmem:[%s569 + $0x98] sm:$0xff]
      %v595 = vld [vmem:[%s569 + $0xa0] sm:$0xff]
      %v596 = vld [vmem:[%s569 + $0xa8] sm:$0xff]
      %v597 = vld [vmem:[%s569 + $0xb0] sm:$0xff]
      %v598 = vld [vmem:[%s569 + $0xb8] sm:$0xff]
      %v599 = vld [vmem:[%s569 + $0xc0] sm:$0xff]
      %v600 = vld [vmem:[%s569 + $0xc8] sm:$0xff]
      %v601 = vld [vmem:[%s569 + $0xd0] sm:$0xff]
      %v602 = vld [vmem:[%s569 + $0xd8] sm:$0xff]
      %v603 = vld [vmem:[%s569 + $0xe0] sm:$0xff]
      %v604 = vld [vmem:[%s569 + $0xe8] sm:$0xff]
      %v605 = vld [vmem:[%s569 + $0xf0] sm:$0xff]
      %v606 = vld [vmem:[%s569 + $0xf8] sm:$0xff]
      %v607 = vld [vmem:[%s1] sm:$0xf]
      %v608 = vld [vmem:[%s1 + $0x4] sm:$0xf]
      %v609 = vld [vmem:[%s1 + $0x8] sm:$0xf]
      %v610 = vld [vmem:[%s1 + $0xc] sm:$0x3]
      %vm643 = vcmask 1040384
      %v644 = vrot.slane %v575, 7
      %v645 = vrot.slane %v576, 7
      %v646 = vsel %vm643, %v644, %v645
      %v647 = vrot.slane %v577, 7
      %v648 = vrot.slane %v578, 7
      %v649 = vsel %vm643, %v647, %v648
      %v650 = vrot.slane %v579, 7
      %v651 = vrot.slane %v580, 7
      %v652 = vsel %vm643, %v650, %v651
      %v653 = vrot.slane %v581, 7
      %v654 = vrot.slane %v582, 7
      %v655 = vsel %vm643, %v653, %v654
      %v656 = vrot.slane %v583, 7
      %v657 = vrot.slane %v584, 7
      %v658 = vsel %vm643, %v656, %v657
      %v659 = vrot.slane %v585, 7
      %v660 = vrot.slane %v586, 7
      %v661 = vsel %vm643, %v659, %v660
      %v662 = vrot.slane %v587, 7
      %v663 = vrot.slane %v588, 7
      %v664 = vsel %vm643, %v662, %v663
      %v665 = vrot.slane %v589, 7
      %v666 = vrot.slane %v590, 7
      %v667 = vsel %vm643, %v665, %v666
      %v668 = vrot.slane %v591, 7
      %v669 = vrot.slane %v592, 7
      %v670 = vsel %vm643, %v668, %v669
      %v671 = vrot.slane %v593, 7
      %v672 = vrot.slane %v594, 7
      %v673 = vsel %vm643, %v671, %v672
      %v674 = vrot.slane %v595, 7
      %v675 = vrot.slane %v596, 7
      %v676 = vsel %vm643, %v674, %v675
      %v677 = vrot.slane %v597, 7
      %v678 = vrot.slane %v598, 7
      %v679 = vsel %vm643, %v677, %v678
      %v680 = vrot.slane %v599, 7
      %v681 = vrot.slane %v600, 7
      %v682 = vsel %vm643, %v680, %v681
      %v683 = vrot.slane %v601, 7
      %v684 = vrot.slane %v602, 7
      %v685 = vsel %vm643, %v683, %v684
      %v686 = vrot.slane %v603, 7
      %v687 = vrot.slane %v604, 7
      %v688 = vsel %vm643, %v686, %v687
      %v689 = vrot.slane %v605, 7
      %v690 = vrot.slane %v606, 7
      %v691 = vsel %vm643, %v689, %v690
      %v739 = vsel %vm643, 0.0, %v644
      %v740 = vsel %vm643, 0.0, %v647
      %v741 = vsel %vm643, 0.0, %v650
      %v742 = vsel %vm643, 0.0, %v653
      %v743 = vsel %vm643, 0.0, %v656
      %v744 = vsel %vm643, 0.0, %v659
      %v745 = vsel %vm643, 0.0, %v662
      %v746 = vsel %vm643, 0.0, %v665
      %v747 = vsel %vm643, 0.0, %v668
      %v748 = vsel %vm643, 0.0, %v671
      %v749 = vsel %vm643, 0.0, %v674
      %v750 = vsel %vm643, 0.0, %v677
      %v751 = vsel %vm643, 0.0, %v680
      %v752 = vsel %vm643, 0.0, %v683
      %v753 = vsel %vm643, 0.0, %v686
      %v754 = vsel %vm643, 0.0, %v689
      %v755 = vsel %vm643, %v645, 0.0
      %v756 = vsel %vm643, %v648, 0.0
      %v757 = vsel %vm643, %v651, 0.0
      %v758 = vsel %vm643, %v654, 0.0
      %v759 = vsel %vm643, %v657, 0.0
      %v760 = vsel %vm643, %v660, 0.0
      %v761 = vsel %vm643, %v663, 0.0
      %v762 = vsel %vm643, %v666, 0.0
      %v763 = vsel %vm643, %v669, 0.0
      %v764 = vsel %vm643, %v672, 0.0
      %v765 = vsel %vm643, %v675, 0.0
      %v766 = vsel %vm643, %v678, 0.0
      %v767 = vsel %vm643, %v681, 0.0
      %v768 = vsel %vm643, %v684, 0.0
      %v769 = vsel %vm643, %v687, 0.0
      %v770 = vsel %vm643, %v690, 0.0
      %vm802 = vcmask 1046528
      %v803 = vrot.slane 0.0, 1
      %v804 = vsel %vm802, %v803, %v803
      %v805 = vrot.slane %v739, 1
      %v806 = vrot.slane %v646, 1
      %v807 = vsel %vm802, %v805, %v806
      %v808 = vrot.slane %v755, 1
      %v809 = vsel %vm802, %v806, %v808
      %v810 = vrot.slane %v740, 1
      %v811 = vrot.slane %v649, 1
      %v812 = vsel %vm802, %v810, %v811
      %v813 = vrot.slane %v756, 1
      %v814 = vsel %vm802, %v811, %v813
      %v815 = vrot.slane %v741, 1
      %v816 = vrot.slane %v652, 1
      %v817 = vsel %vm802, %v815, %v816
      %v818 = vrot.slane %v757, 1
      %v819 = vsel %vm802, %v816, %v818
      %v820 = vrot.slane %v742, 1
      %v821 = vrot.slane %v655, 1
      %v822 = vsel %vm802, %v820, %v821
      %v823 = vrot.slane %v758, 1
      %v824 = vsel %vm802, %v821, %v823
      %v825 = vrot.slane %v743, 1
      %v826 = vrot.slane %v658, 1
      %v827 = vsel %vm802, %v825, %v826
      %v828 = vrot.slane %v759, 1
      %v829 = vsel %vm802, %v826, %v828
      %v830 = vrot.slane %v744, 1
      %v831 = vrot.slane %v661, 1
      %v832 = vsel %vm802, %v830, %v831
      %v833 = vrot.slane %v760, 1
      %v834 = vsel %vm802, %v831, %v833
      %v835 = vrot.slane %v745, 1
      %v836 = vrot.slane %v664, 1
      %v837 = vsel %vm802, %v835, %v836
      %v838 = vrot.slane %v761, 1
      %v839 = vsel %vm802, %v836, %v838
      %v840 = vrot.slane %v746, 1
      %v841 = vrot.slane %v667, 1
      %v842 = vsel %vm802, %v840, %v841
      %v843 = vrot.slane %v762, 1
      %v844 = vsel %vm802, %v841, %v843
      %v845 = vrot.slane %v747, 1
      %v846 = vrot.slane %v670, 1
      %v847 = vsel %vm802, %v845, %v846
      %v848 = vrot.slane %v763, 1
      %v849 = vsel %vm802, %v846, %v848
      %v850 = vrot.slane %v748, 1
      %v851 = vrot.slane %v673, 1
      %v852 = vsel %vm802, %v850, %v851
      %v853 = vrot.slane %v764, 1
      %v854 = vsel %vm802, %v851, %v853
      %v855 = vrot.slane %v749, 1
      %v856 = vrot.slane %v676, 1
      %v857 = vsel %vm802, %v855, %v856
      %v858 = vrot.slane %v765, 1
      %v859 = vsel %vm802, %v856, %v858
      %v860 = vrot.slane %v750, 1
      %v861 = vrot.slane %v679, 1
      %v862 = vsel %vm802, %v860, %v861
      %v863 = vrot.slane %v766, 1
      %v864 = vsel %vm802, %v861, %v863
      %v865 = vrot.slane %v751, 1
      %v866 = vrot.slane %v682, 1
      %v867 = vsel %vm802, %v865, %v866
      %v868 = vrot.slane %v767, 1
      %v869 = vsel %vm802, %v866, %v868
      %v870 = vrot.slane %v752, 1
      %v871 = vrot.slane %v685, 1
      %v872 = vsel %vm802, %v870, %v871
      %v873 = vrot.slane %v768, 1
      %v874 = vsel %vm802, %v871, %v873
      %v875 = vrot.slane %v753, 1
      %v876 = vrot.slane %v688, 1
      %v877 = vsel %vm802, %v875, %v876
      %v878 = vrot.slane %v769, 1
      %v879 = vsel %vm802, %v876, %v878
      %880 = vrot.lane.b32.xlu0 %v804, 3
      %v881 = vpop.permute.xlu0 %880
      %882 = vrot.lane.b32.xlu0 %v807, 3
      %v883 = vpop.permute.xlu0 %882
      %884 = vrot.lane.b32.xlu0 %v809, 3
      %v885 = vpop.permute.xlu0 %884
      %886 = vrot.lane.b32.xlu0 %v812, 3
      %v887 = vpop.permute.xlu0 %886
      %888 = vrot.lane.b32.xlu0 %v814, 3
      %v889 = vpop.permute.xlu0 %888
      %890 = vrot.lane.b32.xlu0 %v817, 3
      %v891 = vpop.permute.xlu0 %890
      %892 = vrot.lane.b32.xlu0 %v819, 3
      %v893 = vpop.permute.xlu0 %892
      %894 = vrot.lane.b32.xlu0 %v822, 3
      %v895 = vpop.permute.xlu0 %894
      %896 = vrot.lane.b32.xlu0 %v824, 3
      %v897 = vpop.permute.xlu0 %896
      %898 = vrot.lane.b32.xlu0 %v827, 3
      %v899 = vpop.permute.xlu0 %898
      %900 = vrot.lane.b32.xlu0 %v829, 3
      %v901 = vpop.permute.xlu0 %900
      %902 = vrot.lane.b32.xlu0 %v832, 3
      %v903 = vpop.permute.xlu0 %902
      %904 = vrot.lane.b32.xlu0 %v834, 3
      %v905 = vpop.permute.xlu0 %904
      %906 = vrot.lane.b32.xlu0 %v837, 3
      %v907 = vpop.permute.xlu0 %906
      %908 = vrot.lane.b32.xlu0 %v839, 3
      %v909 = vpop.permute.xlu0 %908
      %910 = vrot.lane.b32.xlu0 %v842, 3
      %v911 = vpop.permute.xlu0 %910
      %912 = vrot.lane.b32.xlu0 %v844, 3
      %v913 = vpop.permute.xlu0 %912
      %914 = vrot.lane.b32.xlu0 %v847, 3
      %v915 = vpop.permute.xlu0 %914
      %916 = vrot.lane.b32.xlu0 %v849, 3
      %v917 = vpop.permute.xlu0 %916
      %918 = vrot.lane.b32.xlu0 %v852, 3
      %v919 = vpop.permute.xlu0 %918
      %920 = vrot.lane.b32.xlu0 %v854, 3
      %v921 = vpop.permute.xlu0 %920
      %922 = vrot.lane.b32.xlu0 %v857, 3
      %v923 = vpop.permute.xlu0 %922
      %924 = vrot.lane.b32.xlu0 %v859, 3
      %v925 = vpop.permute.xlu0 %924
      %926 = vrot.lane.b32.xlu0 %v862, 3
      %v927 = vpop.permute.xlu0 %926
      %928 = vrot.lane.b32.xlu0 %v864, 3
      %v929 = vpop.permute.xlu0 %928
      %930 = vrot.lane.b32.xlu0 %v867, 3
      %v931 = vpop.permute.xlu0 %930
      %932 = vrot.lane.b32.xlu0 %v869, 3
      %v933 = vpop.permute.xlu0 %932
      %934 = vrot.lane.b32.xlu0 %v872, 3
      %v935 = vpop.permute.xlu0 %934
      %936 = vrot.lane.b32.xlu0 %v874, 3
      %v937 = vpop.permute.xlu0 %936
      %938 = vrot.lane.b32.xlu0 %v877, 3
      %v939 = vpop.permute.xlu0 %938
      %940 = vrot.lane.b32.xlu0 %v879, 3
      %v941 = vpop.permute.xlu0 %940
      %vm973 = vcmask 1045504
      %v974 = vrot.slane 0.0, 2
      %v975 = vsel %vm973, %v974, %v974
      %v976 = vrot.slane %v739, 2
      %v977 = vrot.slane %v646, 2
      %v978 = vsel %vm973, %v976, %v977
      %v979 = vrot.slane %v755, 2
      %v980 = vsel %vm973, %v977, %v979
      %v981 = vrot.slane %v740, 2
      %v982 = vrot.slane %v649, 2
      %v983 = vsel %vm973, %v981, %v982
      %v984 = vrot.slane %v756, 2
      %v985 = vsel %vm973, %v982, %v984
      %v986 = vrot.slane %v741, 2
      %v987 = vrot.slane %v652, 2
      %v988 = vsel %vm973, %v986, %v987
      %v989 = vrot.slane %v757, 2
      %v990 = vsel %vm973, %v987, %v989
      %v991 = vrot.slane %v742, 2
      %v992 = vrot.slane %v655, 2
      %v993 = vsel %vm973, %v991, %v992
      %v994 = vrot.slane %v758, 2
      %v995 = vsel %vm973, %v992, %v994
      %v996 = vrot.slane %v743, 2
      %v997 = vrot.slane %v658, 2
      %v998 = vsel %vm973, %v996, %v997
      %v999 = vrot.slane %v759, 2
      %v1000 = vsel %vm973, %v997, %v999
      %v1001 = vrot.slane %v744, 2
      %v1002 = vrot.slane %v661, 2
      %v1003 = vsel %vm973, %v1001, %v1002
      %v1004 = vrot.slane %v760, 2
      %v1005 = vsel %vm973, %v1002, %v1004
      %v1006 = vrot.slane %v745, 2
      %v1007 = vrot.slane %v664, 2
      %v1008 = vsel %vm973, %v1006, %v1007
      %v1009 = vrot.slane %v761, 2
      %v1010 = vsel %vm973, %v1007, %v1009
      %v1011 = vrot.slane %v746, 2
      %v1012 = vrot.slane %v667, 2
      %v1013 = vsel %vm973, %v1011, %v1012
      %v1014 = vrot.slane %v762, 2
      %v1015 = vsel %vm973, %v1012, %v1014
      %v1016 = vrot.slane %v747, 2
      %v1017 = vrot.slane %v670, 2
      %v1018 = vsel %vm973, %v1016, %v1017
      %v1019 = vrot.slane %v763, 2
      %v1020 = vsel %vm973, %v1017, %v1019
      %v1021 = vrot.slane %v748, 2
      %v1022 = vrot.slane %v673, 2
      %v1023 = vsel %vm973, %v1021, %v1022
      %v1024 = vrot.slane %v764, 2
      %v1025 = vsel %vm973, %v1022, %v1024
      %v1026 = vrot.slane %v749, 2
      %v1027 = vrot.slane %v676, 2
      %v1028 = vsel %vm973, %v1026, %v1027
      %v1029 = vrot.slane %v765, 2
      %v1030 = vsel %vm973, %v1027, %v1029
      %v1031 = vrot.slane %v750, 2
      %v1032 = vrot.slane %v679, 2
      %v1033 = vsel %vm973, %v1031, %v1032
      %v1034 = vrot.slane %v766, 2
      %v1035 = vsel %vm973, %v1032, %v1034
      %v1036 = vrot.slane %v751, 2
      %v1037 = vrot.slane %v682, 2
      %v1038 = vsel %vm973, %v1036, %v1037
      %v1039 = vrot.slane %v767, 2
      %v1040 = vsel %vm973, %v1037, %v1039
      %v1041 = vrot.slane %v752, 2
      %v1042 = vrot.slane %v685, 2
      %v1043 = vsel %vm973, %v1041, %v1042
      %v1044 = vrot.slane %v768, 2
      %v1045 = vsel %vm973, %v1042, %v1044
      %v1046 = vrot.slane %v753, 2
      %v1047 = vrot.slane %v688, 2
      %v1048 = vsel %vm973, %v1046, %v1047
      %v1049 = vrot.slane %v769, 2
      %v1050 = vsel %vm973, %v1047, %v1049
      %1051 = vrot.lane.b32.xlu0 %v975, 6
      %v1052 = vpop.permute.xlu0 %1051
      %1053 = vrot.lane.b32.xlu0 %v978, 6
      %v1054 = vpop.permute.xlu0 %1053
      %1055 = vrot.lane.b32.xlu0 %v980, 6
      %v1056 = vpop.permute.xlu0 %1055
      %1057 = vrot.lane.b32.xlu0 %v983, 6
      %v1058 = vpop.permute.xlu0 %1057
      %1059 = vrot.lane.b32.xlu0 %v985, 6
      %v1060 = vpop.permute.xlu0 %1059
      %1061 = vrot.lane.b32.xlu0 %v988, 6
      %v1062 = vpop.permute.xlu0 %1061
      %1063 = vrot.lane.b32.xlu0 %v990, 6
      %v1064 = vpop.permute.xlu0 %1063
      %1065 = vrot.lane.b32.xlu0 %v993, 6
      %v1066 = vpop.permute.xlu0 %1065
      %1067 = vrot.lane.b32.xlu0 %v995, 6
      %v1068 = vpop.permute.xlu0 %1067
      %1069 = vrot.lane.b32.xlu0 %v998, 6
      %v1070 = vpop.permute.xlu0 %1069
      %1071 = vrot.lane.b32.xlu0 %v1000, 6
      %v1072 = vpop.permute.xlu0 %1071
      %1073 = vrot.lane.b32.xlu0 %v1003, 6
      %v1074 = vpop.permute.xlu0 %1073
      %1075 = vrot.lane.b32.xlu0 %v1005, 6
      %v1076 = vpop.permute.xlu0 %1075
      %1077 = vrot.lane.b32.xlu0 %v1008, 6
      %v1078 = vpop.permute.xlu0 %1077
      %1079 = vrot.lane.b32.xlu0 %v1010, 6
      %v1080 = vpop.permute.xlu0 %1079
      %1081 = vrot.lane.b32.xlu0 %v1013, 6
      %v1082 = vpop.permute.xlu0 %1081
      %1083 = vrot.lane.b32.xlu0 %v1015, 6
      %v1084 = vpop.permute.xlu0 %1083
      %1085 = vrot.lane.b32.xlu0 %v1018, 6
      %v1086 = vpop.permute.xlu0 %1085
      %1087 = vrot.lane.b32.xlu0 %v1020, 6
      %v1088 = vpop.permute.xlu0 %1087
      %1089 = vrot.lane.b32.xlu0 %v1023, 6
      %v1090 = vpop.permute.xlu0 %1089
      %1091 = vrot.lane.b32.xlu0 %v1025, 6
      %v1092 = vpop.permute.xlu0 %1091
      %1093 = vrot.lane.b32.xlu0 %v1028, 6
      %v1094 = vpop.permute.xlu0 %1093
      %1095 = vrot.lane.b32.xlu0 %v1030, 6
      %v1096 = vpop.permute.xlu0 %1095
      %1097 = vrot.lane.b32.xlu0 %v1033, 6
      %v1098 = vpop.permute.xlu0 %1097
      %1099 = vrot.lane.b32.xlu0 %v1035, 6
      %v1100 = vpop.permute.xlu0 %1099
      %1101 = vrot.lane.b32.xlu0 %v1038, 6
      %v1102 = vpop.permute.xlu0 %1101
      %1103 = vrot.lane.b32.xlu0 %v1040, 6
      %v1104 = vpop.permute.xlu0 %1103
      %1105 = vrot.lane.b32.xlu0 %v1043, 6
      %v1106 = vpop.permute.xlu0 %1105
      %1107 = vrot.lane.b32.xlu0 %v1045, 6
      %v1108 = vpop.permute.xlu0 %1107
      %1109 = vrot.lane.b32.xlu0 %v1048, 6
      %v1110 = vpop.permute.xlu0 %1109
      %1111 = vrot.lane.b32.xlu0 %v1050, 6
      %v1112 = vpop.permute.xlu0 %1111
      %1145 = vrot.lane.b32.xlu0 %v739, 9
      %v1146 = vpop.permute.xlu0 %1145
      %1147 = vrot.lane.b32.xlu0 %v646, 9
      %v1148 = vpop.permute.xlu0 %1147
      %1149 = vrot.lane.b32.xlu0 %v740, 9
      %v1150 = vpop.permute.xlu0 %1149
      %1151 = vrot.lane.b32.xlu0 %v649, 9
      %v1152 = vpop.permute.xlu0 %1151
      %1153 = vrot.lane.b32.xlu0 %v741, 9
      %v1154 = vpop.permute.xlu0 %1153
      %1155 = vrot.lane.b32.xlu0 %v652, 9
      %v1156 = vpop.permute.xlu0 %1155
      %1157 = vrot.lane.b32.xlu0 %v742, 9
      %v1158 = vpop.permute.xlu0 %1157
      %1159 = vrot.lane.b32.xlu0 %v655, 9
      %v1160 = vpop.permute.xlu0 %1159
      %1161 = vrot.lane.b32.xlu0 %v743, 9
      %v1162 = vpop.permute.xlu0 %1161
      %1163 = vrot.lane.b32.xlu0 %v658, 9
      %v1164 = vpop.permute.xlu0 %1163
      %1165 = vrot.lane.b32.xlu0 %v744, 9
      %v1166 = vpop.permute.xlu0 %1165
      %1167 = vrot.lane.b32.xlu0 %v661, 9
      %v1168 = vpop.permute.xlu0 %1167
      %1169 = vrot.lane.b32.xlu0 %v745, 9
      %v1170 = vpop.permute.xlu0 %1169
      %1171 = vrot.lane.b32.xlu0 %v664, 9
      %v1172 = vpop.permute.xlu0 %1171
      %1173 = vrot.lane.b32.xlu0 %v746, 9
      %v1174 = vpop.permute.xlu0 %1173
      %1175 = vrot.lane.b32.xlu0 %v667, 9
      %v1176 = vpop.permute.xlu0 %1175
      %1177 = vrot.lane.b32.xlu0 %v747, 9
      %v1178 = vpop.permute.xlu0 %1177
      %1179 = vrot.lane.b32.xlu0 %v670, 9
      %v1180 = vpop.permute.xlu0 %1179
      %1181 = vrot.lane.b32.xlu0 %v748, 9
      %v1182 = vpop.permute.xlu0 %1181
      %1183 = vrot.lane.b32.xlu0 %v673, 9
      %v1184 = vpop.permute.xlu0 %1183
      %1185 = vrot.lane.b32.xlu0 %v749, 9
      %v1186 = vpop.permute.xlu0 %1185
      %1187 = vrot.lane.b32.xlu0 %v676, 9
      %v1188 = vpop.permute.xlu0 %1187
      %1189 = vrot.lane.b32.xlu0 %v750, 9
      %v1190 = vpop.permute.xlu0 %1189
      %1191 = vrot.lane.b32.xlu0 %v679, 9
      %v1192 = vpop.permute.xlu0 %1191
      %1193 = vrot.lane.b32.xlu0 %v751, 9
      %v1194 = vpop.permute.xlu0 %1193
      %1195 = vrot.lane.b32.xlu0 %v682, 9
      %v1196 = vpop.permute.xlu0 %1195
      %1197 = vrot.lane.b32.xlu0 %v752, 9
      %v1198 = vpop.permute.xlu0 %1197
      %1199 = vrot.lane.b32.xlu0 %v685, 9
      %v1200 = vpop.permute.xlu0 %1199
      %1201 = vrot.lane.b32.xlu0 %v753, 9
      %v1202 = vpop.permute.xlu0 %1201
      %1203 = vrot.lane.b32.xlu0 %v688, 9
      %v1204 = vpop.permute.xlu0 %1203
      %1205 = vrot.lane.b32.xlu0 %v754, 9
      %v1206 = vpop.permute.xlu0 %1205
      %1207 = vrot.lane.b32.xlu0 %v691, 9
      %v1208 = vpop.permute.xlu0 %1207
      %v1242 = vrot.slane %v754, 1
      %v1243 = vrot.slane %v691, 1
      %v1244 = vsel %vm802, %v1242, %v1243
      %v1245 = vrot.slane %v770, 1
      %v1246 = vsel %vm802, %v1243, %v1245
      %1247 = vrot.lane.b32.xlu0 %v807, 12
      %v1248 = vpop.permute.xlu0 %1247
      %1249 = vrot.lane.b32.xlu0 %v809, 12
      %v1250 = vpop.permute.xlu0 %1249
      %1251 = vrot.lane.b32.xlu0 %v812, 12
      %v1252 = vpop.permute.xlu0 %1251
      %1253 = vrot.lane.b32.xlu0 %v814, 12
      %v1254 = vpop.permute.xlu0 %1253
      %1255 = vrot.lane.b32.xlu0 %v817, 12
      %v1256 = vpop.permute.xlu0 %1255
      %1257 = vrot.lane.b32.xlu0 %v819, 12
      %v1258 = vpop.permute.xlu0 %1257
      %1259 = vrot.lane.b32.xlu0 %v822, 12
      %v1260 = vpop.permute.xlu0 %1259
      %1261 = vrot.lane.b32.xlu0 %v824, 12
      %v1262 = vpop.permute.xlu0 %1261
      %1263 = vrot.lane.b32.xlu0 %v827, 12
      %v1264 = vpop.permute.xlu0 %1263
      %1265 = vrot.lane.b32.xlu0 %v829, 12
      %v1266 = vpop.permute.xlu0 %1265
      %1267 = vrot.lane.b32.xlu0 %v832, 12
      %v1268 = vpop.permute.xlu0 %1267
      %1269 = vrot.lane.b32.xlu0 %v834, 12
      %v1270 = vpop.permute.xlu0 %1269
      %1271 = vrot.lane.b32.xlu0 %v837, 12
      %v1272 = vpop.permute.xlu0 %1271
      %1273 = vrot.lane.b32.xlu0 %v839, 12
      %v1274 = vpop.permute.xlu0 %1273
      %1275 = vrot.lane.b32.xlu0 %v842, 12
      %v1276 = vpop.permute.xlu0 %1275
      %1277 = vrot.lane.b32.xlu0 %v844, 12
      %v1278 = vpop.permute.xlu0 %1277
      %1279 = vrot.lane.b32.xlu0 %v847, 12
      %v1280 = vpop.permute.xlu0 %1279
      %1281 = vrot.lane.b32.xlu0 %v849, 12
      %v1282 = vpop.permute.xlu0 %1281
      %1283 = vrot.lane.b32.xlu0 %v852, 12
      %v1284 = vpop.permute.xlu0 %1283
      %1285 = vrot.lane.b32.xlu0 %v854, 12
      %v1286 = vpop.permute.xlu0 %1285
      %1287 = vrot.lane.b32.xlu0 %v857, 12
      %v1288 = vpop.permute.xlu0 %1287
      %1289 = vrot.lane.b32.xlu0 %v859, 12
      %v1290 = vpop.permute.xlu0 %1289
      %1291 = vrot.lane.b32.xlu0 %v862, 12
      %v1292 = vpop.permute.xlu0 %1291
      %1293 = vrot.lane.b32.xlu0 %v864, 12
      %v1294 = vpop.permute.xlu0 %1293
      %1295 = vrot.lane.b32.xlu0 %v867, 12
      %v1296 = vpop.permute.xlu0 %1295
      %1297 = vrot.lane.b32.xlu0 %v869, 12
      %v1298 = vpop.permute.xlu0 %1297
      %1299 = vrot.lane.b32.xlu0 %v872, 12
      %v1300 = vpop.permute.xlu0 %1299
      %1301 = vrot.lane.b32.xlu0 %v874, 12
      %v1302 = vpop.permute.xlu0 %1301
      %1303 = vrot.lane.b32.xlu0 %v877, 12
      %v1304 = vpop.permute.xlu0 %1303
      %1305 = vrot.lane.b32.xlu0 %v879, 12
      %v1306 = vpop.permute.xlu0 %1305
      %1307 = vrot.lane.b32.xlu0 %v1244, 12
      %v1308 = vpop.permute.xlu0 %1307
      %1309 = vrot.lane.b32.xlu0 %v1246, 12
      %v1310 = vpop.permute.xlu0 %1309
      %v1343 = vrot.slane %v754, 2
      %v1344 = vrot.slane %v691, 2
      %v1345 = vsel %vm973, %v1343, %v1344
      %v1346 = vrot.slane %v770, 2
      %v1347 = vsel %vm973, %v1344, %v1346
      %1348 = vrot.lane.b32.xlu0 %v978, 15
      %v1349 = vpop.permute.xlu0 %1348
      %1350 = vrot.lane.b32.xlu0 %v980, 15
      %v1351 = vpop.permute.xlu0 %1350
      %1352 = vrot.lane.b32.xlu0 %v983, 15
      %v1353 = vpop.permute.xlu0 %1352
      %1354 = vrot.lane.b32.xlu0 %v985, 15
      %v1355 = vpop.permute.xlu0 %1354
      %1356 = vrot.lane.b32.xlu0 %v988, 15
      %v1357 = vpop.permute.xlu0 %1356
      %1358 = vrot.lane.b32.xlu0 %v990, 15
      %v1359 = vpop.permute.xlu0 %1358
      %1360 = vrot.lane.b32.xlu0 %v993, 15
      %v1361 = vpop.permute.xlu0 %1360
      %1362 = vrot.lane.b32.xlu0 %v995, 15
      %v1363 = vpop.permute.xlu0 %1362
      %1364 = vrot.lane.b32.xlu0 %v998, 15
      %v1365 = vpop.permute.xlu0 %1364
      %1366 = vrot.lane.b32.xlu0 %v1000, 15
      %v1367 = vpop.permute.xlu0 %1366
      %1368 = vrot.lane.b32.xlu0 %v1003, 15
      %v1369 = vpop.permute.xlu0 %1368
      %1370 = vrot.lane.b32.xlu0 %v1005, 15
      %v1371 = vpop.permute.xlu0 %1370
      %1372 = vrot.lane.b32.xlu0 %v1008, 15
      %v1373 = vpop.permute.xlu0 %1372
      %1374 = vrot.lane.b32.xlu0 %v1010, 15
      %v1375 = vpop.permute.xlu0 %1374
      %1376 = vrot.lane.b32.xlu0 %v1013, 15
      %v1377 = vpop.permute.xlu0 %1376
      %1378 = vrot.lane.b32.xlu0 %v1015, 15
      %v1379 = vpop.permute.xlu0 %1378
      %1380 = vrot.lane.b32.xlu0 %v1018, 15
      %v1381 = vpop.permute.xlu0 %1380
      %1382 = vrot.lane.b32.xlu0 %v1020, 15
      %v1383 = vpop.permute.xlu0 %1382
      %1384 = vrot.lane.b32.xlu0 %v1023, 15
      %v1385 = vpop.permute.xlu0 %1384
      %1386 = vrot.lane.b32.xlu0 %v1025, 15
      %v1387 = vpop.permute.xlu0 %1386
      %1388 = vrot.lane.b32.xlu0 %v1028, 15
      %v1389 = vpop.permute.xlu0 %1388
      %1390 = vrot.lane.b32.xlu0 %v1030, 15
      %v1391 = vpop.permute.xlu0 %1390
      %1392 = vrot.lane.b32.xlu0 %v1033, 15
      %v1393 = vpop.permute.xlu0 %1392
      %1394 = vrot.lane.b32.xlu0 %v1035, 15
      %v1395 = vpop.permute.xlu0 %1394
      %1396 = vrot.lane.b32.xlu0 %v1038, 15
      %v1397 = vpop.permute.xlu0 %1396
      %1398 = vrot.lane.b32.xlu0 %v1040, 15
      %v1399 = vpop.permute.xlu0 %1398
      %1400 = vrot.lane.b32.xlu0 %v1043, 15
      %v1401 = vpop.permute.xlu0 %1400
      %1402 = vrot.lane.b32.xlu0 %v1045, 15
      %v1403 = vpop.permute.xlu0 %1402
      %1404 = vrot.lane.b32.xlu0 %v1048, 15
      %v1405 = vpop.permute.xlu0 %1404
      %1406 = vrot.lane.b32.xlu0 %v1050, 15
      %v1407 = vpop.permute.xlu0 %1406
      %1408 = vrot.lane.b32.xlu0 %v1345, 15
      %v1409 = vpop.permute.xlu0 %1408
      %1410 = vrot.lane.b32.xlu0 %v1347, 15
      %v1411 = vpop.permute.xlu0 %1410
      %1444 = vrot.lane.b32.xlu0 %v740, 18
      %v1445 = vpop.permute.xlu0 %1444
      %1446 = vrot.lane.b32.xlu0 %v649, 18
      %v1447 = vpop.permute.xlu0 %1446
      %1448 = vrot.lane.b32.xlu0 %v741, 18
      %v1449 = vpop.permute.xlu0 %1448
      %1450 = vrot.lane.b32.xlu0 %v652, 18
      %v1451 = vpop.permute.xlu0 %1450
      %1452 = vrot.lane.b32.xlu0 %v742, 18
      %v1453 = vpop.permute.xlu0 %1452
      %1454 = vrot.lane.b32.xlu0 %v655, 18
      %v1455 = vpop.permute.xlu0 %1454
      %1456 = vrot.lane.b32.xlu0 %v743, 18
      %v1457 = vpop.permute.xlu0 %1456
      %1458 = vrot.lane.b32.xlu0 %v658, 18
      %v1459 = vpop.permute.xlu0 %1458
      %1460 = vrot.lane.b32.xlu0 %v744, 18
      %v1461 = vpop.permute.xlu0 %1460
      %1462 = vrot.lane.b32.xlu0 %v661, 18
      %v1463 = vpop.permute.xlu0 %1462
      %1464 = vrot.lane.b32.xlu0 %v745, 18
      %v1465 = vpop.permute.xlu0 %1464
      %1466 = vrot.lane.b32.xlu0 %v664, 18
      %v1467 = vpop.permute.xlu0 %1466
      %1468 = vrot.lane.b32.xlu0 %v746, 18
      %v1469 = vpop.permute.xlu0 %1468
      %1470 = vrot.lane.b32.xlu0 %v667, 18
      %v1471 = vpop.permute.xlu0 %1470
      %1472 = vrot.lane.b32.xlu0 %v747, 18
      %v1473 = vpop.permute.xlu0 %1472
      %1474 = vrot.lane.b32.xlu0 %v670, 18
      %v1475 = vpop.permute.xlu0 %1474
      %1476 = vrot.lane.b32.xlu0 %v748, 18
      %v1477 = vpop.permute.xlu0 %1476
      %1478 = vrot.lane.b32.xlu0 %v673, 18
      %v1479 = vpop.permute.xlu0 %1478
      %1480 = vrot.lane.b32.xlu0 %v749, 18
      %v1481 = vpop.permute.xlu0 %1480
      %1482 = vrot.lane.b32.xlu0 %v676, 18
      %v1483 = vpop.permute.xlu0 %1482
      %1484 = vrot.lane.b32.xlu0 %v750, 18
      %v1485 = vpop.permute.xlu0 %1484
      %1486 = vrot.lane.b32.xlu0 %v679, 18
      %v1487 = vpop.permute.xlu0 %1486
      %1488 = vrot.lane.b32.xlu0 %v751, 18
      %v1489 = vpop.permute.xlu0 %1488
      %1490 = vrot.lane.b32.xlu0 %v682, 18
      %v1491 = vpop.permute.xlu0 %1490
      %1492 = vrot.lane.b32.xlu0 %v752, 18
      %v1493 = vpop.permute.xlu0 %1492
      %1494 = vrot.lane.b32.xlu0 %v685, 18
      %v1495 = vpop.permute.xlu0 %1494
      %1496 = vrot.lane.b32.xlu0 %v753, 18
      %v1497 = vpop.permute.xlu0 %1496
      %1498 = vrot.lane.b32.xlu0 %v688, 18
      %v1499 = vpop.permute.xlu0 %1498
      %1500 = vrot.lane.b32.xlu0 %v754, 18
      %v1501 = vpop.permute.xlu0 %1500
      %1502 = vrot.lane.b32.xlu0 %v691, 18
      %v1503 = vpop.permute.xlu0 %1502
      %1504 = vrot.lane.b32.xlu0 0.0, 18
      %v1505 = vpop.permute.xlu0 %1504
      %1537 = vrot.lane.b32.xlu0 %v812, 21
      %v1538 = vpop.permute.xlu0 %1537
      %1539 = vrot.lane.b32.xlu0 %v814, 21
      %v1540 = vpop.permute.xlu0 %1539
      %1541 = vrot.lane.b32.xlu0 %v817, 21
      %v1542 = vpop.permute.xlu0 %1541
      %1543 = vrot.lane.b32.xlu0 %v819, 21
      %v1544 = vpop.permute.xlu0 %1543
      %1545 = vrot.lane.b32.xlu0 %v822, 21
      %v1546 = vpop.permute.xlu0 %1545
      %1547 = vrot.lane.b32.xlu0 %v824, 21
      %v1548 = vpop.permute.xlu0 %1547
      %1549 = vrot.lane.b32.xlu0 %v827, 21
      %v1550 = vpop.permute.xlu0 %1549
      %1551 = vrot.lane.b32.xlu0 %v829, 21
      %v1552 = vpop.permute.xlu0 %1551
      %1553 = vrot.lane.b32.xlu0 %v832, 21
      %v1554 = vpop.permute.xlu0 %1553
      %1555 = vrot.lane.b32.xlu0 %v834, 21
      %v1556 = vpop.permute.xlu0 %1555
      %1557 = vrot.lane.b32.xlu0 %v837, 21
      %v1558 = vpop.permute.xlu0 %1557
      %1559 = vrot.lane.b32.xlu0 %v839, 21
      %v1560 = vpop.permute.xlu0 %1559
      %1561 = vrot.lane.b32.xlu0 %v842, 21
      %v1562 = vpop.permute.xlu0 %1561
      %1563 = vrot.lane.b32.xlu0 %v844, 21
      %v1564 = vpop.permute.xlu0 %1563
      %1565 = vrot.lane.b32.xlu0 %v847, 21
      %v1566 = vpop.permute.xlu0 %1565
      %1567 = vrot.lane.b32.xlu0 %v849, 21
      %v1568 = vpop.permute.xlu0 %1567
      %1569 = vrot.lane.b32.xlu0 %v852, 21
      %v1570 = vpop.permute.xlu0 %1569
      %1571 = vrot.lane.b32.xlu0 %v854, 21
      %v1572 = vpop.permute.xlu0 %1571
      %1573 = vrot.lane.b32.xlu0 %v857, 21
      %v1574 = vpop.permute.xlu0 %1573
      %1575 = vrot.lane.b32.xlu0 %v859, 21
      %v1576 = vpop.permute.xlu0 %1575
      %1577 = vrot.lane.b32.xlu0 %v862, 21
      %v1578 = vpop.permute.xlu0 %1577
      %1579 = vrot.lane.b32.xlu0 %v864, 21
      %v1580 = vpop.permute.xlu0 %1579
      %1581 = vrot.lane.b32.xlu0 %v867, 21
      %v1582 = vpop.permute.xlu0 %1581
      %1583 = vrot.lane.b32.xlu0 %v869, 21
      %v1584 = vpop.permute.xlu0 %1583
      %1585 = vrot.lane.b32.xlu0 %v872, 21
      %v1586 = vpop.permute.xlu0 %1585
      %1587 = vrot.lane.b32.xlu0 %v874, 21
      %v1588 = vpop.permute.xlu0 %1587
      %1589 = vrot.lane.b32.xlu0 %v877, 21
      %v1590 = vpop.permute.xlu0 %1589
      %1591 = vrot.lane.b32.xlu0 %v879, 21
      %v1592 = vpop.permute.xlu0 %1591
      %1593 = vrot.lane.b32.xlu0 %v1244, 21
      %v1594 = vpop.permute.xlu0 %1593
      %1595 = vrot.lane.b32.xlu0 %v1246, 21
      %v1596 = vpop.permute.xlu0 %1595
      %1597 = vrot.lane.b32.xlu0 %v804, 21
      %v1598 = vpop.permute.xlu0 %1597
      %1630 = vrot.lane.b32.xlu0 %v983, 24
      %v1631 = vpop.permute.xlu0 %1630
      %1632 = vrot.lane.b32.xlu0 %v985, 24
      %v1633 = vpop.permute.xlu0 %1632
      %1634 = vrot.lane.b32.xlu0 %v988, 24
      %v1635 = vpop.permute.xlu0 %1634
      %1636 = vrot.lane.b32.xlu0 %v990, 24
      %v1637 = vpop.permute.xlu0 %1636
      %1638 = vrot.lane.b32.xlu0 %v993, 24
      %v1639 = vpop.permute.xlu0 %1638
      %1640 = vrot.lane.b32.xlu0 %v995, 24
      %v1641 = vpop.permute.xlu0 %1640
      %1642 = vrot.lane.b32.xlu0 %v998, 24
      %v1643 = vpop.permute.xlu0 %1642
      %1644 = vrot.lane.b32.xlu0 %v1000, 24
      %v1645 = vpop.permute.xlu0 %1644
      %1646 = vrot.lane.b32.xlu0 %v1003, 24
      %v1647 = vpop.permute.xlu0 %1646
      %1648 = vrot.lane.b32.xlu0 %v1005, 24
      %v1649 = vpop.permute.xlu0 %1648
      %1650 = vrot.lane.b32.xlu0 %v1008, 24
      %v1651 = vpop.permute.xlu0 %1650
      %1652 = vrot.lane.b32.xlu0 %v1010, 24
      %v1653 = vpop.permute.xlu0 %1652
      %1654 = vrot.lane.b32.xlu0 %v1013, 24
      %v1655 = vpop.permute.xlu0 %1654
      %1656 = vrot.lane.b32.xlu0 %v1015, 24
      %v1657 = vpop.permute.xlu0 %1656
      %1658 = vrot.lane.b32.xlu0 %v1018, 24
      %v1659 = vpop.permute.xlu0 %1658
      %1660 = vrot.lane.b32.xlu0 %v1020, 24
      %v1661 = vpop.permute.xlu0 %1660
      %1662 = vrot.lane.b32.xlu0 %v1023, 24
      %v1663 = vpop.permute.xlu0 %1662
      %1664 = vrot.lane.b32.xlu0 %v1025, 24
      %v1665 = vpop.permute.xlu0 %1664
      %1666 = vrot.lane.b32.xlu0 %v1028, 24
      %v1667 = vpop.permute.xlu0 %1666
      %1668 = vrot.lane.b32.xlu0 %v1030, 24
      %v1669 = vpop.permute.xlu0 %1668
      %1670 = vrot.lane.b32.xlu0 %v1033, 24
      %v1671 = vpop.permute.xlu0 %1670
      %1672 = vrot.lane.b32.xlu0 %v1035, 24
      %v1673 = vpop.permute.xlu0 %1672
      %1674 = vrot.lane.b32.xlu0 %v1038, 24
      %v1675 = vpop.permute.xlu0 %1674
      %1676 = vrot.lane.b32.xlu0 %v1040, 24
      %v1677 = vpop.permute.xlu0 %1676
      %1678 = vrot.lane.b32.xlu0 %v1043, 24
      %v1679 = vpop.permute.xlu0 %1678
      %1680 = vrot.lane.b32.xlu0 %v1045, 24
      %v1681 = vpop.permute.xlu0 %1680
      %1682 = vrot.lane.b32.xlu0 %v1048, 24
      %v1683 = vpop.permute.xlu0 %1682
      %1684 = vrot.lane.b32.xlu0 %v1050, 24
      %v1685 = vpop.permute.xlu0 %1684
      %1686 = vrot.lane.b32.xlu0 %v1345, 24
      %v1687 = vpop.permute.xlu0 %1686
      %1688 = vrot.lane.b32.xlu0 %v1347, 24
      %v1689 = vpop.permute.xlu0 %1688
      %1690 = vrot.lane.b32.xlu0 %v975, 24
      %v1691 = vpop.permute.xlu0 %1690
      %vm1723 = vcmask 23552
      %v1724 = vsel %vm1723, 0.0, %v881
      %v1725 = vsel %vm1723, %v739, %v883
      %v1726 = vsel %vm1723, %v646, %v885
      %v1727 = vsel %vm1723, %v740, %v887
      %v1728 = vsel %vm1723, %v649, %v889
      %v1729 = vsel %vm1723, %v741, %v891
      %v1730 = vsel %vm1723, %v652, %v893
      %v1731 = vsel %vm1723, %v742, %v895
      %v1732 = vsel %vm1723, %v655, %v897
      %v1733 = vsel %vm1723, %v743, %v899
      %v1734 = vsel %vm1723, %v658, %v901
      %v1735 = vsel %vm1723, %v744, %v903
      %v1736 = vsel %vm1723, %v661, %v905
      %v1737 = vsel %vm1723, %v745, %v907
      %v1738 = vsel %vm1723, %v664, %v909
      %v1739 = vsel %vm1723, %v746, %v911
      %v1740 = vsel %vm1723, %v667, %v913
      %v1741 = vsel %vm1723, %v747, %v915
      %v1742 = vsel %vm1723, %v670, %v917
      %v1743 = vsel %vm1723, %v748, %v919
      %v1744 = vsel %vm1723, %v673, %v921
      %v1745 = vsel %vm1723, %v749, %v923
      %v1746 = vsel %vm1723, %v676, %v925
      %v1747 = vsel %vm1723, %v750, %v927
      %v1748 = vsel %vm1723, %v679, %v929
      %v1749 = vsel %vm1723, %v751, %v931
      %v1750 = vsel %vm1723, %v682, %v933
      %v1751 = vsel %vm1723, %v752, %v935
      %v1752 = vsel %vm1723, %v685, %v937
      %v1753 = vsel %vm1723, %v753, %v939
      %v1754 = vsel %vm1723, %v688, %v941
      %vm1755 = vcmask 48128
      %v1756 = vsel %vm1755, %v1724, %v1052
      %v1757 = vsel %vm1755, %v1725, %v1054
      %v1758 = vsel %vm1755, %v1726, %v1056
      %v1759 = vsel %vm1755, %v1727, %v1058
      %v1760 = vsel %vm1755, %v1728, %v1060
      %v1761 = vsel %vm1755, %v1729, %v1062
      %v1762 = vsel %vm1755, %v1730, %v1064
      %v1763 = vsel %vm1755, %v1731, %v1066
      %v1764 = vsel %vm1755, %v1732, %v1068
      %v1765 = vsel %vm1755, %v1733, %v1070
      %v1766 = vsel %vm1755, %v1734, %v1072
      %v1767 = vsel %vm1755, %v1735, %v1074
      %v1768 = vsel %vm1755, %v1736, %v1076
      %v1769 = vsel %vm1755, %v1737, %v1078
      %v1770 = vsel %vm1755, %v1738, %v1080
      %v1771 = vsel %vm1755, %v1739, %v1082
      %v1772 = vsel %vm1755, %v1740, %v1084
      %v1773 = vsel %vm1755, %v1741, %v1086
      %v1774 = vsel %vm1755, %v1742, %v1088
      %v1775 = vsel %vm1755, %v1743, %v1090
      %v1776 = vsel %vm1755, %v1744, %v1092
      %v1777 = vsel %vm1755, %v1745, %v1094
      %v1778 = vsel %vm1755, %v1746, %v1096
      %v1779 = vsel %vm1755, %v1747, %v1098
      %v1780 = vsel %vm1755, %v1748, %v1100
      %v1781 = vsel %vm1755, %v1749, %v1102
      %v1782 = vsel %vm1755, %v1750, %v1104
      %v1783 = vsel %vm1755, %v1751, %v1106
      %v1784 = vsel %vm1755, %v1752, %v1108
      %v1785 = vsel %vm1755, %v1753, %v1110
      %v1786 = vsel %vm1755, %v1754, %v1112
      %vm1787 = vcmask 72704
      %v1788 = vsel %vm1787, %v1756, %v1146
      %v1789 = vsel %vm1787, %v1756, %v1148
      %v1790 = vsel %vm1787, %v1757, %v1150
      %v1791 = vsel %vm1787, %v1758, %v1152
      %v1792 = vsel %vm1787, %v1759, %v1154
      %v1793 = vsel %vm1787, %v1760, %v1156
      %v1794 = vsel %vm1787, %v1761, %v1158
      %v1795 = vsel %vm1787, %v1762, %v1160
      %v1796 = vsel %vm1787, %v1763, %v1162
      %v1797 = vsel %vm1787, %v1764, %v1164
      %v1798 = vsel %vm1787, %v1765, %v1166
      %v1799 = vsel %vm1787, %v1766, %v1168
      %v1800 = vsel %vm1787, %v1767, %v1170
      %v1801 = vsel %vm1787, %v1768, %v1172
      %v1802 = vsel %vm1787, %v1769, %v1174
      %v1803 = vsel %vm1787, %v1770, %v1176
      %v1804 = vsel %vm1787, %v1771, %v1178
      %v1805 = vsel %vm1787, %v1772, %v1180
      %v1806 = vsel %vm1787, %v1773, %v1182
      %v1807 = vsel %vm1787, %v1774, %v1184
      %v1808 = vsel %vm1787, %v1775, %v1186
      %v1809 = vsel %vm1787, %v1776, %v1188
      %v1810 = vsel %vm1787, %v1777, %v1190
      %v1811 = vsel %vm1787, %v1778, %v1192
      %v1812 = vsel %vm1787, %v1779, %v1194
      %v1813 = vsel %vm1787, %v1780, %v1196
      %v1814 = vsel %vm1787, %v1781, %v1198
      %v1815 = vsel %vm1787, %v1782, %v1200
      %v1816 = vsel %vm1787, %v1783, %v1202
      %v1817 = vsel %vm1787, %v1784, %v1204
      %v1818 = vsel %vm1787, %v1785, %v1206
      %v1819 = vsel %vm1787, %v1786, %v1208
      %vm1820 = vcmask 97280
      %v1821 = vsel %vm1820, %v1788, %v1248
      %v1822 = vsel %vm1820, %v1789, %v1250
      %v1823 = vsel %vm1820, %v1790, %v1252
      %v1824 = vsel %vm1820, %v1791, %v1254
      %v1825 = vsel %vm1820, %v1792, %v1256
      %v1826 = vsel %vm1820, %v1793, %v1258
      %v1827 = vsel %vm1820, %v1794, %v1260
      %v1828 = vsel %vm1820, %v1795, %v1262
      %v1829 = vsel %vm1820, %v1796, %v1264
      %v1830 = vsel %vm1820, %v1797, %v1266
      %v1831 = vsel %vm1820, %v1798, %v1268
      %v1832 = vsel %vm1820, %v1799, %v1270
      %v1833 = vsel %vm1820, %v1800, %v1272
      %v1834 = vsel %vm1820, %v1801, %v1274
      %v1835 = vsel %vm1820, %v1802, %v1276
      %v1836 = vsel %vm1820, %v1803, %v1278
      %v1837 = vsel %vm1820, %v1804, %v1280
      %v1838 = vsel %vm1820, %v1805, %v1282
      %v1839 = vsel %vm1820, %v1806, %v1284
      %v1840 = vsel %vm1820, %v1807, %v1286
      %v1841 = vsel %vm1820, %v1808, %v1288
      %v1842 = vsel %vm1820, %v1809, %v1290
      %v1843 = vsel %vm1820, %v1810, %v1292
      %v1844 = vsel %vm1820, %v1811, %v1294
      %v1845 = vsel %vm1820, %v1812, %v1296
      %v1846 = vsel %vm1820, %v1813, %v1298
      %v1847 = vsel %vm1820, %v1814, %v1300
      %v1848 = vsel %vm1820, %v1815, %v1302
      %v1849 = vsel %vm1820, %v1816, %v1304
      %v1850 = vsel %vm1820, %v1817, %v1306
      %v1851 = vsel %vm1820, %v1818, %v1308
      %v1852 = vsel %vm1820, %v1819, %v1310
      %vm1853 = vcmask 121856
      %v1854 = vsel %vm1853, %v1821, %v1349
      %v1855 = vsel %vm1853, %v1822, %v1351
      %v1856 = vsel %vm1853, %v1823, %v1353
      %v1857 = vsel %vm1853, %v1824, %v1355
      %v1858 = vsel %vm1853, %v1825, %v1357
      %v1859 = vsel %vm1853, %v1826, %v1359
      %v1860 = vsel %vm1853, %v1827, %v1361
      %v1861 = vsel %vm1853, %v1828, %v1363
      %v1862 = vsel %vm1853, %v1829, %v1365
      %v1863 = vsel %vm1853, %v1830, %v1367
      %v1864 = vsel %vm1853, %v1831, %v1369
      %v1865 = vsel %vm1853, %v1832, %v1371
      %v1866 = vsel %vm1853, %v1833, %v1373
      %v1867 = vsel %vm1853, %v1834, %v1375
      %v1868 = vsel %vm1853, %v1835, %v1377
      %v1869 = vsel %vm1853, %v1836, %v1379
      %v1870 = vsel %vm1853, %v1837, %v1381
      %v1871 = vsel %vm1853, %v1838, %v1383
      %v1872 = vsel %vm1853, %v1839, %v1385
      %v1873 = vsel %vm1853, %v1840, %v1387
      %v1874 = vsel %vm1853, %v1841, %v1389
      %v1875 = vsel %vm1853, %v1842, %v1391
      %v1876 = vsel %vm1853, %v1843, %v1393
      %v1877 = vsel %vm1853, %v1844, %v1395
      %v1878 = vsel %vm1853, %v1845, %v1397
      %v1879 = vsel %vm1853, %v1846, %v1399
      %v1880 = vsel %vm1853, %v1847, %v1401
      %v1881 = vsel %vm1853, %v1848, %v1403
      %v1882 = vsel %vm1853, %v1849, %v1405
      %v1883 = vsel %vm1853, %v1850, %v1407
      %v1884 = vsel %vm1853, %v1851, %v1409
      %v1885 = vsel %vm1853, %v1852, %v1411
      %vm1886 = vcmask 146432
      %v1887 = vsel %vm1886, %v1854, %v1445
      %v1888 = vsel %vm1886, %v1855, %v1447
      %v1889 = vsel %vm1886, %v1856, %v1449
      %v1890 = vsel %vm1886, %v1857, %v1451
      %v1891 = vsel %vm1886, %v1858, %v1453
      %v1892 = vsel %vm1886, %v1859, %v1455
      %v1893 = vsel %vm1886, %v1860, %v1457
      %v1894 = vsel %vm1886, %v1861, %v1459
      %v1895 = vsel %vm1886, %v1862, %v1461
      %v1896 = vsel %vm1886, %v1863, %v1463
      %v1897 = vsel %vm1886, %v1864, %v1465
      %v1898 = vsel %vm1886, %v1865, %v1467
      %v1899 = vsel %vm1886, %v1866, %v1469
      %v1900 = vsel %vm1886, %v1867, %v1471
      %v1901 = vsel %vm1886, %v1868, %v1473
      %v1902 = vsel %vm1886, %v1869, %v1475
      %v1903 = vsel %vm1886, %v1870, %v1477
      %v1904 = vsel %vm1886, %v1871, %v1479
      %v1905 = vsel %vm1886, %v1872, %v1481
      %v1906 = vsel %vm1886, %v1873, %v1483
      %v1907 = vsel %vm1886, %v1874, %v1485
      %v1908 = vsel %vm1886, %v1875, %v1487
      %v1909 = vsel %vm1886, %v1876, %v1489
      %v1910 = vsel %vm1886, %v1877, %v1491
      %v1911 = vsel %vm1886, %v1878, %v1493
      %v1912 = vsel %vm1886, %v1879, %v1495
      %v1913 = vsel %vm1886, %v1880, %v1497
      %v1914 = vsel %vm1886, %v1881, %v1499
      %v1915 = vsel %vm1886, %v1882, %v1501
      %v1916 = vsel %vm1886, %v1883, %v1503
      %v1917 = vsel %vm1886, %v1884, %v1505
      %v1918 = vsel %vm1886, %v1885, %v1505
      %vm1919 = vcmask 171008
      %v1920 = vsel %vm1919, %v1887, %v1538
      %v1921 = vsel %vm1919, %v1888, %v1540
      %v1922 = vsel %vm1919, %v1889, %v1542
      %v1923 = vsel %vm1919, %v1890, %v1544
      %v1924 = vsel %vm1919, %v1891, %v1546
      %v1925 = vsel %vm1919, %v1892, %v1548
      %v1926 = vsel %vm1919, %v1893, %v1550
      %v1927 = vsel %vm1919, %v1894, %v1552
      %v1928 = vsel %vm1919, %v1895, %v1554
      %v1929 = vsel %vm1919, %v1896, %v1556
      %v1930 = vsel %vm1919, %v1897, %v1558
      %v1931 = vsel %vm1919, %v1898, %v1560
      %v1932 = vsel %vm1919, %v1899, %v1562
      %v1933 = vsel %vm1919, %v1900, %v1564
      %v1934 = vsel %vm1919, %v1901, %v1566
      %v1935 = vsel %vm1919, %v1902, %v1568
      %v1936 = vsel %vm1919, %v1903, %v1570
      %v1937 = vsel %vm1919, %v1904, %v1572
      %v1938 = vsel %vm1919, %v1905, %v1574
      %v1939 = vsel %vm1919, %v1906, %v1576
      %v1940 = vsel %vm1919, %v1907, %v1578
      %v1941 = vsel %vm1919, %v1908, %v1580
      %v1942 = vsel %vm1919, %v1909, %v1582
      %v1943 = vsel %vm1919, %v1910, %v1584
      %v1944 = vsel %vm1919, %v1911, %v1586
      %v1945 = vsel %vm1919, %v1912, %v1588
      %v1946 = vsel %vm1919, %v1913, %v1590
      %v1947 = vsel %vm1919, %v1914, %v1592
      %v1948 = vsel %vm1919, %v1915, %v1594
      %v1949 = vsel %vm1919, %v1916, %v1596
      %v1950 = vsel %vm1919, %v1917, %v1598
      %v1951 = vsel %vm1919, %v1918, %v1598
      %vm1952 = vcmask 195584
      %v1953 = vsel %vm1952, %v1920, %v1631
      %v1954 = vsel %vm1952, %v1921, %v1633
      %v1955 = vsel %vm1952, %v1922, %v1635
      %v1956 = vsel %vm1952, %v1923, %v1637
      %v1957 = vsel %vm1952, %v1924, %v1639
      %v1958 = vsel %vm1952, %v1925, %v1641
      %v1959 = vsel %vm1952, %v1926, %v1643
      %v1960 = vsel %vm1952, %v1927, %v1645
      %v1961 = vsel %vm1952, %v1928, %v1647
      %v1962 = vsel %vm1952, %v1929, %v1649
      %v1963 = vsel %vm1952, %v1930, %v1651
      %v1964 = vsel %vm1952, %v1931, %v1653
      %v1965 = vsel %vm1952, %v1932, %v1655
      %v1966 = vsel %vm1952, %v1933, %v1657
      %v1967 = vsel %vm1952, %v1934, %v1659
      %v1968 = vsel %vm1952, %v1935, %v1661
      %v1969 = vsel %vm1952, %v1936, %v1663
      %v1970 = vsel %vm1952, %v1937, %v1665
      %v1971 = vsel %vm1952, %v1938, %v1667
      %v1972 = vsel %vm1952, %v1939, %v1669
      %v1973 = vsel %vm1952, %v1940, %v1671
      %v1974 = vsel %vm1952, %v1941, %v1673
      %v1975 = vsel %vm1952, %v1942, %v1675
      %v1976 = vsel %vm1952, %v1943, %v1677
      %v1977 = vsel %vm1952, %v1944, %v1679
      %v1978 = vsel %vm1952, %v1945, %v1681
      %v1979 = vsel %vm1952, %v1946, %v1683
      %v1980 = vsel %vm1952, %v1947, %v1685
      %v1981 = vsel %vm1952, %v1948, %v1687
      %v1982 = vsel %vm1952, %v1949, %v1689
      %v1983 = vsel %vm1952, %v1950, %v1691
      %v1984 = vsel %vm1952, %v1951, %v1691
      %v1985 = vpack.c.bf16 %v1954, %v1953
      %v1986 = vpack.c.bf16 %v1956, %v1955
      %v1987 = vpack.c.bf16 %v1958, %v1957
      %v1988 = vpack.c.bf16 %v1960, %v1959
      %v1989 = vpack.c.bf16 %v1962, %v1961
      %v1990 = vpack.c.bf16 %v1964, %v1963
      %v1991 = vpack.c.bf16 %v1966, %v1965
      %v1992 = vpack.c.bf16 %v1968, %v1967
      %v1993 = vpack.c.bf16 %v1970, %v1969
      %v1994 = vpack.c.bf16 %v1972, %v1971
      %v1995 = vpack.c.bf16 %v1974, %v1973
      %v1996 = vpack.c.bf16 %v1976, %v1975
      %v1997 = vpack.c.bf16 %v1978, %v1977
      %v1998 = vpack.c.bf16 %v1980, %v1979
      %v1999 = vpack.c.bf16 %v1982, %v1981
      %v2000 = vpack.c.bf16 %v1984, %v1983
      %v2005 = vunpack.c.l.b16 %v607
      %v2006 = vunpack.c.l.b16 %v608
      %v2007 = vunpack.c.l.b16 %v609
      %v2008 = vunpack.c.l.b16 %v610
      %v2009 = vpack.c.b16 %v2006, %v2005
      %v2010 = vpack.c.b16 %v2008, %v2007
      %vm2012 = vcmask 220160
      %v2014 = vsel %vm2012, %v1985, 0
      %v2017 = vsel %vm2012, %v1986, 0
      %v2020 = vsel %vm2012, %v1987, 0
      %v2023 = vsel %vm2012, %v1988, 0
      %v2026 = vsel %vm2012, %v1989, 0
      %v2029 = vsel %vm2012, %v1990, 0
      %v2032 = vsel %vm2012, %v1991, 0
      %v2035 = vsel %vm2012, %v1992, 0
      %v2038 = vsel %vm2012, %v1993, 0
      %v2041 = vsel %vm2012, %v1994, 0
      %v2044 = vsel %vm2012, %v1995, 0
      %v2047 = vsel %vm2012, %v1996, 0
      %v2050 = vsel %vm2012, %v1997, 0
      %v2053 = vsel %vm2012, %v1998, 0
      %v2056 = vsel %vm2012, %v1999, 0
      %v2059 = vsel %vm2012, %v2000, 0
      %vm2061 = vcmask 1044480
      %v2062 = vsel %vm2061, 4294967295, 65535
      %v2063 = vsel %vm973, %v2062, 0
      %v2065 = vand.u32 %v2010, %v2063
      %2067 = vmatpush.bf16.msra.mxu0 0
      %2068 = vmatpush.bf16.msra.mxu0 0
      %2069 = vmatpush.bf16.msra.mxu0 0
      %2070 = vmatpush.bf16.msra.mxu0 0
      %2071 = vmatpush.bf16.msra.mxu0 0
      %2072 = vmatpush.bf16.msra.mxu0 0
      %2073 = vmatpush.bf16.msra.mxu0 %v2065
      %2074 = vmatpush.bf16.msra.mxu0 %v2009
      %2075 = vmatmul.bf16.gmra.mxu0 %v2014
      %v2076 = vpop.f32.mrf.mxu0
      %v2077 = vadd.f32 0.0, %v2076
      %v2078 = vpop.f32.mrf.mxu0
      %v2079 = vadd.f32 0.0, %v2078
      %2080 = vmatmul.bf16.gmra.mxu0 %v2017
      %v2081 = vpop.f32.mrf.mxu0
      %v2082 = vadd.f32 0.0, %v2081
      %v2083 = vpop.f32.mrf.mxu0
      %v2084 = vadd.f32 0.0, %v2083
      %2085 = vmatmul.bf16.gmra.mxu0 %v2020
      %v2086 = vpop.f32.mrf.mxu0
      %v2087 = vadd.f32 0.0, %v2086
      %v2088 = vpop.f32.mrf.mxu0
      %v2089 = vadd.f32 0.0, %v2088
      %2090 = vmatmul.bf16.gmra.mxu0 %v2023
      %v2091 = vpop.f32.mrf.mxu0
      %v2092 = vadd.f32 0.0, %v2091
      %v2093 = vpop.f32.mrf.mxu0
      %v2094 = vadd.f32 0.0, %v2093
      %2095 = vmatmul.bf16.gmra.mxu0 %v2026
      %v2096 = vpop.f32.mrf.mxu0
      %v2097 = vadd.f32 0.0, %v2096
      %v2098 = vpop.f32.mrf.mxu0
      %v2099 = vadd.f32 0.0, %v2098
      %2100 = vmatmul.bf16.gmra.mxu0 %v2029
      %v2101 = vpop.f32.mrf.mxu0
      %v2102 = vadd.f32 0.0, %v2101
      %v2103 = vpop.f32.mrf.mxu0
      %v2104 = vadd.f32 0.0, %v2103
      %2105 = vmatmul.bf16.gmra.mxu0 %v2032
      %v2106 = vpop.f32.mrf.mxu0
      %v2107 = vadd.f32 0.0, %v2106
      %v2108 = vpop.f32.mrf.mxu0
      %v2109 = vadd.f32 0.0, %v2108
      %2110 = vmatmul.bf16.gmra.mxu0 %v2035
      %v2111 = vpop.f32.mrf.mxu0
      %v2112 = vadd.f32 0.0, %v2111
      %v2113 = vpop.f32.mrf.mxu0
      %v2114 = vadd.f32 0.0, %v2113
      %2115 = vmatmul.bf16.gmra.mxu0 %v2038
      %v2116 = vpop.f32.mrf.mxu0
      %v2117 = vadd.f32 0.0, %v2116
      %v2118 = vpop.f32.mrf.mxu0
      %v2119 = vadd.f32 0.0, %v2118
      %2120 = vmatmul.bf16.gmra.mxu0 %v2041
      %v2121 = vpop.f32.mrf.mxu0
      %v2122 = vadd.f32 0.0, %v2121
      %v2123 = vpop.f32.mrf.mxu0
      %v2124 = vadd.f32 0.0, %v2123
      %2125 = vmatmul.bf16.gmra.mxu0 %v2044
      %v2126 = vpop.f32.mrf.mxu0
      %v2127 = vadd.f32 0.0, %v2126
      %v2128 = vpop.f32.mrf.mxu0
      %v2129 = vadd.f32 0.0, %v2128
      %2130 = vmatmul.bf16.gmra.mxu0 %v2047
      %v2131 = vpop.f32.mrf.mxu0
      %v2132 = vadd.f32 0.0, %v2131
      %v2133 = vpop.f32.mrf.mxu0
      %v2134 = vadd.f32 0.0, %v2133
      %2135 = vmatmul.bf16.gmra.mxu0 %v2050
      %v2136 = vpop.f32.mrf.mxu0
      %v2137 = vadd.f32 0.0, %v2136
      %v2138 = vpop.f32.mrf.mxu0
      %v2139 = vadd.f32 0.0, %v2138
      %2140 = vmatmul.bf16.gmra.mxu0 %v2053
      %v2141 = vpop.f32.mrf.mxu0
      %v2142 = vadd.f32 0.0, %v2141
      %v2143 = vpop.f32.mrf.mxu0
      %v2144 = vadd.f32 0.0, %v2143
      %2145 = vmatmul.bf16.gmra.mxu0 %v2056
      %v2146 = vpop.f32.mrf.mxu0
      %v2147 = vadd.f32 0.0, %v2146
      %v2148 = vpop.f32.mrf.mxu0
      %v2149 = vadd.f32 0.0, %v2148
      %2150 = vmatmul.bf16.gmra.mxu0 %v2059
      %v2151 = vpop.f32.mrf.mxu0
      %v2152 = vadd.f32 0.0, %v2151
      %v2153 = vpop.f32.mrf.mxu0
      %v2154 = vadd.f32 0.0, %v2153
      %2155 = vdwg.mxu0
      %v2156 = vld [vmem:[%s2] sm:$0x1]
      %v2157 = vld [vmem:[%s2 + $0x1] sm:$0x1]
      %v2158 = vperm.slane %v2156, 0
      %v2159 = vmul.f32 %v2077, %v2158
      %v2160 = vmul.f32 %v2079, %v2158
      %v2161 = vmul.f32 %v2082, %v2158
      %v2162 = vmul.f32 %v2084, %v2158
      %v2163 = vmul.f32 %v2087, %v2158
      %v2164 = vmul.f32 %v2089, %v2158
      %v2165 = vmul.f32 %v2092, %v2158
      %v2166 = vmul.f32 %v2094, %v2158
      %v2167 = vmul.f32 %v2097, %v2158
      %v2168 = vmul.f32 %v2099, %v2158
      %v2169 = vmul.f32 %v2102, %v2158
      %v2170 = vmul.f32 %v2104, %v2158
      %v2171 = vmul.f32 %v2107, %v2158
      %v2172 = vmul.f32 %v2109, %v2158
      %v2173 = vmul.f32 %v2112, %v2158
      %v2174 = vmul.f32 %v2114, %v2158
      %v2175 = vmul.f32 %v2117, %v2158
      %v2176 = vmul.f32 %v2119, %v2158
      %v2177 = vmul.f32 %v2122, %v2158
      %v2178 = vmul.f32 %v2124, %v2158
      %v2179 = vmul.f32 %v2127, %v2158
      %v2180 = vmul.f32 %v2129, %v2158
      %v2181 = vmul.f32 %v2132, %v2158
      %v2182 = vmul.f32 %v2134, %v2158
      %v2183 = vmul.f32 %v2137, %v2158
      %v2184 = vmul.f32 %v2139, %v2158
      %v2185 = vmul.f32 %v2142, %v2158
      %v2186 = vmul.f32 %v2144, %v2158
      %v2187 = vmul.f32 %v2147, %v2158
      %v2188 = vmul.f32 %v2149, %v2158
      %v2189 = vmul.f32 %v2152, %v2158
      %v2190 = vmul.f32 %v2154, %v2158
      %v2191 = vperm.slane %v2157, 0
      %v2192 = vadd.f32 %v2159, %v2191
      %v2193 = vadd.f32 %v2160, %v2191
      %v2194 = vadd.f32 %v2161, %v2191
      %v2195 = vadd.f32 %v2162, %v2191
      %v2196 = vadd.f32 %v2163, %v2191
      %v2197 = vadd.f32 %v2164, %v2191
      %v2198 = vadd.f32 %v2165, %v2191
      %v2199 = vadd.f32 %v2166, %v2191
      %v2200 = vadd.f32 %v2167, %v2191
      %v2201 = vadd.f32 %v2168, %v2191
      %v2202 = vadd.f32 %v2169, %v2191
      %v2203 = vadd.f32 %v2170, %v2191
      %v2204 = vadd.f32 %v2171, %v2191
      %v2205 = vadd.f32 %v2172, %v2191
      %v2206 = vadd.f32 %v2173, %v2191
      %v2207 = vadd.f32 %v2174, %v2191
      %v2208 = vadd.f32 %v2175, %v2191
      %v2209 = vadd.f32 %v2176, %v2191
      %v2210 = vadd.f32 %v2177, %v2191
      %v2211 = vadd.f32 %v2178, %v2191
      %v2212 = vadd.f32 %v2179, %v2191
      %v2213 = vadd.f32 %v2180, %v2191
      %v2214 = vadd.f32 %v2181, %v2191
      %v2215 = vadd.f32 %v2182, %v2191
      %v2216 = vadd.f32 %v2183, %v2191
      %v2217 = vadd.f32 %v2184, %v2191
      %v2218 = vadd.f32 %v2185, %v2191
      %v2219 = vadd.f32 %v2186, %v2191
      %v2220 = vadd.f32 %v2187, %v2191
      %v2221 = vadd.f32 %v2188, %v2191
      %v2222 = vadd.f32 %v2189, %v2191
      %v2223 = vadd.f32 %v2190, %v2191
      %v2224 = vmax.f32 %v2192, 0.0
      %v2225 = vmax.f32 %v2193, 0.0
      %v2226 = vmax.f32 %v2194, 0.0
      %v2227 = vmax.f32 %v2195, 0.0
      %v2228 = vmax.f32 %v2196, 0.0
      %v2229 = vmax.f32 %v2197, 0.0
      %v2230 = vmax.f32 %v2198, 0.0
      %v2231 = vmax.f32 %v2199, 0.0
      %v2232 = vmax.f32 %v2200, 0.0
      %v2233 = vmax.f32 %v2201, 0.0
      %v2234 = vmax.f32 %v2202, 0.0
      %v2235 = vmax.f32 %v2203, 0.0
      %v2236 = vmax.f32 %v2204, 0.0
      %v2237 = vmax.f32 %v2205, 0.0
      %v2238 = vmax.f32 %v2206, 0.0
      %v2239 = vmax.f32 %v2207, 0.0
      %v2240 = vmax.f32 %v2208, 0.0
      %v2241 = vmax.f32 %v2209, 0.0
      %v2242 = vmax.f32 %v2210, 0.0
      %v2243 = vmax.f32 %v2211, 0.0
      %v2244 = vmax.f32 %v2212, 0.0
      %v2245 = vmax.f32 %v2213, 0.0
      %v2246 = vmax.f32 %v2214, 0.0
      %v2247 = vmax.f32 %v2215, 0.0
      %v2248 = vmax.f32 %v2216, 0.0
      %v2249 = vmax.f32 %v2217, 0.0
      %v2250 = vmax.f32 %v2218, 0.0
      %v2251 = vmax.f32 %v2219, 0.0
      %v2252 = vmax.f32 %v2220, 0.0
      %v2253 = vmax.f32 %v2221, 0.0
      %v2254 = vmax.f32 %v2222, 0.0
      %v2255 = vmax.f32 %v2223, 0.0
      %v2256 = vld [vmem:[%s3] sm:$0xf]
      %v2257 = vld [vmem:[%s3 + $0x4] sm:$0xf]
      %v2258 = vld [vmem:[%s3 + $0x8] sm:$0xf]
      %v2259 = vld [vmem:[%s3 + $0xc] sm:$0xf]
      %v2260 = vld [vmem:[%s3 + $0x10] sm:$0xf]
      %v2261 = vld [vmem:[%s3 + $0x14] sm:$0xf]
      %v2262 = vld [vmem:[%s3 + $0x18] sm:$0xf]
      %v2263 = vld [vmem:[%s3 + $0x1c] sm:$0xf]
      %v2264 = vld [vmem:[%s3 + $0x20] sm:$0xf]
      %v2297 = vrot.slane %v2224, 7
      %v2298 = vrot.slane %v2225, 7
      %v2299 = vsel %vm643, %v2297, %v2298
      %v2300 = vrot.slane %v2226, 7
      %v2301 = vrot.slane %v2227, 7
      %v2302 = vsel %vm643, %v2300, %v2301
      %v2303 = vrot.slane %v2228, 7
      %v2304 = vrot.slane %v2229, 7
      %v2305 = vsel %vm643, %v2303, %v2304
      %v2306 = vrot.slane %v2230, 7
      %v2307 = vrot.slane %v2231, 7
      %v2308 = vsel %vm643, %v2306, %v2307
      %v2309 = vrot.slane %v2232, 7
      %v2310 = vrot.slane %v2233, 7
      %v2311 = vsel %vm643, %v2309, %v2310
      %v2312 = vrot.slane %v2234, 7
      %v2313 = vrot.slane %v2235, 7
      %v2314 = vsel %vm643, %v2312, %v2313
      %v2315 = vrot.slane %v2236, 7
      %v2316 = vrot.slane %v2237, 7
      %v2317 = vsel %vm643, %v2315, %v2316
      %v2318 = vrot.slane %v2238, 7
      %v2319 = vrot.slane %v2239, 7
      %v2320 = vsel %vm643, %v2318, %v2319
      %v2321 = vrot.slane %v2240, 7
      %v2322 = vrot.slane %v2241, 7
      %v2323 = vsel %vm643, %v2321, %v2322
      %v2324 = vrot.slane %v2242, 7
      %v2325 = vrot.slane %v2243, 7
      %v2326 = vsel %vm643, %v2324, %v2325
      %v2327 = vrot.slane %v2244, 7
      %v2328 = vrot.slane %v2245, 7
      %v2329 = vsel %vm643, %v2327, %v2328
      %v2330 = vrot.slane %v2246, 7
      %v2331 = vrot.slane %v2247, 7
      %v2332 = vsel %vm643, %v2330, %v2331
      %v2333 = vrot.slane %v2248, 7
      %v2334 = vrot.slane %v2249, 7
      %v2335 = vsel %vm643, %v2333, %v2334
      %v2336 = vrot.slane %v2250, 7
      %v2337 = vrot.slane %v2251, 7
      %v2338 = vsel %vm643, %v2336, %v2337
      %v2339 = vrot.slane %v2252, 7
      %v2340 = vrot.slane %v2253, 7
      %v2341 = vsel %vm643, %v2339, %v2340
      %v2342 = vrot.slane %v2254, 7
      %v2343 = vrot.slane %v2255, 7
      %v2344 = vsel %vm643, %v2342, %v2343
      %v2392 = vsel %vm643, 0.0, %v2297
      %v2393 = vsel %vm643, 0.0, %v2300
      %v2394 = vsel %vm643, 0.0, %v2303
      %v2395 = vsel %vm643, 0.0, %v2306
      %v2396 = vsel %vm643, 0.0, %v2309
      %v2397 = vsel %vm643, 0.0, %v2312
      %v2398 = vsel %vm643, 0.0, %v2315
      %v2399 = vsel %vm643, 0.0, %v2318
      %v2400 = vsel %vm643, 0.0, %v2321
      %v2401 = vsel %vm643, 0.0, %v2324
      %v2402 = vsel %vm643, 0.0, %v2327
      %v2403 = vsel %vm643, 0.0, %v2330
      %v2404 = vsel %vm643, 0.0, %v2333
      %v2405 = vsel %vm643, 0.0, %v2336
      %v2406 = vsel %vm643, 0.0, %v2339
      %v2407 = vsel %vm643, 0.0, %v2342
      %v2408 = vsel %vm643, %v2298, 0.0
      %v2409 = vsel %vm643, %v2301, 0.0
      %v2410 = vsel %vm643, %v2304, 0.0
      %v2411 = vsel %vm643, %v2307, 0.0
      %v2412 = vsel %vm643, %v2310, 0.0
      %v2413 = vsel %vm643, %v2313, 0.0
      %v2414 = vsel %vm643, %v2316, 0.0
      %v2415 = vsel %vm643, %v2319, 0.0
      %v2416 = vsel %vm643, %v2322, 0.0
      %v2417 = vsel %vm643, %v2325, 0.0
      %v2418 = vsel %vm643, %v2328, 0.0
      %v2419 = vsel %vm643, %v2331, 0.0
      %v2420 = vsel %vm643, %v2334, 0.0
      %v2421 = vsel %vm643, %v2337, 0.0
      %v2422 = vsel %vm643, %v2340, 0.0
      %v2423 = vsel %vm643, %v2343, 0.0
      %v2454 = vrot.slane %v2392, 1
      %v2455 = vrot.slane %v2299, 1
      %v2456 = vsel %vm802, %v2454, %v2455
      %v2457 = vrot.slane %v2408, 1
      %v2458 = vsel %vm802, %v2455, %v2457
      %v2459 = vrot.slane %v2393, 1
      %v2460 = vrot.slane %v2302, 1
      %v2461 = vsel %vm802, %v2459, %v2460
      %v2462 = vrot.slane %v2409, 1
      %v2463 = vsel %vm802, %v2460, %v2462
      %v2464 = vrot.slane %v2394, 1
      %v2465 = vrot.slane %v2305, 1
      %v2466 = vsel %vm802, %v2464, %v2465
      %v2467 = vrot.slane %v2410, 1
      %v2468 = vsel %vm802, %v2465, %v2467
      %v2469 = vrot.slane %v2395, 1
      %v2470 = vrot.slane %v2308, 1
      %v2471 = vsel %vm802, %v2469, %v2470
      %v2472 = vrot.slane %v2411, 1
      %v2473 = vsel %vm802, %v2470, %v2472
      %v2474 = vrot.slane %v2396, 1
      %v2475 = vrot.slane %v2311, 1
      %v2476 = vsel %vm802, %v2474, %v2475
      %v2477 = vrot.slane %v2412, 1
      %v2478 = vsel %vm802, %v2475, %v2477
      %v2479 = vrot.slane %v2397, 1
      %v2480 = vrot.slane %v2314, 1
      %v2481 = vsel %vm802, %v2479, %v2480
      %v2482 = vrot.slane %v2413, 1
      %v2483 = vsel %vm802, %v2480, %v2482
      %v2484 = vrot.slane %v2398, 1
      %v2485 = vrot.slane %v2317, 1
      %v2486 = vsel %vm802, %v2484, %v2485
      %v2487 = vrot.slane %v2414, 1
      %v2488 = vsel %vm802, %v2485, %v2487
      %v2489 = vrot.slane %v2399, 1
      %v2490 = vrot.slane %v2320, 1
      %v2491 = vsel %vm802, %v2489, %v2490
      %v2492 = vrot.slane %v2415, 1
      %v2493 = vsel %vm802, %v2490, %v2492
      %v2494 = vrot.slane %v2400, 1
      %v2495 = vrot.slane %v2323, 1
      %v2496 = vsel %vm802, %v2494, %v2495
      %v2497 = vrot.slane %v2416, 1
      %v2498 = vsel %vm802, %v2495, %v2497
      %v2499 = vrot.slane %v2401, 1
      %v2500 = vrot.slane %v2326, 1
      %v2501 = vsel %vm802, %v2499, %v2500
      %v2502 = vrot.slane %v2417, 1
      %v2503 = vsel %vm802, %v2500, %v2502
      %v2504 = vrot.slane %v2402, 1
      %v2505 = vrot.slane %v2329, 1
      %v2506 = vsel %vm802, %v2504, %v2505
      %v2507 = vrot.slane %v2418, 1
      %v2508 = vsel %vm802, %v2505, %v2507
      %v2509 = vrot.slane %v2403, 1
      %v2510 = vrot.slane %v2332, 1
      %v2511 = vsel %vm802, %v2509, %v2510
      %v2512 = vrot.slane %v2419, 1
      %v2513 = vsel %vm802, %v2510, %v2512
      %v2514 = vrot.slane %v2404, 1
      %v2515 = vrot.slane %v2335, 1
      %v2516 = vsel %vm802, %v2514, %v2515
      %v2517 = vrot.slane %v2420, 1
      %v2518 = vsel %vm802, %v2515, %v2517
      %v2519 = vrot.slane %v2405, 1
      %v2520 = vrot.slane %v2338, 1
      %v2521 = vsel %vm802, %v2519, %v2520
      %v2522 = vrot.slane %v2421, 1
      %v2523 = vsel %vm802, %v2520, %v2522
      %v2524 = vrot.slane %v2406, 1
      %v2525 = vrot.slane %v2341, 1
      %v2526 = vsel %vm802, %v2524, %v2525
      %v2527 = vrot.slane %v2422, 1
      %v2528 = vsel %vm802, %v2525, %v2527
      %2529 = vrot.lane.b32.xlu0 %v804, 8
      %v2530 = vpop.permute.xlu0 %2529
      %2531 = vrot.lane.b32.xlu0 %v2456, 8
      %v2532 = vpop.permute.xlu0 %2531
      %2533 = vrot.lane.b32.xlu0 %v2458, 8
      %v2534 = vpop.permute.xlu0 %2533
      %2535 = vrot.lane.b32.xlu0 %v2461, 8
      %v2536 = vpop.permute.xlu0 %2535
      %2537 = vrot.lane.b32.xlu0 %v2463, 8
      %v2538 = vpop.permute.xlu0 %2537
      %2539 = vrot.lane.b32.xlu0 %v2466, 8
      %v2540 = vpop.permute.xlu0 %2539
      %2541 = vrot.lane.b32.xlu0 %v2468, 8
      %v2542 = vpop.permute.xlu0 %2541
      %2543 = vrot.lane.b32.xlu0 %v2471, 8
      %v2544 = vpop.permute.xlu0 %2543
      %2545 = vrot.lane.b32.xlu0 %v2473, 8
      %v2546 = vpop.permute.xlu0 %2545
      %2547 = vrot.lane.b32.xlu0 %v2476, 8
      %v2548 = vpop.permute.xlu0 %2547
      %2549 = vrot.lane.b32.xlu0 %v2478, 8
      %v2550 = vpop.permute.xlu0 %2549
      %2551 = vrot.lane.b32.xlu0 %v2481, 8
      %v2552 = vpop.permute.xlu0 %2551
      %2553 = vrot.lane.b32.xlu0 %v2483, 8
      %v2554 = vpop.permute.xlu0 %2553
      %2555 = vrot.lane.b32.xlu0 %v2486, 8
      %v2556 = vpop.permute.xlu0 %2555
      %2557 = vrot.lane.b32.xlu0 %v2488, 8
      %v2558 = vpop.permute.xlu0 %2557
      %2559 = vrot.lane.b32.xlu0 %v2491, 8
      %v2560 = vpop.permute.xlu0 %2559
      %2561 = vrot.lane.b32.xlu0 %v2493, 8
      %v2562 = vpop.permute.xlu0 %2561
      %2563 = vrot.lane.b32.xlu0 %v2496, 8
      %v2564 = vpop.permute.xlu0 %2563
      %2565 = vrot.lane.b32.xlu0 %v2498, 8
      %v2566 = vpop.permute.xlu0 %2565
      %2567 = vrot.lane.b32.xlu0 %v2501, 8
      %v2568 = vpop.permute.xlu0 %2567
      %2569 = vrot.lane.b32.xlu0 %v2503, 8
      %v2570 = vpop.permute.xlu0 %2569
      %2571 = vrot.lane.b32.xlu0 %v2506, 8
      %v2572 = vpop.permute.xlu0 %2571
      %2573 = vrot.lane.b32.xlu0 %v2508, 8
      %v2574 = vpop.permute.xlu0 %2573
      %2575 = vrot.lane.b32.xlu0 %v2511, 8
      %v2576 = vpop.permute.xlu0 %2575
      %2577 = vrot.lane.b32.xlu0 %v2513, 8
      %v2578 = vpop.permute.xlu0 %2577
      %2579 = vrot.lane.b32.xlu0 %v2516, 8
      %v2580 = vpop.permute.xlu0 %2579
      %2581 = vrot.lane.b32.xlu0 %v2518, 8
      %v2582 = vpop.permute.xlu0 %2581
      %2583 = vrot.lane.b32.xlu0 %v2521, 8
      %v2584 = vpop.permute.xlu0 %2583
      %2585 = vrot.lane.b32.xlu0 %v2523, 8
      %v2586 = vpop.permute.xlu0 %2585
      %2587 = vrot.lane.b32.xlu0 %v2526, 8
      %v2588 = vpop.permute.xlu0 %2587
      %2589 = vrot.lane.b32.xlu0 %v2528, 8
      %v2590 = vpop.permute.xlu0 %2589
      %v2622 = vrot.slane %v2392, 2
      %v2623 = vrot.slane %v2299, 2
      %v2624 = vsel %vm973, %v2622, %v2623
      %v2625 = vrot.slane %v2408, 2
      %v2626 = vsel %vm973, %v2623, %v2625
      %v2627 = vrot.slane %v2393, 2
      %v2628 = vrot.slane %v2302, 2
      %v2629 = vsel %vm973, %v2627, %v2628
      %v2630 = vrot.slane %v2409, 2
      %v2631 = vsel %vm973, %v2628, %v2630
      %v2632 = vrot.slane %v2394, 2
      %v2633 = vrot.slane %v2305, 2
      %v2634 = vsel %vm973, %v2632, %v2633
      %v2635 = vrot.slane %v2410, 2
      %v2636 = vsel %vm973, %v2633, %v2635
      %v2637 = vrot.slane %v2395, 2
      %v2638 = vrot.slane %v2308, 2
      %v2639 = vsel %vm973, %v2637, %v2638
      %v2640 = vrot.slane %v2411, 2
      %v2641 = vsel %vm973, %v2638, %v2640
      %v2642 = vrot.slane %v2396, 2
      %v2643 = vrot.slane %v2311, 2
      %v2644 = vsel %vm973, %v2642, %v2643
      %v2645 = vrot.slane %v2412, 2
      %v2646 = vsel %vm973, %v2643, %v2645
      %v2647 = vrot.slane %v2397, 2
      %v2648 = vrot.slane %v2314, 2
      %v2649 = vsel %vm973, %v2647, %v2648
      %v2650 = vrot.slane %v2413, 2
      %v2651 = vsel %vm973, %v2648, %v2650
      %v2652 = vrot.slane %v2398, 2
      %v2653 = vrot.slane %v2317, 2
      %v2654 = vsel %vm973, %v2652, %v2653
      %v2655 = vrot.slane %v2414, 2
      %v2656 = vsel %vm973, %v2653, %v2655
      %v2657 = vrot.slane %v2399, 2
      %v2658 = vrot.slane %v2320, 2
      %v2659 = vsel %vm973, %v2657, %v2658
      %v2660 = vrot.slane %v2415, 2
      %v2661 = vsel %vm973, %v2658, %v2660
      %v2662 = vrot.slane %v2400, 2
      %v2663 = vrot.slane %v2323, 2
      %v2664 = vsel %vm973, %v2662, %v2663
      %v2665 = vrot.slane %v2416, 2
      %v2666 = vsel %vm973, %v2663, %v2665
      %v2667 = vrot.slane %v2401, 2
      %v2668 = vrot.slane %v2326, 2
      %v2669 = vsel %vm973, %v2667, %v2668
      %v2670 = vrot.slane %v2417, 2
      %v2671 = vsel %vm973, %v2668, %v2670
      %v2672 = vrot.slane %v2402, 2
      %v2673 = vrot.slane %v2329, 2
      %v2674 = vsel %vm973, %v2672, %v2673
      %v2675 = vrot.slane %v2418, 2
      %v2676 = vsel %vm973, %v2673, %v2675
      %v2677 = vrot.slane %v2403, 2
      %v2678 = vrot.slane %v2332, 2
      %v2679 = vsel %vm973, %v2677, %v2678
      %v2680 = vrot.slane %v2419, 2
      %v2681 = vsel %vm973, %v2678, %v2680
      %v2682 = vrot.slane %v2404, 2
      %v2683 = vrot.slane %v2335, 2
      %v2684 = vsel %vm973, %v2682, %v2683
      %v2685 = vrot.slane %v2420, 2
      %v2686 = vsel %vm973, %v2683, %v2685
      %v2687 = vrot.slane %v2405, 2
      %v2688 = vrot.slane %v2338, 2
      %v2689 = vsel %vm973, %v2687, %v2688
      %v2690 = vrot.slane %v2421, 2
      %v2691 = vsel %vm973, %v2688, %v2690
      %v2692 = vrot.slane %v2406, 2
      %v2693 = vrot.slane %v2341, 2
      %v2694 = vsel %vm973, %v2692, %v2693
      %v2695 = vrot.slane %v2422, 2
      %v2696 = vsel %vm973, %v2693, %v2695
      %2697 = vrot.lane.b32.xlu0 %v975, 16
      %v2698 = vpop.permute.xlu0 %2697
      %2699 = vrot.lane.b32.xlu0 %v2624, 16
      %v2700 = vpop.permute.xlu0 %2699
      %2701 = vrot.lane.b32.xlu0 %v2626, 16
      %v2702 = vpop.permute.xlu0 %2701
      %2703 = vrot.lane.b32.xlu0 %v2629, 16
      %v2704 = vpop.permute.xlu0 %2703
      %2705 = vrot.lane.b32.xlu0 %v2631, 16
      %v2706 = vpop.permute.xlu0 %2705
      %2707 = vrot.lane.b32.xlu0 %v2634, 16
      %v2708 = vpop.permute.xlu0 %2707
      %2709 = vrot.lane.b32.xlu0 %v2636, 16
      %v2710 = vpop.permute.xlu0 %2709
      %2711 = vrot.lane.b32.xlu0 %v2639, 16
      %v2712 = vpop.permute.xlu0 %2711
      %2713 = vrot.lane.b32.xlu0 %v2641, 16
      %v2714 = vpop.permute.xlu0 %2713
      %2715 = vrot.lane.b32.xlu0 %v2644, 16
      %v2716 = vpop.permute.xlu0 %2715
      %2717 = vrot.lane.b32.xlu0 %v2646, 16
      %v2718 = vpop.permute.xlu0 %2717
      %2719 = vrot.lane.b32.xlu0 %v2649, 16
      %v2720 = vpop.permute.xlu0 %2719
      %2721 = vrot.lane.b32.xlu0 %v2651, 16
      %v2722 = vpop.permute.xlu0 %2721
      %2723 = vrot.lane.b32.xlu0 %v2654, 16
      %v2724 = vpop.permute.xlu0 %2723
      %2725 = vrot.lane.b32.xlu0 %v2656, 16
      %v2726 = vpop.permute.xlu0 %2725
      %2727 = vrot.lane.b32.xlu0 %v2659, 16
      %v2728 = vpop.permute.xlu0 %2727
      %2729 = vrot.lane.b32.xlu0 %v2661, 16
      %v2730 = vpop.permute.xlu0 %2729
      %2731 = vrot.lane.b32.xlu0 %v2664, 16
      %v2732 = vpop.permute.xlu0 %2731
      %2733 = vrot.lane.b32.xlu0 %v2666, 16
      %v2734 = vpop.permute.xlu0 %2733
      %2735 = vrot.lane.b32.xlu0 %v2669, 16
      %v2736 = vpop.permute.xlu0 %2735
      %2737 = vrot.lane.b32.xlu0 %v2671, 16
      %v2738 = vpop.permute.xlu0 %2737
      %2739 = vrot.lane.b32.xlu0 %v2674, 16
      %v2740 = vpop.permute.xlu0 %2739
      %2741 = vrot.lane.b32.xlu0 %v2676, 16
      %v2742 = vpop.permute.xlu0 %2741
      %2743 = vrot.lane.b32.xlu0 %v2679, 16
      %v2744 = vpop.permute.xlu0 %2743
      %2745 = vrot.lane.b32.xlu0 %v2681, 16
      %v2746 = vpop.permute.xlu0 %2745
      %2747 = vrot.lane.b32.xlu0 %v2684, 16
      %v2748 = vpop.permute.xlu0 %2747
      %2749 = vrot.lane.b32.xlu0 %v2686, 16
      %v2750 = vpop.permute.xlu0 %2749
      %2751 = vrot.lane.b32.xlu0 %v2689, 16
      %v2752 = vpop.permute.xlu0 %2751
      %2753 = vrot.lane.b32.xlu0 %v2691, 16
      %v2754 = vpop.permute.xlu0 %2753
      %2755 = vrot.lane.b32.xlu0 %v2694, 16
      %v2756 = vpop.permute.xlu0 %2755
      %2757 = vrot.lane.b32.xlu0 %v2696, 16
      %v2758 = vpop.permute.xlu0 %2757
      %2791 = vrot.lane.b32.xlu0 %v2392, 24
      %v2792 = vpop.permute.xlu0 %2791
      %2793 = vrot.lane.b32.xlu0 %v2299, 24
      %v2794 = vpop.permute.xlu0 %2793
      %2795 = vrot.lane.b32.xlu0 %v2393, 24
      %v2796 = vpop.permute.xlu0 %2795
      %2797 = vrot.lane.b32.xlu0 %v2302, 24
      %v2798 = vpop.permute.xlu0 %2797
      %2799 = vrot.lane.b32.xlu0 %v2394, 24
      %v2800 = vpop.permute.xlu0 %2799
      %2801 = vrot.lane.b32.xlu0 %v2305, 24
      %v2802 = vpop.permute.xlu0 %2801
      %2803 = vrot.lane.b32.xlu0 %v2395, 24
      %v2804 = vpop.permute.xlu0 %2803
      %2805 = vrot.lane.b32.xlu0 %v2308, 24
      %v2806 = vpop.permute.xlu0 %2805
      %2807 = vrot.lane.b32.xlu0 %v2396, 24
      %v2808 = vpop.permute.xlu0 %2807
      %2809 = vrot.lane.b32.xlu0 %v2311, 24
      %v2810 = vpop.permute.xlu0 %2809
      %2811 = vrot.lane.b32.xlu0 %v2397, 24
      %v2812 = vpop.permute.xlu0 %2811
      %2813 = vrot.lane.b32.xlu0 %v2314, 24
      %v2814 = vpop.permute.xlu0 %2813
      %2815 = vrot.lane.b32.xlu0 %v2398, 24
      %v2816 = vpop.permute.xlu0 %2815
      %2817 = vrot.lane.b32.xlu0 %v2317, 24
      %v2818 = vpop.permute.xlu0 %2817
      %2819 = vrot.lane.b32.xlu0 %v2399, 24
      %v2820 = vpop.permute.xlu0 %2819
      %2821 = vrot.lane.b32.xlu0 %v2320, 24
      %v2822 = vpop.permute.xlu0 %2821
      %2823 = vrot.lane.b32.xlu0 %v2400, 24
      %v2824 = vpop.permute.xlu0 %2823
      %2825 = vrot.lane.b32.xlu0 %v2323, 24
      %v2826 = vpop.permute.xlu0 %2825
      %2827 = vrot.lane.b32.xlu0 %v2401, 24
      %v2828 = vpop.permute.xlu0 %2827
      %2829 = vrot.lane.b32.xlu0 %v2326, 24
      %v2830 = vpop.permute.xlu0 %2829
      %2831 = vrot.lane.b32.xlu0 %v2402, 24
      %v2832 = vpop.permute.xlu0 %2831
      %2833 = vrot.lane.b32.xlu0 %v2329, 24
      %v2834 = vpop.permute.xlu0 %2833
      %2835 = vrot.lane.b32.xlu0 %v2403, 24
      %v2836 = vpop.permute.xlu0 %2835
      %2837 = vrot.lane.b32.xlu0 %v2332, 24
      %v2838 = vpop.permute.xlu0 %2837
      %2839 = vrot.lane.b32.xlu0 %v2404, 24
      %v2840 = vpop.permute.xlu0 %2839
      %2841 = vrot.lane.b32.xlu0 %v2335, 24
      %v2842 = vpop.permute.xlu0 %2841
      %2843 = vrot.lane.b32.xlu0 %v2405, 24
      %v2844 = vpop.permute.xlu0 %2843
      %2845 = vrot.lane.b32.xlu0 %v2338, 24
      %v2846 = vpop.permute.xlu0 %2845
      %2847 = vrot.lane.b32.xlu0 %v2406, 24
      %v2848 = vpop.permute.xlu0 %2847
      %2849 = vrot.lane.b32.xlu0 %v2341, 24
      %v2850 = vpop.permute.xlu0 %2849
      %2851 = vrot.lane.b32.xlu0 %v2407, 24
      %v2852 = vpop.permute.xlu0 %2851
      %2853 = vrot.lane.b32.xlu0 %v2344, 24
      %v2854 = vpop.permute.xlu0 %2853
      %v2888 = vrot.slane %v2407, 1
      %v2889 = vrot.slane %v2344, 1
      %v2890 = vsel %vm802, %v2888, %v2889
      %v2891 = vrot.slane %v2423, 1
      %v2892 = vsel %vm802, %v2889, %v2891
      %2893 = vrot.lane.b32.xlu0 %v2456, 32
      %v2894 = vpop.permute.xlu0 %2893
      %2895 = vrot.lane.b32.xlu0 %v2458, 32
      %v2896 = vpop.permute.xlu0 %2895
      %2897 = vrot.lane.b32.xlu0 %v2461, 32
      %v2898 = vpop.permute.xlu0 %2897
      %2899 = vrot.lane.b32.xlu0 %v2463, 32
      %v2900 = vpop.permute.xlu0 %2899
      %2901 = vrot.lane.b32.xlu0 %v2466, 32
      %v2902 = vpop.permute.xlu0 %2901
      %2903 = vrot.lane.b32.xlu0 %v2468, 32
      %v2904 = vpop.permute.xlu0 %2903
      %2905 = vrot.lane.b32.xlu0 %v2471, 32
      %v2906 = vpop.permute.xlu0 %2905
      %2907 = vrot.lane.b32.xlu0 %v2473, 32
      %v2908 = vpop.permute.xlu0 %2907
      %2909 = vrot.lane.b32.xlu0 %v2476, 32
      %v2910 = vpop.permute.xlu0 %2909
      %2911 = vrot.lane.b32.xlu0 %v2478, 32
      %v2912 = vpop.permute.xlu0 %2911
      %2913 = vrot.lane.b32.xlu0 %v2481, 32
      %v2914 = vpop.permute.xlu0 %2913
      %2915 = vrot.lane.b32.xlu0 %v2483, 32
      %v2916 = vpop.permute.xlu0 %2915
      %2917 = vrot.lane.b32.xlu0 %v2486, 32
      %v2918 = vpop.permute.xlu0 %2917
      %2919 = vrot.lane.b32.xlu0 %v2488, 32
      %v2920 = vpop.permute.xlu0 %2919
      %2921 = vrot.lane.b32.xlu0 %v2491, 32
      %v2922 = vpop.permute.xlu0 %2921
      %2923 = vrot.lane.b32.xlu0 %v2493, 32
      %v2924 = vpop.permute.xlu0 %2923
      %2925 = vrot.lane.b32.xlu0 %v2496, 32
      %v2926 = vpop.permute.xlu0 %2925
      %2927 = vrot.lane.b32.xlu0 %v2498, 32
      %v2928 = vpop.permute.xlu0 %2927
      %2929 = vrot.lane.b32.xlu0 %v2501, 32
      %v2930 = vpop.permute.xlu0 %2929
      %2931 = vrot.lane.b32.xlu0 %v2503, 32
      %v2932 = vpop.permute.xlu0 %2931
      %2933 = vrot.lane.b32.xlu0 %v2506, 32
      %v2934 = vpop.permute.xlu0 %2933
      %2935 = vrot.lane.b32.xlu0 %v2508, 32
      %v2936 = vpop.permute.xlu0 %2935
      %2937 = vrot.lane.b32.xlu0 %v2511, 32
      %v2938 = vpop.permute.xlu0 %2937
      %2939 = vrot.lane.b32.xlu0 %v2513, 32
      %v2940 = vpop.permute.xlu0 %2939
      %2941 = vrot.lane.b32.xlu0 %v2516, 32
      %v2942 = vpop.permute.xlu0 %2941
      %2943 = vrot.lane.b32.xlu0 %v2518, 32
      %v2944 = vpop.permute.xlu0 %2943
      %2945 = vrot.lane.b32.xlu0 %v2521, 32
      %v2946 = vpop.permute.xlu0 %2945
      %2947 = vrot.lane.b32.xlu0 %v2523, 32
      %v2948 = vpop.permute.xlu0 %2947
      %2949 = vrot.lane.b32.xlu0 %v2526, 32
      %v2950 = vpop.permute.xlu0 %2949
      %2951 = vrot.lane.b32.xlu0 %v2528, 32
      %v2952 = vpop.permute.xlu0 %2951
      %2953 = vrot.lane.b32.xlu0 %v2890, 32
      %v2954 = vpop.permute.xlu0 %2953
      %2955 = vrot.lane.b32.xlu0 %v2892, 32
      %v2956 = vpop.permute.xlu0 %2955
      %v2989 = vrot.slane %v2407, 2
      %v2990 = vrot.slane %v2344, 2
      %v2991 = vsel %vm973, %v2989, %v2990
      %v2992 = vrot.slane %v2423, 2
      %v2993 = vsel %vm973, %v2990, %v2992
      %2994 = vrot.lane.b32.xlu0 %v2624, 40
      %v2995 = vpop.permute.xlu0 %2994
      %2996 = vrot.lane.b32.xlu0 %v2626, 40
      %v2997 = vpop.permute.xlu0 %2996
      %2998 = vrot.lane.b32.xlu0 %v2629, 40
      %v2999 = vpop.permute.xlu0 %2998
      %3000 = vrot.lane.b32.xlu0 %v2631, 40
      %v3001 = vpop.permute.xlu0 %3000
      %3002 = vrot.lane.b32.xlu0 %v2634, 40
      %v3003 = vpop.permute.xlu0 %3002
      %3004 = vrot.lane.b32.xlu0 %v2636, 40
      %v3005 = vpop.permute.xlu0 %3004
      %3006 = vrot.lane.b32.xlu0 %v2639, 40
      %v3007 = vpop.permute.xlu0 %3006
      %3008 = vrot.lane.b32.xlu0 %v2641, 40
      %v3009 = vpop.permute.xlu0 %3008
      %3010 = vrot.lane.b32.xlu0 %v2644, 40
      %v3011 = vpop.permute.xlu0 %3010
      %3012 = vrot.lane.b32.xlu0 %v2646, 40
      %v3013 = vpop.permute.xlu0 %3012
      %3014 = vrot.lane.b32.xlu0 %v2649, 40
      %v3015 = vpop.permute.xlu0 %3014
      %3016 = vrot.lane.b32.xlu0 %v2651, 40
      %v3017 = vpop.permute.xlu0 %3016
      %3018 = vrot.lane.b32.xlu0 %v2654, 40
      %v3019 = vpop.permute.xlu0 %3018
      %3020 = vrot.lane.b32.xlu0 %v2656, 40
      %v3021 = vpop.permute.xlu0 %3020
      %3022 = vrot.lane.b32.xlu0 %v2659, 40
      %v3023 = vpop.permute.xlu0 %3022
      %3024 = vrot.lane.b32.xlu0 %v2661, 40
      %v3025 = vpop.permute.xlu0 %3024
      %3026 = vrot.lane.b32.xlu0 %v2664, 40
      %v3027 = vpop.permute.xlu0 %3026
      %3028 = vrot.lane.b32.xlu0 %v2666, 40
      %v3029 = vpop.permute.xlu0 %3028
      %3030 = vrot.lane.b32.xlu0 %v2669, 40
      %v3031 = vpop.permute.xlu0 %3030
      %3032 = vrot.lane.b32.xlu0 %v2671, 40
      %v3033 = vpop.permute.xlu0 %3032
      %3034 = vrot.lane.b32.xlu0 %v2674, 40
      %v3035 = vpop.permute.xlu0 %3034
      %3036 = vrot.lane.b32.xlu0 %v2676, 40
      %v3037 = vpop.permute.xlu0 %3036
      %3038 = vrot.lane.b32.xlu0 %v2679, 40
      %v3039 = vpop.permute.xlu0 %3038
      %3040 = vrot.lane.b32.xlu0 %v2681, 40
      %v3041 = vpop.permute.xlu0 %3040
      %3042 = vrot.lane.b32.xlu0 %v2684, 40
      %v3043 = vpop.permute.xlu0 %3042
      %3044 = vrot.lane.b32.xlu0 %v2686, 40
      %v3045 = vpop.permute.xlu0 %3044
      %3046 = vrot.lane.b32.xlu0 %v2689, 40
      %v3047 = vpop.permute.xlu0 %3046
      %3048 = vrot.lane.b32.xlu0 %v2691, 40
      %v3049 = vpop.permute.xlu0 %3048
      %3050 = vrot.lane.b32.xlu0 %v2694, 40
      %v3051 = vpop.permute.xlu0 %3050
      %3052 = vrot.lane.b32.xlu0 %v2696, 40
      %v3053 = vpop.permute.xlu0 %3052
      %3054 = vrot.lane.b32.xlu0 %v2991, 40
      %v3055 = vpop.permute.xlu0 %3054
      %3056 = vrot.lane.b32.xlu0 %v2993, 40
      %v3057 = vpop.permute.xlu0 %3056
      %3090 = vrot.lane.b32.xlu0 %v2393, 48
      %v3091 = vpop.permute.xlu0 %3090
      %3092 = vrot.lane.b32.xlu0 %v2302, 48
      %v3093 = vpop.permute.xlu0 %3092
      %3094 = vrot.lane.b32.xlu0 %v2394, 48
      %v3095 = vpop.permute.xlu0 %3094
      %3096 = vrot.lane.b32.xlu0 %v2305, 48
      %v3097 = vpop.permute.xlu0 %3096
      %3098 = vrot.lane.b32.xlu0 %v2395, 48
      %v3099 = vpop.permute.xlu0 %3098
      %3100 = vrot.lane.b32.xlu0 %v2308, 48
      %v3101 = vpop.permute.xlu0 %3100
      %3102 = vrot.lane.b32.xlu0 %v2396, 48
      %v3103 = vpop.permute.xlu0 %3102
      %3104 = vrot.lane.b32.xlu0 %v2311, 48
      %v3105 = vpop.permute.xlu0 %3104
      %3106 = vrot.lane.b32.xlu0 %v2397, 48
      %v3107 = vpop.permute.xlu0 %3106
      %3108 = vrot.lane.b32.xlu0 %v2314, 48
      %v3109 = vpop.permute.xlu0 %3108
      %3110 = vrot.lane.b32.xlu0 %v2398, 48
      %v3111 = vpop.permute.xlu0 %3110
      %3112 = vrot.lane.b32.xlu0 %v2317, 48
      %v3113 = vpop.permute.xlu0 %3112
      %3114 = vrot.lane.b32.xlu0 %v2399, 48
      %v3115 = vpop.permute.xlu0 %3114
      %3116 = vrot.lane.b32.xlu0 %v2320, 48
      %v3117 = vpop.permute.xlu0 %3116
      %3118 = vrot.lane.b32.xlu0 %v2400, 48
      %v3119 = vpop.permute.xlu0 %3118
      %3120 = vrot.lane.b32.xlu0 %v2323, 48
      %v3121 = vpop.permute.xlu0 %3120
      %3122 = vrot.lane.b32.xlu0 %v2401, 48
      %v3123 = vpop.permute.xlu0 %3122
      %3124 = vrot.lane.b32.xlu0 %v2326, 48
      %v3125 = vpop.permute.xlu0 %3124
      %3126 = vrot.lane.b32.xlu0 %v2402, 48
      %v3127 = vpop.permute.xlu0 %3126
      %3128 = vrot.lane.b32.xlu0 %v2329, 48
      %v3129 = vpop.permute.xlu0 %3128
      %3130 = vrot.lane.b32.xlu0 %v2403, 48
      %v3131 = vpop.permute.xlu0 %3130
      %3132 = vrot.lane.b32.xlu0 %v2332, 48
      %v3133 = vpop.permute.xlu0 %3132
      %3134 = vrot.lane.b32.xlu0 %v2404, 48
      %v3135 = vpop.permute.xlu0 %3134
      %3136 = vrot.lane.b32.xlu0 %v2335, 48
      %v3137 = vpop.permute.xlu0 %3136
      %3138 = vrot.lane.b32.xlu0 %v2405, 48
      %v3139 = vpop.permute.xlu0 %3138
      %3140 = vrot.lane.b32.xlu0 %v2338, 48
      %v3141 = vpop.permute.xlu0 %3140
      %3142 = vrot.lane.b32.xlu0 %v2406, 48
      %v3143 = vpop.permute.xlu0 %3142
      %3144 = vrot.lane.b32.xlu0 %v2341, 48
      %v3145 = vpop.permute.xlu0 %3144
      %3146 = vrot.lane.b32.xlu0 %v2407, 48
      %v3147 = vpop.permute.xlu0 %3146
      %3148 = vrot.lane.b32.xlu0 %v2344, 48
      %v3149 = vpop.permute.xlu0 %3148
      %3150 = vrot.lane.b32.xlu0 0.0, 48
      %v3151 = vpop.permute.xlu0 %3150
      %3183 = vrot.lane.b32.xlu0 %v2461, 56
      %v3184 = vpop.permute.xlu0 %3183
      %3185 = vrot.lane.b32.xlu0 %v2463, 56
      %v3186 = vpop.permute.xlu0 %3185
      %3187 = vrot.lane.b32.xlu0 %v2466, 56
      %v3188 = vpop.permute.xlu0 %3187
      %3189 = vrot.lane.b32.xlu0 %v2468, 56
      %v3190 = vpop.permute.xlu0 %3189
      %3191 = vrot.lane.b32.xlu0 %v2471, 56
      %v3192 = vpop.permute.xlu0 %3191
      %3193 = vrot.lane.b32.xlu0 %v2473, 56
      %v3194 = vpop.permute.xlu0 %3193
      %3195 = vrot.lane.b32.xlu0 %v2476, 56
      %v3196 = vpop.permute.xlu0 %3195
      %3197 = vrot.lane.b32.xlu0 %v2478, 56
      %v3198 = vpop.permute.xlu0 %3197
      %3199 = vrot.lane.b32.xlu0 %v2481, 56
      %v3200 = vpop.permute.xlu0 %3199
      %3201 = vrot.lane.b32.xlu0 %v2483, 56
      %v3202 = vpop.permute.xlu0 %3201
      %3203 = vrot.lane.b32.xlu0 %v2486, 56
      %v3204 = vpop.permute.xlu0 %3203
      %3205 = vrot.lane.b32.xlu0 %v2488, 56
      %v3206 = vpop.permute.xlu0 %3205
      %3207 = vrot.lane.b32.xlu0 %v2491, 56
      %v3208 = vpop.permute.xlu0 %3207
      %3209 = vrot.lane.b32.xlu0 %v2493, 56
      %v3210 = vpop.permute.xlu0 %3209
      %3211 = vrot.lane.b32.xlu0 %v2496, 56
      %v3212 = vpop.permute.xlu0 %3211
      %3213 = vrot.lane.b32.xlu0 %v2498, 56
      %v3214 = vpop.permute.xlu0 %3213
      %3215 = vrot.lane.b32.xlu0 %v2501, 56
      %v3216 = vpop.permute.xlu0 %3215
      %3217 = vrot.lane.b32.xlu0 %v2503, 56
      %v3218 = vpop.permute.xlu0 %3217
      %3219 = vrot.lane.b32.xlu0 %v2506, 56
      %v3220 = vpop.permute.xlu0 %3219
      %3221 = vrot.lane.b32.xlu0 %v2508, 56
      %v3222 = vpop.permute.xlu0 %3221
      %3223 = vrot.lane.b32.xlu0 %v2511, 56
      %v3224 = vpop.permute.xlu0 %3223
      %3225 = vrot.lane.b32.xlu0 %v2513, 56
      %v3226 = vpop.permute.xlu0 %3225
      %3227 = vrot.lane.b32.xlu0 %v2516, 56
      %v3228 = vpop.permute.xlu0 %3227
      %3229 = vrot.lane.b32.xlu0 %v2518, 56
      %v3230 = vpop.permute.xlu0 %3229
      %3231 = vrot.lane.b32.xlu0 %v2521, 56
      %v3232 = vpop.permute.xlu0 %3231
      %3233 = vrot.lane.b32.xlu0 %v2523, 56
      %v3234 = vpop.permute.xlu0 %3233
      %3235 = vrot.lane.b32.xlu0 %v2526, 56
      %v3236 = vpop.permute.xlu0 %3235
      %3237 = vrot.lane.b32.xlu0 %v2528, 56
      %v3238 = vpop.permute.xlu0 %3237
      %3239 = vrot.lane.b32.xlu0 %v2890, 56
      %v3240 = vpop.permute.xlu0 %3239
      %3241 = vrot.lane.b32.xlu0 %v2892, 56
      %v3242 = vpop.permute.xlu0 %3241
      %3243 = vrot.lane.b32.xlu0 %v804, 56
      %v3244 = vpop.permute.xlu0 %3243
      %3276 = vrot.lane.b32.xlu0 %v2629, 64
      %v3277 = vpop.permute.xlu0 %3276
      %3278 = vrot.lane.b32.xlu0 %v2631, 64
      %v3279 = vpop.permute.xlu0 %3278
      %3280 = vrot.lane.b32.xlu0 %v2634, 64
      %v3281 = vpop.permute.xlu0 %3280
      %3282 = vrot.lane.b32.xlu0 %v2636, 64
      %v3283 = vpop.permute.xlu0 %3282
      %3284 = vrot.lane.b32.xlu0 %v2639, 64
      %v3285 = vpop.permute.xlu0 %3284
      %3286 = vrot.lane.b32.xlu0 %v2641, 64
      %v3287 = vpop.permute.xlu0 %3286
      %3288 = vrot.lane.b32.xlu0 %v2644, 64
      %v3289 = vpop.permute.xlu0 %3288
      %3290 = vrot.lane.b32.xlu0 %v2646, 64
      %v3291 = vpop.permute.xlu0 %3290
      %3292 = vrot.lane.b32.xlu0 %v2649, 64
      %v3293 = vpop.permute.xlu0 %3292
      %3294 = vrot.lane.b32.xlu0 %v2651, 64
      %v3295 = vpop.permute.xlu0 %3294
      %3296 = vrot.lane.b32.xlu0 %v2654, 64
      %v3297 = vpop.permute.xlu0 %3296
      %3298 = vrot.lane.b32.xlu0 %v2656, 64
      %v3299 = vpop.permute.xlu0 %3298
      %3300 = vrot.lane.b32.xlu0 %v2659, 64
      %v3301 = vpop.permute.xlu0 %3300
      %3302 = vrot.lane.b32.xlu0 %v2661, 64
      %v3303 = vpop.permute.xlu0 %3302
      %3304 = vrot.lane.b32.xlu0 %v2664, 64
      %v3305 = vpop.permute.xlu0 %3304
      %3306 = vrot.lane.b32.xlu0 %v2666, 64
      %v3307 = vpop.permute.xlu0 %3306
      %3308 = vrot.lane.b32.xlu0 %v2669, 64
      %v3309 = vpop.permute.xlu0 %3308
      %3310 = vrot.lane.b32.xlu0 %v2671, 64
      %v3311 = vpop.permute.xlu0 %3310
      %3312 = vrot.lane.b32.xlu0 %v2674, 64
      %v3313 = vpop.permute.xlu0 %3312
      %3314 = vrot.lane.b32.xlu0 %v2676, 64
      %v3315 = vpop.permute.xlu0 %3314
      %3316 = vrot.lane.b32.xlu0 %v2679, 64
      %v3317 = vpop.permute.xlu0 %3316
      %3318 = vrot.lane.b32.xlu0 %v2681, 64
      %v3319 = vpop.permute.xlu0 %3318
      %3320 = vrot.lane.b32.xlu0 %v2684, 64
      %v3321 = vpop.permute.xlu0 %3320
      %3322 = vrot.lane.b32.xlu0 %v2686, 64
      %v3323 = vpop.permute.xlu0 %3322
      %3324 = vrot.lane.b32.xlu0 %v2689, 64
      %v3325 = vpop.permute.xlu0 %3324
      %3326 = vrot.lane.b32.xlu0 %v2691, 64
      %v3327 = vpop.permute.xlu0 %3326
      %3328 = vrot.lane.b32.xlu0 %v2694, 64
      %v3329 = vpop.permute.xlu0 %3328
      %3330 = vrot.lane.b32.xlu0 %v2696, 64
      %v3331 = vpop.permute.xlu0 %3330
      %3332 = vrot.lane.b32.xlu0 %v2991, 64
      %v3333 = vpop.permute.xlu0 %3332
      %3334 = vrot.lane.b32.xlu0 %v2993, 64
      %v3335 = vpop.permute.xlu0 %3334
      %3336 = vrot.lane.b32.xlu0 %v975, 64
      %v3337 = vpop.permute.xlu0 %3336
      %vm3369 = vcmask 64512
      %v3370 = vsel %vm3369, 0.0, %v2530
      %v3371 = vsel %vm3369, %v2392, %v2532
      %v3372 = vsel %vm3369, %v2299, %v2534
      %v3373 = vsel %vm3369, %v2393, %v2536
      %v3374 = vsel %vm3369, %v2302, %v2538
      %v3375 = vsel %vm3369, %v2394, %v2540
      %v3376 = vsel %vm3369, %v2305, %v2542
      %v3377 = vsel %vm3369, %v2395, %v2544
      %v3378 = vsel %vm3369, %v2308, %v2546
      %v3379 = vsel %vm3369, %v2396, %v2548
      %v3380 = vsel %vm3369, %v2311, %v2550
      %v3381 = vsel %vm3369, %v2397, %v2552
      %v3382 = vsel %vm3369, %v2314, %v2554
      %v3383 = vsel %vm3369, %v2398, %v2556
      %v3384 = vsel %vm3369, %v2317, %v2558
      %v3385 = vsel %vm3369, %v2399, %v2560
      %v3386 = vsel %vm3369, %v2320, %v2562
      %v3387 = vsel %vm3369, %v2400, %v2564
      %v3388 = vsel %vm3369, %v2323, %v2566
      %v3389 = vsel %vm3369, %v2401, %v2568
      %v3390 = vsel %vm3369, %v2326, %v2570
      %v3391 = vsel %vm3369, %v2402, %v2572
      %v3392 = vsel %vm3369, %v2329, %v2574
      %v3393 = vsel %vm3369, %v2403, %v2576
      %v3394 = vsel %vm3369, %v2332, %v2578
      %v3395 = vsel %vm3369, %v2404, %v2580
      %v3396 = vsel %vm3369, %v2335, %v2582
      %v3397 = vsel %vm3369, %v2405, %v2584
      %v3398 = vsel %vm3369, %v2338, %v2586
      %v3399 = vsel %vm3369, %v2406, %v2588
      %v3400 = vsel %vm3369, %v2341, %v2590
      %vm3401 = vcmask 130048
      %v3402 = vsel %vm3401, %v3370, %v2698
      %v3403 = vsel %vm3401, %v3371, %v2700
      %v3404 = vsel %vm3401, %v3372, %v2702
      %v3405 = vsel %vm3401, %v3373, %v2704
      %v3406 = vsel %vm3401, %v3374, %v2706
      %v3407 = vsel %vm3401, %v3375, %v2708
      %v3408 = vsel %vm3401, %v3376, %v2710
      %v3409 = vsel %vm3401, %v3377, %v2712
      %v3410 = vsel %vm3401, %v3378, %v2714
      %v3411 = vsel %vm3401, %v3379, %v2716
      %v3412 = vsel %vm3401, %v3380, %v2718
      %v3413 = vsel %vm3401, %v3381, %v2720
      %v3414 = vsel %vm3401, %v3382, %v2722
      %v3415 = vsel %vm3401, %v3383, %v2724
      %v3416 = vsel %vm3401, %v3384, %v2726
      %v3417 = vsel %vm3401, %v3385, %v2728
      %v3418 = vsel %vm3401, %v3386, %v2730
      %v3419 = vsel %vm3401, %v3387, %v2732
      %v3420 = vsel %vm3401, %v3388, %v2734
      %v3421 = vsel %vm3401, %v3389, %v2736
      %v3422 = vsel %vm3401, %v3390, %v2738
      %v3423 = vsel %vm3401, %v3391, %v2740
      %v3424 = vsel %vm3401, %v3392, %v2742
      %v3425 = vsel %vm3401, %v3393, %v2744
      %v3426 = vsel %vm3401, %v3394, %v2746
      %v3427 = vsel %vm3401, %v3395, %v2748
      %v3428 = vsel %vm3401, %v3396, %v2750
      %v3429 = vsel %vm3401, %v3397, %v2752
      %v3430 = vsel %vm3401, %v3398, %v2754
      %v3431 = vsel %vm3401, %v3399, %v2756
      %v3432 = vsel %vm3401, %v3400, %v2758
      %v3433 = vsel %vm1952, %v3402, %v2792
      %v3434 = vsel %vm1952, %v3402, %v2794
      %v3435 = vsel %vm1952, %v3403, %v2796
      %v3436 = vsel %vm1952, %v3404, %v2798
      %v3437 = vsel %vm1952, %v3405, %v2800
      %v3438 = vsel %vm1952, %v3406, %v2802
      %v3439 = vsel %vm1952, %v3407, %v2804
      %v3440 = vsel %vm1952, %v3408, %v2806
      %v3441 = vsel %vm1952, %v3409, %v2808
      %v3442 = vsel %vm1952, %v3410, %v2810
      %v3443 = vsel %vm1952, %v3411, %v2812
      %v3444 = vsel %vm1952, %v3412, %v2814
      %v3445 = vsel %vm1952, %v3413, %v2816
      %v3446 = vsel %vm1952, %v3414, %v2818
      %v3447 = vsel %vm1952, %v3415, %v2820
      %v3448 = vsel %vm1952, %v3416, %v2822
      %v3449 = vsel %vm1952, %v3417, %v2824
      %v3450 = vsel %vm1952, %v3418, %v2826
      %v3451 = vsel %vm1952, %v3419, %v2828
      %v3452 = vsel %vm1952, %v3420, %v2830
      %v3453 = vsel %vm1952, %v3421, %v2832
      %v3454 = vsel %vm1952, %v3422, %v2834
      %v3455 = vsel %vm1952, %v3423, %v2836
      %v3456 = vsel %vm1952, %v3424, %v2838
      %v3457 = vsel %vm1952, %v3425, %v2840
      %v3458 = vsel %vm1952, %v3426, %v2842
      %v3459 = vsel %vm1952, %v3427, %v2844
      %v3460 = vsel %vm1952, %v3428, %v2846
      %v3461 = vsel %vm1952, %v3429, %v2848
      %v3462 = vsel %vm1952, %v3430, %v2850
      %v3463 = vsel %vm1952, %v3431, %v2852
      %v3464 = vsel %vm1952, %v3432, %v2854
      %vm3465 = vcmask 261120
      %v3466 = vsel %vm3465, %v3433, %v2894
      %v3467 = vsel %vm3465, %v3434, %v2896
      %v3468 = vsel %vm3465, %v3435, %v2898
      %v3469 = vsel %vm3465, %v3436, %v2900
      %v3470 = vsel %vm3465, %v3437, %v2902
      %v3471 = vsel %vm3465, %v3438, %v2904
      %v3472 = vsel %vm3465, %v3439, %v2906
      %v3473 = vsel %vm3465, %v3440, %v2908
      %v3474 = vsel %vm3465, %v3441, %v2910
      %v3475 = vsel %vm3465, %v3442, %v2912
      %v3476 = vsel %vm3465, %v3443, %v2914
      %v3477 = vsel %vm3465, %v3444, %v2916
      %v3478 = vsel %vm3465, %v3445, %v2918
      %v3479 = vsel %vm3465, %v3446, %v2920
      %v3480 = vsel %vm3465, %v3447, %v2922
      %v3481 = vsel %vm3465, %v3448, %v2924
      %v3482 = vsel %vm3465, %v3449, %v2926
      %v3483 = vsel %vm3465, %v3450, %v2928
      %v3484 = vsel %vm3465, %v3451, %v2930
      %v3485 = vsel %vm3465, %v3452, %v2932
      %v3486 = vsel %vm3465, %v3453, %v2934
      %v3487 = vsel %vm3465, %v3454, %v2936
      %v3488 = vsel %vm3465, %v3455, %v2938
      %v3489 = vsel %vm3465, %v3456, %v2940
      %v3490 = vsel %vm3465, %v3457, %v2942
      %v3491 = vsel %vm3465, %v3458, %v2944
      %v3492 = vsel %vm3465, %v3459, %v2946
      %v3493 = vsel %vm3465, %v3460, %v2948
      %v3494 = vsel %vm3465, %v3461, %v2950
      %v3495 = vsel %vm3465, %v3462, %v2952
      %v3496 = vsel %vm3465, %v3463, %v2954
      %v3497 = vsel %vm3465, %v3464, %v2956
      %vm3498 = vcmask 326656
      %v3499 = vsel %vm3498, %v3466, %v2995
      %v3500 = vsel %vm3498, %v3467, %v2997
      %v3501 = vsel %vm3498, %v3468, %v2999
      %v3502 = vsel %vm3498, %v3469, %v3001
      %v3503 = vsel %vm3498, %v3470, %v3003
      %v3504 = vsel %vm3498, %v3471, %v3005
      %v3505 = vsel %vm3498, %v3472, %v3007
      %v3506 = vsel %vm3498, %v3473, %v3009
      %v3507 = vsel %vm3498, %v3474, %v3011
      %v3508 = vsel %vm3498, %v3475, %v3013
      %v3509 = vsel %vm3498, %v3476, %v3015
      %v3510 = vsel %vm3498, %v3477, %v3017
      %v3511 = vsel %vm3498, %v3478, %v3019
      %v3512 = vsel %vm3498, %v3479, %v3021
      %v3513 = vsel %vm3498, %v3480, %v3023
      %v3514 = vsel %vm3498, %v3481, %v3025
      %v3515 = vsel %vm3498, %v3482, %v3027
      %v3516 = vsel %vm3498, %v3483, %v3029
      %v3517 = vsel %vm3498, %v3484, %v3031
      %v3518 = vsel %vm3498, %v3485, %v3033
      %v3519 = vsel %vm3498, %v3486, %v3035
      %v3520 = vsel %vm3498, %v3487, %v3037
      %v3521 = vsel %vm3498, %v3488, %v3039
      %v3522 = vsel %vm3498, %v3489, %v3041
      %v3523 = vsel %vm3498, %v3490, %v3043
      %v3524 = vsel %vm3498, %v3491, %v3045
      %v3525 = vsel %vm3498, %v3492, %v3047
      %v3526 = vsel %vm3498, %v3493, %v3049
      %v3527 = vsel %vm3498, %v3494, %v3051
      %v3528 = vsel %vm3498, %v3495, %v3053
      %v3529 = vsel %vm3498, %v3496, %v3055
      %v3530 = vsel %vm3498, %v3497, %v3057
      %vm3531 = vcmask 392192
      %v3532 = vsel %vm3531, %v3499, %v3091
      %v3533 = vsel %vm3531, %v3500, %v3093
      %v3534 = vsel %vm3531, %v3501, %v3095
      %v3535 = vsel %vm3531, %v3502, %v3097
      %v3536 = vsel %vm3531, %v3503, %v3099
      %v3537 = vsel %vm3531, %v3504, %v3101
      %v3538 = vsel %vm3531, %v3505, %v3103
      %v3539 = vsel %vm3531, %v3506, %v3105
      %v3540 = vsel %vm3531, %v3507, %v3107
      %v3541 = vsel %vm3531, %v3508, %v3109
      %v3542 = vsel %vm3531, %v3509, %v3111
      %v3543 = vsel %vm3531, %v3510, %v3113
      %v3544 = vsel %vm3531, %v3511, %v3115
      %v3545 = vsel %vm3531, %v3512, %v3117
      %v3546 = vsel %vm3531, %v3513, %v3119
      %v3547 = vsel %vm3531, %v3514, %v3121
      %v3548 = vsel %vm3531, %v3515, %v3123
      %v3549 = vsel %vm3531, %v3516, %v3125
      %v3550 = vsel %vm3531, %v3517, %v3127
      %v3551 = vsel %vm3531, %v3518, %v3129
      %v3552 = vsel %vm3531, %v3519, %v3131
      %v3553 = vsel %vm3531, %v3520, %v3133
      %v3554 = vsel %vm3531, %v3521, %v3135
      %v3555 = vsel %vm3531, %v3522, %v3137
      %v3556 = vsel %vm3531, %v3523, %v3139
      %v3557 = vsel %vm3531, %v3524, %v3141
      %v3558 = vsel %vm3531, %v3525, %v3143
      %v3559 = vsel %vm3531, %v3526, %v3145
      %v3560 = vsel %vm3531, %v3527, %v3147
      %v3561 = vsel %vm3531, %v3528, %v3149
      %v3562 = vsel %vm3531, %v3529, %v3151
      %v3563 = vsel %vm3531, %v3530, %v3151
      %vm3564 = vcmask 457728
      %v3565 = vsel %vm3564, %v3532, %v3184
      %v3566 = vsel %vm3564, %v3533, %v3186
      %v3567 = vsel %vm3564, %v3534, %v3188
      %v3568 = vsel %vm3564, %v3535, %v3190
      %v3569 = vsel %vm3564, %v3536, %v3192
      %v3570 = vsel %vm3564, %v3537, %v3194
      %v3571 = vsel %vm3564, %v3538, %v3196
      %v3572 = vsel %vm3564, %v3539, %v3198
      %v3573 = vsel %vm3564, %v3540, %v3200
      %v3574 = vsel %vm3564, %v3541, %v3202
      %v3575 = vsel %vm3564, %v3542, %v3204
      %v3576 = vsel %vm3564, %v3543, %v3206
      %v3577 = vsel %vm3564, %v3544, %v3208
      %v3578 = vsel %vm3564, %v3545, %v3210
      %v3579 = vsel %vm3564, %v3546, %v3212
      %v3580 = vsel %vm3564, %v3547, %v3214
      %v3581 = vsel %vm3564, %v3548, %v3216
      %v3582 = vsel %vm3564, %v3549, %v3218
      %v3583 = vsel %vm3564, %v3550, %v3220
      %v3584 = vsel %vm3564, %v3551, %v3222
      %v3585 = vsel %vm3564, %v3552, %v3224
      %v3586 = vsel %vm3564, %v3553, %v3226
      %v3587 = vsel %vm3564, %v3554, %v3228
      %v3588 = vsel %vm3564, %v3555, %v3230
      %v3589 = vsel %vm3564, %v3556, %v3232
      %v3590 = vsel %vm3564, %v3557, %v3234
      %v3591 = vsel %vm3564, %v3558, %v3236
      %v3592 = vsel %vm3564, %v3559, %v3238
      %v3593 = vsel %vm3564, %v3560, %v3240
      %v3594 = vsel %vm3564, %v3561, %v3242
      %v3595 = vsel %vm3564, %v3562, %v3244
      %v3596 = vsel %vm3564, %v3563, %v3244
      %vm3597 = vcmask 523264
      %v3598 = vsel %vm3597, %v3565, %v3277
      %v3599 = vsel %vm3597, %v3566, %v3279
      %v3600 = vsel %vm3597, %v3567, %v3281
      %v3601 = vsel %vm3597, %v3568, %v3283
      %v3602 = vsel %vm3597, %v3569, %v3285
      %v3603 = vsel %vm3597, %v3570, %v3287
      %v3604 = vsel %vm3597, %v3571, %v3289
      %v3605 = vsel %vm3597, %v3572, %v3291
      %v3606 = vsel %vm3597, %v3573, %v3293
      %v3607 = vsel %vm3597, %v3574, %v3295
      %v3608 = vsel %vm3597, %v3575, %v3297
      %v3609 = vsel %vm3597, %v3576, %v3299
      %v3610 = vsel %vm3597, %v3577, %v3301
      %v3611 = vsel %vm3597, %v3578, %v3303
      %v3612 = vsel %vm3597, %v3579, %v3305
      %v3613 = vsel %vm3597, %v3580, %v3307
      %v3614 = vsel %vm3597, %v3581, %v3309
      %v3615 = vsel %vm3597, %v3582, %v3311
      %v3616 = vsel %vm3597, %v3583, %v3313
      %v3617 = vsel %vm3597, %v3584, %v3315
      %v3618 = vsel %vm3597, %v3585, %v3317
      %v3619 = vsel %vm3597, %v3586, %v3319
      %v3620 = vsel %vm3597, %v3587, %v3321
      %v3621 = vsel %vm3597, %v3588, %v3323
      %v3622 = vsel %vm3597, %v3589, %v3325
      %v3623 = vsel %vm3597, %v3590, %v3327
      %v3624 = vsel %vm3597, %v3591, %v3329
      %v3625 = vsel %vm3597, %v3592, %v3331
      %v3626 = vsel %vm3597, %v3593, %v3333
      %v3627 = vsel %vm3597, %v3594, %v3335
      %v3628 = vsel %vm3597, %v3595, %v3337
      %v3629 = vsel %vm3597, %v3596, %v3337
      %v3630 = vpack.c.bf16 %v3599, %v3598
      %v3631 = vpack.c.bf16 %v3601, %v3600
      %v3632 = vpack.c.bf16 %v3603, %v3602
      %v3633 = vpack.c.bf16 %v3605, %v3604
      %v3634 = vpack.c.bf16 %v3607, %v3606
      %v3635 = vpack.c.bf16 %v3609, %v3608
      %v3636 = vpack.c.bf16 %v3611, %v3610
      %v3637 = vpack.c.bf16 %v3613, %v3612
      %v3638 = vpack.c.bf16 %v3615, %v3614
      %v3639 = vpack.c.bf16 %v3617, %v3616
      %v3640 = vpack.c.bf16 %v3619, %v3618
      %v3641 = vpack.c.bf16 %v3621, %v3620
      %v3642 = vpack.c.bf16 %v3623, %v3622
      %v3643 = vpack.c.bf16 %v3625, %v3624
      %v3644 = vpack.c.bf16 %v3627, %v3626
      %v3645 = vpack.c.bf16 %v3629, %v3628
      %v3655 = vunpack.c.l.b16 %v2256
      %v3656 = vunpack.c.l.b16 %v2257
      %v3657 = vunpack.c.l.b16 %v2258
      %v3658 = vunpack.c.l.b16 %v2259
      %v3659 = vunpack.c.l.b16 %v2260
      %v3660 = vunpack.c.l.b16 %v2261
      %v3661 = vunpack.c.l.b16 %v2262
      %v3662 = vunpack.c.l.b16 %v2263
      %v3663 = vunpack.c.l.b16 %v2264
      %v3664 = vpack.c.b16 %v3656, %v3655
      %v3665 = vpack.c.b16 %v3658, %v3657
      %v3666 = vpack.c.b16 %v3660, %v3659
      %v3667 = vpack.c.b16 %v3662, %v3661
      %v3668 = vpack.c.b16 %v3663, %v3663
      %vm3673 = vcmask 588800
      %v3675 = vsel %vm3673, %v3630, 0
      %v3678 = vsel %vm3673, %v3631, 0
      %v3681 = vsel %vm3673, %v3632, 0
      %v3684 = vsel %vm3673, %v3633, 0
      %v3687 = vsel %vm3673, %v3634, 0
      %v3690 = vsel %vm3673, %v3635, 0
      %v3693 = vsel %vm3673, %v3636, 0
      %v3696 = vsel %vm3673, %v3637, 0
      %v3699 = vsel %vm3673, %v3638, 0
      %v3702 = vsel %vm3673, %v3639, 0
      %v3705 = vsel %vm3673, %v3640, 0
      %v3708 = vsel %vm3673, %v3641, 0
      %v3711 = vsel %vm3673, %v3642, 0
      %v3714 = vsel %vm3673, %v3643, 0
      %v3717 = vsel %vm3673, %v3644, 0
      %v3720 = vsel %vm3673, %v3645, 0
      %vm3722 = vcmask 1043456
      %v3724 = vsel %vm3722, %v3668, 0
      %3726 = vmatpush.bf16.msra.mxu0 0
      %3727 = vmatpush.bf16.msra.mxu0 0
      %3728 = vmatpush.bf16.msra.mxu0 0
      %3729 = vmatpush.bf16.msra.mxu0 %v3724
      %3730 = vmatpush.bf16.msra.mxu0 %v3667
      %3731 = vmatpush.bf16.msra.mxu0 %v3666
      %3732 = vmatpush.bf16.msra.mxu0 %v3665
      %3733 = vmatpush.bf16.msra.mxu0 %v3664
      %3734 = vmatmul.bf16.gmra.mxu0 %v3675
      %v3735 = vpop.f32.mrf.mxu0
      %v3736 = vadd.f32 0.0, %v3735
      %v3737 = vpop.f32.mrf.mxu0
      %v3738 = vadd.f32 0.0, %v3737
      %3739 = vmatmul.bf16.gmra.mxu0 %v3678
      %v3740 = vpop.f32.mrf.mxu0
      %v3741 = vadd.f32 0.0, %v3740
      %v3742 = vpop.f32.mrf.mxu0
      %v3743 = vadd.f32 0.0, %v3742
      %3744 = vmatmul.bf16.gmra.mxu0 %v3681
      %v3745 = vpop.f32.mrf.mxu0
      %v3746 = vadd.f32 0.0, %v3745
      %v3747 = vpop.f32.mrf.mxu0
      %v3748 = vadd.f32 0.0, %v3747
      %3749 = vmatmul.bf16.gmra.mxu0 %v3684
      %v3750 = vpop.f32.mrf.mxu0
      %v3751 = vadd.f32 0.0, %v3750
      %v3752 = vpop.f32.mrf.mxu0
      %v3753 = vadd.f32 0.0, %v3752
      %3754 = vmatmul.bf16.gmra.mxu0 %v3687
      %v3755 = vpop.f32.mrf.mxu0
      %v3756 = vadd.f32 0.0, %v3755
      %v3757 = vpop.f32.mrf.mxu0
      %v3758 = vadd.f32 0.0, %v3757
      %3759 = vmatmul.bf16.gmra.mxu0 %v3690
      %v3760 = vpop.f32.mrf.mxu0
      %v3761 = vadd.f32 0.0, %v3760
      %v3762 = vpop.f32.mrf.mxu0
      %v3763 = vadd.f32 0.0, %v3762
      %3764 = vmatmul.bf16.gmra.mxu0 %v3693
      %v3765 = vpop.f32.mrf.mxu0
      %v3766 = vadd.f32 0.0, %v3765
      %v3767 = vpop.f32.mrf.mxu0
      %v3768 = vadd.f32 0.0, %v3767
      %3769 = vmatmul.bf16.gmra.mxu0 %v3696
      %v3770 = vpop.f32.mrf.mxu0
      %v3771 = vadd.f32 0.0, %v3770
      %v3772 = vpop.f32.mrf.mxu0
      %v3773 = vadd.f32 0.0, %v3772
      %3774 = vmatmul.bf16.gmra.mxu0 %v3699
      %v3775 = vpop.f32.mrf.mxu0
      %v3776 = vadd.f32 0.0, %v3775
      %v3777 = vpop.f32.mrf.mxu0
      %v3778 = vadd.f32 0.0, %v3777
      %3779 = vmatmul.bf16.gmra.mxu0 %v3702
      %v3780 = vpop.f32.mrf.mxu0
      %v3781 = vadd.f32 0.0, %v3780
      %v3782 = vpop.f32.mrf.mxu0
      %v3783 = vadd.f32 0.0, %v3782
      %3784 = vmatmul.bf16.gmra.mxu0 %v3705
      %v3785 = vpop.f32.mrf.mxu0
      %v3786 = vadd.f32 0.0, %v3785
      %v3787 = vpop.f32.mrf.mxu0
      %v3788 = vadd.f32 0.0, %v3787
      %3789 = vmatmul.bf16.gmra.mxu0 %v3708
      %v3790 = vpop.f32.mrf.mxu0
      %v3791 = vadd.f32 0.0, %v3790
      %v3792 = vpop.f32.mrf.mxu0
      %v3793 = vadd.f32 0.0, %v3792
      %3794 = vmatmul.bf16.gmra.mxu0 %v3711
      %v3795 = vpop.f32.mrf.mxu0
      %v3796 = vadd.f32 0.0, %v3795
      %v3797 = vpop.f32.mrf.mxu0
      %v3798 = vadd.f32 0.0, %v3797
      %3799 = vmatmul.bf16.gmra.mxu0 %v3714
      %v3800 = vpop.f32.mrf.mxu0
      %v3801 = vadd.f32 0.0, %v3800
      %v3802 = vpop.f32.mrf.mxu0
      %v3803 = vadd.f32 0.0, %v3802
      %3804 = vmatmul.bf16.gmra.mxu0 %v3717
      %v3805 = vpop.f32.mrf.mxu0
      %v3806 = vadd.f32 0.0, %v3805
      %v3807 = vpop.f32.mrf.mxu0
      %v3808 = vadd.f32 0.0, %v3807
      %3809 = vmatmul.bf16.gmra.mxu0 %v3720
      %v3810 = vpop.f32.mrf.mxu0
      %v3811 = vadd.f32 0.0, %v3810
      %v3812 = vpop.f32.mrf.mxu0
      %v3813 = vadd.f32 0.0, %v3812
      %3814 = vdwg.mxu0
      %v3815 = vld [vmem:[%s4] sm:$0x1]
      %v3816 = vld [vmem:[%s4 + $0x1] sm:$0x1]
      %v3817 = vperm.slane %v3815, 0
      %v3818 = vmul.f32 %v3736, %v3817
      %v3819 = vmul.f32 %v3738, %v3817
      %v3820 = vmul.f32 %v3741, %v3817
      %v3821 = vmul.f32 %v3743, %v3817
      %v3822 = vmul.f32 %v3746, %v3817
      %v3823 = vmul.f32 %v3748, %v3817
      %v3824 = vmul.f32 %v3751, %v3817
      %v3825 = vmul.f32 %v3753, %v3817
      %v3826 = vmul.f32 %v3756, %v3817
      %v3827 = vmul.f32 %v3758, %v3817
      %v3828 = vmul.f32 %v3761, %v3817
      %v3829 = vmul.f32 %v3763, %v3817
      %v3830 = vmul.f32 %v3766, %v3817
      %v3831 = vmul.f32 %v3768, %v3817
      %v3832 = vmul.f32 %v3771, %v3817
      %v3833 = vmul.f32 %v3773, %v3817
      %v3834 = vmul.f32 %v3776, %v3817
      %v3835 = vmul.f32 %v3778, %v3817
      %v3836 = vmul.f32 %v3781, %v3817
      %v3837 = vmul.f32 %v3783, %v3817
      %v3838 = vmul.f32 %v3786, %v3817
      %v3839 = vmul.f32 %v3788, %v3817
      %v3840 = vmul.f32 %v3791, %v3817
      %v3841 = vmul.f32 %v3793, %v3817
      %v3842 = vmul.f32 %v3796, %v3817
      %v3843 = vmul.f32 %v3798, %v3817
      %v3844 = vmul.f32 %v3801, %v3817
      %v3845 = vmul.f32 %v3803, %v3817
      %v3846 = vmul.f32 %v3806, %v3817
      %v3847 = vmul.f32 %v3808, %v3817
      %v3848 = vmul.f32 %v3811, %v3817
      %v3849 = vmul.f32 %v3813, %v3817
      %v3850 = vperm.slane %v3816, 0
      %v3851 = vadd.f32 %v3818, %v3850
      %v3852 = vadd.f32 %v3819, %v3850
      %v3853 = vadd.f32 %v3820, %v3850
      %v3854 = vadd.f32 %v3821, %v3850
      %v3855 = vadd.f32 %v3822, %v3850
      %v3856 = vadd.f32 %v3823, %v3850
      %v3857 = vadd.f32 %v3824, %v3850
      %v3858 = vadd.f32 %v3825, %v3850
      %v3859 = vadd.f32 %v3826, %v3850
      %v3860 = vadd.f32 %v3827, %v3850
      %v3861 = vadd.f32 %v3828, %v3850
      %v3862 = vadd.f32 %v3829, %v3850
      %v3863 = vadd.f32 %v3830, %v3850
      %v3864 = vadd.f32 %v3831, %v3850
      %v3865 = vadd.f32 %v3832, %v3850
      %v3866 = vadd.f32 %v3833, %v3850
      %v3867 = vadd.f32 %v3834, %v3850
      %v3868 = vadd.f32 %v3835, %v3850
      %v3869 = vadd.f32 %v3836, %v3850
      %v3870 = vadd.f32 %v3837, %v3850
      %v3871 = vadd.f32 %v3838, %v3850
      %v3872 = vadd.f32 %v3839, %v3850
      %v3873 = vadd.f32 %v3840, %v3850
      %v3874 = vadd.f32 %v3841, %v3850
      %v3875 = vadd.f32 %v3842, %v3850
      %v3876 = vadd.f32 %v3843, %v3850
      %v3877 = vadd.f32 %v3844, %v3850
      %v3878 = vadd.f32 %v3845, %v3850
      %v3879 = vadd.f32 %v3846, %v3850
      %v3880 = vadd.f32 %v3847, %v3850
      %v3881 = vadd.f32 %v3848, %v3850
      %v3882 = vadd.f32 %v3849, %v3850
      %v3883 = vmax.f32 %v3851, 0.0
      %v3884 = vmax.f32 %v3852, 0.0
      %v3885 = vmax.f32 %v3853, 0.0
      %v3886 = vmax.f32 %v3854, 0.0
      %v3887 = vmax.f32 %v3855, 0.0
      %v3888 = vmax.f32 %v3856, 0.0
      %v3889 = vmax.f32 %v3857, 0.0
      %v3890 = vmax.f32 %v3858, 0.0
      %v3891 = vmax.f32 %v3859, 0.0
      %v3892 = vmax.f32 %v3860, 0.0
      %v3893 = vmax.f32 %v3861, 0.0
      %v3894 = vmax.f32 %v3862, 0.0
      %v3895 = vmax.f32 %v3863, 0.0
      %v3896 = vmax.f32 %v3864, 0.0
      %v3897 = vmax.f32 %v3865, 0.0
      %v3898 = vmax.f32 %v3866, 0.0
      %v3899 = vmax.f32 %v3867, 0.0
      %v3900 = vmax.f32 %v3868, 0.0
      %v3901 = vmax.f32 %v3869, 0.0
      %v3902 = vmax.f32 %v3870, 0.0
      %v3903 = vmax.f32 %v3871, 0.0
      %v3904 = vmax.f32 %v3872, 0.0
      %v3905 = vmax.f32 %v3873, 0.0
      %v3906 = vmax.f32 %v3874, 0.0
      %v3907 = vmax.f32 %v3875, 0.0
      %v3908 = vmax.f32 %v3876, 0.0
      %v3909 = vmax.f32 %v3877, 0.0
      %v3910 = vmax.f32 %v3878, 0.0
      %v3911 = vmax.f32 %v3879, 0.0
      %v3912 = vmax.f32 %v3880, 0.0
      %v3913 = vmax.f32 %v3881, 0.0
      %v3914 = vmax.f32 %v3882, 0.0
      %v3947 = vrot.slane %v3883, 2
      %v3948 = vrot.slane %v3883, 4
      %v3949 = vrot.slane %v3883, 6
      %v3950 = vrot.slane %v3884, 2
      %v3951 = vrot.slane %v3884, 4
      %v3952 = vrot.slane %v3884, 6
      %v3953 = vrot.slane %v3885, 2
      %v3954 = vrot.slane %v3885, 4
      %v3955 = vrot.slane %v3885, 6
      %v3956 = vrot.slane %v3886, 2
      %v3957 = vrot.slane %v3886, 4
      %v3958 = vrot.slane %v3886, 6
      %v3959 = vrot.slane %v3887, 2
      %v3960 = vrot.slane %v3887, 4
      %v3961 = vrot.slane %v3887, 6
      %v3962 = vrot.slane %v3888, 2
      %v3963 = vrot.slane %v3888, 4
      %v3964 = vrot.slane %v3888, 6
      %v3965 = vrot.slane %v3889, 2
      %v3966 = vrot.slane %v3889, 4
      %v3967 = vrot.slane %v3889, 6
      %v3968 = vrot.slane %v3890, 2
      %v3969 = vrot.slane %v3890, 4
      %v3970 = vrot.slane %v3890, 6
      %v3971 = vrot.slane %v3891, 2
      %v3972 = vrot.slane %v3891, 4
      %v3973 = vrot.slane %v3891, 6
      %v3974 = vrot.slane %v3892, 2
      %v3975 = vrot.slane %v3892, 4
      %v3976 = vrot.slane %v3892, 6
      %v3977 = vrot.slane %v3893, 2
      %v3978 = vrot.slane %v3893, 4
      %v3979 = vrot.slane %v3893, 6
      %v3980 = vrot.slane %v3894, 2
      %v3981 = vrot.slane %v3894, 4
      %v3982 = vrot.slane %v3894, 6
      %v3983 = vrot.slane %v3895, 2
      %v3984 = vrot.slane %v3895, 4
      %v3985 = vrot.slane %v3895, 6
      %v3986 = vrot.slane %v3896, 2
      %v3987 = vrot.slane %v3896, 4
      %v3988 = vrot.slane %v3896, 6
      %v3989 = vrot.slane %v3897, 2
      %v3990 = vrot.slane %v3897, 4
      %v3991 = vrot.slane %v3897, 6
      %v3992 = vrot.slane %v3898, 2
      %v3993 = vrot.slane %v3898, 4
      %v3994 = vrot.slane %v3898, 6
      %v3995 = vrot.slane %v3899, 2
      %v3996 = vrot.slane %v3899, 4
      %v3997 = vrot.slane %v3899, 6
      %v3998 = vrot.slane %v3900, 2
      %v3999 = vrot.slane %v3900, 4
      %v4000 = vrot.slane %v3900, 6
      %v4001 = vrot.slane %v3901, 2
      %v4002 = vrot.slane %v3901, 4
      %v4003 = vrot.slane %v3901, 6
      %v4004 = vrot.slane %v3902, 2
      %v4005 = vrot.slane %v3902, 4
      %v4006 = vrot.slane %v3902, 6
      %v4007 = vrot.slane %v3903, 2
      %v4008 = vrot.slane %v3903, 4
      %v4009 = vrot.slane %v3903, 6
      %v4010 = vrot.slane %v3904, 2
      %v4011 = vrot.slane %v3904, 4
      %v4012 = vrot.slane %v3904, 6
      %v4013 = vrot.slane %v3905, 2
      %v4014 = vrot.slane %v3905, 4
      %v4015 = vrot.slane %v3905, 6
      %v4016 = vrot.slane %v3906, 2
      %v4017 = vrot.slane %v3906, 4
      %v4018 = vrot.slane %v3906, 6
      %v4019 = vrot.slane %v3907, 2
      %v4020 = vrot.slane %v3907, 4
      %v4021 = vrot.slane %v3907, 6
      %v4022 = vrot.slane %v3908, 2
      %v4023 = vrot.slane %v3908, 4
      %v4024 = vrot.slane %v3908, 6
      %v4025 = vrot.slane %v3909, 2
      %v4026 = vrot.slane %v3909, 4
      %v4027 = vrot.slane %v3909, 6
      %v4028 = vrot.slane %v3910, 2
      %v4029 = vrot.slane %v3910, 4
      %v4030 = vrot.slane %v3910, 6
      %v4031 = vrot.slane %v3911, 2
      %v4032 = vrot.slane %v3911, 4
      %v4033 = vrot.slane %v3911, 6
      %v4034 = vrot.slane %v3912, 2
      %v4035 = vrot.slane %v3912, 4
      %v4036 = vrot.slane %v3912, 6
      %v4037 = vrot.slane %v3913, 2
      %v4038 = vrot.slane %v3913, 4
      %v4039 = vrot.slane %v3913, 6
      %v4040 = vrot.slane %v3914, 2
      %v4041 = vrot.slane %v3914, 4
      %v4042 = vrot.slane %v3914, 6
      %vm4139 = vcmask 58368
      %v4140 = vsel %vm4139, %v3883, -inf
      %v4141 = vrot.slane %v4140, 4
      %v4142 = vmax.f32 %v4140, %v4141
      %v4143 = vrot.slane %v4142, 2
      %v4144 = vmax.f32 %v4142, %v4143
      %v4145 = vrot.slane %v4144, 1
      %v4146 = vmax.f32 %v4144, %v4145
      %v4147 = vsel %vm4139, %v3947, -inf
      %v4148 = vrot.slane %v4147, 4
      %v4149 = vmax.f32 %v4147, %v4148
      %v4150 = vrot.slane %v4149, 2
      %v4151 = vmax.f32 %v4149, %v4150
      %v4152 = vrot.slane %v4151, 1
      %v4153 = vmax.f32 %v4151, %v4152
      %v4154 = vsel %vm4139, %v3948, -inf
      %v4155 = vrot.slane %v4154, 4
      %v4156 = vmax.f32 %v4154, %v4155
      %v4157 = vrot.slane %v4156, 2
      %v4158 = vmax.f32 %v4156, %v4157
      %v4159 = vrot.slane %v4158, 1
      %v4160 = vmax.f32 %v4158, %v4159
      %v4161 = vsel %vm4139, %v3949, -inf
      %v4162 = vrot.slane %v4161, 4
      %v4163 = vmax.f32 %v4161, %v4162
      %v4164 = vrot.slane %v4163, 2
      %v4165 = vmax.f32 %v4163, %v4164
      %v4166 = vrot.slane %v4165, 1
      %v4167 = vmax.f32 %v4165, %v4166
      %v4168 = vsel %vm4139, %v3884, -inf
      %v4169 = vrot.slane %v4168, 4
      %v4170 = vmax.f32 %v4168, %v4169
      %v4171 = vrot.slane %v4170, 2
      %v4172 = vmax.f32 %v4170, %v4171
      %v4173 = vrot.slane %v4172, 1
      %v4174 = vmax.f32 %v4172, %v4173
      %v4175 = vsel %vm4139, %v3950, -inf
      %v4176 = vrot.slane %v4175, 4
      %v4177 = vmax.f32 %v4175, %v4176
      %v4178 = vrot.slane %v4177, 2
      %v4179 = vmax.f32 %v4177, %v4178
      %v4180 = vrot.slane %v4179, 1
      %v4181 = vmax.f32 %v4179, %v4180
      %v4182 = vsel %vm4139, %v3951, -inf
      %v4183 = vrot.slane %v4182, 4
      %v4184 = vmax.f32 %v4182, %v4183
      %v4185 = vrot.slane %v4184, 2
      %v4186 = vmax.f32 %v4184, %v4185
      %v4187 = vrot.slane %v4186, 1
      %v4188 = vmax.f32 %v4186, %v4187
      %v4189 = vsel %vm4139, %v3952, -inf
      %v4190 = vrot.slane %v4189, 4
      %v4191 = vmax.f32 %v4189, %v4190
      %v4192 = vrot.slane %v4191, 2
      %v4193 = vmax.f32 %v4191, %v4192
      %v4194 = vrot.slane %v4193, 1
      %v4195 = vmax.f32 %v4193, %v4194
      %v4196 = vsel %vm4139, %v3885, -inf
      %v4197 = vrot.slane %v4196, 4
      %v4198 = vmax.f32 %v4196, %v4197
      %v4199 = vrot.slane %v4198, 2
      %v4200 = vmax.f32 %v4198, %v4199
      %v4201 = vrot.slane %v4200, 1
      %v4202 = vmax.f32 %v4200, %v4201
      %v4203 = vsel %vm4139, %v3953, -inf
      %v4204 = vrot.slane %v4203, 4
      %v4205 = vmax.f32 %v4203, %v4204
      %v4206 = vrot.slane %v4205, 2
      %v4207 = vmax.f32 %v4205, %v4206
      %v4208 = vrot.slane %v4207, 1
      %v4209 = vmax.f32 %v4207, %v4208
      %v4210 = vsel %vm4139, %v3954, -inf
      %v4211 = vrot.slane %v4210, 4
      %v4212 = vmax.f32 %v4210, %v4211
      %v4213 = vrot.slane %v4212, 2
      %v4214 = vmax.f32 %v4212, %v4213
      %v4215 = vrot.slane %v4214, 1
      %v4216 = vmax.f32 %v4214, %v4215
      %v4217 = vsel %vm4139, %v3955, -inf
      %v4218 = vrot.slane %v4217, 4
      %v4219 = vmax.f32 %v4217, %v4218
      %v4220 = vrot.slane %v4219, 2
      %v4221 = vmax.f32 %v4219, %v4220
      %v4222 = vrot.slane %v4221, 1
      %v4223 = vmax.f32 %v4221, %v4222
      %v4224 = vsel %vm4139, %v3886, -inf
      %v4225 = vrot.slane %v4224, 4
      %v4226 = vmax.f32 %v4224, %v4225
      %v4227 = vrot.slane %v4226, 2
      %v4228 = vmax.f32 %v4226, %v4227
      %v4229 = vrot.slane %v4228, 1
      %v4230 = vmax.f32 %v4228, %v4229
      %v4231 = vsel %vm4139, %v3956, -inf
      %v4232 = vrot.slane %v4231, 4
      %v4233 = vmax.f32 %v4231, %v4232
      %v4234 = vrot.slane %v4233, 2
      %v4235 = vmax.f32 %v4233, %v4234
      %v4236 = vrot.slane %v4235, 1
      %v4237 = vmax.f32 %v4235, %v4236
      %v4238 = vsel %vm4139, %v3957, -inf
      %v4239 = vrot.slane %v4238, 4
      %v4240 = vmax.f32 %v4238, %v4239
      %v4241 = vrot.slane %v4240, 2
      %v4242 = vmax.f32 %v4240, %v4241
      %v4243 = vrot.slane %v4242, 1
      %v4244 = vmax.f32 %v4242, %v4243
      %v4245 = vsel %vm4139, %v3958, -inf
      %v4246 = vrot.slane %v4245, 4
      %v4247 = vmax.f32 %v4245, %v4246
      %v4248 = vrot.slane %v4247, 2
      %v4249 = vmax.f32 %v4247, %v4248
      %v4250 = vrot.slane %v4249, 1
      %v4251 = vmax.f32 %v4249, %v4250
      %v4252 = vsel %vm4139, %v3887, -inf
      %v4253 = vrot.slane %v4252, 4
      %v4254 = vmax.f32 %v4252, %v4253
      %v4255 = vrot.slane %v4254, 2
      %v4256 = vmax.f32 %v4254, %v4255
      %v4257 = vrot.slane %v4256, 1
      %v4258 = vmax.f32 %v4256, %v4257
      %v4259 = vsel %vm4139, %v3959, -inf
      %v4260 = vrot.slane %v4259, 4
      %v4261 = vmax.f32 %v4259, %v4260
      %v4262 = vrot.slane %v4261, 2
      %v4263 = vmax.f32 %v4261, %v4262
      %v4264 = vrot.slane %v4263, 1
      %v4265 = vmax.f32 %v4263, %v4264
      %v4266 = vsel %vm4139, %v3960, -inf
      %v4267 = vrot.slane %v4266, 4
      %v4268 = vmax.f32 %v4266, %v4267
      %v4269 = vrot.slane %v4268, 2
      %v4270 = vmax.f32 %v4268, %v4269
      %v4271 = vrot.slane %v4270, 1
      %v4272 = vmax.f32 %v4270, %v4271
      %v4273 = vsel %vm4139, %v3961, -inf
      %v4274 = vrot.slane %v4273, 4
      %v4275 = vmax.f32 %v4273, %v4274
      %v4276 = vrot.slane %v4275, 2
      %v4277 = vmax.f32 %v4275, %v4276
      %v4278 = vrot.slane %v4277, 1
      %v4279 = vmax.f32 %v4277, %v4278
      %v4280 = vsel %vm4139, %v3888, -inf
      %v4281 = vrot.slane %v4280, 4
      %v4282 = vmax.f32 %v4280, %v4281
      %v4283 = vrot.slane %v4282, 2
      %v4284 = vmax.f32 %v4282, %v4283
      %v4285 = vrot.slane %v4284, 1
      %v4286 = vmax.f32 %v4284, %v4285
      %v4287 = vsel %vm4139, %v3962, -inf
      %v4288 = vrot.slane %v4287, 4
      %v4289 = vmax.f32 %v4287, %v4288
      %v4290 = vrot.slane %v4289, 2
      %v4291 = vmax.f32 %v4289, %v4290
      %v4292 = vrot.slane %v4291, 1
      %v4293 = vmax.f32 %v4291, %v4292
      %v4294 = vsel %vm4139, %v3963, -inf
      %v4295 = vrot.slane %v4294, 4
      %v4296 = vmax.f32 %v4294, %v4295
      %v4297 = vrot.slane %v4296, 2
      %v4298 = vmax.f32 %v4296, %v4297
      %v4299 = vrot.slane %v4298, 1
      %v4300 = vmax.f32 %v4298, %v4299
      %v4301 = vsel %vm4139, %v3964, -inf
      %v4302 = vrot.slane %v4301, 4
      %v4303 = vmax.f32 %v4301, %v4302
      %v4304 = vrot.slane %v4303, 2
      %v4305 = vmax.f32 %v4303, %v4304
      %v4306 = vrot.slane %v4305, 1
      %v4307 = vmax.f32 %v4305, %v4306
      %v4308 = vsel %vm4139, %v3889, -inf
      %v4309 = vrot.slane %v4308, 4
      %v4310 = vmax.f32 %v4308, %v4309
      %v4311 = vrot.slane %v4310, 2
      %v4312 = vmax.f32 %v4310, %v4311
      %v4313 = vrot.slane %v4312, 1
      %v4314 = vmax.f32 %v4312, %v4313
      %v4315 = vsel %vm4139, %v3965, -inf
      %v4316 = vrot.slane %v4315, 4
      %v4317 = vmax.f32 %v4315, %v4316
      %v4318 = vrot.slane %v4317, 2
      %v4319 = vmax.f32 %v4317, %v4318
      %v4320 = vrot.slane %v4319, 1
      %v4321 = vmax.f32 %v4319, %v4320
      %v4322 = vsel %vm4139, %v3966, -inf
      %v4323 = vrot.slane %v4322, 4
      %v4324 = vmax.f32 %v4322, %v4323
      %v4325 = vrot.slane %v4324, 2
      %v4326 = vmax.f32 %v4324, %v4325
      %v4327 = vrot.slane %v4326, 1
      %v4328 = vmax.f32 %v4326, %v4327
      %v4329 = vsel %vm4139, %v3967, -inf
      %v4330 = vrot.slane %v4329, 4
      %v4331 = vmax.f32 %v4329, %v4330
      %v4332 = vrot.slane %v4331, 2
      %v4333 = vmax.f32 %v4331, %v4332
      %v4334 = vrot.slane %v4333, 1
      %v4335 = vmax.f32 %v4333, %v4334
      %v4336 = vsel %vm4139, %v3890, -inf
      %v4337 = vrot.slane %v4336, 4
      %v4338 = vmax.f32 %v4336, %v4337
      %v4339 = vrot.slane %v4338, 2
      %v4340 = vmax.f32 %v4338, %v4339
      %v4341 = vrot.slane %v4340, 1
      %v4342 = vmax.f32 %v4340, %v4341
      %v4343 = vsel %vm4139, %v3968, -inf
      %v4344 = vrot.slane %v4343, 4
      %v4345 = vmax.f32 %v4343, %v4344
      %v4346 = vrot.slane %v4345, 2
      %v4347 = vmax.f32 %v4345, %v4346
      %v4348 = vrot.slane %v4347, 1
      %v4349 = vmax.f32 %v4347, %v4348
      %v4350 = vsel %vm4139, %v3969, -inf
      %v4351 = vrot.slane %v4350, 4
      %v4352 = vmax.f32 %v4350, %v4351
      %v4353 = vrot.slane %v4352, 2
      %v4354 = vmax.f32 %v4352, %v4353
      %v4355 = vrot.slane %v4354, 1
      %v4356 = vmax.f32 %v4354, %v4355
      %v4357 = vsel %vm4139, %v3970, -inf
      %v4358 = vrot.slane %v4357, 4
      %v4359 = vmax.f32 %v4357, %v4358
      %v4360 = vrot.slane %v4359, 2
      %v4361 = vmax.f32 %v4359, %v4360
      %v4362 = vrot.slane %v4361, 1
      %v4363 = vmax.f32 %v4361, %v4362
      %v4364 = vsel %vm4139, %v3891, -inf
      %v4365 = vrot.slane %v4364, 4
      %v4366 = vmax.f32 %v4364, %v4365
      %v4367 = vrot.slane %v4366, 2
      %v4368 = vmax.f32 %v4366, %v4367
      %v4369 = vrot.slane %v4368, 1
      %v4370 = vmax.f32 %v4368, %v4369
      %v4371 = vsel %vm4139, %v3971, -inf
      %v4372 = vrot.slane %v4371, 4
      %v4373 = vmax.f32 %v4371, %v4372
      %v4374 = vrot.slane %v4373, 2
      %v4375 = vmax.f32 %v4373, %v4374
      %v4376 = vrot.slane %v4375, 1
      %v4377 = vmax.f32 %v4375, %v4376
      %v4378 = vsel %vm4139, %v3972, -inf
      %v4379 = vrot.slane %v4378, 4
      %v4380 = vmax.f32 %v4378, %v4379
      %v4381 = vrot.slane %v4380, 2
      %v4382 = vmax.f32 %v4380, %v4381
      %v4383 = vrot.slane %v4382, 1
      %v4384 = vmax.f32 %v4382, %v4383
      %v4385 = vsel %vm4139, %v3973, -inf
      %v4386 = vrot.slane %v4385, 4
      %v4387 = vmax.f32 %v4385, %v4386
      %v4388 = vrot.slane %v4387, 2
      %v4389 = vmax.f32 %v4387, %v4388
      %v4390 = vrot.slane %v4389, 1
      %v4391 = vmax.f32 %v4389, %v4390
      %v4392 = vsel %vm4139, %v3892, -inf
      %v4393 = vrot.slane %v4392, 4
      %v4394 = vmax.f32 %v4392, %v4393
      %v4395 = vrot.slane %v4394, 2
      %v4396 = vmax.f32 %v4394, %v4395
      %v4397 = vrot.slane %v4396, 1
      %v4398 = vmax.f32 %v4396, %v4397
      %v4399 = vsel %vm4139, %v3974, -inf
      %v4400 = vrot.slane %v4399, 4
      %v4401 = vmax.f32 %v4399, %v4400
      %v4402 = vrot.slane %v4401, 2
      %v4403 = vmax.f32 %v4401, %v4402
      %v4404 = vrot.slane %v4403, 1
      %v4405 = vmax.f32 %v4403, %v4404
      %v4406 = vsel %vm4139, %v3975, -inf
      %v4407 = vrot.slane %v4406, 4
      %v4408 = vmax.f32 %v4406, %v4407
      %v4409 = vrot.slane %v4408, 2
      %v4410 = vmax.f32 %v4408, %v4409
      %v4411 = vrot.slane %v4410, 1
      %v4412 = vmax.f32 %v4410, %v4411
      %v4413 = vsel %vm4139, %v3976, -inf
      %v4414 = vrot.slane %v4413, 4
      %v4415 = vmax.f32 %v4413, %v4414
      %v4416 = vrot.slane %v4415, 2
      %v4417 = vmax.f32 %v4415, %v4416
      %v4418 = vrot.slane %v4417, 1
      %v4419 = vmax.f32 %v4417, %v4418
      %v4420 = vsel %vm4139, %v3893, -inf
      %v4421 = vrot.slane %v4420, 4
      %v4422 = vmax.f32 %v4420, %v4421
      %v4423 = vrot.slane %v4422, 2
      %v4424 = vmax.f32 %v4422, %v4423
      %v4425 = vrot.slane %v4424, 1
      %v4426 = vmax.f32 %v4424, %v4425
      %v4427 = vsel %vm4139, %v3977, -inf
      %v4428 = vrot.slane %v4427, 4
      %v4429 = vmax.f32 %v4427, %v4428
      %v4430 = vrot.slane %v4429, 2
      %v4431 = vmax.f32 %v4429, %v4430
      %v4432 = vrot.slane %v4431, 1
      %v4433 = vmax.f32 %v4431, %v4432
      %v4434 = vsel %vm4139, %v3978, -inf
      %v4435 = vrot.slane %v4434, 4
      %v4436 = vmax.f32 %v4434, %v4435
      %v4437 = vrot.slane %v4436, 2
      %v4438 = vmax.f32 %v4436, %v4437
      %v4439 = vrot.slane %v4438, 1
      %v4440 = vmax.f32 %v4438, %v4439
      %v4441 = vsel %vm4139, %v3979, -inf
      %v4442 = vrot.slane %v4441, 4
      %v4443 = vmax.f32 %v4441, %v4442
      %v4444 = vrot.slane %v4443, 2
      %v4445 = vmax.f32 %v4443, %v4444
      %v4446 = vrot.slane %v4445, 1
      %v4447 = vmax.f32 %v4445, %v4446
      %v4448 = vsel %vm4139, %v3894, -inf
      %v4449 = vrot.slane %v4448, 4
      %v4450 = vmax.f32 %v4448, %v4449
      %v4451 = vrot.slane %v4450, 2
      %v4452 = vmax.f32 %v4450, %v4451
      %v4453 = vrot.slane %v4452, 1
      %v4454 = vmax.f32 %v4452, %v4453
      %v4455 = vsel %vm4139, %v3980, -inf
      %v4456 = vrot.slane %v4455, 4
      %v4457 = vmax.f32 %v4455, %v4456
      %v4458 = vrot.slane %v4457, 2
      %v4459 = vmax.f32 %v4457, %v4458
      %v4460 = vrot.slane %v4459, 1
      %v4461 = vmax.f32 %v4459, %v4460
      %v4462 = vsel %vm4139, %v3981, -inf
      %v4463 = vrot.slane %v4462, 4
      %v4464 = vmax.f32 %v4462, %v4463
      %v4465 = vrot.slane %v4464, 2
      %v4466 = vmax.f32 %v4464, %v4465
      %v4467 = vrot.slane %v4466, 1
      %v4468 = vmax.f32 %v4466, %v4467
      %v4469 = vsel %vm4139, %v3982, -inf
      %v4470 = vrot.slane %v4469, 4
      %v4471 = vmax.f32 %v4469, %v4470
      %v4472 = vrot.slane %v4471, 2
      %v4473 = vmax.f32 %v4471, %v4472
      %v4474 = vrot.slane %v4473, 1
      %v4475 = vmax.f32 %v4473, %v4474
      %v4476 = vsel %vm4139, %v3895, -inf
      %v4477 = vrot.slane %v4476, 4
      %v4478 = vmax.f32 %v4476, %v4477
      %v4479 = vrot.slane %v4478, 2
      %v4480 = vmax.f32 %v4478, %v4479
      %v4481 = vrot.slane %v4480, 1
      %v4482 = vmax.f32 %v4480, %v4481
      %v4483 = vsel %vm4139, %v3983, -inf
      %v4484 = vrot.slane %v4483, 4
      %v4485 = vmax.f32 %v4483, %v4484
      %v4486 = vrot.slane %v4485, 2
      %v4487 = vmax.f32 %v4485, %v4486
      %v4488 = vrot.slane %v4487, 1
      %v4489 = vmax.f32 %v4487, %v4488
      %v4490 = vsel %vm4139, %v3984, -inf
      %v4491 = vrot.slane %v4490, 4
      %v4492 = vmax.f32 %v4490, %v4491
      %v4493 = vrot.slane %v4492, 2
      %v4494 = vmax.f32 %v4492, %v4493
      %v4495 = vrot.slane %v4494, 1
      %v4496 = vmax.f32 %v4494, %v4495
      %v4497 = vsel %vm4139, %v3985, -inf
      %v4498 = vrot.slane %v4497, 4
      %v4499 = vmax.f32 %v4497, %v4498
      %v4500 = vrot.slane %v4499, 2
      %v4501 = vmax.f32 %v4499, %v4500
      %v4502 = vrot.slane %v4501, 1
      %v4503 = vmax.f32 %v4501, %v4502
      %v4504 = vsel %vm4139, %v3896, -inf
      %v4505 = vrot.slane %v4504, 4
      %v4506 = vmax.f32 %v4504, %v4505
      %v4507 = vrot.slane %v4506, 2
      %v4508 = vmax.f32 %v4506, %v4507
      %v4509 = vrot.slane %v4508, 1
      %v4510 = vmax.f32 %v4508, %v4509
      %v4511 = vsel %vm4139, %v3986, -inf
      %v4512 = vrot.slane %v4511, 4
      %v4513 = vmax.f32 %v4511, %v4512
      %v4514 = vrot.slane %v4513, 2
      %v4515 = vmax.f32 %v4513, %v4514
      %v4516 = vrot.slane %v4515, 1
      %v4517 = vmax.f32 %v4515, %v4516
      %v4518 = vsel %vm4139, %v3987, -inf
      %v4519 = vrot.slane %v4518, 4
      %v4520 = vmax.f32 %v4518, %v4519
      %v4521 = vrot.slane %v4520, 2
      %v4522 = vmax.f32 %v4520, %v4521
      %v4523 = vrot.slane %v4522, 1
      %v4524 = vmax.f32 %v4522, %v4523
      %v4525 = vsel %vm4139, %v3988, -inf
      %v4526 = vrot.slane %v4525, 4
      %v4527 = vmax.f32 %v4525, %v4526
      %v4528 = vrot.slane %v4527, 2
      %v4529 = vmax.f32 %v4527, %v4528
      %v4530 = vrot.slane %v4529, 1
      %v4531 = vmax.f32 %v4529, %v4530
      %v4532 = vsel %vm4139, %v3897, -inf
      %v4533 = vrot.slane %v4532, 4
      %v4534 = vmax.f32 %v4532, %v4533
      %v4535 = vrot.slane %v4534, 2
      %v4536 = vmax.f32 %v4534, %v4535
      %v4537 = vrot.slane %v4536, 1
      %v4538 = vmax.f32 %v4536, %v4537
      %v4539 = vsel %vm4139, %v3989, -inf
      %v4540 = vrot.slane %v4539, 4
      %v4541 = vmax.f32 %v4539, %v4540
      %v4542 = vrot.slane %v4541, 2
      %v4543 = vmax.f32 %v4541, %v4542
      %v4544 = vrot.slane %v4543, 1
      %v4545 = vmax.f32 %v4543, %v4544
      %v4546 = vsel %vm4139, %v3990, -inf
      %v4547 = vrot.slane %v4546, 4
      %v4548 = vmax.f32 %v4546, %v4547
      %v4549 = vrot.slane %v4548, 2
      %v4550 = vmax.f32 %v4548, %v4549
      %v4551 = vrot.slane %v4550, 1
      %v4552 = vmax.f32 %v4550, %v4551
      %v4553 = vsel %vm4139, %v3991, -inf
      %v4554 = vrot.slane %v4553, 4
      %v4555 = vmax.f32 %v4553, %v4554
      %v4556 = vrot.slane %v4555, 2
      %v4557 = vmax.f32 %v4555, %v4556
      %v4558 = vrot.slane %v4557, 1
      %v4559 = vmax.f32 %v4557, %v4558
      %v4560 = vsel %vm4139, %v3898, -inf
      %v4561 = vrot.slane %v4560, 4
      %v4562 = vmax.f32 %v4560, %v4561
      %v4563 = vrot.slane %v4562, 2
      %v4564 = vmax.f32 %v4562, %v4563
      %v4565 = vrot.slane %v4564, 1
      %v4566 = vmax.f32 %v4564, %v4565
      %v4567 = vsel %vm4139, %v3992, -inf
      %v4568 = vrot.slane %v4567, 4
      %v4569 = vmax.f32 %v4567, %v4568
      %v4570 = vrot.slane %v4569, 2
      %v4571 = vmax.f32 %v4569, %v4570
      %v4572 = vrot.slane %v4571, 1
      %v4573 = vmax.f32 %v4571, %v4572
      %v4574 = vsel %vm4139, %v3993, -inf
      %v4575 = vrot.slane %v4574, 4
      %v4576 = vmax.f32 %v4574, %v4575
      %v4577 = vrot.slane %v4576, 2
      %v4578 = vmax.f32 %v4576, %v4577
      %v4579 = vrot.slane %v4578, 1
      %v4580 = vmax.f32 %v4578, %v4579
      %v4581 = vsel %vm4139, %v3994, -inf
      %v4582 = vrot.slane %v4581, 4
      %v4583 = vmax.f32 %v4581, %v4582
      %v4584 = vrot.slane %v4583, 2
      %v4585 = vmax.f32 %v4583, %v4584
      %v4586 = vrot.slane %v4585, 1
      %v4587 = vmax.f32 %v4585, %v4586
      %v4588 = vsel %vm4139, %v3899, -inf
      %v4589 = vrot.slane %v4588, 4
      %v4590 = vmax.f32 %v4588, %v4589
      %v4591 = vrot.slane %v4590, 2
      %v4592 = vmax.f32 %v4590, %v4591
      %v4593 = vrot.slane %v4592, 1
      %v4594 = vmax.f32 %v4592, %v4593
      %v4595 = vsel %vm4139, %v3995, -inf
      %v4596 = vrot.slane %v4595, 4
      %v4597 = vmax.f32 %v4595, %v4596
      %v4598 = vrot.slane %v4597, 2
      %v4599 = vmax.f32 %v4597, %v4598
      %v4600 = vrot.slane %v4599, 1
      %v4601 = vmax.f32 %v4599, %v4600
      %v4602 = vsel %vm4139, %v3996, -inf
      %v4603 = vrot.slane %v4602, 4
      %v4604 = vmax.f32 %v4602, %v4603
      %v4605 = vrot.slane %v4604, 2
      %v4606 = vmax.f32 %v4604, %v4605
      %v4607 = vrot.slane %v4606, 1
      %v4608 = vmax.f32 %v4606, %v4607
      %v4609 = vsel %vm4139, %v3997, -inf
      %v4610 = vrot.slane %v4609, 4
      %v4611 = vmax.f32 %v4609, %v4610
      %v4612 = vrot.slane %v4611, 2
      %v4613 = vmax.f32 %v4611, %v4612
      %v4614 = vrot.slane %v4613, 1
      %v4615 = vmax.f32 %v4613, %v4614
      %v4616 = vsel %vm4139, %v3900, -inf
      %v4617 = vrot.slane %v4616, 4
      %v4618 = vmax.f32 %v4616, %v4617
      %v4619 = vrot.slane %v4618, 2
      %v4620 = vmax.f32 %v4618, %v4619
      %v4621 = vrot.slane %v4620, 1
      %v4622 = vmax.f32 %v4620, %v4621
      %v4623 = vsel %vm4139, %v3998, -inf
      %v4624 = vrot.slane %v4623, 4
      %v4625 = vmax.f32 %v4623, %v4624
      %v4626 = vrot.slane %v4625, 2
      %v4627 = vmax.f32 %v4625, %v4626
      %v4628 = vrot.slane %v4627, 1
      %v4629 = vmax.f32 %v4627, %v4628
      %v4630 = vsel %vm4139, %v3999, -inf
      %v4631 = vrot.slane %v4630, 4
      %v4632 = vmax.f32 %v4630, %v4631
      %v4633 = vrot.slane %v4632, 2
      %v4634 = vmax.f32 %v4632, %v4633
      %v4635 = vrot.slane %v4634, 1
      %v4636 = vmax.f32 %v4634, %v4635
      %v4637 = vsel %vm4139, %v4000, -inf
      %v4638 = vrot.slane %v4637, 4
      %v4639 = vmax.f32 %v4637, %v4638
      %v4640 = vrot.slane %v4639, 2
      %v4641 = vmax.f32 %v4639, %v4640
      %v4642 = vrot.slane %v4641, 1
      %v4643 = vmax.f32 %v4641, %v4642
      %v4644 = vsel %vm4139, %v3901, -inf
      %v4645 = vrot.slane %v4644, 4
      %v4646 = vmax.f32 %v4644, %v4645
      %v4647 = vrot.slane %v4646, 2
      %v4648 = vmax.f32 %v4646, %v4647
      %v4649 = vrot.slane %v4648, 1
      %v4650 = vmax.f32 %v4648, %v4649
      %v4651 = vsel %vm4139, %v4001, -inf
      %v4652 = vrot.slane %v4651, 4
      %v4653 = vmax.f32 %v4651, %v4652
      %v4654 = vrot.slane %v4653, 2
      %v4655 = vmax.f32 %v4653, %v4654
      %v4656 = vrot.slane %v4655, 1
      %v4657 = vmax.f32 %v4655, %v4656
      %v4658 = vsel %vm4139, %v4002, -inf
      %v4659 = vrot.slane %v4658, 4
      %v4660 = vmax.f32 %v4658, %v4659
      %v4661 = vrot.slane %v4660, 2
      %v4662 = vmax.f32 %v4660, %v4661
      %v4663 = vrot.slane %v4662, 1
      %v4664 = vmax.f32 %v4662, %v4663
      %v4665 = vsel %vm4139, %v4003, -inf
      %v4666 = vrot.slane %v4665, 4
      %v4667 = vmax.f32 %v4665, %v4666
      %v4668 = vrot.slane %v4667, 2
      %v4669 = vmax.f32 %v4667, %v4668
      %v4670 = vrot.slane %v4669, 1
      %v4671 = vmax.f32 %v4669, %v4670
      %v4672 = vsel %vm4139, %v3902, -inf
      %v4673 = vrot.slane %v4672, 4
      %v4674 = vmax.f32 %v4672, %v4673
      %v4675 = vrot.slane %v4674, 2
      %v4676 = vmax.f32 %v4674, %v4675
      %v4677 = vrot.slane %v4676, 1
      %v4678 = vmax.f32 %v4676, %v4677
      %v4679 = vsel %vm4139, %v4004, -inf
      %v4680 = vrot.slane %v4679, 4
      %v4681 = vmax.f32 %v4679, %v4680
      %v4682 = vrot.slane %v4681, 2
      %v4683 = vmax.f32 %v4681, %v4682
      %v4684 = vrot.slane %v4683, 1
      %v4685 = vmax.f32 %v4683, %v4684
      %v4686 = vsel %vm4139, %v4005, -inf
      %v4687 = vrot.slane %v4686, 4
      %v4688 = vmax.f32 %v4686, %v4687
      %v4689 = vrot.slane %v4688, 2
      %v4690 = vmax.f32 %v4688, %v4689
      %v4691 = vrot.slane %v4690, 1
      %v4692 = vmax.f32 %v4690, %v4691
      %v4693 = vsel %vm4139, %v4006, -inf
      %v4694 = vrot.slane %v4693, 4
      %v4695 = vmax.f32 %v4693, %v4694
      %v4696 = vrot.slane %v4695, 2
      %v4697 = vmax.f32 %v4695, %v4696
      %v4698 = vrot.slane %v4697, 1
      %v4699 = vmax.f32 %v4697, %v4698
      %v4700 = vsel %vm4139, %v3903, -inf
      %v4701 = vrot.slane %v4700, 4
      %v4702 = vmax.f32 %v4700, %v4701
      %v4703 = vrot.slane %v4702, 2
      %v4704 = vmax.f32 %v4702, %v4703
      %v4705 = vrot.slane %v4704, 1
      %v4706 = vmax.f32 %v4704, %v4705
      %v4707 = vsel %vm4139, %v4007, -inf
      %v4708 = vrot.slane %v4707, 4
      %v4709 = vmax.f32 %v4707, %v4708
      %v4710 = vrot.slane %v4709, 2
      %v4711 = vmax.f32 %v4709, %v4710
      %v4712 = vrot.slane %v4711, 1
      %v4713 = vmax.f32 %v4711, %v4712
      %v4714 = vsel %vm4139, %v4008, -inf
      %v4715 = vrot.slane %v4714, 4
      %v4716 = vmax.f32 %v4714, %v4715
      %v4717 = vrot.slane %v4716, 2
      %v4718 = vmax.f32 %v4716, %v4717
      %v4719 = vrot.slane %v4718, 1
      %v4720 = vmax.f32 %v4718, %v4719
      %v4721 = vsel %vm4139, %v4009, -inf
      %v4722 = vrot.slane %v4721, 4
      %v4723 = vmax.f32 %v4721, %v4722
      %v4724 = vrot.slane %v4723, 2
      %v4725 = vmax.f32 %v4723, %v4724
      %v4726 = vrot.slane %v4725, 1
      %v4727 = vmax.f32 %v4725, %v4726
      %v4728 = vsel %vm4139, %v3904, -inf
      %v4729 = vrot.slane %v4728, 4
      %v4730 = vmax.f32 %v4728, %v4729
      %v4731 = vrot.slane %v4730, 2
      %v4732 = vmax.f32 %v4730, %v4731
      %v4733 = vrot.slane %v4732, 1
      %v4734 = vmax.f32 %v4732, %v4733
      %v4735 = vsel %vm4139, %v4010, -inf
      %v4736 = vrot.slane %v4735, 4
      %v4737 = vmax.f32 %v4735, %v4736
      %v4738 = vrot.slane %v4737, 2
      %v4739 = vmax.f32 %v4737, %v4738
      %v4740 = vrot.slane %v4739, 1
      %v4741 = vmax.f32 %v4739, %v4740
      %v4742 = vsel %vm4139, %v4011, -inf
      %v4743 = vrot.slane %v4742, 4
      %v4744 = vmax.f32 %v4742, %v4743
      %v4745 = vrot.slane %v4744, 2
      %v4746 = vmax.f32 %v4744, %v4745
      %v4747 = vrot.slane %v4746, 1
      %v4748 = vmax.f32 %v4746, %v4747
      %v4749 = vsel %vm4139, %v4012, -inf
      %v4750 = vrot.slane %v4749, 4
      %v4751 = vmax.f32 %v4749, %v4750
      %v4752 = vrot.slane %v4751, 2
      %v4753 = vmax.f32 %v4751, %v4752
      %v4754 = vrot.slane %v4753, 1
      %v4755 = vmax.f32 %v4753, %v4754
      %v4756 = vsel %vm4139, %v3905, -inf
      %v4757 = vrot.slane %v4756, 4
      %v4758 = vmax.f32 %v4756, %v4757
      %v4759 = vrot.slane %v4758, 2
      %v4760 = vmax.f32 %v4758, %v4759
      %v4761 = vrot.slane %v4760, 1
      %v4762 = vmax.f32 %v4760, %v4761
      %v4763 = vsel %vm4139, %v4013, -inf
      %v4764 = vrot.slane %v4763, 4
      %v4765 = vmax.f32 %v4763, %v4764
      %v4766 = vrot.slane %v4765, 2
      %v4767 = vmax.f32 %v4765, %v4766
      %v4768 = vrot.slane %v4767, 1
      %v4769 = vmax.f32 %v4767, %v4768
      %v4770 = vsel %vm4139, %v4014, -inf
      %v4771 = vrot.slane %v4770, 4
      %v4772 = vmax.f32 %v4770, %v4771
      %v4773 = vrot.slane %v4772, 2
      %v4774 = vmax.f32 %v4772, %v4773
      %v4775 = vrot.slane %v4774, 1
      %v4776 = vmax.f32 %v4774, %v4775
      %v4777 = vsel %vm4139, %v4015, -inf
      %v4778 = vrot.slane %v4777, 4
      %v4779 = vmax.f32 %v4777, %v4778
      %v4780 = vrot.slane %v4779, 2
      %v4781 = vmax.f32 %v4779, %v4780
      %v4782 = vrot.slane %v4781, 1
      %v4783 = vmax.f32 %v4781, %v4782
      %v4784 = vsel %vm4139, %v3906, -inf
      %v4785 = vrot.slane %v4784, 4
      %v4786 = vmax.f32 %v4784, %v4785
      %v4787 = vrot.slane %v4786, 2
      %v4788 = vmax.f32 %v4786, %v4787
      %v4789 = vrot.slane %v4788, 1
      %v4790 = vmax.f32 %v4788, %v4789
      %v4791 = vsel %vm4139, %v4016, -inf
      %v4792 = vrot.slane %v4791, 4
      %v4793 = vmax.f32 %v4791, %v4792
      %v4794 = vrot.slane %v4793, 2
      %v4795 = vmax.f32 %v4793, %v4794
      %v4796 = vrot.slane %v4795, 1
      %v4797 = vmax.f32 %v4795, %v4796
      %v4798 = vsel %vm4139, %v4017, -inf
      %v4799 = vrot.slane %v4798, 4
      %v4800 = vmax.f32 %v4798, %v4799
      %v4801 = vrot.slane %v4800, 2
      %v4802 = vmax.f32 %v4800, %v4801
      %v4803 = vrot.slane %v4802, 1
      %v4804 = vmax.f32 %v4802, %v4803
      %v4805 = vsel %vm4139, %v4018, -inf
      %v4806 = vrot.slane %v4805, 4
      %v4807 = vmax.f32 %v4805, %v4806
      %v4808 = vrot.slane %v4807, 2
      %v4809 = vmax.f32 %v4807, %v4808
      %v4810 = vrot.slane %v4809, 1
      %v4811 = vmax.f32 %v4809, %v4810
      %v4812 = vsel %vm4139, %v3907, -inf
      %v4813 = vrot.slane %v4812, 4
      %v4814 = vmax.f32 %v4812, %v4813
      %v4815 = vrot.slane %v4814, 2
      %v4816 = vmax.f32 %v4814, %v4815
      %v4817 = vrot.slane %v4816, 1
      %v4818 = vmax.f32 %v4816, %v4817
      %v4819 = vsel %vm4139, %v4019, -inf
      %v4820 = vrot.slane %v4819, 4
      %v4821 = vmax.f32 %v4819, %v4820
      %v4822 = vrot.slane %v4821, 2
      %v4823 = vmax.f32 %v4821, %v4822
      %v4824 = vrot.slane %v4823, 1
      %v4825 = vmax.f32 %v4823, %v4824
      %v4826 = vsel %vm4139, %v4020, -inf
      %v4827 = vrot.slane %v4826, 4
      %v4828 = vmax.f32 %v4826, %v4827
      %v4829 = vrot.slane %v4828, 2
      %v4830 = vmax.f32 %v4828, %v4829
      %v4831 = vrot.slane %v4830, 1
      %v4832 = vmax.f32 %v4830, %v4831
      %v4833 = vsel %vm4139, %v4021, -inf
      %v4834 = vrot.slane %v4833, 4
      %v4835 = vmax.f32 %v4833, %v4834
      %v4836 = vrot.slane %v4835, 2
      %v4837 = vmax.f32 %v4835, %v4836
      %v4838 = vrot.slane %v4837, 1
      %v4839 = vmax.f32 %v4837, %v4838
      %v4840 = vsel %vm4139, %v3908, -inf
      %v4841 = vrot.slane %v4840, 4
      %v4842 = vmax.f32 %v4840, %v4841
      %v4843 = vrot.slane %v4842, 2
      %v4844 = vmax.f32 %v4842, %v4843
      %v4845 = vrot.slane %v4844, 1
      %v4846 = vmax.f32 %v4844, %v4845
      %v4847 = vsel %vm4139, %v4022, -inf
      %v4848 = vrot.slane %v4847, 4
      %v4849 = vmax.f32 %v4847, %v4848
      %v4850 = vrot.slane %v4849, 2
      %v4851 = vmax.f32 %v4849, %v4850
      %v4852 = vrot.slane %v4851, 1
      %v4853 = vmax.f32 %v4851, %v4852
      %v4854 = vsel %vm4139, %v4023, -inf
      %v4855 = vrot.slane %v4854, 4
      %v4856 = vmax.f32 %v4854, %v4855
      %v4857 = vrot.slane %v4856, 2
      %v4858 = vmax.f32 %v4856, %v4857
      %v4859 = vrot.slane %v4858, 1
      %v4860 = vmax.f32 %v4858, %v4859
      %v4861 = vsel %vm4139, %v4024, -inf
      %v4862 = vrot.slane %v4861, 4
      %v4863 = vmax.f32 %v4861, %v4862
      %v4864 = vrot.slane %v4863, 2
      %v4865 = vmax.f32 %v4863, %v4864
      %v4866 = vrot.slane %v4865, 1
      %v4867 = vmax.f32 %v4865, %v4866
      %v4868 = vsel %vm4139, %v3909, -inf
      %v4869 = vrot.slane %v4868, 4
      %v4870 = vmax.f32 %v4868, %v4869
      %v4871 = vrot.slane %v4870, 2
      %v4872 = vmax.f32 %v4870, %v4871
      %v4873 = vrot.slane %v4872, 1
      %v4874 = vmax.f32 %v4872, %v4873
      %v4875 = vsel %vm4139, %v4025, -inf
      %v4876 = vrot.slane %v4875, 4
      %v4877 = vmax.f32 %v4875, %v4876
      %v4878 = vrot.slane %v4877, 2
      %v4879 = vmax.f32 %v4877, %v4878
      %v4880 = vrot.slane %v4879, 1
      %v4881 = vmax.f32 %v4879, %v4880
      %v4882 = vsel %vm4139, %v4026, -inf
      %v4883 = vrot.slane %v4882, 4
      %v4884 = vmax.f32 %v4882, %v4883
      %v4885 = vrot.slane %v4884, 2
      %v4886 = vmax.f32 %v4884, %v4885
      %v4887 = vrot.slane %v4886, 1
      %v4888 = vmax.f32 %v4886, %v4887
      %v4889 = vsel %vm4139, %v4027, -inf
      %v4890 = vrot.slane %v4889, 4
      %v4891 = vmax.f32 %v4889, %v4890
      %v4892 = vrot.slane %v4891, 2
      %v4893 = vmax.f32 %v4891, %v4892
      %v4894 = vrot.slane %v4893, 1
      %v4895 = vmax.f32 %v4893, %v4894
      %v4896 = vsel %vm4139, %v3910, -inf
      %v4897 = vrot.slane %v4896, 4
      %v4898 = vmax.f32 %v4896, %v4897
      %v4899 = vrot.slane %v4898, 2
      %v4900 = vmax.f32 %v4898, %v4899
      %v4901 = vrot.slane %v4900, 1
      %v4902 = vmax.f32 %v4900, %v4901
      %v4903 = vsel %vm4139, %v4028, -inf
      %v4904 = vrot.slane %v4903, 4
      %v4905 = vmax.f32 %v4903, %v4904
      %v4906 = vrot.slane %v4905, 2
      %v4907 = vmax.f32 %v4905, %v4906
      %v4908 = vrot.slane %v4907, 1
      %v4909 = vmax.f32 %v4907, %v4908
      %v4910 = vsel %vm4139, %v4029, -inf
      %v4911 = vrot.slane %v4910, 4
      %v4912 = vmax.f32 %v4910, %v4911
      %v4913 = vrot.slane %v4912, 2
      %v4914 = vmax.f32 %v4912, %v4913
      %v4915 = vrot.slane %v4914, 1
      %v4916 = vmax.f32 %v4914, %v4915
      %v4917 = vsel %vm4139, %v4030, -inf
      %v4918 = vrot.slane %v4917, 4
      %v4919 = vmax.f32 %v4917, %v4918
      %v4920 = vrot.slane %v4919, 2
      %v4921 = vmax.f32 %v4919, %v4920
      %v4922 = vrot.slane %v4921, 1
      %v4923 = vmax.f32 %v4921, %v4922
      %v4924 = vsel %vm4139, %v3911, -inf
      %v4925 = vrot.slane %v4924, 4
      %v4926 = vmax.f32 %v4924, %v4925
      %v4927 = vrot.slane %v4926, 2
      %v4928 = vmax.f32 %v4926, %v4927
      %v4929 = vrot.slane %v4928, 1
      %v4930 = vmax.f32 %v4928, %v4929
      %v4931 = vsel %vm4139, %v4031, -inf
      %v4932 = vrot.slane %v4931, 4
      %v4933 = vmax.f32 %v4931, %v4932
      %v4934 = vrot.slane %v4933, 2
      %v4935 = vmax.f32 %v4933, %v4934
      %v4936 = vrot.slane %v4935, 1
      %v4937 = vmax.f32 %v4935, %v4936
      %v4938 = vsel %vm4139, %v4032, -inf
      %v4939 = vrot.slane %v4938, 4
      %v4940 = vmax.f32 %v4938, %v4939
      %v4941 = vrot.slane %v4940, 2
      %v4942 = vmax.f32 %v4940, %v4941
      %v4943 = vrot.slane %v4942, 1
      %v4944 = vmax.f32 %v4942, %v4943
      %v4945 = vsel %vm4139, %v4033, -inf
      %v4946 = vrot.slane %v4945, 4
      %v4947 = vmax.f32 %v4945, %v4946
      %v4948 = vrot.slane %v4947, 2
      %v4949 = vmax.f32 %v4947, %v4948
      %v4950 = vrot.slane %v4949, 1
      %v4951 = vmax.f32 %v4949, %v4950
      %v4952 = vsel %vm4139, %v3912, -inf
      %v4953 = vrot.slane %v4952, 4
      %v4954 = vmax.f32 %v4952, %v4953
      %v4955 = vrot.slane %v4954, 2
      %v4956 = vmax.f32 %v4954, %v4955
      %v4957 = vrot.slane %v4956, 1
      %v4958 = vmax.f32 %v4956, %v4957
      %v4959 = vsel %vm4139, %v4034, -inf
      %v4960 = vrot.slane %v4959, 4
      %v4961 = vmax.f32 %v4959, %v4960
      %v4962 = vrot.slane %v4961, 2
      %v4963 = vmax.f32 %v4961, %v4962
      %v4964 = vrot.slane %v4963, 1
      %v4965 = vmax.f32 %v4963, %v4964
      %v4966 = vsel %vm4139, %v4035, -inf
      %v4967 = vrot.slane %v4966, 4
      %v4968 = vmax.f32 %v4966, %v4967
      %v4969 = vrot.slane %v4968, 2
      %v4970 = vmax.f32 %v4968, %v4969
      %v4971 = vrot.slane %v4970, 1
      %v4972 = vmax.f32 %v4970, %v4971
      %v4973 = vsel %vm4139, %v4036, -inf
      %v4974 = vrot.slane %v4973, 4
      %v4975 = vmax.f32 %v4973, %v4974
      %v4976 = vrot.slane %v4975, 2
      %v4977 = vmax.f32 %v4975, %v4976
      %v4978 = vrot.slane %v4977, 1
      %v4979 = vmax.f32 %v4977, %v4978
      %v4980 = vsel %vm4139, %v3913, -inf
      %v4981 = vrot.slane %v4980, 4
      %v4982 = vmax.f32 %v4980, %v4981
      %v4983 = vrot.slane %v4982, 2
      %v4984 = vmax.f32 %v4982, %v4983
      %v4985 = vrot.slane %v4984, 1
      %v4986 = vmax.f32 %v4984, %v4985
      %v4987 = vsel %vm4139, %v4037, -inf
      %v4988 = vrot.slane %v4987, 4
      %v4989 = vmax.f32 %v4987, %v4988
      %v4990 = vrot.slane %v4989, 2
      %v4991 = vmax.f32 %v4989, %v4990
      %v4992 = vrot.slane %v4991, 1
      %v4993 = vmax.f32 %v4991, %v4992
      %v4994 = vsel %vm4139, %v4038, -inf
      %v4995 = vrot.slane %v4994, 4
      %v4996 = vmax.f32 %v4994, %v4995
      %v4997 = vrot.slane %v4996, 2
      %v4998 = vmax.f32 %v4996, %v4997
      %v4999 = vrot.slane %v4998, 1
      %v5000 = vmax.f32 %v4998, %v4999
      %v5001 = vsel %vm4139, %v4039, -inf
      %v5002 = vrot.slane %v5001, 4
      %v5003 = vmax.f32 %v5001, %v5002
      %v5004 = vrot.slane %v5003, 2
      %v5005 = vmax.f32 %v5003, %v5004
      %v5006 = vrot.slane %v5005, 1
      %v5007 = vmax.f32 %v5005, %v5006
      %v5008 = vsel %vm4139, %v3914, -inf
      %v5009 = vrot.slane %v5008, 4
      %v5010 = vmax.f32 %v5008, %v5009
      %v5011 = vrot.slane %v5010, 2
      %v5012 = vmax.f32 %v5010, %v5011
      %v5013 = vrot.slane %v5012, 1
      %v5014 = vmax.f32 %v5012, %v5013
      %v5015 = vsel %vm4139, %v4040, -inf
      %v5016 = vrot.slane %v5015, 4
      %v5017 = vmax.f32 %v5015, %v5016
      %v5018 = vrot.slane %v5017, 2
      %v5019 = vmax.f32 %v5017, %v5018
      %v5020 = vrot.slane %v5019, 1
      %v5021 = vmax.f32 %v5019, %v5020
      %v5022 = vsel %vm4139, %v4041, -inf
      %v5023 = vrot.slane %v5022, 4
      %v5024 = vmax.f32 %v5022, %v5023
      %v5025 = vrot.slane %v5024, 2
      %v5026 = vmax.f32 %v5024, %v5025
      %v5027 = vrot.slane %v5026, 1
      %v5028 = vmax.f32 %v5026, %v5027
      %v5029 = vsel %vm4139, %v4042, -inf
      %v5030 = vrot.slane %v5029, 4
      %v5031 = vmax.f32 %v5029, %v5030
      %v5032 = vrot.slane %v5031, 2
      %v5033 = vmax.f32 %v5031, %v5032
      %v5034 = vrot.slane %v5033, 1
      %v5035 = vmax.f32 %v5033, %v5034
      %v5036 = vsel %vm3369, %v4146, -inf
      %v5037 = vsel %vm3369, %v4202, -inf
      %v5038 = vmax.f32 %v5036, %v5037
      %v5039 = vsel %vm3369, %v4153, -inf
      %v5040 = vsel %vm3369, %v4209, -inf
      %v5041 = vmax.f32 %v5039, %v5040
      %v5042 = vsel %vm3369, %v4160, -inf
      %v5043 = vsel %vm3369, %v4216, -inf
      %v5044 = vmax.f32 %v5042, %v5043
      %v5045 = vsel %vm3369, %v4167, -inf
      %v5046 = vsel %vm3369, %v4223, -inf
      %v5047 = vmax.f32 %v5045, %v5046
      %v5048 = vsel %vm3369, %v4174, -inf
      %v5049 = vsel %vm3369, %v4230, -inf
      %v5050 = vmax.f32 %v5048, %v5049
      %v5051 = vsel %vm3369, %v4181, -inf
      %v5052 = vsel %vm3369, %v4237, -inf
      %v5053 = vmax.f32 %v5051, %v5052
      %v5054 = vsel %vm3369, %v4188, -inf
      %v5055 = vsel %vm3369, %v4244, -inf
      %v5056 = vmax.f32 %v5054, %v5055
      %v5057 = vsel %vm3369, %v4195, -inf
      %v5058 = vsel %vm3369, %v4251, -inf
      %v5059 = vmax.f32 %v5057, %v5058
      %v5060 = vsel %vm3369, %v4258, -inf
      %v5061 = vsel %vm3369, %v4314, -inf
      %v5062 = vmax.f32 %v5060, %v5061
      %v5063 = vsel %vm3369, %v4265, -inf
      %v5064 = vsel %vm3369, %v4321, -inf
      %v5065 = vmax.f32 %v5063, %v5064
      %v5066 = vsel %vm3369, %v4272, -inf
      %v5067 = vsel %vm3369, %v4328, -inf
      %v5068 = vmax.f32 %v5066, %v5067
      %v5069 = vsel %vm3369, %v4279, -inf
      %v5070 = vsel %vm3369, %v4335, -inf
      %v5071 = vmax.f32 %v5069, %v5070
      %v5072 = vsel %vm3369, %v4286, -inf
      %v5073 = vsel %vm3369, %v4342, -inf
      %v5074 = vmax.f32 %v5072, %v5073
      %v5075 = vsel %vm3369, %v4293, -inf
      %v5076 = vsel %vm3369, %v4349, -inf
      %v5077 = vmax.f32 %v5075, %v5076
      %v5078 = vsel %vm3369, %v4300, -inf
      %v5079 = vsel %vm3369, %v4356, -inf
      %v5080 = vmax.f32 %v5078, %v5079
      %v5081 = vsel %vm3369, %v4307, -inf
      %v5082 = vsel %vm3369, %v4363, -inf
      %v5083 = vmax.f32 %v5081, %v5082
      %v5084 = vsel %vm3369, %v4370, -inf
      %v5085 = vsel %vm3369, %v4426, -inf
      %v5086 = vmax.f32 %v5084, %v5085
      %v5087 = vsel %vm3369, %v4377, -inf
      %v5088 = vsel %vm3369, %v4433, -inf
      %v5089 = vmax.f32 %v5087, %v5088
      %v5090 = vsel %vm3369, %v4384, -inf
      %v5091 = vsel %vm3369, %v4440, -inf
      %v5092 = vmax.f32 %v5090, %v5091
      %v5093 = vsel %vm3369, %v4391, -inf
      %v5094 = vsel %vm3369, %v4447, -inf
      %v5095 = vmax.f32 %v5093, %v5094
      %v5096 = vsel %vm3369, %v4398, -inf
      %v5097 = vsel %vm3369, %v4454, -inf
      %v5098 = vmax.f32 %v5096, %v5097
      %v5099 = vsel %vm3369, %v4405, -inf
      %v5100 = vsel %vm3369, %v4461, -inf
      %v5101 = vmax.f32 %v5099, %v5100
      %v5102 = vsel %vm3369, %v4412, -inf
      %v5103 = vsel %vm3369, %v4468, -inf
      %v5104 = vmax.f32 %v5102, %v5103
      %v5105 = vsel %vm3369, %v4419, -inf
      %v5106 = vsel %vm3369, %v4475, -inf
      %v5107 = vmax.f32 %v5105, %v5106
      %v5108 = vsel %vm3369, %v4482, -inf
      %v5109 = vsel %vm3369, %v4538, -inf
      %v5110 = vmax.f32 %v5108, %v5109
      %v5111 = vsel %vm3369, %v4489, -inf
      %v5112 = vsel %vm3369, %v4545, -inf
      %v5113 = vmax.f32 %v5111, %v5112
      %v5114 = vsel %vm3369, %v4496, -inf
      %v5115 = vsel %vm3369, %v4552, -inf
      %v5116 = vmax.f32 %v5114, %v5115
      %v5117 = vsel %vm3369, %v4503, -inf
      %v5118 = vsel %vm3369, %v4559, -inf
      %v5119 = vmax.f32 %v5117, %v5118
      %v5120 = vsel %vm3369, %v4510, -inf
      %v5121 = vsel %vm3369, %v4566, -inf
      %v5122 = vmax.f32 %v5120, %v5121
      %v5123 = vsel %vm3369, %v4517, -inf
      %v5124 = vsel %vm3369, %v4573, -inf
      %v5125 = vmax.f32 %v5123, %v5124
      %v5126 = vsel %vm3369, %v4524, -inf
      %v5127 = vsel %vm3369, %v4580, -inf
      %v5128 = vmax.f32 %v5126, %v5127
      %v5129 = vsel %vm3369, %v4531, -inf
      %v5130 = vsel %vm3369, %v4587, -inf
      %v5131 = vmax.f32 %v5129, %v5130
      %v5132 = vsel %vm3369, %v4594, -inf
      %v5133 = vsel %vm3369, %v4650, -inf
      %v5134 = vmax.f32 %v5132, %v5133
      %v5135 = vsel %vm3369, %v4601, -inf
      %v5136 = vsel %vm3369, %v4657, -inf
      %v5137 = vmax.f32 %v5135, %v5136
      %v5138 = vsel %vm3369, %v4608, -inf
      %v5139 = vsel %vm3369, %v4664, -inf
      %v5140 = vmax.f32 %v5138, %v5139
      %v5141 = vsel %vm3369, %v4615, -inf
      %v5142 = vsel %vm3369, %v4671, -inf
      %v5143 = vmax.f32 %v5141, %v5142
      %v5144 = vsel %vm3369, %v4622, -inf
      %v5145 = vsel %vm3369, %v4678, -inf
      %v5146 = vmax.f32 %v5144, %v5145
      %v5147 = vsel %vm3369, %v4629, -inf
      %v5148 = vsel %vm3369, %v4685, -inf
      %v5149 = vmax.f32 %v5147, %v5148
      %v5150 = vsel %vm3369, %v4636, -inf
      %v5151 = vsel %vm3369, %v4692, -inf
      %v5152 = vmax.f32 %v5150, %v5151
      %v5153 = vsel %vm3369, %v4643, -inf
      %v5154 = vsel %vm3369, %v4699, -inf
      %v5155 = vmax.f32 %v5153, %v5154
      %v5156 = vsel %vm3369, %v4706, -inf
      %v5157 = vsel %vm3369, %v4762, -inf
      %v5158 = vmax.f32 %v5156, %v5157
      %v5159 = vsel %vm3369, %v4713, -inf
      %v5160 = vsel %vm3369, %v4769, -inf
      %v5161 = vmax.f32 %v5159, %v5160
      %v5162 = vsel %vm3369, %v4720, -inf
      %v5163 = vsel %vm3369, %v4776, -inf
      %v5164 = vmax.f32 %v5162, %v5163
      %v5165 = vsel %vm3369, %v4727, -inf
      %v5166 = vsel %vm3369, %v4783, -inf
      %v5167 = vmax.f32 %v5165, %v5166
      %v5168 = vsel %vm3369, %v4734, -inf
      %v5169 = vsel %vm3369, %v4790, -inf
      %v5170 = vmax.f32 %v5168, %v5169
      %v5171 = vsel %vm3369, %v4741, -inf
      %v5172 = vsel %vm3369, %v4797, -inf
      %v5173 = vmax.f32 %v5171, %v5172
      %v5174 = vsel %vm3369, %v4748, -inf
      %v5175 = vsel %vm3369, %v4804, -inf
      %v5176 = vmax.f32 %v5174, %v5175
      %v5177 = vsel %vm3369, %v4755, -inf
      %v5178 = vsel %vm3369, %v4811, -inf
      %v5179 = vmax.f32 %v5177, %v5178
      %v5180 = vsel %vm3369, %v4818, -inf
      %v5181 = vsel %vm3369, %v4874, -inf
      %v5182 = vmax.f32 %v5180, %v5181
      %v5183 = vsel %vm3369, %v4825, -inf
      %v5184 = vsel %vm3369, %v4881, -inf
      %v5185 = vmax.f32 %v5183, %v5184
      %v5186 = vsel %vm3369, %v4832, -inf
      %v5187 = vsel %vm3369, %v4888, -inf
      %v5188 = vmax.f32 %v5186, %v5187
      %v5189 = vsel %vm3369, %v4839, -inf
      %v5190 = vsel %vm3369, %v4895, -inf
      %v5191 = vmax.f32 %v5189, %v5190
      %v5192 = vsel %vm3369, %v4846, -inf
      %v5193 = vsel %vm3369, %v4902, -inf
      %v5194 = vmax.f32 %v5192, %v5193
      %v5195 = vsel %vm3369, %v4853, -inf
      %v5196 = vsel %vm3369, %v4909, -inf
      %v5197 = vmax.f32 %v5195, %v5196
      %v5198 = vsel %vm3369, %v4860, -inf
      %v5199 = vsel %vm3369, %v4916, -inf
      %v5200 = vmax.f32 %v5198, %v5199
      %v5201 = vsel %vm3369, %v4867, -inf
      %v5202 = vsel %vm3369, %v4923, -inf
      %v5203 = vmax.f32 %v5201, %v5202
      %v5204 = vsel %vm3369, %v4930, -inf
      %v5205 = vsel %vm3369, %v4986, -inf
      %v5206 = vmax.f32 %v5204, %v5205
      %v5207 = vsel %vm3369, %v4937, -inf
      %v5208 = vsel %vm3369, %v4993, -inf
      %v5209 = vmax.f32 %v5207, %v5208
      %v5210 = vsel %vm3369, %v4944, -inf
      %v5211 = vsel %vm3369, %v5000, -inf
      %v5212 = vmax.f32 %v5210, %v5211
      %v5213 = vsel %vm3369, %v4951, -inf
      %v5214 = vsel %vm3369, %v5007, -inf
      %v5215 = vmax.f32 %v5213, %v5214
      %v5216 = vsel %vm3369, %v4958, -inf
      %v5217 = vsel %vm3369, %v5014, -inf
      %v5218 = vmax.f32 %v5216, %v5217
      %v5219 = vsel %vm3369, %v4965, -inf
      %v5220 = vsel %vm3369, %v5021, -inf
      %v5221 = vmax.f32 %v5219, %v5220
      %v5222 = vsel %vm3369, %v4972, -inf
      %v5223 = vsel %vm3369, %v5028, -inf
      %v5224 = vmax.f32 %v5222, %v5223
      %v5225 = vsel %vm3369, %v4979, -inf
      %v5226 = vsel %vm3369, %v5035, -inf
      %v5227 = vmax.f32 %v5225, %v5226
      %v5228 = vld [vmem:[%s5] sm:$0xf]
      %v5229 = vld [vmem:[%s5 + $0x4] sm:$0xf]
      %v5230 = vld [vmem:[%s5 + $0x8] sm:$0xf]
      %v5231 = vld [vmem:[%s5 + $0xc] sm:$0xf]
      %v5232 = vld [vmem:[%s5 + $0x10] sm:$0xf]
      %v5233 = vld [vmem:[%s5 + $0x14] sm:$0xf]
      %v5234 = vld [vmem:[%s5 + $0x18] sm:$0xf]
      %v5235 = vld [vmem:[%s5 + $0x1c] sm:$0xf]
      %v5236 = vld [vmem:[%s5 + $0x20] sm:$0xf]
      %vm5301 = vcmask 1042434
      %v5302 = vsel %vm5301, %v5041, %v5038
      %vm5303 = vcmask 1043459
      %v5304 = vsel %vm5303, %v5044, %v5302
      %vm5305 = vcmask 1044484
      %v5306 = vsel %vm5305, %v5047, %v5304
      %vm5307 = vcmask 1045509
      %v5308 = vsel %vm5307, %v5050, %v5306
      %vm5309 = vcmask 1046534
      %v5310 = vsel %vm5309, %v5053, %v5308
      %vm5311 = vcmask 1047559
      %v5312 = vsel %vm5311, %v5056, %v5310
      %v5313 = vsel %vm5301, %v5065, %v5062
      %v5314 = vsel %vm5303, %v5068, %v5313
      %v5315 = vsel %vm5305, %v5071, %v5314
      %v5316 = vsel %vm5307, %v5074, %v5315
      %v5317 = vsel %vm5309, %v5077, %v5316
      %v5318 = vsel %vm5311, %v5080, %v5317
      %v5319 = vsel %vm5301, %v5089, %v5086
      %v5320 = vsel %vm5303, %v5092, %v5319
      %v5321 = vsel %vm5305, %v5095, %v5320
      %v5322 = vsel %vm5307, %v5098, %v5321
      %v5323 = vsel %vm5309, %v5101, %v5322
      %v5324 = vsel %vm5311, %v5104, %v5323
      %v5325 = vsel %vm5301, %v5113, %v5110
      %v5326 = vsel %vm5303, %v5116, %v5325
      %v5327 = vsel %vm5305, %v5119, %v5326
      %v5328 = vsel %vm5307, %v5122, %v5327
      %v5329 = vsel %vm5309, %v5125, %v5328
      %v5330 = vsel %vm5311, %v5128, %v5329
      %v5331 = vsel %vm5301, %v5137, %v5134
      %v5332 = vsel %vm5303, %v5140, %v5331
      %v5333 = vsel %vm5305, %v5143, %v5332
      %v5334 = vsel %vm5307, %v5146, %v5333
      %v5335 = vsel %vm5309, %v5149, %v5334
      %v5336 = vsel %vm5311, %v5152, %v5335
      %v5337 = vsel %vm5301, %v5161, %v5158
      %v5338 = vsel %vm5303, %v5164, %v5337
      %v5339 = vsel %vm5305, %v5167, %v5338
      %v5340 = vsel %vm5307, %v5170, %v5339
      %v5341 = vsel %vm5309, %v5173, %v5340
      %v5342 = vsel %vm5311, %v5176, %v5341
      %v5343 = vsel %vm5301, %v5185, %v5182
      %v5344 = vsel %vm5303, %v5188, %v5343
      %v5345 = vsel %vm5305, %v5191, %v5344
      %v5346 = vsel %vm5307, %v5194, %v5345
      %v5347 = vsel %vm5309, %v5197, %v5346
      %v5348 = vsel %vm5311, %v5200, %v5347
      %v5349 = vsel %vm5301, %v5209, %v5206
      %v5350 = vsel %vm5303, %v5212, %v5349
      %v5351 = vsel %vm5305, %v5215, %v5350
      %v5352 = vsel %vm5307, %v5218, %v5351
      %v5353 = vsel %vm5309, %v5221, %v5352
      %v5354 = vsel %vm5311, %v5224, %v5353
      %v5371 = vsel %vm643, 0.0, %v5312
      %v5372 = vsel %vm643, 0.0, %v5318
      %v5373 = vsel %vm643, 0.0, %v5324
      %v5374 = vsel %vm643, 0.0, %v5330
      %v5375 = vsel %vm643, 0.0, %v5336
      %v5376 = vsel %vm643, 0.0, %v5342
      %v5377 = vsel %vm643, 0.0, %v5348
      %v5378 = vsel %vm643, 0.0, %v5354
      %v5379 = vsel %vm643, %v5059, 0.0
      %v5380 = vsel %vm643, %v5083, 0.0
      %v5381 = vsel %vm643, %v5107, 0.0
      %v5382 = vsel %vm643, %v5131, 0.0
      %v5383 = vsel %vm643, %v5155, 0.0
      %v5384 = vsel %vm643, %v5179, 0.0
      %v5385 = vsel %vm643, %v5203, 0.0
      %v5386 = vsel %vm643, %v5227, 0.0
      %v5401 = vrot.slane %v5371, 1
      %v5402 = vrot.slane %v5379, 1
      %v5403 = vsel %vm802, %v5401, %v5402
      %v5404 = vrot.slane %v5372, 1
      %v5405 = vrot.slane %v5380, 1
      %v5406 = vsel %vm802, %v5404, %v5405
      %v5407 = vrot.slane %v5373, 1
      %v5408 = vrot.slane %v5381, 1
      %v5409 = vsel %vm802, %v5407, %v5408
      %v5410 = vrot.slane %v5374, 1
      %v5411 = vrot.slane %v5382, 1
      %v5412 = vsel %vm802, %v5410, %v5411
      %v5413 = vrot.slane %v5375, 1
      %v5414 = vrot.slane %v5383, 1
      %v5415 = vsel %vm802, %v5413, %v5414
      %v5416 = vrot.slane %v5376, 1
      %v5417 = vrot.slane %v5384, 1
      %v5418 = vsel %vm802, %v5416, %v5417
      %v5419 = vrot.slane %v5377, 1
      %v5420 = vrot.slane %v5385, 1
      %v5421 = vsel %vm802, %v5419, %v5420
      %5422 = vrot.lane.b32.xlu0 %v5403, 8
      %v5423 = vpop.permute.xlu0 %5422
      %5424 = vrot.lane.b32.xlu0 %v5406, 8
      %v5425 = vpop.permute.xlu0 %5424
      %5426 = vrot.lane.b32.xlu0 %v5409, 8
      %v5427 = vpop.permute.xlu0 %5426
      %5428 = vrot.lane.b32.xlu0 %v5412, 8
      %v5429 = vpop.permute.xlu0 %5428
      %5430 = vrot.lane.b32.xlu0 %v5415, 8
      %v5431 = vpop.permute.xlu0 %5430
      %5432 = vrot.lane.b32.xlu0 %v5418, 8
      %v5433 = vpop.permute.xlu0 %5432
      %5434 = vrot.lane.b32.xlu0 %v5421, 8
      %v5435 = vpop.permute.xlu0 %5434
      %v5443 = vrot.slane %v5371, 2
      %v5444 = vrot.slane %v5379, 2
      %v5445 = vsel %vm973, %v5443, %v5444
      %v5446 = vrot.slane %v5372, 2
      %v5447 = vrot.slane %v5380, 2
      %v5448 = vsel %vm973, %v5446, %v5447
      %v5449 = vrot.slane %v5373, 2
      %v5450 = vrot.slane %v5381, 2
      %v5451 = vsel %vm973, %v5449, %v5450
      %v5452 = vrot.slane %v5374, 2
      %v5453 = vrot.slane %v5382, 2
      %v5454 = vsel %vm973, %v5452, %v5453
      %v5455 = vrot.slane %v5375, 2
      %v5456 = vrot.slane %v5383, 2
      %v5457 = vsel %vm973, %v5455, %v5456
      %v5458 = vrot.slane %v5376, 2
      %v5459 = vrot.slane %v5384, 2
      %v5460 = vsel %vm973, %v5458, %v5459
      %v5461 = vrot.slane %v5377, 2
      %v5462 = vrot.slane %v5385, 2
      %v5463 = vsel %vm973, %v5461, %v5462
      %5464 = vrot.lane.b32.xlu0 %v5445, 16
      %v5465 = vpop.permute.xlu0 %5464
      %5466 = vrot.lane.b32.xlu0 %v5448, 16
      %v5467 = vpop.permute.xlu0 %5466
      %5468 = vrot.lane.b32.xlu0 %v5451, 16
      %v5469 = vpop.permute.xlu0 %5468
      %5470 = vrot.lane.b32.xlu0 %v5454, 16
      %v5471 = vpop.permute.xlu0 %5470
      %5472 = vrot.lane.b32.xlu0 %v5457, 16
      %v5473 = vpop.permute.xlu0 %5472
      %5474 = vrot.lane.b32.xlu0 %v5460, 16
      %v5475 = vpop.permute.xlu0 %5474
      %5476 = vrot.lane.b32.xlu0 %v5463, 16
      %v5477 = vpop.permute.xlu0 %5476
      %5486 = vrot.lane.b32.xlu0 %v5371, 24
      %v5487 = vpop.permute.xlu0 %5486
      %5488 = vrot.lane.b32.xlu0 %v5372, 24
      %v5489 = vpop.permute.xlu0 %5488
      %5490 = vrot.lane.b32.xlu0 %v5373, 24
      %v5491 = vpop.permute.xlu0 %5490
      %5492 = vrot.lane.b32.xlu0 %v5374, 24
      %v5493 = vpop.permute.xlu0 %5492
      %5494 = vrot.lane.b32.xlu0 %v5375, 24
      %v5495 = vpop.permute.xlu0 %5494
      %5496 = vrot.lane.b32.xlu0 %v5376, 24
      %v5497 = vpop.permute.xlu0 %5496
      %5498 = vrot.lane.b32.xlu0 %v5377, 24
      %v5499 = vpop.permute.xlu0 %5498
      %5500 = vrot.lane.b32.xlu0 %v5378, 24
      %v5501 = vpop.permute.xlu0 %5500
      %v5511 = vrot.slane %v5378, 1
      %v5512 = vrot.slane %v5386, 1
      %v5513 = vsel %vm802, %v5511, %v5512
      %5514 = vrot.lane.b32.xlu0 %v5403, 32
      %v5515 = vpop.permute.xlu0 %5514
      %5516 = vrot.lane.b32.xlu0 %v5406, 32
      %v5517 = vpop.permute.xlu0 %5516
      %5518 = vrot.lane.b32.xlu0 %v5409, 32
      %v5519 = vpop.permute.xlu0 %5518
      %5520 = vrot.lane.b32.xlu0 %v5412, 32
      %v5521 = vpop.permute.xlu0 %5520
      %5522 = vrot.lane.b32.xlu0 %v5415, 32
      %v5523 = vpop.permute.xlu0 %5522
      %5524 = vrot.lane.b32.xlu0 %v5418, 32
      %v5525 = vpop.permute.xlu0 %5524
      %5526 = vrot.lane.b32.xlu0 %v5421, 32
      %v5527 = vpop.permute.xlu0 %5526
      %5528 = vrot.lane.b32.xlu0 %v5513, 32
      %v5529 = vpop.permute.xlu0 %5528
      %v5538 = vrot.slane %v5378, 2
      %v5539 = vrot.slane %v5386, 2
      %v5540 = vsel %vm973, %v5538, %v5539
      %5541 = vrot.lane.b32.xlu0 %v5445, 40
      %v5542 = vpop.permute.xlu0 %5541
      %5543 = vrot.lane.b32.xlu0 %v5448, 40
      %v5544 = vpop.permute.xlu0 %5543
      %5545 = vrot.lane.b32.xlu0 %v5451, 40
      %v5546 = vpop.permute.xlu0 %5545
      %5547 = vrot.lane.b32.xlu0 %v5454, 40
      %v5548 = vpop.permute.xlu0 %5547
      %5549 = vrot.lane.b32.xlu0 %v5457, 40
      %v5550 = vpop.permute.xlu0 %5549
      %5551 = vrot.lane.b32.xlu0 %v5460, 40
      %v5552 = vpop.permute.xlu0 %5551
      %5553 = vrot.lane.b32.xlu0 %v5463, 40
      %v5554 = vpop.permute.xlu0 %5553
      %5555 = vrot.lane.b32.xlu0 %v5540, 40
      %v5556 = vpop.permute.xlu0 %5555
      %5565 = vrot.lane.b32.xlu0 %v5372, 48
      %v5566 = vpop.permute.xlu0 %5565
      %5567 = vrot.lane.b32.xlu0 %v5373, 48
      %v5568 = vpop.permute.xlu0 %5567
      %5569 = vrot.lane.b32.xlu0 %v5374, 48
      %v5570 = vpop.permute.xlu0 %5569
      %5571 = vrot.lane.b32.xlu0 %v5375, 48
      %v5572 = vpop.permute.xlu0 %5571
      %5573 = vrot.lane.b32.xlu0 %v5376, 48
      %v5574 = vpop.permute.xlu0 %5573
      %5575 = vrot.lane.b32.xlu0 %v5377, 48
      %v5576 = vpop.permute.xlu0 %5575
      %5577 = vrot.lane.b32.xlu0 %v5378, 48
      %v5578 = vpop.permute.xlu0 %5577
      %5586 = vrot.lane.b32.xlu0 %v5406, 56
      %v5587 = vpop.permute.xlu0 %5586
      %5588 = vrot.lane.b32.xlu0 %v5409, 56
      %v5589 = vpop.permute.xlu0 %5588
      %5590 = vrot.lane.b32.xlu0 %v5412, 56
      %v5591 = vpop.permute.xlu0 %5590
      %5592 = vrot.lane.b32.xlu0 %v5415, 56
      %v5593 = vpop.permute.xlu0 %5592
      %5594 = vrot.lane.b32.xlu0 %v5418, 56
      %v5595 = vpop.permute.xlu0 %5594
      %5596 = vrot.lane.b32.xlu0 %v5421, 56
      %v5597 = vpop.permute.xlu0 %5596
      %5598 = vrot.lane.b32.xlu0 %v5513, 56
      %v5599 = vpop.permute.xlu0 %5598
      %5607 = vrot.lane.b32.xlu0 %v5448, 64
      %v5608 = vpop.permute.xlu0 %5607
      %5609 = vrot.lane.b32.xlu0 %v5451, 64
      %v5610 = vpop.permute.xlu0 %5609
      %5611 = vrot.lane.b32.xlu0 %v5454, 64
      %v5612 = vpop.permute.xlu0 %5611
      %5613 = vrot.lane.b32.xlu0 %v5457, 64
      %v5614 = vpop.permute.xlu0 %5613
      %5615 = vrot.lane.b32.xlu0 %v5460, 64
      %v5616 = vpop.permute.xlu0 %5615
      %5617 = vrot.lane.b32.xlu0 %v5463, 64
      %v5618 = vpop.permute.xlu0 %5617
      %5619 = vrot.lane.b32.xlu0 %v5540, 64
      %v5620 = vpop.permute.xlu0 %5619
      %v5628 = vsel %vm3369, %v5371, %v5423
      %v5629 = vsel %vm3369, %v5372, %v5425
      %v5630 = vsel %vm3369, %v5373, %v5427
      %v5631 = vsel %vm3369, %v5374, %v5429
      %v5632 = vsel %vm3369, %v5375, %v5431
      %v5633 = vsel %vm3369, %v5376, %v5433
      %v5634 = vsel %vm3369, %v5377, %v5435
      %v5635 = vsel %vm3401, %v5628, %v5465
      %v5636 = vsel %vm3401, %v5629, %v5467
      %v5637 = vsel %vm3401, %v5630, %v5469
      %v5638 = vsel %vm3401, %v5631, %v5471
      %v5639 = vsel %vm3401, %v5632, %v5473
      %v5640 = vsel %vm3401, %v5633, %v5475
      %v5641 = vsel %vm3401, %v5634, %v5477
      %v5642 = vsel %vm1952, %v3402, %v5487
      %v5643 = vsel %vm1952, %v5635, %v5489
      %v5644 = vsel %vm1952, %v5636, %v5491
      %v5645 = vsel %vm1952, %v5637, %v5493
      %v5646 = vsel %vm1952, %v5638, %v5495
      %v5647 = vsel %vm1952, %v5639, %v5497
      %v5648 = vsel %vm1952, %v5640, %v5499
      %v5649 = vsel %vm1952, %v5641, %v5501
      %v5650 = vsel %vm3465, %v5642, %v5515
      %v5651 = vsel %vm3465, %v5643, %v5517
      %v5652 = vsel %vm3465, %v5644, %v5519
      %v5653 = vsel %vm3465, %v5645, %v5521
      %v5654 = vsel %vm3465, %v5646, %v5523
      %v5655 = vsel %vm3465, %v5647, %v5525
      %v5656 = vsel %vm3465, %v5648, %v5527
      %v5657 = vsel %vm3465, %v5649, %v5529
      %v5658 = vsel %vm3498, %v5650, %v5542
      %v5659 = vsel %vm3498, %v5651, %v5544
      %v5660 = vsel %vm3498, %v5652, %v5546
      %v5661 = vsel %vm3498, %v5653, %v5548
      %v5662 = vsel %vm3498, %v5654, %v5550
      %v5663 = vsel %vm3498, %v5655, %v5552
      %v5664 = vsel %vm3498, %v5656, %v5554
      %v5665 = vsel %vm3498, %v5657, %v5556
      %v5666 = vsel %vm3531, %v5658, %v5566
      %v5667 = vsel %vm3531, %v5659, %v5568
      %v5668 = vsel %vm3531, %v5660, %v5570
      %v5669 = vsel %vm3531, %v5661, %v5572
      %v5670 = vsel %vm3531, %v5662, %v5574
      %v5671 = vsel %vm3531, %v5663, %v5576
      %v5672 = vsel %vm3531, %v5664, %v5578
      %v5673 = vsel %vm3531, %v5665, %v3151
      %v5674 = vsel %vm3564, %v5666, %v5587
      %v5675 = vsel %vm3564, %v5667, %v5589
      %v5676 = vsel %vm3564, %v5668, %v5591
      %v5677 = vsel %vm3564, %v5669, %v5593
      %v5678 = vsel %vm3564, %v5670, %v5595
      %v5679 = vsel %vm3564, %v5671, %v5597
      %v5680 = vsel %vm3564, %v5672, %v5599
      %v5681 = vsel %vm3564, %v5673, %v3244
      %v5682 = vsel %vm3597, %v5674, %v5608
      %v5683 = vsel %vm3597, %v5675, %v5610
      %v5684 = vsel %vm3597, %v5676, %v5612
      %v5685 = vsel %vm3597, %v5677, %v5614
      %v5686 = vsel %vm3597, %v5678, %v5616
      %v5687 = vsel %vm3597, %v5679, %v5618
      %v5688 = vsel %vm3597, %v5680, %v5620
      %v5689 = vsel %vm3597, %v5681, %v3337
      %v5690 = vpack.c.bf16 %v5683, %v5682
      %v5691 = vpack.c.bf16 %v5685, %v5684
      %v5692 = vpack.c.bf16 %v5687, %v5686
      %v5693 = vpack.c.bf16 %v5689, %v5688
      %v5703 = vunpack.c.l.b16 %v5228
      %v5704 = vunpack.c.l.b16 %v5229
      %v5705 = vunpack.c.l.b16 %v5230
      %v5706 = vunpack.c.l.b16 %v5231
      %v5707 = vunpack.c.l.b16 %v5232
      %v5708 = vunpack.c.l.b16 %v5233
      %v5709 = vunpack.c.l.b16 %v5234
      %v5710 = vunpack.c.l.b16 %v5235
      %v5711 = vunpack.c.l.b16 %v5236
      %v5712 = vpack.c.b16 %v5704, %v5703
      %v5713 = vpack.c.b16 %v5706, %v5705
      %v5714 = vpack.c.b16 %v5708, %v5707
      %v5715 = vpack.c.b16 %v5710, %v5709
      %v5716 = vpack.c.b16 %v5711, %v5711
      %v5722 = vsel %vm3673, %v5690, 0
      %v5725 = vsel %vm3673, %v5691, 0
      %v5728 = vsel %vm3673, %v5692, 0
      %v5731 = vsel %vm3673, %v5693, 0
      %v5734 = vsel %vm3722, %v5716, 0
      %5736 = vmatpush.bf16.msra.mxu0 0
      %5737 = vmatpush.bf16.msra.mxu0 0
      %5738 = vmatpush.bf16.msra.mxu0 0
      %5739 = vmatpush.bf16.msra.mxu0 %v5734
      %5740 = vmatpush.bf16.msra.mxu0 %v5715
      %5741 = vmatpush.bf16.msra.mxu0 %v5714
      %5742 = vmatpush.bf16.msra.mxu0 %v5713
      %5743 = vmatpush.bf16.msra.mxu0 %v5712
      %5744 = vmatmul.bf16.gmra.mxu0 %v5722
      %v5745 = vpop.f32.mrf.mxu0
      %v5746 = vadd.f32 0.0, %v5745
      %v5747 = vpop.f32.mrf.mxu0
      %v5748 = vadd.f32 0.0, %v5747
      %5749 = vmatmul.bf16.gmra.mxu0 %v5725
      %v5750 = vpop.f32.mrf.mxu0
      %v5751 = vadd.f32 0.0, %v5750
      %v5752 = vpop.f32.mrf.mxu0
      %v5753 = vadd.f32 0.0, %v5752
      %5754 = vmatmul.bf16.gmra.mxu0 %v5728
      %v5755 = vpop.f32.mrf.mxu0
      %v5756 = vadd.f32 0.0, %v5755
      %v5757 = vpop.f32.mrf.mxu0
      %v5758 = vadd.f32 0.0, %v5757
      %5759 = vmatmul.bf16.gmra.mxu0 %v5731
      %v5760 = vpop.f32.mrf.mxu0
      %v5761 = vadd.f32 0.0, %v5760
      %v5762 = vpop.f32.mrf.mxu0
      %v5763 = vadd.f32 0.0, %v5762
      %5764 = vdwg.mxu0
      %v5765 = vld [vmem:[%s6] sm:$0x1]
      %v5766 = vld [vmem:[%s6 + $0x1] sm:$0x1]
      %v5767 = vperm.slane %v5765, 0
      %v5768 = vmul.f32 %v5746, %v5767
      %v5769 = vmul.f32 %v5748, %v5767
      %v5770 = vmul.f32 %v5751, %v5767
      %v5771 = vmul.f32 %v5753, %v5767
      %v5772 = vmul.f32 %v5756, %v5767
      %v5773 = vmul.f32 %v5758, %v5767
      %v5774 = vmul.f32 %v5761, %v5767
      %v5775 = vmul.f32 %v5763, %v5767
      %v5776 = vperm.slane %v5766, 0
      %v5777 = vadd.f32 %v5768, %v5776
      %v5778 = vadd.f32 %v5769, %v5776
      %v5779 = vadd.f32 %v5770, %v5776
      %v5780 = vadd.f32 %v5771, %v5776
      %v5781 = vadd.f32 %v5772, %v5776
      %v5782 = vadd.f32 %v5773, %v5776
      %v5783 = vadd.f32 %v5774, %v5776
      %v5784 = vadd.f32 %v5775, %v5776
      %v5785 = vmax.f32 %v5777, 0.0
      %v5786 = vmax.f32 %v5778, 0.0
      %v5787 = vmax.f32 %v5779, 0.0
      %v5788 = vmax.f32 %v5780, 0.0
      %v5789 = vmax.f32 %v5781, 0.0
      %v5790 = vmax.f32 %v5782, 0.0
      %v5791 = vmax.f32 %v5783, 0.0
      %v5792 = vmax.f32 %v5784, 0.0
      %v5793 = vld [vmem:[%s7] sm:$0xf]
      %v5794 = vld [vmem:[%s7 + $0x4] sm:$0xf]
      %v5795 = vld [vmem:[%s7 + $0x8] sm:$0xf]
      %v5796 = vld [vmem:[%s7 + $0xc] sm:$0xf]
      %v5797 = vld [vmem:[%s7 + $0x10] sm:$0xf]
      %v5798 = vld [vmem:[%s7 + $0x14] sm:$0xf]
      %v5799 = vld [vmem:[%s7 + $0x18] sm:$0xf]
      %v5800 = vld [vmem:[%s7 + $0x1c] sm:$0xf]
      %v5801 = vld [vmem:[%s7 + $0x20] sm:$0xf]
      %v5802 = vld [vmem:[%s7 + $0x24] sm:$0xf]
      %v5803 = vld [vmem:[%s7 + $0x28] sm:$0xf]
      %v5804 = vld [vmem:[%s7 + $0x2c] sm:$0xf]
      %v5805 = vld [vmem:[%s7 + $0x30] sm:$0xf]
      %v5806 = vld [vmem:[%s7 + $0x34] sm:$0xf]
      %v5807 = vld [vmem:[%s7 + $0x38] sm:$0xf]
      %v5808 = vld [vmem:[%s7 + $0x3c] sm:$0xf]
      %v5809 = vld [vmem:[%s7 + $0x40] sm:$0xf]
      %v5810 = vld [vmem:[%s7 + $0x44] sm:$0xf]
      %v5819 = vrot.slane %v5785, 7
      %v5820 = vrot.slane %v5786, 7
      %v5821 = vrot.slane %v5787, 7
      %v5822 = vrot.slane %v5788, 7
      %v5823 = vrot.slane %v5789, 7
      %v5824 = vrot.slane %v5790, 7
      %v5825 = vrot.slane %v5791, 7
      %v5826 = vrot.slane %v5792, 7
      %v5835 = vsel %vm643, 0.0, %v5819
      %v5836 = vsel %vm643, 0.0, %v5820
      %v5837 = vsel %vm643, 0.0, %v5821
      %v5838 = vsel %vm643, 0.0, %v5822
      %v5839 = vsel %vm643, 0.0, %v5823
      %v5840 = vsel %vm643, 0.0, %v5824
      %v5841 = vsel %vm643, 0.0, %v5825
      %v5842 = vsel %vm643, 0.0, %v5826
      %v5843 = vsel %vm643, %v5819, 0.0
      %v5844 = vsel %vm643, %v5820, 0.0
      %v5845 = vsel %vm643, %v5821, 0.0
      %v5846 = vsel %vm643, %v5822, 0.0
      %v5847 = vsel %vm643, %v5823, 0.0
      %v5848 = vsel %vm643, %v5824, 0.0
      %v5849 = vsel %vm643, %v5825, 0.0
      %v5850 = vsel %vm643, %v5826, 0.0
      %v5865 = vrot.slane %v5835, 1
      %v5866 = vrot.slane %v5843, 1
      %v5867 = vsel %vm802, %v5865, %v5866
      %v5868 = vrot.slane %v5836, 1
      %v5869 = vrot.slane %v5844, 1
      %v5870 = vsel %vm802, %v5868, %v5869
      %v5871 = vrot.slane %v5837, 1
      %v5872 = vrot.slane %v5845, 1
      %v5873 = vsel %vm802, %v5871, %v5872
      %v5874 = vrot.slane %v5838, 1
      %v5875 = vrot.slane %v5846, 1
      %v5876 = vsel %vm802, %v5874, %v5875
      %v5877 = vrot.slane %v5839, 1
      %v5878 = vrot.slane %v5847, 1
      %v5879 = vsel %vm802, %v5877, %v5878
      %v5880 = vrot.slane %v5840, 1
      %v5881 = vrot.slane %v5848, 1
      %v5882 = vsel %vm802, %v5880, %v5881
      %v5883 = vrot.slane %v5841, 1
      %v5884 = vrot.slane %v5849, 1
      %v5885 = vsel %vm802, %v5883, %v5884
      %5886 = vrot.lane.b32.xlu0 %v804, 16
      %v5887 = vpop.permute.xlu0 %5886
      %5888 = vrot.lane.b32.xlu0 %v5867, 16
      %v5889 = vpop.permute.xlu0 %5888
      %5890 = vrot.lane.b32.xlu0 %v5870, 16
      %v5891 = vpop.permute.xlu0 %5890
      %5892 = vrot.lane.b32.xlu0 %v5873, 16
      %v5893 = vpop.permute.xlu0 %5892
      %5894 = vrot.lane.b32.xlu0 %v5876, 16
      %v5895 = vpop.permute.xlu0 %5894
      %5896 = vrot.lane.b32.xlu0 %v5879, 16
      %v5897 = vpop.permute.xlu0 %5896
      %5898 = vrot.lane.b32.xlu0 %v5882, 16
      %v5899 = vpop.permute.xlu0 %5898
      %5900 = vrot.lane.b32.xlu0 %v5885, 16
      %v5901 = vpop.permute.xlu0 %5900
      %v5910 = vrot.slane %v5835, 2
      %v5911 = vrot.slane %v5843, 2
      %v5912 = vsel %vm973, %v5910, %v5911
      %v5913 = vrot.slane %v5836, 2
      %v5914 = vrot.slane %v5844, 2
      %v5915 = vsel %vm973, %v5913, %v5914
      %v5916 = vrot.slane %v5837, 2
      %v5917 = vrot.slane %v5845, 2
      %v5918 = vsel %vm973, %v5916, %v5917
      %v5919 = vrot.slane %v5838, 2
      %v5920 = vrot.slane %v5846, 2
      %v5921 = vsel %vm973, %v5919, %v5920
      %v5922 = vrot.slane %v5839, 2
      %v5923 = vrot.slane %v5847, 2
      %v5924 = vsel %vm973, %v5922, %v5923
      %v5925 = vrot.slane %v5840, 2
      %v5926 = vrot.slane %v5848, 2
      %v5927 = vsel %vm973, %v5925, %v5926
      %v5928 = vrot.slane %v5841, 2
      %v5929 = vrot.slane %v5849, 2
      %v5930 = vsel %vm973, %v5928, %v5929
      %5931 = vrot.lane.b32.xlu0 %v975, 32
      %v5932 = vpop.permute.xlu0 %5931
      %5933 = vrot.lane.b32.xlu0 %v5912, 32
      %v5934 = vpop.permute.xlu0 %5933
      %5935 = vrot.lane.b32.xlu0 %v5915, 32
      %v5936 = vpop.permute.xlu0 %5935
      %5937 = vrot.lane.b32.xlu0 %v5918, 32
      %v5938 = vpop.permute.xlu0 %5937
      %5939 = vrot.lane.b32.xlu0 %v5921, 32
      %v5940 = vpop.permute.xlu0 %5939
      %5941 = vrot.lane.b32.xlu0 %v5924, 32
      %v5942 = vpop.permute.xlu0 %5941
      %5943 = vrot.lane.b32.xlu0 %v5927, 32
      %v5944 = vpop.permute.xlu0 %5943
      %5945 = vrot.lane.b32.xlu0 %v5930, 32
      %v5946 = vpop.permute.xlu0 %5945
      %5956 = vrot.lane.b32.xlu0 %v5835, 48
      %v5957 = vpop.permute.xlu0 %5956
      %5958 = vrot.lane.b32.xlu0 %v5836, 48
      %v5959 = vpop.permute.xlu0 %5958
      %5960 = vrot.lane.b32.xlu0 %v5837, 48
      %v5961 = vpop.permute.xlu0 %5960
      %5962 = vrot.lane.b32.xlu0 %v5838, 48
      %v5963 = vpop.permute.xlu0 %5962
      %5964 = vrot.lane.b32.xlu0 %v5839, 48
      %v5965 = vpop.permute.xlu0 %5964
      %5966 = vrot.lane.b32.xlu0 %v5840, 48
      %v5967 = vpop.permute.xlu0 %5966
      %5968 = vrot.lane.b32.xlu0 %v5841, 48
      %v5969 = vpop.permute.xlu0 %5968
      %5970 = vrot.lane.b32.xlu0 %v5842, 48
      %v5971 = vpop.permute.xlu0 %5970
      %v5981 = vrot.slane %v5842, 1
      %v5982 = vrot.slane %v5850, 1
      %v5983 = vsel %vm802, %v5981, %v5982
      %5984 = vrot.lane.b32.xlu0 %v5867, 64
      %v5985 = vpop.permute.xlu0 %5984
      %5986 = vrot.lane.b32.xlu0 %v5870, 64
      %v5987 = vpop.permute.xlu0 %5986
      %5988 = vrot.lane.b32.xlu0 %v5873, 64
      %v5989 = vpop.permute.xlu0 %5988
      %5990 = vrot.lane.b32.xlu0 %v5876, 64
      %v5991 = vpop.permute.xlu0 %5990
      %5992 = vrot.lane.b32.xlu0 %v5879, 64
      %v5993 = vpop.permute.xlu0 %5992
      %5994 = vrot.lane.b32.xlu0 %v5882, 64
      %v5995 = vpop.permute.xlu0 %5994
      %5996 = vrot.lane.b32.xlu0 %v5885, 64
      %v5997 = vpop.permute.xlu0 %5996
      %5998 = vrot.lane.b32.xlu0 %v5983, 64
      %v5999 = vpop.permute.xlu0 %5998
      %v6008 = vrot.slane %v5842, 2
      %v6009 = vrot.slane %v5850, 2
      %v6010 = vsel %vm973, %v6008, %v6009
      %6011 = vrot.lane.b32.xlu0 %v5912, 80
      %v6012 = vpop.permute.xlu0 %6011
      %6013 = vrot.lane.b32.xlu0 %v5915, 80
      %v6014 = vpop.permute.xlu0 %6013
      %6015 = vrot.lane.b32.xlu0 %v5918, 80
      %v6016 = vpop.permute.xlu0 %6015
      %6017 = vrot.lane.b32.xlu0 %v5921, 80
      %v6018 = vpop.permute.xlu0 %6017
      %6019 = vrot.lane.b32.xlu0 %v5924, 80
      %v6020 = vpop.permute.xlu0 %6019
      %6021 = vrot.lane.b32.xlu0 %v5927, 80
      %v6022 = vpop.permute.xlu0 %6021
      %6023 = vrot.lane.b32.xlu0 %v5930, 80
      %v6024 = vpop.permute.xlu0 %6023
      %6025 = vrot.lane.b32.xlu0 %v6010, 80
      %v6026 = vpop.permute.xlu0 %6025
      %6035 = vrot.lane.b32.xlu0 %v5836, 96
      %v6036 = vpop.permute.xlu0 %6035
      %6037 = vrot.lane.b32.xlu0 %v5837, 96
      %v6038 = vpop.permute.xlu0 %6037
      %6039 = vrot.lane.b32.xlu0 %v5838, 96
      %v6040 = vpop.permute.xlu0 %6039
      %6041 = vrot.lane.b32.xlu0 %v5839, 96
      %v6042 = vpop.permute.xlu0 %6041
      %6043 = vrot.lane.b32.xlu0 %v5840, 96
      %v6044 = vpop.permute.xlu0 %6043
      %6045 = vrot.lane.b32.xlu0 %v5841, 96
      %v6046 = vpop.permute.xlu0 %6045
      %6047 = vrot.lane.b32.xlu0 %v5842, 96
      %v6048 = vpop.permute.xlu0 %6047
      %6049 = vrot.lane.b32.xlu0 0.0, 96
      %v6050 = vpop.permute.xlu0 %6049
      %6059 = vrot.lane.b32.xlu0 %v5870, 112
      %v6060 = vpop.permute.xlu0 %6059
      %6061 = vrot.lane.b32.xlu0 %v5873, 112
      %v6062 = vpop.permute.xlu0 %6061
      %6063 = vrot.lane.b32.xlu0 %v5876, 112
      %v6064 = vpop.permute.xlu0 %6063
      %6065 = vrot.lane.b32.xlu0 %v5879, 112
      %v6066 = vpop.permute.xlu0 %6065
      %6067 = vrot.lane.b32.xlu0 %v5882, 112
      %v6068 = vpop.permute.xlu0 %6067
      %6069 = vrot.lane.b32.xlu0 %v5885, 112
      %v6070 = vpop.permute.xlu0 %6069
      %6071 = vrot.lane.b32.xlu0 %v5983, 112
      %v6072 = vpop.permute.xlu0 %6071
      %6073 = vrot.lane.b32.xlu0 %v804, 112
      %v6074 = vpop.permute.xlu0 %6073
      %v6091 = vsel %vm3401, 0.0, %v5887
      %v6092 = vsel %vm3401, %v5835, %v5889
      %v6093 = vsel %vm3401, %v5836, %v5891
      %v6094 = vsel %vm3401, %v5837, %v5893
      %v6095 = vsel %vm3401, %v5838, %v5895
      %v6096 = vsel %vm3401, %v5839, %v5897
      %v6097 = vsel %vm3401, %v5840, %v5899
      %v6098 = vsel %vm3401, %v5841, %v5901
      %v6099 = vsel %vm3465, %v6091, %v5932
      %v6100 = vsel %vm3465, %v6092, %v5934
      %v6101 = vsel %vm3465, %v6093, %v5936
      %v6102 = vsel %vm3465, %v6094, %v5938
      %v6103 = vsel %vm3465, %v6095, %v5940
      %v6104 = vsel %vm3465, %v6096, %v5942
      %v6105 = vsel %vm3465, %v6097, %v5944
      %v6106 = vsel %vm3465, %v6098, %v5946
      %v6107 = vsel %vm3531, %v6099, %v5957
      %v6108 = vsel %vm3531, %v6100, %v5959
      %v6109 = vsel %vm3531, %v6101, %v5961
      %v6110 = vsel %vm3531, %v6102, %v5963
      %v6111 = vsel %vm3531, %v6103, %v5965
      %v6112 = vsel %vm3531, %v6104, %v5967
      %v6113 = vsel %vm3531, %v6105, %v5969
      %v6114 = vsel %vm3531, %v6106, %v5971
      %v6115 = vsel %vm3597, %v6107, %v5985
      %v6116 = vsel %vm3597, %v6108, %v5987
      %v6117 = vsel %vm3597, %v6109, %v5989
      %v6118 = vsel %vm3597, %v6110, %v5991
      %v6119 = vsel %vm3597, %v6111, %v5993
      %v6120 = vsel %vm3597, %v6112, %v5995
      %v6121 = vsel %vm3597, %v6113, %v5997
      %v6122 = vsel %vm3597, %v6114, %v5999
      %vm6123 = vcmask 654336
      %v6124 = vsel %vm6123, %v6115, %v6012
      %v6125 = vsel %vm6123, %v6116, %v6014
      %v6126 = vsel %vm6123, %v6117, %v6016
      %v6127 = vsel %vm6123, %v6118, %v6018
      %v6128 = vsel %vm6123, %v6119, %v6020
      %v6129 = vsel %vm6123, %v6120, %v6022
      %v6130 = vsel %vm6123, %v6121, %v6024
      %v6131 = vsel %vm6123, %v6122, %v6026
      %vm6132 = vcmask 785408
      %v6133 = vsel %vm6132, %v6124, %v6036
      %v6134 = vsel %vm6132, %v6125, %v6038
      %v6135 = vsel %vm6132, %v6126, %v6040
      %v6136 = vsel %vm6132, %v6127, %v6042
      %v6137 = vsel %vm6132, %v6128, %v6044
      %v6138 = vsel %vm6132, %v6129, %v6046
      %v6139 = vsel %vm6132, %v6130, %v6048
      %v6140 = vsel %vm6132, %v6131, %v6050
      %vm6141 = vcmask 916480
      %v6142 = vsel %vm6141, %v6133, %v6060
      %v6143 = vsel %vm6141, %v6134, %v6062
      %v6144 = vsel %vm6141, %v6135, %v6064
      %v6145 = vsel %vm6141, %v6136, %v6066
      %v6146 = vsel %vm6141, %v6137, %v6068
      %v6147 = vsel %vm6141, %v6138, %v6070
      %v6148 = vsel %vm6141, %v6139, %v6072
      %v6149 = vsel %vm6141, %v6140, %v6074
      %v6150 = vpack.c.bf16 %v6143, %v6142
      %v6151 = vpack.c.bf16 %v5918, %v5915
      %v6152 = vpack.c.bf16 %v6145, %v6144
      %v6153 = vpack.c.bf16 %v5924, %v5921
      %v6154 = vpack.c.bf16 %v6147, %v6146
      %v6155 = vpack.c.bf16 %v5930, %v5927
      %v6156 = vpack.c.bf16 %v6149, %v6148
      %v6157 = vpack.c.bf16 %v975, %v6010
      %v6176 = vunpack.c.l.b16 %v5793
      %v6177 = vunpack.c.l.b16 %v5794
      %v6178 = vunpack.c.l.b16 %v5795
      %v6179 = vunpack.c.l.b16 %v5796
      %v6180 = vunpack.c.l.b16 %v5797
      %v6181 = vunpack.c.l.b16 %v5798
      %v6182 = vunpack.c.l.b16 %v5799
      %v6183 = vunpack.c.l.b16 %v5800
      %v6184 = vunpack.c.l.b16 %v5801
      %v6185 = vunpack.c.l.b16 %v5802
      %v6186 = vunpack.c.l.b16 %v5803
      %v6187 = vunpack.c.l.b16 %v5804
      %v6188 = vunpack.c.l.b16 %v5805
      %v6189 = vunpack.c.l.b16 %v5806
      %v6190 = vunpack.c.l.b16 %v5807
      %v6191 = vunpack.c.l.b16 %v5808
      %v6192 = vunpack.c.l.b16 %v5809
      %v6193 = vunpack.c.l.b16 %v5810
      %v6194 = vpack.c.b16 %v6177, %v6176
      %v6195 = vpack.c.b16 %v6179, %v6178
      %v6196 = vpack.c.b16 %v6181, %v6180
      %v6197 = vpack.c.b16 %v6183, %v6182
      %v6198 = vpack.c.b16 %v6185, %v6184
      %v6199 = vpack.c.b16 %v6187, %v6186
      %v6200 = vpack.c.b16 %v6189, %v6188
      %v6201 = vpack.c.b16 %v6191, %v6190
      %v6202 = vpack.c.b16 %v6193, %v6192
      %v6213 = vsel %vm3401, %v6151, 0
      %v6216 = vsel %vm3401, %v6153, 0
      %v6219 = vsel %vm3401, %v6155, 0
      %v6222 = vsel %vm3401, %v6157, 0
      %6224 = vmatpush.bf16.msra.mxu0 %v6201
      %6225 = vmatpush.bf16.msra.mxu0 %v6200
      %6226 = vmatpush.bf16.msra.mxu0 %v6199
      %6227 = vmatpush.bf16.msra.mxu0 %v6198
      %6228 = vmatpush.bf16.msra.mxu0 %v6197
      %6229 = vmatpush.bf16.msra.mxu0 %v6196
      %6230 = vmatpush.bf16.msra.mxu0 %v6195
      %6231 = vmatpush.bf16.msra.mxu0 %v6194
      %6232 = vmatmul.bf16.gmra.mxu0 %v6150
      %v6233 = vpop.f32.mrf.mxu0
      %v6234 = vadd.f32 0.0, %v6233
      %v6235 = vpop.f32.mrf.mxu0
      %v6236 = vadd.f32 0.0, %v6235
      %6237 = vmatmul.bf16.gmra.mxu0 %v6152
      %v6238 = vpop.f32.mrf.mxu0
      %v6239 = vadd.f32 0.0, %v6238
      %v6240 = vpop.f32.mrf.mxu0
      %v6241 = vadd.f32 0.0, %v6240
      %6242 = vmatmul.bf16.gmra.mxu0 %v6154
      %v6243 = vpop.f32.mrf.mxu0
      %v6244 = vadd.f32 0.0, %v6243
      %v6245 = vpop.f32.mrf.mxu0
      %v6246 = vadd.f32 0.0, %v6245
      %6247 = vmatmul.bf16.gmra.mxu0 %v6156
      %v6248 = vpop.f32.mrf.mxu0
      %v6249 = vadd.f32 0.0, %v6248
      %v6250 = vpop.f32.mrf.mxu0
      %v6251 = vadd.f32 0.0, %v6250
      %6252 = vdwg.mxu0
      %6253 = vmatpush.bf16.msra.mxu0 0
      %6254 = vmatpush.bf16.msra.mxu0 0
      %6255 = vmatpush.bf16.msra.mxu0 0
      %6256 = vmatpush.bf16.msra.mxu0 0
      %6257 = vmatpush.bf16.msra.mxu0 0
      %6258 = vmatpush.bf16.msra.mxu0 0
      %6259 = vmatpush.bf16.msra.mxu0 0
      %6260 = vmatpush.bf16.msra.mxu0 %v6202
      %6261 = vmatmul.bf16.gmra.mxu0 %v6213
      %v6262 = vpop.f32.mrf.mxu0
      %v6263 = vadd.f32 %v6234, %v6262
      %v6264 = vpop.f32.mrf.mxu0
      %v6265 = vadd.f32 %v6236, %v6264
      %6266 = vmatmul.bf16.gmra.mxu0 %v6216
      %v6267 = vpop.f32.mrf.mxu0
      %v6268 = vadd.f32 %v6239, %v6267
      %v6269 = vpop.f32.mrf.mxu0
      %v6270 = vadd.f32 %v6241, %v6269
      %6271 = vmatmul.bf16.gmra.mxu0 %v6219
      %v6272 = vpop.f32.mrf.mxu0
      %v6273 = vadd.f32 %v6244, %v6272
      %v6274 = vpop.f32.mrf.mxu0
      %v6275 = vadd.f32 %v6246, %v6274
      %6276 = vmatmul.bf16.gmra.mxu0 %v6222
      %v6277 = vpop.f32.mrf.mxu0
      %v6278 = vadd.f32 %v6249, %v6277
      %v6279 = vpop.f32.mrf.mxu0
      %v6280 = vadd.f32 %v6251, %v6279
      %6281 = vdwg.mxu0
      %v6282 = vld [vmem:[%s8] sm:$0x1]
      %v6283 = vld [vmem:[%s8 + $0x1] sm:$0x1]
      %v6284 = vperm.slane %v6282, 0
      %v6285 = vmul.f32 %v6263, %v6284
      %v6286 = vmul.f32 %v6265, %v6284
      %v6287 = vmul.f32 %v6268, %v6284
      %v6288 = vmul.f32 %v6270, %v6284
      %v6289 = vmul.f32 %v6273, %v6284
      %v6290 = vmul.f32 %v6275, %v6284
      %v6291 = vmul.f32 %v6278, %v6284
      %v6292 = vmul.f32 %v6280, %v6284
      %v6293 = vperm.slane %v6283, 0
      %v6294 = vadd.f32 %v6285, %v6293
      %v6295 = vadd.f32 %v6286, %v6293
      %v6296 = vadd.f32 %v6287, %v6293
      %v6297 = vadd.f32 %v6288, %v6293
      %v6298 = vadd.f32 %v6289, %v6293
      %v6299 = vadd.f32 %v6290, %v6293
      %v6300 = vadd.f32 %v6291, %v6293
      %v6301 = vadd.f32 %v6292, %v6293
      %v6302 = vmax.f32 %v6294, 0.0
      %v6303 = vmax.f32 %v6295, 0.0
      %v6304 = vmax.f32 %v6296, 0.0
      %v6305 = vmax.f32 %v6297, 0.0
      %v6306 = vmax.f32 %v6298, 0.0
      %v6307 = vmax.f32 %v6299, 0.0
      %v6308 = vmax.f32 %v6300, 0.0
      %v6309 = vmax.f32 %v6301, 0.0
      %v6318 = vrot.slane %v6302, 2
      %v6319 = vrot.slane %v6302, 4
      %v6320 = vrot.slane %v6302, 6
      %v6321 = vrot.slane %v6303, 2
      %v6322 = vrot.slane %v6303, 4
      %v6323 = vrot.slane %v6303, 6
      %v6324 = vrot.slane %v6304, 2
      %v6325 = vrot.slane %v6304, 4
      %v6326 = vrot.slane %v6304, 6
      %v6327 = vrot.slane %v6305, 2
      %v6328 = vrot.slane %v6305, 4
      %v6329 = vrot.slane %v6305, 6
      %v6330 = vrot.slane %v6306, 2
      %v6331 = vrot.slane %v6306, 4
      %v6332 = vrot.slane %v6306, 6
      %v6333 = vrot.slane %v6307, 2
      %v6334 = vrot.slane %v6307, 4
      %v6335 = vrot.slane %v6307, 6
      %v6336 = vrot.slane %v6308, 2
      %v6337 = vrot.slane %v6308, 4
      %v6338 = vrot.slane %v6308, 6
      %v6339 = vrot.slane %v6309, 2
      %v6340 = vrot.slane %v6309, 4
      %v6341 = vrot.slane %v6309, 6
      %vm6366 = vcmask 123904
      %v6367 = vsel %vm6366, %v6302, -inf
      %v6368 = vrot.slane %v6367, 4
      %v6369 = vmax.f32 %v6367, %v6368
      %v6370 = vrot.slane %v6369, 2
      %v6371 = vmax.f32 %v6369, %v6370
      %v6372 = vrot.slane %v6371, 1
      %v6373 = vmax.f32 %v6371, %v6372
      %v6374 = vsel %vm6366, %v6318, -inf
      %v6375 = vrot.slane %v6374, 4
      %v6376 = vmax.f32 %v6374, %v6375
      %v6377 = vrot.slane %v6376, 2
      %v6378 = vmax.f32 %v6376, %v6377
      %v6379 = vrot.slane %v6378, 1
      %v6380 = vmax.f32 %v6378, %v6379
      %v6381 = vsel %vm6366, %v6319, -inf
      %v6382 = vrot.slane %v6381, 4
      %v6383 = vmax.f32 %v6381, %v6382
      %v6384 = vrot.slane %v6383, 2
      %v6385 = vmax.f32 %v6383, %v6384
      %v6386 = vrot.slane %v6385, 1
      %v6387 = vmax.f32 %v6385, %v6386
      %v6388 = vsel %vm6366, %v6320, -inf
      %v6389 = vrot.slane %v6388, 4
      %v6390 = vmax.f32 %v6388, %v6389
      %v6391 = vrot.slane %v6390, 2
      %v6392 = vmax.f32 %v6390, %v6391
      %v6393 = vrot.slane %v6392, 1
      %v6394 = vmax.f32 %v6392, %v6393
      %v6395 = vsel %vm6366, %v6303, -inf
      %v6396 = vrot.slane %v6395, 4
      %v6397 = vmax.f32 %v6395, %v6396
      %v6398 = vrot.slane %v6397, 2
      %v6399 = vmax.f32 %v6397, %v6398
      %v6400 = vrot.slane %v6399, 1
      %v6401 = vmax.f32 %v6399, %v6400
      %v6402 = vsel %vm6366, %v6321, -inf
      %v6403 = vrot.slane %v6402, 4
      %v6404 = vmax.f32 %v6402, %v6403
      %v6405 = vrot.slane %v6404, 2
      %v6406 = vmax.f32 %v6404, %v6405
      %v6407 = vrot.slane %v6406, 1
      %v6408 = vmax.f32 %v6406, %v6407
      %v6409 = vsel %vm6366, %v6322, -inf
      %v6410 = vrot.slane %v6409, 4
      %v6411 = vmax.f32 %v6409, %v6410
      %v6412 = vrot.slane %v6411, 2
      %v6413 = vmax.f32 %v6411, %v6412
      %v6414 = vrot.slane %v6413, 1
      %v6415 = vmax.f32 %v6413, %v6414
      %v6416 = vsel %vm6366, %v6323, -inf
      %v6417 = vrot.slane %v6416, 4
      %v6418 = vmax.f32 %v6416, %v6417
      %v6419 = vrot.slane %v6418, 2
      %v6420 = vmax.f32 %v6418, %v6419
      %v6421 = vrot.slane %v6420, 1
      %v6422 = vmax.f32 %v6420, %v6421
      %v6423 = vsel %vm6366, %v6304, -inf
      %v6424 = vrot.slane %v6423, 4
      %v6425 = vmax.f32 %v6423, %v6424
      %v6426 = vrot.slane %v6425, 2
      %v6427 = vmax.f32 %v6425, %v6426
      %v6428 = vrot.slane %v6427, 1
      %v6429 = vmax.f32 %v6427, %v6428
      %v6430 = vsel %vm6366, %v6324, -inf
      %v6431 = vrot.slane %v6430, 4
      %v6432 = vmax.f32 %v6430, %v6431
      %v6433 = vrot.slane %v6432, 2
      %v6434 = vmax.f32 %v6432, %v6433
      %v6435 = vrot.slane %v6434, 1
      %v6436 = vmax.f32 %v6434, %v6435
      %v6437 = vsel %vm6366, %v6325, -inf
      %v6438 = vrot.slane %v6437, 4
      %v6439 = vmax.f32 %v6437, %v6438
      %v6440 = vrot.slane %v6439, 2
      %v6441 = vmax.f32 %v6439, %v6440
      %v6442 = vrot.slane %v6441, 1
      %v6443 = vmax.f32 %v6441, %v6442
      %v6444 = vsel %vm6366, %v6326, -inf
      %v6445 = vrot.slane %v6444, 4
      %v6446 = vmax.f32 %v6444, %v6445
      %v6447 = vrot.slane %v6446, 2
      %v6448 = vmax.f32 %v6446, %v6447
      %v6449 = vrot.slane %v6448, 1
      %v6450 = vmax.f32 %v6448, %v6449
      %v6451 = vsel %vm6366, %v6305, -inf
      %v6452 = vrot.slane %v6451, 4
      %v6453 = vmax.f32 %v6451, %v6452
      %v6454 = vrot.slane %v6453, 2
      %v6455 = vmax.f32 %v6453, %v6454
      %v6456 = vrot.slane %v6455, 1
      %v6457 = vmax.f32 %v6455, %v6456
      %v6458 = vsel %vm6366, %v6327, -inf
      %v6459 = vrot.slane %v6458, 4
      %v6460 = vmax.f32 %v6458, %v6459
      %v6461 = vrot.slane %v6460, 2
      %v6462 = vmax.f32 %v6460, %v6461
      %v6463 = vrot.slane %v6462, 1
      %v6464 = vmax.f32 %v6462, %v6463
      %v6465 = vsel %vm6366, %v6328, -inf
      %v6466 = vrot.slane %v6465, 4
      %v6467 = vmax.f32 %v6465, %v6466
      %v6468 = vrot.slane %v6467, 2
      %v6469 = vmax.f32 %v6467, %v6468
      %v6470 = vrot.slane %v6469, 1
      %v6471 = vmax.f32 %v6469, %v6470
      %v6472 = vsel %vm6366, %v6329, -inf
      %v6473 = vrot.slane %v6472, 4
      %v6474 = vmax.f32 %v6472, %v6473
      %v6475 = vrot.slane %v6474, 2
      %v6476 = vmax.f32 %v6474, %v6475
      %v6477 = vrot.slane %v6476, 1
      %v6478 = vmax.f32 %v6476, %v6477
      %v6479 = vsel %vm6366, %v6306, -inf
      %v6480 = vrot.slane %v6479, 4
      %v6481 = vmax.f32 %v6479, %v6480
      %v6482 = vrot.slane %v6481, 2
      %v6483 = vmax.f32 %v6481, %v6482
      %v6484 = vrot.slane %v6483, 1
      %v6485 = vmax.f32 %v6483, %v6484
      %v6486 = vsel %vm6366, %v6330, -inf
      %v6487 = vrot.slane %v6486, 4
      %v6488 = vmax.f32 %v6486, %v6487
      %v6489 = vrot.slane %v6488, 2
      %v6490 = vmax.f32 %v6488, %v6489
      %v6491 = vrot.slane %v6490, 1
      %v6492 = vmax.f32 %v6490, %v6491
      %v6493 = vsel %vm6366, %v6331, -inf
      %v6494 = vrot.slane %v6493, 4
      %v6495 = vmax.f32 %v6493, %v6494
      %v6496 = vrot.slane %v6495, 2
      %v6497 = vmax.f32 %v6495, %v6496
      %v6498 = vrot.slane %v6497, 1
      %v6499 = vmax.f32 %v6497, %v6498
      %v6500 = vsel %vm6366, %v6332, -inf
      %v6501 = vrot.slane %v6500, 4
      %v6502 = vmax.f32 %v6500, %v6501
      %v6503 = vrot.slane %v6502, 2
      %v6504 = vmax.f32 %v6502, %v6503
      %v6505 = vrot.slane %v6504, 1
      %v6506 = vmax.f32 %v6504, %v6505
      %v6507 = vsel %vm6366, %v6307, -inf
      %v6508 = vrot.slane %v6507, 4
      %v6509 = vmax.f32 %v6507, %v6508
      %v6510 = vrot.slane %v6509, 2
      %v6511 = vmax.f32 %v6509, %v6510
      %v6512 = vrot.slane %v6511, 1
      %v6513 = vmax.f32 %v6511, %v6512
      %v6514 = vsel %vm6366, %v6333, -inf
      %v6515 = vrot.slane %v6514, 4
      %v6516 = vmax.f32 %v6514, %v6515
      %v6517 = vrot.slane %v6516, 2
      %v6518 = vmax.f32 %v6516, %v6517
      %v6519 = vrot.slane %v6518, 1
      %v6520 = vmax.f32 %v6518, %v6519
      %v6521 = vsel %vm6366, %v6334, -inf
      %v6522 = vrot.slane %v6521, 4
      %v6523 = vmax.f32 %v6521, %v6522
      %v6524 = vrot.slane %v6523, 2
      %v6525 = vmax.f32 %v6523, %v6524
      %v6526 = vrot.slane %v6525, 1
      %v6527 = vmax.f32 %v6525, %v6526
      %v6528 = vsel %vm6366, %v6335, -inf
      %v6529 = vrot.slane %v6528, 4
      %v6530 = vmax.f32 %v6528, %v6529
      %v6531 = vrot.slane %v6530, 2
      %v6532 = vmax.f32 %v6530, %v6531
      %v6533 = vrot.slane %v6532, 1
      %v6534 = vmax.f32 %v6532, %v6533
      %v6535 = vsel %vm6366, %v6308, -inf
      %v6536 = vrot.slane %v6535, 4
      %v6537 = vmax.f32 %v6535, %v6536
      %v6538 = vrot.slane %v6537, 2
      %v6539 = vmax.f32 %v6537, %v6538
      %v6540 = vrot.slane %v6539, 1
      %v6541 = vmax.f32 %v6539, %v6540
      %v6542 = vsel %vm6366, %v6336, -inf
      %v6543 = vrot.slane %v6542, 4
      %v6544 = vmax.f32 %v6542, %v6543
      %v6545 = vrot.slane %v6544, 2
      %v6546 = vmax.f32 %v6544, %v6545
      %v6547 = vrot.slane %v6546, 1
      %v6548 = vmax.f32 %v6546, %v6547
      %v6549 = vsel %vm6366, %v6337, -inf
      %v6550 = vrot.slane %v6549, 4
      %v6551 = vmax.f32 %v6549, %v6550
      %v6552 = vrot.slane %v6551, 2
      %v6553 = vmax.f32 %v6551, %v6552
      %v6554 = vrot.slane %v6553, 1
      %v6555 = vmax.f32 %v6553, %v6554
      %v6556 = vsel %vm6366, %v6338, -inf
      %v6557 = vrot.slane %v6556, 4
      %v6558 = vmax.f32 %v6556, %v6557
      %v6559 = vrot.slane %v6558, 2
      %v6560 = vmax.f32 %v6558, %v6559
      %v6561 = vrot.slane %v6560, 1
      %v6562 = vmax.f32 %v6560, %v6561
      %v6563 = vsel %vm6366, %v6309, -inf
      %v6564 = vrot.slane %v6563, 4
      %v6565 = vmax.f32 %v6563, %v6564
      %v6566 = vrot.slane %v6565, 2
      %v6567 = vmax.f32 %v6565, %v6566
      %v6568 = vrot.slane %v6567, 1
      %v6569 = vmax.f32 %v6567, %v6568
      %v6570 = vsel %vm6366, %v6339, -inf
      %v6571 = vrot.slane %v6570, 4
      %v6572 = vmax.f32 %v6570, %v6571
      %v6573 = vrot.slane %v6572, 2
      %v6574 = vmax.f32 %v6572, %v6573
      %v6575 = vrot.slane %v6574, 1
      %v6576 = vmax.f32 %v6574, %v6575
      %v6577 = vsel %vm6366, %v6340, -inf
      %v6578 = vrot.slane %v6577, 4
      %v6579 = vmax.f32 %v6577, %v6578
      %v6580 = vrot.slane %v6579, 2
      %v6581 = vmax.f32 %v6579, %v6580
      %v6582 = vrot.slane %v6581, 1
      %v6583 = vmax.f32 %v6581, %v6582
      %v6584 = vsel %vm6366, %v6341, -inf
      %v6585 = vrot.slane %v6584, 4
      %v6586 = vmax.f32 %v6584, %v6585
      %v6587 = vrot.slane %v6586, 2
      %v6588 = vmax.f32 %v6586, %v6587
      %v6589 = vrot.slane %v6588, 1
      %v6590 = vmax.f32 %v6588, %v6589
      %v6591 = vsel %vm3401, %v6373, -inf
      %v6592 = vsel %vm3401, %v6401, -inf
      %v6593 = vmax.f32 %v6591, %v6592
      %v6594 = vsel %vm3401, %v6380, -inf
      %v6595 = vsel %vm3401, %v6408, -inf
      %v6596 = vmax.f32 %v6594, %v6595
      %v6597 = vsel %vm3401, %v6387, -inf
      %v6598 = vsel %vm3401, %v6415, -inf
      %v6599 = vmax.f32 %v6597, %v6598
      %v6600 = vsel %vm3401, %v6394, -inf
      %v6601 = vsel %vm3401, %v6422, -inf
      %v6602 = vmax.f32 %v6600, %v6601
      %v6603 = vsel %vm3401, %v6429, -inf
      %v6604 = vsel %vm3401, %v6457, -inf
      %v6605 = vmax.f32 %v6603, %v6604
      %v6606 = vsel %vm3401, %v6436, -inf
      %v6607 = vsel %vm3401, %v6464, -inf
      %v6608 = vmax.f32 %v6606, %v6607
      %v6609 = vsel %vm3401, %v6443, -inf
      %v6610 = vsel %vm3401, %v6471, -inf
      %v6611 = vmax.f32 %v6609, %v6610
      %v6612 = vsel %vm3401, %v6450, -inf
      %v6613 = vsel %vm3401, %v6478, -inf
      %v6614 = vmax.f32 %v6612, %v6613
      %v6615 = vsel %vm3401, %v6485, -inf
      %v6616 = vsel %vm3401, %v6513, -inf
      %v6617 = vmax.f32 %v6615, %v6616
      %v6618 = vsel %vm3401, %v6492, -inf
      %v6619 = vsel %vm3401, %v6520, -inf
      %v6620 = vmax.f32 %v6618, %v6619
      %v6621 = vsel %vm3401, %v6499, -inf
      %v6622 = vsel %vm3401, %v6527, -inf
      %v6623 = vmax.f32 %v6621, %v6622
      %v6624 = vsel %vm3401, %v6506, -inf
      %v6625 = vsel %vm3401, %v6534, -inf
      %v6626 = vmax.f32 %v6624, %v6625
      %v6627 = vsel %vm3401, %v6541, -inf
      %v6628 = vsel %vm3401, %v6569, -inf
      %v6629 = vmax.f32 %v6627, %v6628
      %v6630 = vsel %vm3401, %v6548, -inf
      %v6631 = vsel %vm3401, %v6576, -inf
      %v6632 = vmax.f32 %v6630, %v6631
      %v6633 = vsel %vm3401, %v6555, -inf
      %v6634 = vsel %vm3401, %v6583, -inf
      %v6635 = vmax.f32 %v6633, %v6634
      %v6636 = vsel %vm3401, %v6562, -inf
      %v6637 = vsel %vm3401, %v6590, -inf
      %v6638 = vmax.f32 %v6636, %v6637
      %v6639 = vld [vmem:[%s9] sm:$0xf]
      %v6640 = vld [vmem:[%s9 + $0x4] sm:$0xf]
      %v6641 = vld [vmem:[%s9 + $0x8] sm:$0xf]
      %v6642 = vld [vmem:[%s9 + $0xc] sm:$0xf]
      %v6643 = vld [vmem:[%s9 + $0x10] sm:$0xf]
      %v6644 = vld [vmem:[%s9 + $0x14] sm:$0xf]
      %v6645 = vld [vmem:[%s9 + $0x18] sm:$0xf]
      %v6646 = vld [vmem:[%s9 + $0x1c] sm:$0xf]
      %v6647 = vld [vmem:[%s9 + $0x20] sm:$0xf]
      %v6648 = vld [vmem:[%s9 + $0x24] sm:$0xf]
      %v6649 = vld [vmem:[%s9 + $0x28] sm:$0xf]
      %v6650 = vld [vmem:[%s9 + $0x2c] sm:$0xf]
      %v6651 = vld [vmem:[%s9 + $0x30] sm:$0xf]
      %v6652 = vld [vmem:[%s9 + $0x34] sm:$0xf]
      %v6653 = vld [vmem:[%s9 + $0x38] sm:$0xf]
      %v6654 = vld [vmem:[%s9 + $0x3c] sm:$0xf]
      %v6655 = vld [vmem:[%s9 + $0x40] sm:$0xf]
      %v6656 = vld [vmem:[%s9 + $0x44] sm:$0xf]
      %v6673 = vsel %vm5301, %v6596, %v6593
      %v6674 = vsel %vm5303, %v6599, %v6673
      %v6675 = vsel %vm5305, %v6602, %v6674
      %v6676 = vsel %vm5301, %v6608, %v6605
      %v6677 = vsel %vm5303, %v6611, %v6676
      %v6678 = vsel %vm5305, %v6614, %v6677
      %v6679 = vsel %vm5301, %v6620, %v6617
      %v6680 = vsel %vm5303, %v6623, %v6679
      %v6681 = vsel %vm5305, %v6626, %v6680
      %v6682 = vsel %vm5301, %v6632, %v6629
      %v6683 = vsel %vm5303, %v6635, %v6682
      %v6684 = vsel %vm5305, %v6638, %v6683
      %v6689 = vsel %vm643, 0.0, %v6675
      %v6690 = vsel %vm643, 0.0, %v6678
      %v6691 = vsel %vm643, 0.0, %v6681
      %v6692 = vsel %vm643, 0.0, %v6684
      %v6693 = vsel %vm2061, %v6689, 0.0
      %v6694 = vsel %vm2061, %v6690, 0.0
      %v6695 = vsel %vm2061, %v6691, 0.0
      %v6696 = vsel %vm2061, %v6692, 0.0
      %v6700 = vrot.slane %v6693, 1
      %v6701 = vrot.slane %v6694, 1
      %v6702 = vrot.slane %v6695, 1
      %6703 = vrot.lane.b32.xlu0 %v803, 16
      %v6704 = vpop.permute.xlu0 %6703
      %6705 = vrot.lane.b32.xlu0 %v6700, 16
      %v6706 = vpop.permute.xlu0 %6705
      %6707 = vrot.lane.b32.xlu0 %v6701, 16
      %v6708 = vpop.permute.xlu0 %6707
      %6709 = vrot.lane.b32.xlu0 %v6702, 16
      %v6710 = vpop.permute.xlu0 %6709
      %v6715 = vrot.slane %v6693, 2
      %v6716 = vrot.slane %v6694, 2
      %v6717 = vrot.slane %v6695, 2
      %6718 = vrot.lane.b32.xlu0 %v974, 32
      %v6719 = vpop.permute.xlu0 %6718
      %6720 = vrot.lane.b32.xlu0 %v6715, 32
      %v6721 = vpop.permute.xlu0 %6720
      %6722 = vrot.lane.b32.xlu0 %v6716, 32
      %v6723 = vpop.permute.xlu0 %6722
      %6724 = vrot.lane.b32.xlu0 %v6717, 32
      %v6725 = vpop.permute.xlu0 %6724
      %6731 = vrot.lane.b32.xlu0 %v6693, 48
      %v6732 = vpop.permute.xlu0 %6731
      %6733 = vrot.lane.b32.xlu0 %v6694, 48
      %v6734 = vpop.permute.xlu0 %6733
      %6735 = vrot.lane.b32.xlu0 %v6695, 48
      %v6736 = vpop.permute.xlu0 %6735
      %6737 = vrot.lane.b32.xlu0 %v6696, 48
      %v6738 = vpop.permute.xlu0 %6737
      %v6743 = vrot.slane %v6696, 1
      %6744 = vrot.lane.b32.xlu0 %v6700, 64
      %v6745 = vpop.permute.xlu0 %6744
      %6746 = vrot.lane.b32.xlu0 %v6701, 64
      %v6747 = vpop.permute.xlu0 %6746
      %6748 = vrot.lane.b32.xlu0 %v6702, 64
      %v6749 = vpop.permute.xlu0 %6748
      %6750 = vrot.lane.b32.xlu0 %v6743, 64
      %v6751 = vpop.permute.xlu0 %6750
      %v6756 = vrot.slane %v6696, 2
      %6757 = vrot.lane.b32.xlu0 %v6715, 80
      %v6758 = vpop.permute.xlu0 %6757
      %6759 = vrot.lane.b32.xlu0 %v6716, 80
      %v6760 = vpop.permute.xlu0 %6759
      %6761 = vrot.lane.b32.xlu0 %v6717, 80
      %v6762 = vpop.permute.xlu0 %6761
      %6763 = vrot.lane.b32.xlu0 %v6756, 80
      %v6764 = vpop.permute.xlu0 %6763
      %6769 = vrot.lane.b32.xlu0 %v6694, 96
      %v6770 = vpop.permute.xlu0 %6769
      %6771 = vrot.lane.b32.xlu0 %v6695, 96
      %v6772 = vpop.permute.xlu0 %6771
      %6773 = vrot.lane.b32.xlu0 %v6696, 96
      %v6774 = vpop.permute.xlu0 %6773
      %6778 = vrot.lane.b32.xlu0 %v6701, 112
      %v6779 = vpop.permute.xlu0 %6778
      %6780 = vrot.lane.b32.xlu0 %v6702, 112
      %v6781 = vpop.permute.xlu0 %6780
      %6782 = vrot.lane.b32.xlu0 %v6743, 112
      %v6783 = vpop.permute.xlu0 %6782
      %6784 = vrot.lane.b32.xlu0 %v803, 112
      %v6785 = vpop.permute.xlu0 %6784
      %v6790 = vsel %vm3401, 0.0, %v6704
      %v6791 = vsel %vm3401, %v6693, %v6706
      %v6792 = vsel %vm3401, %v6694, %v6708
      %v6793 = vsel %vm3401, %v6695, %v6710
      %v6794 = vsel %vm3465, %v6790, %v6719
      %v6795 = vsel %vm3465, %v6791, %v6721
      %v6796 = vsel %vm3465, %v6792, %v6723
      %v6797 = vsel %vm3465, %v6793, %v6725
      %v6798 = vsel %vm3531, %v6794, %v6732
      %v6799 = vsel %vm3531, %v6795, %v6734
      %v6800 = vsel %vm3531, %v6796, %v6736
      %v6801 = vsel %vm3531, %v6797, %v6738
      %v6802 = vsel %vm3597, %v6798, %v6745
      %v6803 = vsel %vm3597, %v6799, %v6747
      %v6804 = vsel %vm3597, %v6800, %v6749
      %v6805 = vsel %vm3597, %v6801, %v6751
      %v6806 = vsel %vm6123, %v6802, %v6758
      %v6807 = vsel %vm6123, %v6803, %v6760
      %v6808 = vsel %vm6123, %v6804, %v6762
      %v6809 = vsel %vm6123, %v6805, %v6764
      %v6810 = vsel %vm6132, %v6806, %v6770
      %v6811 = vsel %vm6132, %v6807, %v6772
      %v6812 = vsel %vm6132, %v6808, %v6774
      %v6813 = vsel %vm6132, %v6809, %v6050
      %v6814 = vsel %vm6141, %v6810, %v6779
      %v6815 = vsel %vm6141, %v6811, %v6781
      %v6816 = vsel %vm6141, %v6812, %v6783
      %v6817 = vsel %vm6141, %v6813, %v6785
      %v6822 = vrot.slane %v6716, 4
      %v6823 = vrot.slane %v6717, 4
      %v6824 = vrot.slane %v6756, 4
      %v6825 = vrot.slane %v974, 4
      %v6826 = vsel %vm3722, %v6814, %v6822
      %v6827 = vsel %vm3722, %v6815, %v6823
      %v6828 = vsel %vm3722, %v6816, %v6824
      %v6829 = vsel %vm3722, %v6817, %v6825
      %6830 = vst [vmem:[#allocation1] ss:$2 sm:$0xff] %v6826
      %s6831 = scalar_lea.vmem [#allocation1], 1
      %6832 = vst [vmem:[%s6831] ss:$2 sm:$0xff] %v6827
      %s6833 = scalar_lea.vmem [#allocation1], 16
      %6834 = vst [vmem:[%s6833] ss:$2 sm:$0xff] %v6828
      %s6835 = scalar_lea.vmem [#allocation1], 17
      %6836 = vst [vmem:[%s6835] ss:$2 sm:$0xff] %v6829
      %v6837 = vld.sshfl [vmem:[#allocation1] sm:$0xff pattern:$0x75316420]
      %v6838 = vld.sshfl [vmem:[#allocation1 + $0x8] sm:$0xff pattern:$0x75316420]
      %v6839 = vld.sshfl [vmem:[#allocation1 + $0x10] sm:$0xff pattern:$0x75316420]
      %v6840 = vld.sshfl [vmem:[#allocation1 + $0x18] sm:$0xff pattern:$0x75316420]
      %v6845 = vpack.c.bf16 %v6839, %v6837
      %v6846 = vpack.c.bf16 %v6840, %v6838
      %v6865 = vunpack.c.l.b16 %v6639
      %v6866 = vunpack.c.l.b16 %v6640
      %v6867 = vunpack.c.l.b16 %v6641
      %v6868 = vunpack.c.l.b16 %v6642
      %v6869 = vunpack.c.l.b16 %v6643
      %v6870 = vunpack.c.l.b16 %v6644
      %v6871 = vunpack.c.l.b16 %v6645
      %v6872 = vunpack.c.l.b16 %v6646
      %v6873 = vunpack.c.l.b16 %v6647
      %v6874 = vunpack.c.l.b16 %v6648
      %v6875 = vunpack.c.l.b16 %v6649
      %v6876 = vunpack.c.l.b16 %v6650
      %v6877 = vunpack.c.l.b16 %v6651
      %v6878 = vunpack.c.l.b16 %v6652
      %v6879 = vunpack.c.l.b16 %v6653
      %v6880 = vunpack.c.l.b16 %v6654
      %v6881 = vunpack.c.l.b16 %v6655
      %v6882 = vunpack.c.l.b16 %v6656
      %v6883 = vpack.c.b16 %v6866, %v6865
      %v6884 = vpack.c.b16 %v6868, %v6867
      %v6885 = vpack.c.b16 %v6870, %v6869
      %v6886 = vpack.c.b16 %v6872, %v6871
      %v6887 = vpack.c.b16 %v6874, %v6873
      %v6888 = vpack.c.b16 %v6876, %v6875
      %v6889 = vpack.c.b16 %v6878, %v6877
      %v6890 = vpack.c.b16 %v6880, %v6879
      %v6891 = vpack.c.b16 %v6882, %v6881
      %v6902 = vsel %vm3401, %v6846, 0
      %6904 = vmatpush.bf16.msra.mxu0 %v6890
      %6905 = vmatpush.bf16.msra.mxu0 %v6889
      %6906 = vmatpush.bf16.msra.mxu0 %v6888
      %6907 = vmatpush.bf16.msra.mxu0 %v6887
      %6908 = vmatpush.bf16.msra.mxu0 %v6886
      %6909 = vmatpush.bf16.msra.mxu0 %v6885
      %6910 = vmatpush.bf16.msra.mxu0 %v6884
      %6911 = vmatpush.bf16.msra.mxu0 %v6883
      %6912 = vmatmul.bf16.gmra.mxu0 %v6845
      %v6913 = vpop.f32.mrf.mxu0
      %v6914 = vadd.f32 0.0, %v6913
      %v6915 = vpop.f32.mrf.mxu0
      %v6916 = vadd.f32 0.0, %v6915
      %6917 = vdwg.mxu0
      %6918 = vmatpush.bf16.msra.mxu0 0
      %6919 = vmatpush.bf16.msra.mxu0 0
      %6920 = vmatpush.bf16.msra.mxu0 0
      %6921 = vmatpush.bf16.msra.mxu0 0
      %6922 = vmatpush.bf16.msra.mxu0 0
      %6923 = vmatpush.bf16.msra.mxu0 0
      %6924 = vmatpush.bf16.msra.mxu0 0
      %6925 = vmatpush.bf16.msra.mxu0 %v6891
      %6926 = vmatmul.bf16.gmra.mxu0 %v6902
      %v6927 = vpop.f32.mrf.mxu0
      %v6928 = vadd.f32 %v6914, %v6927
      %v6929 = vpop.f32.mrf.mxu0
      %v6930 = vadd.f32 %v6916, %v6929
      %6931 = vdwg.mxu0
      %v6932 = vld [vmem:[%s10] sm:$0x1]
      %v6933 = vld [vmem:[%s10 + $0x1] sm:$0x1]
      %v6934 = vperm.slane %v6932, 0
      %v6935 = vmul.f32 %v6928, %v6934
      %v6936 = vmul.f32 %v6930, %v6934
      %v6937 = vperm.slane %v6933, 0
      %v6938 = vadd.f32 %v6935, %v6937
      %v6939 = vadd.f32 %v6936, %v6937
      %v6940 = vmax.f32 %v6938, 0.0
      %v6941 = vmax.f32 %v6939, 0.0
      %v6944 = vrot.slane %v6940, 4
      %v6945 = vrot.slane %v6941, 4
      %v6948 = vld [vmem:[%s11] sm:$0xf]
      %v6949 = vld [vmem:[%s11 + $0x4] sm:$0xf]
      %v6950 = vld [vmem:[%s11 + $0x8] sm:$0xf]
      %v6951 = vld [vmem:[%s11 + $0xc] sm:$0xf]
      %v6952 = vld [vmem:[%s11 + $0x10] sm:$0xf]
      %v6953 = vld [vmem:[%s11 + $0x14] sm:$0xf]
      %v6954 = vld [vmem:[%s11 + $0x18] sm:$0xf]
      %v6955 = vld [vmem:[%s11 + $0x1c] sm:$0xf]
      %v6956 = vld [vmem:[%s11 + $0x20] sm:$0xf]
      %v6957 = vld [vmem:[%s11 + $0x24] sm:$0xf]
      %v6958 = vld [vmem:[%s11 + $0x28] sm:$0xf]
      %v6959 = vld [vmem:[%s11 + $0x2c] sm:$0xf]
      %v6960 = vld [vmem:[%s11 + $0x30] sm:$0xf]
      %v6961 = vld [vmem:[%s11 + $0x34] sm:$0xf]
      %v6962 = vld [vmem:[%s11 + $0x38] sm:$0xf]
      %v6963 = vld [vmem:[%s11 + $0x3c] sm:$0xf]
      %v6964 = vld [vmem:[%s11 + $0x40] sm:$0xf]
      %v6965 = vld [vmem:[%s11 + $0x44] sm:$0xf]
      %v6966 = vld [vmem:[%s11 + $0x48] sm:$0xf]
      %v6967 = vld [vmem:[%s11 + $0x4c] sm:$0xf]
      %v6968 = vld [vmem:[%s11 + $0x50] sm:$0xf]
      %v6969 = vld [vmem:[%s11 + $0x54] sm:$0xf]
      %v6970 = vld [vmem:[%s11 + $0x58] sm:$0xf]
      %v6971 = vld [vmem:[%s11 + $0x5c] sm:$0xf]
      %v6972 = vld [vmem:[%s11 + $0x60] sm:$0xf]
      %v6973 = vld [vmem:[%s11 + $0x64] sm:$0xf]
      %v6974 = vld [vmem:[%s11 + $0x68] sm:$0xf]
      %v6975 = vld [vmem:[%s11 + $0x6c] sm:$0xf]
      %v6976 = vld [vmem:[%s11 + $0x70] sm:$0xf]
      %v6977 = vld [vmem:[%s11 + $0x74] sm:$0xf]
      %v6978 = vld [vmem:[%s11 + $0x78] sm:$0xf]
      %v6979 = vld [vmem:[%s11 + $0x7c] sm:$0xf]
      %v6980 = vld [vmem:[%s11 + $0x80] sm:$0xf]
      %v6981 = vld [vmem:[%s11 + $0x84] sm:$0xf]
      %v6982 = vld [vmem:[%s11 + $0x88] sm:$0xf]
      %v6983 = vld [vmem:[%s11 + $0x8c] sm:$0xf]
      %v6984 = vld [vmem:[%s11 + $0x90] sm:$0xf]
      %v6985 = vld [vmem:[%s11 + $0x94] sm:$0x1]
      %v6986 = vld [vmem:[%s13] sm:$0xf]
      %v6987 = vld [vmem:[%s13 + $0x4] sm:$0xf]
      %v6988 = vld [vmem:[%s13 + $0x8] sm:$0xf]
      %v6989 = vld [vmem:[%s13 + $0xc] sm:$0xf]
      %v6990 = vld [vmem:[%s13 + $0x10] sm:$0xf]
      %v6991 = vld [vmem:[%s13 + $0x14] sm:$0xf]
      %v6992 = vld [vmem:[%s13 + $0x18] sm:$0xf]
      %v6993 = vld [vmem:[%s13 + $0x1c] sm:$0xf]
      %v6994 = vld [vmem:[%s13 + $0x20] sm:$0xf]
      %v6995 = vld [vmem:[%s13 + $0x24] sm:$0xf]
      %v6996 = vld [vmem:[%s13 + $0x28] sm:$0xf]
      %v6997 = vld [vmem:[%s13 + $0x2c] sm:$0xf]
      %v6998 = vld [vmem:[%s13 + $0x30] sm:$0xf]
      %v6999 = vld [vmem:[%s13 + $0x34] sm:$0xf]
      %v7000 = vld [vmem:[%s13 + $0x38] sm:$0xf]
      %v7001 = vld [vmem:[%s13 + $0x3c] sm:$0xf]
      %v7002 = vld [vmem:[%s13 + $0x40] sm:$0xf]
      %v7003 = vld [vmem:[%s13 + $0x44] sm:$0xf]
      %v7004 = vld [vmem:[%s13 + $0x48] sm:$0xf]
      %v7005 = vld [vmem:[%s13 + $0x4c] sm:$0xf]
      %v7006 = vld [vmem:[%s13 + $0x50] sm:$0xf]
      %v7007 = vld [vmem:[%s13 + $0x54] sm:$0xf]
      %v7008 = vld [vmem:[%s13 + $0x58] sm:$0xf]
      %v7009 = vld [vmem:[%s13 + $0x5c] sm:$0xf]
      %v7010 = vld [vmem:[%s13 + $0x60] sm:$0xf]
      %v7011 = vld [vmem:[%s13 + $0x64] sm:$0xf]
      %v7012 = vld [vmem:[%s13 + $0x68] sm:$0xf]
      %v7013 = vld [vmem:[%s13 + $0x6c] sm:$0xf]
      %v7014 = vld [vmem:[%s13 + $0x70] sm:$0xf]
      %v7015 = vld [vmem:[%s13 + $0x74] sm:$0xf]
      %v7016 = vld [vmem:[%s13 + $0x78] sm:$0xf]
      %v7017 = vld [vmem:[%s13 + $0x7c] sm:$0xf]
      %v7018 = vld [vmem:[%s13 + $0x80] sm:$0xf]
      %v7019 = vld [vmem:[%s13 + $0x84] sm:$0xf]
      %v7020 = vld [vmem:[%s13 + $0x88] sm:$0xf]
      %v7021 = vld [vmem:[%s13 + $0x8c] sm:$0xf]
      %v7022 = vld [vmem:[%s13 + $0x90] sm:$0xf]
      %v7023 = vld [vmem:[%s13 + $0x94] sm:$0x1]
      %v7024 = vld [vmem:[%s12] sm:$0x1]
      %v7025 = vld [vmem:[%s12 + $0x1] sm:$0x1]
      %v7026 = vld [vmem:[%s14] sm:$0x1]
      %v7027 = vld [vmem:[%s14 + $0x1] sm:$0x1]
      loop: start=0, step=1, limit=20
      $region93: #{forward.1} parent=91 // loop_pre_header
        _
      $region94: #{forward.1} parent=91 // loop_header
        %s7029 = sphi 0, %s7033
        %p7030 = scmp.ge.s32.totalorder %s7029, 20
        %v7034 = vphi %v6940, %v7815
        %v7035 = vphi %v6944, %v7816
        %v7036 = vphi %v6941, %v7817
        %v7037 = vphi %v6945, %v7818
      $region95: #{forward.1} parent=91 // loop_header_branch
        %7032 = sbr.rel (%p7030) target = $region99
      $region96: #{forward.1} parent=91 // loop_body
        %s7038 = scvt.s32.f32 %s7029
        %s7039 = smul.f32 %s7038, 0.05
        %s7040 = sadd.f32 %s7039, 0.0
        %v7041 = vstv %s7040
        %v7042 = vsel %vm3465, %v7034, %v7041
        %v7043 = vsel %vm3465, %v7035, %v7041
        %v7044 = vsel %vm3465, %v7036, %v7041
        %v7045 = vsel %vm3465, %v7037, %v7041
        %v7050 = vrot.slane %v7042, 7
        %v7051 = vrot.slane %v7043, 7
        %v7052 = vrot.slane %v7044, 7
        %v7053 = vrot.slane %v7045, 7
        %v7058 = vsel %vm643, 0.0, %v7050
        %v7059 = vsel %vm643, 0.0, %v7051
        %v7060 = vsel %vm643, 0.0, %v7052
        %v7061 = vsel %vm643, 0.0, %v7053
        %v7062 = vsel %vm2061, %v7058, 0.0
        %v7063 = vsel %vm2061, %v7059, 0.0
        %v7064 = vsel %vm2061, %v7060, 0.0
        %v7065 = vsel %vm2061, %v7061, 0.0
        %v7069 = vrot.slane %v7062, 1
        %v7070 = vrot.slane %v7063, 1
        %v7071 = vrot.slane %v7064, 1
        %7072 = vrot.lane.b32.xlu0 %v803, 33
        %v7073 = vpop.permute.xlu0 %7072
        %7074 = vrot.lane.b32.xlu0 %v7069, 33
        %v7075 = vpop.permute.xlu0 %7074
        %7076 = vrot.lane.b32.xlu0 %v7070, 33
        %v7077 = vpop.permute.xlu0 %7076
        %7078 = vrot.lane.b32.xlu0 %v7071, 33
        %v7079 = vpop.permute.xlu0 %7078
        %v7084 = vrot.slane %v7062, 2
        %v7085 = vrot.slane %v7063, 2
        %v7086 = vrot.slane %v7064, 2
        %7087 = vrot.lane.b32.xlu0 %v974, 66
        %v7088 = vpop.permute.xlu0 %7087
        %7089 = vrot.lane.b32.xlu0 %v7084, 66
        %v7090 = vpop.permute.xlu0 %7089
        %7091 = vrot.lane.b32.xlu0 %v7085, 66
        %v7092 = vpop.permute.xlu0 %7091
        %7093 = vrot.lane.b32.xlu0 %v7086, 66
        %v7094 = vpop.permute.xlu0 %7093
        %7100 = vrot.lane.b32.xlu0 %v7062, 99
        %v7101 = vpop.permute.xlu0 %7100
        %7102 = vrot.lane.b32.xlu0 %v7063, 99
        %v7103 = vpop.permute.xlu0 %7102
        %7104 = vrot.lane.b32.xlu0 %v7064, 99
        %v7105 = vpop.permute.xlu0 %7104
        %7106 = vrot.lane.b32.xlu0 %v7065, 99
        %v7107 = vpop.permute.xlu0 %7106
        %v7112 = vrot.slane %v7065, 1
        %7113 = vrot.lane.b32.xlu0 %v7069, 4
        %v7114 = vpop.permute.xlu0 %7113
        %7115 = vrot.lane.b32.xlu0 %v7070, 4
        %v7116 = vpop.permute.xlu0 %7115
        %7117 = vrot.lane.b32.xlu0 %v7071, 4
        %v7118 = vpop.permute.xlu0 %7117
        %7119 = vrot.lane.b32.xlu0 %v7112, 4
        %v7120 = vpop.permute.xlu0 %7119
        %v7125 = vrot.slane %v7065, 2
        %7126 = vrot.lane.b32.xlu0 %v7084, 37
        %v7127 = vpop.permute.xlu0 %7126
        %7128 = vrot.lane.b32.xlu0 %v7085, 37
        %v7129 = vpop.permute.xlu0 %7128
        %7130 = vrot.lane.b32.xlu0 %v7086, 37
        %v7131 = vpop.permute.xlu0 %7130
        %7132 = vrot.lane.b32.xlu0 %v7125, 37
        %v7133 = vpop.permute.xlu0 %7132
        %7138 = vrot.lane.b32.xlu0 %v7063, 70
        %v7139 = vpop.permute.xlu0 %7138
        %7140 = vrot.lane.b32.xlu0 %v7064, 70
        %v7141 = vpop.permute.xlu0 %7140
        %7142 = vrot.lane.b32.xlu0 %v7065, 70
        %v7143 = vpop.permute.xlu0 %7142
        %7144 = vrot.lane.b32.xlu0 0.0, 70
        %v7145 = vpop.permute.xlu0 %7144
        %7150 = vrot.lane.b32.xlu0 %v7070, 103
        %v7151 = vpop.permute.xlu0 %7150
        %7152 = vrot.lane.b32.xlu0 %v7071, 103
        %v7153 = vpop.permute.xlu0 %7152
        %7154 = vrot.lane.b32.xlu0 %v7112, 103
        %v7155 = vpop.permute.xlu0 %7154
        %7156 = vrot.lane.b32.xlu0 %v803, 103
        %v7157 = vpop.permute.xlu0 %7156
        %7162 = vrot.lane.b32.xlu0 %v7085, 8
        %v7163 = vpop.permute.xlu0 %7162
        %7164 = vrot.lane.b32.xlu0 %v7086, 8
        %v7165 = vpop.permute.xlu0 %7164
        %7166 = vrot.lane.b32.xlu0 %v7125, 8
        %v7167 = vpop.permute.xlu0 %7166
        %7168 = vrot.lane.b32.xlu0 %v974, 8
        %v7169 = vpop.permute.xlu0 %7168
        %vm7174 = vcmask 269312
        %v7175 = vsel %vm7174, 0.0, %v7073
        %v7176 = vsel %vm7174, %v7062, %v7075
        %v7177 = vsel %vm7174, %v7063, %v7077
        %v7178 = vsel %vm7174, %v7064, %v7079
        %vm7179 = vcmask 539648
        %v7180 = vsel %vm7179, %v7175, %v7088
        %v7181 = vsel %vm7179, %v7176, %v7090
        %v7182 = vsel %vm7179, %v7177, %v7092
        %v7183 = vsel %vm7179, %v7178, %v7094
        %vm7184 = vcmask 809984
        %v7185 = vsel %vm7184, %v7180, %v7101
        %v7186 = vsel %vm7184, %v7181, %v7103
        %v7187 = vsel %vm7184, %v7182, %v7105
        %v7188 = vsel %vm7184, %v7183, %v7107
        %vm7189 = vcmask 31744
        %v7190 = vsel %vm7189, %v7101, %v7114
        %v7191 = vsel %vm7189, %v7103, %v7116
        %v7192 = vsel %vm7189, %v7105, %v7118
        %v7193 = vsel %vm7189, %v7107, %v7120
        %vm7194 = vcmask 302080
        %v7195 = vsel %vm7194, %v7190, %v7127
        %v7196 = vsel %vm7194, %v7191, %v7129
        %v7197 = vsel %vm7194, %v7192, %v7131
        %v7198 = vsel %vm7194, %v7193, %v7133
        %vm7199 = vcmask 572416
        %v7200 = vsel %vm7199, %v7195, %v7139
        %v7201 = vsel %vm7199, %v7196, %v7141
        %v7202 = vsel %vm7199, %v7197, %v7143
        %v7203 = vsel %vm7199, %v7198, %v7145
        %vm7204 = vcmask 842752
        %v7205 = vsel %vm7204, %v7200, %v7151
        %v7206 = vsel %vm7204, %v7201, %v7153
        %v7207 = vsel %vm7204, %v7202, %v7155
        %v7208 = vsel %vm7204, %v7203, %v7157
        %v7209 = vsel %vm3369, %v7151, %v7163
        %v7210 = vsel %vm3369, %v7153, %v7165
        %v7211 = vsel %vm3369, %v7155, %v7167
        %v7212 = vsel %vm3369, %v7157, %v7169
        %v7225 = vrot.slane %v7205, 4
        %v7226 = vrot.slane %v7206, 4
        %v7227 = vrot.slane %v7207, 4
        %v7228 = vrot.slane %v7208, 4
        %v7229 = vsel %vm3722, %v7185, %v7225
        %v7230 = vsel %vm3722, %v7186, %v7226
        %v7231 = vsel %vm3722, %v7187, %v7227
        %v7232 = vsel %vm3722, %v7188, %v7228
        %7233 = vst [vmem:[#allocation1] ss:$2 sm:$0xff] %v7229
        %s7234 = scalar_lea.vmem [#allocation1], 1
        %7235 = vst [vmem:[%s7234] ss:$2 sm:$0xff] %v7230
        %s7236 = scalar_lea.vmem [#allocation1], 16
        %7237 = vst [vmem:[%s7236] ss:$2 sm:$0xff] %v7209
        %s7238 = scalar_lea.vmem [#allocation1], 17
        %7239 = vst [vmem:[%s7238] ss:$2 sm:$0xff] %v7210
        %s7240 = scalar_lea.vmem [#allocation1], 32
        %7241 = vst [vmem:[%s7240] ss:$2 sm:$0xff] %v7231
        %s7242 = scalar_lea.vmem [#allocation1], 33
        %7243 = vst [vmem:[%s7242] ss:$2 sm:$0xff] %v7232
        %s7244 = scalar_lea.vmem [#allocation1], 48
        %7245 = vst [vmem:[%s7244] ss:$2 sm:$0xff] %v7211
        %s7246 = scalar_lea.vmem [#allocation1], 49
        %7247 = vst [vmem:[%s7246] ss:$2 sm:$0xff] %v7212
        %v7248 = vld.sshfl [vmem:[#allocation1] sm:$0xff pattern:$0x75316420]
        %v7249 = vld.sshfl [vmem:[#allocation1 + $0x8] sm:$0xff pattern:$0x75316420]
        %v7250 = vld.sshfl [vmem:[#allocation1 + $0x10] sm:$0xff pattern:$0x75316420]
        %v7251 = vld.sshfl [vmem:[#allocation1 + $0x20] sm:$0xff pattern:$0x75316420]
        %v7252 = vld.sshfl [vmem:[#allocation1 + $0x28] sm:$0xff pattern:$0x75316420]
        %v7253 = vld.sshfl [vmem:[#allocation1 + $0x30] sm:$0xff pattern:$0x75316420]
        %v7260 = vpack.c.bf16 %v7251, %v7248
        %v7261 = vpack.c.bf16 %v7252, %v7249
        %v7262 = vpack.c.bf16 %v7253, %v7250
        %v7301 = vunpack.c.l.b16 %v6948
        %v7302 = vunpack.c.l.b16 %v6949
        %v7303 = vunpack.c.l.b16 %v6950
        %v7304 = vunpack.c.l.b16 %v6951
        %v7305 = vunpack.c.l.b16 %v6952
        %v7306 = vunpack.c.l.b16 %v6953
        %v7307 = vunpack.c.l.b16 %v6954
        %v7308 = vunpack.c.l.b16 %v6955
        %v7309 = vunpack.c.l.b16 %v6956
        %v7310 = vunpack.c.l.b16 %v6957
        %v7311 = vunpack.c.l.b16 %v6958
        %v7312 = vunpack.c.l.b16 %v6959
        %v7313 = vunpack.c.l.b16 %v6960
        %v7314 = vunpack.c.l.b16 %v6961
        %v7315 = vunpack.c.l.b16 %v6962
        %v7316 = vunpack.c.l.b16 %v6963
        %v7317 = vunpack.c.l.b16 %v6964
        %v7318 = vunpack.c.l.b16 %v6965
        %v7319 = vunpack.c.l.b16 %v6966
        %v7320 = vunpack.c.l.b16 %v6967
        %v7321 = vunpack.c.l.b16 %v6968
        %v7322 = vunpack.c.l.b16 %v6969
        %v7323 = vunpack.c.l.b16 %v6970
        %v7324 = vunpack.c.l.b16 %v6971
        %v7325 = vunpack.c.l.b16 %v6972
        %v7326 = vunpack.c.l.b16 %v6973
        %v7327 = vunpack.c.l.b16 %v6974
        %v7328 = vunpack.c.l.b16 %v6975
        %v7329 = vunpack.c.l.b16 %v6976
        %v7330 = vunpack.c.l.b16 %v6977
        %v7331 = vunpack.c.l.b16 %v6978
        %v7332 = vunpack.c.l.b16 %v6979
        %v7333 = vunpack.c.l.b16 %v6980
        %v7334 = vunpack.c.l.b16 %v6981
        %v7335 = vunpack.c.l.b16 %v6982
        %v7336 = vunpack.c.l.b16 %v6983
        %v7337 = vunpack.c.l.b16 %v6984
        %v7338 = vunpack.c.l.b16 %v6985
        %v7339 = vpack.c.b16 %v7302, %v7301
        %v7340 = vpack.c.b16 %v7304, %v7303
        %v7341 = vpack.c.b16 %v7306, %v7305
        %v7342 = vpack.c.b16 %v7308, %v7307
        %v7343 = vpack.c.b16 %v7310, %v7309
        %v7344 = vpack.c.b16 %v7312, %v7311
        %v7345 = vpack.c.b16 %v7314, %v7313
        %v7346 = vpack.c.b16 %v7316, %v7315
        %v7347 = vpack.c.b16 %v7318, %v7317
        %v7348 = vpack.c.b16 %v7320, %v7319
        %v7349 = vpack.c.b16 %v7322, %v7321
        %v7350 = vpack.c.b16 %v7324, %v7323
        %v7351 = vpack.c.b16 %v7326, %v7325
        %v7352 = vpack.c.b16 %v7328, %v7327
        %v7353 = vpack.c.b16 %v7330, %v7329
        %v7354 = vpack.c.b16 %v7332, %v7331
        %v7355 = vpack.c.b16 %v7334, %v7333
        %v7356 = vpack.c.b16 %v7336, %v7335
        %v7357 = vpack.c.b16 %v7338, %v7337
        %vm7376 = vcmask 334848
        %v7378 = vsel %vm7376, %v7262, 0
        %v7380 = vsel %vm3722, 4294967295, 65535
        %v7381 = vsel %vm2061, %v7380, 0
        %v7383 = vand.u32 %v7357, %v7381
        %7385 = vmatpush.bf16.msra.mxu0 %v7346
        %7386 = vmatpush.bf16.msra.mxu0 %v7345
        %7387 = vmatpush.bf16.msra.mxu0 %v7344
        %7388 = vmatpush.bf16.msra.mxu0 %v7343
        %7389 = vmatpush.bf16.msra.mxu0 %v7342
        %7390 = vmatpush.bf16.msra.mxu0 %v7341
        %7391 = vmatpush.bf16.msra.mxu0 %v7340
        %7392 = vmatpush.bf16.msra.mxu0 %v7339
        %7393 = vmatmul.bf16.gmra.mxu0 %v7260
        %v7394 = vpop.f32.mrf.mxu0
        %v7395 = vadd.f32 0.0, %v7394
        %v7396 = vpop.f32.mrf.mxu0
        %v7397 = vadd.f32 0.0, %v7396
        %7398 = vdwg.mxu0
        %7399 = vmatpush.bf16.msra.mxu0 %v7354
        %7400 = vmatpush.bf16.msra.mxu0 %v7353
        %7401 = vmatpush.bf16.msra.mxu0 %v7352
        %7402 = vmatpush.bf16.msra.mxu0 %v7351
        %7403 = vmatpush.bf16.msra.mxu0 %v7350
        %7404 = vmatpush.bf16.msra.mxu0 %v7349
        %7405 = vmatpush.bf16.msra.mxu0 %v7348
        %7406 = vmatpush.bf16.msra.mxu0 %v7347
        %7407 = vmatmul.bf16.gmra.mxu0 %v7261
        %v7408 = vpop.f32.mrf.mxu0
        %v7409 = vadd.f32 %v7395, %v7408
        %v7410 = vpop.f32.mrf.mxu0
        %v7411 = vadd.f32 %v7397, %v7410
        %7412 = vdwg.mxu0
        %7413 = vmatpush.bf16.msra.mxu0 0
        %7414 = vmatpush.bf16.msra.mxu0 0
        %7415 = vmatpush.bf16.msra.mxu0 0
        %7416 = vmatpush.bf16.msra.mxu0 0
        %7417 = vmatpush.bf16.msra.mxu0 0
        %7418 = vmatpush.bf16.msra.mxu0 %v7383
        %7419 = vmatpush.bf16.msra.mxu0 %v7356
        %7420 = vmatpush.bf16.msra.mxu0 %v7355
        %7421 = vmatmul.bf16.gmra.mxu0 %v7378
        %v7422 = vpop.f32.mrf.mxu0
        %v7423 = vadd.f32 %v7409, %v7422
        %v7424 = vpop.f32.mrf.mxu0
        %v7425 = vadd.f32 %v7411, %v7424
        %7426 = vdwg.mxu0
        %v7427 = vmax.f32 %v7423, 0.0
        %v7428 = vmax.f32 %v7425, 0.0
        %v7429 = vperm.slane %v7024, 0
        %v7430 = vmul.f32 %v7427, %v7429
        %v7431 = vmul.f32 %v7428, %v7429
        %v7432 = vperm.slane %v7025, 0
        %v7433 = vadd.f32 %v7430, %v7432
        %v7434 = vadd.f32 %v7431, %v7432
        %v7437 = vrot.slane %v7433, 4
        %v7438 = vrot.slane %v7434, 4
        %v7441 = vsel %vm3465, %v7433, %v7041
        %v7442 = vsel %vm3465, %v7437, %v7041
        %v7443 = vsel %vm3465, %v7434, %v7041
        %v7444 = vsel %vm3465, %v7438, %v7041
        %v7449 = vrot.slane %v7441, 7
        %v7450 = vrot.slane %v7442, 7
        %v7451 = vrot.slane %v7443, 7
        %v7452 = vrot.slane %v7444, 7
        %v7457 = vsel %vm643, 0.0, %v7449
        %v7458 = vsel %vm643, 0.0, %v7450
        %v7459 = vsel %vm643, 0.0, %v7451
        %v7460 = vsel %vm643, 0.0, %v7452
        %v7461 = vsel %vm2061, %v7457, 0.0
        %v7462 = vsel %vm2061, %v7458, 0.0
        %v7463 = vsel %vm2061, %v7459, 0.0
        %v7464 = vsel %vm2061, %v7460, 0.0
        %v7468 = vrot.slane %v7461, 1
        %v7469 = vrot.slane %v7462, 1
        %v7470 = vrot.slane %v7463, 1
        %7471 = vrot.lane.b32.xlu0 %v7468, 33
        %v7472 = vpop.permute.xlu0 %7471
        %7473 = vrot.lane.b32.xlu0 %v7469, 33
        %v7474 = vpop.permute.xlu0 %7473
        %7475 = vrot.lane.b32.xlu0 %v7470, 33
        %v7476 = vpop.permute.xlu0 %7475
        %v7480 = vrot.slane %v7461, 2
        %v7481 = vrot.slane %v7462, 2
        %v7482 = vrot.slane %v7463, 2
        %7483 = vrot.lane.b32.xlu0 %v7480, 66
        %v7484 = vpop.permute.xlu0 %7483
        %7485 = vrot.lane.b32.xlu0 %v7481, 66
        %v7486 = vpop.permute.xlu0 %7485
        %7487 = vrot.lane.b32.xlu0 %v7482, 66
        %v7488 = vpop.permute.xlu0 %7487
        %7493 = vrot.lane.b32.xlu0 %v7461, 99
        %v7494 = vpop.permute.xlu0 %7493
        %7495 = vrot.lane.b32.xlu0 %v7462, 99
        %v7496 = vpop.permute.xlu0 %7495
        %7497 = vrot.lane.b32.xlu0 %v7463, 99
        %v7498 = vpop.permute.xlu0 %7497
        %7499 = vrot.lane.b32.xlu0 %v7464, 99
        %v7500 = vpop.permute.xlu0 %7499
        %v7505 = vrot.slane %v7464, 1
        %7506 = vrot.lane.b32.xlu0 %v7468, 4
        %v7507 = vpop.permute.xlu0 %7506
        %7508 = vrot.lane.b32.xlu0 %v7469, 4
        %v7509 = vpop.permute.xlu0 %7508
        %7510 = vrot.lane.b32.xlu0 %v7470, 4
        %v7511 = vpop.permute.xlu0 %7510
        %7512 = vrot.lane.b32.xlu0 %v7505, 4
        %v7513 = vpop.permute.xlu0 %7512
        %v7518 = vrot.slane %v7464, 2
        %7519 = vrot.lane.b32.xlu0 %v7480, 37
        %v7520 = vpop.permute.xlu0 %7519
        %7521 = vrot.lane.b32.xlu0 %v7481, 37
        %v7522 = vpop.permute.xlu0 %7521
        %7523 = vrot.lane.b32.xlu0 %v7482, 37
        %v7524 = vpop.permute.xlu0 %7523
        %7525 = vrot.lane.b32.xlu0 %v7518, 37
        %v7526 = vpop.permute.xlu0 %7525
        %7531 = vrot.lane.b32.xlu0 %v7462, 70
        %v7532 = vpop.permute.xlu0 %7531
        %7533 = vrot.lane.b32.xlu0 %v7463, 70
        %v7534 = vpop.permute.xlu0 %7533
        %7535 = vrot.lane.b32.xlu0 %v7464, 70
        %v7536 = vpop.permute.xlu0 %7535
        %7540 = vrot.lane.b32.xlu0 %v7469, 103
        %v7541 = vpop.permute.xlu0 %7540
        %7542 = vrot.lane.b32.xlu0 %v7470, 103
        %v7543 = vpop.permute.xlu0 %7542
        %7544 = vrot.lane.b32.xlu0 %v7505, 103
        %v7545 = vpop.permute.xlu0 %7544
        %7549 = vrot.lane.b32.xlu0 %v7481, 8
        %v7550 = vpop.permute.xlu0 %7549
        %7551 = vrot.lane.b32.xlu0 %v7482, 8
        %v7552 = vpop.permute.xlu0 %7551
        %7553 = vrot.lane.b32.xlu0 %v7518, 8
        %v7554 = vpop.permute.xlu0 %7553
        %v7558 = vsel %vm7174, %v7461, %v7472
        %v7559 = vsel %vm7174, %v7462, %v7474
        %v7560 = vsel %vm7174, %v7463, %v7476
        %v7561 = vsel %vm7179, %v7558, %v7484
        %v7562 = vsel %vm7179, %v7559, %v7486
        %v7563 = vsel %vm7179, %v7560, %v7488
        %v7564 = vsel %vm7184, %v7180, %v7494
        %v7565 = vsel %vm7184, %v7561, %v7496
        %v7566 = vsel %vm7184, %v7562, %v7498
        %v7567 = vsel %vm7184, %v7563, %v7500
        %v7568 = vsel %vm7189, %v7494, %v7507
        %v7569 = vsel %vm7189, %v7496, %v7509
        %v7570 = vsel %vm7189, %v7498, %v7511
        %v7571 = vsel %vm7189, %v7500, %v7513
        %v7572 = vsel %vm7194, %v7568, %v7520
        %v7573 = vsel %vm7194, %v7569, %v7522
        %v7574 = vsel %vm7194, %v7570, %v7524
        %v7575 = vsel %vm7194, %v7571, %v7526
        %v7576 = vsel %vm7199, %v7572, %v7532
        %v7577 = vsel %vm7199, %v7573, %v7534
        %v7578 = vsel %vm7199, %v7574, %v7536
        %v7579 = vsel %vm7199, %v7575, %v7145
        %v7580 = vsel %vm7204, %v7576, %v7541
        %v7581 = vsel %vm7204, %v7577, %v7543
        %v7582 = vsel %vm7204, %v7578, %v7545
        %v7583 = vsel %vm7204, %v7579, %v7157
        %v7584 = vsel %vm3369, %v7541, %v7550
        %v7585 = vsel %vm3369, %v7543, %v7552
        %v7586 = vsel %vm3369, %v7545, %v7554
        %v7598 = vrot.slane %v7580, 4
        %v7599 = vrot.slane %v7581, 4
        %v7600 = vrot.slane %v7582, 4
        %v7601 = vrot.slane %v7583, 4
        %v7602 = vsel %vm3722, %v7564, %v7598
        %v7603 = vsel %vm3722, %v7565, %v7599
        %v7604 = vsel %vm3722, %v7566, %v7600
        %v7605 = vsel %vm3722, %v7567, %v7601
        %7606 = vst [vmem:[#allocation1] ss:$2 sm:$0xff] %v7602
        %s7607 = scalar_lea.vmem [#allocation1], 1
        %7608 = vst [vmem:[%s7607] ss:$2 sm:$0xff] %v7603
        %s7609 = scalar_lea.vmem [#allocation1], 16
        %7610 = vst [vmem:[%s7609] ss:$2 sm:$0xff] %v7584
        %s7611 = scalar_lea.vmem [#allocation1], 17
        %7612 = vst [vmem:[%s7611] ss:$2 sm:$0xff] %v7585
        %s7613 = scalar_lea.vmem [#allocation1], 32
        %7614 = vst [vmem:[%s7613] ss:$2 sm:$0xff] %v7604
        %s7615 = scalar_lea.vmem [#allocation1], 33
        %7616 = vst [vmem:[%s7615] ss:$2 sm:$0xff] %v7605
        %s7617 = scalar_lea.vmem [#allocation1], 48
        %7618 = vst [vmem:[%s7617] ss:$2 sm:$0xff] %v7586
        %s7619 = scalar_lea.vmem [#allocation1], 49
        %7620 = vst [vmem:[%s7619] ss:$2 sm:$0xff] %v7212
        %v7621 = vld.sshfl [vmem:[#allocation1] sm:$0xff pattern:$0x75316420]
        %v7622 = vld.sshfl [vmem:[#allocation1 + $0x8] sm:$0xff pattern:$0x75316420]
        %v7623 = vld.sshfl [vmem:[#allocation1 + $0x10] sm:$0xff pattern:$0x75316420]
        %v7624 = vld.sshfl [vmem:[#allocation1 + $0x20] sm:$0xff pattern:$0x75316420]
        %v7625 = vld.sshfl [vmem:[#allocation1 + $0x28] sm:$0xff pattern:$0x75316420]
        %v7626 = vld.sshfl [vmem:[#allocation1 + $0x30] sm:$0xff pattern:$0x75316420]
        %v7633 = vpack.c.bf16 %v7624, %v7621
        %v7634 = vpack.c.bf16 %v7625, %v7622
        %v7635 = vpack.c.bf16 %v7626, %v7623
        %v7674 = vunpack.c.l.b16 %v6986
        %v7675 = vunpack.c.l.b16 %v6987
        %v7676 = vunpack.c.l.b16 %v6988
        %v7677 = vunpack.c.l.b16 %v6989
        %v7678 = vunpack.c.l.b16 %v6990
        %v7679 = vunpack.c.l.b16 %v6991
        %v7680 = vunpack.c.l.b16 %v6992
        %v7681 = vunpack.c.l.b16 %v6993
        %v7682 = vunpack.c.l.b16 %v6994
        %v7683 = vunpack.c.l.b16 %v6995
        %v7684 = vunpack.c.l.b16 %v6996
        %v7685 = vunpack.c.l.b16 %v6997
        %v7686 = vunpack.c.l.b16 %v6998
        %v7687 = vunpack.c.l.b16 %v6999
        %v7688 = vunpack.c.l.b16 %v7000
        %v7689 = vunpack.c.l.b16 %v7001
        %v7690 = vunpack.c.l.b16 %v7002
        %v7691 = vunpack.c.l.b16 %v7003
        %v7692 = vunpack.c.l.b16 %v7004
        %v7693 = vunpack.c.l.b16 %v7005
        %v7694 = vunpack.c.l.b16 %v7006
        %v7695 = vunpack.c.l.b16 %v7007
        %v7696 = vunpack.c.l.b16 %v7008
        %v7697 = vunpack.c.l.b16 %v7009
        %v7698 = vunpack.c.l.b16 %v7010
        %v7699 = vunpack.c.l.b16 %v7011
        %v7700 = vunpack.c.l.b16 %v7012
        %v7701 = vunpack.c.l.b16 %v7013
        %v7702 = vunpack.c.l.b16 %v7014
        %v7703 = vunpack.c.l.b16 %v7015
        %v7704 = vunpack.c.l.b16 %v7016
        %v7705 = vunpack.c.l.b16 %v7017
        %v7706 = vunpack.c.l.b16 %v7018
        %v7707 = vunpack.c.l.b16 %v7019
        %v7708 = vunpack.c.l.b16 %v7020
        %v7709 = vunpack.c.l.b16 %v7021
        %v7710 = vunpack.c.l.b16 %v7022
        %v7711 = vunpack.c.l.b16 %v7023
        %v7712 = vpack.c.b16 %v7675, %v7674
        %v7713 = vpack.c.b16 %v7677, %v7676
        %v7714 = vpack.c.b16 %v7679, %v7678
        %v7715 = vpack.c.b16 %v7681, %v7680
        %v7716 = vpack.c.b16 %v7683, %v7682
        %v7717 = vpack.c.b16 %v7685, %v7684
        %v7718 = vpack.c.b16 %v7687, %v7686
        %v7719 = vpack.c.b16 %v7689, %v7688
        %v7720 = vpack.c.b16 %v7691, %v7690
        %v7721 = vpack.c.b16 %v7693, %v7692
        %v7722 = vpack.c.b16 %v7695, %v7694
        %v7723 = vpack.c.b16 %v7697, %v7696
        %v7724 = vpack.c.b16 %v7699, %v7698
        %v7725 = vpack.c.b16 %v7701, %v7700
        %v7726 = vpack.c.b16 %v7703, %v7702
        %v7727 = vpack.c.b16 %v7705, %v7704
        %v7728 = vpack.c.b16 %v7707, %v7706
        %v7729 = vpack.c.b16 %v7709, %v7708
        %v7730 = vpack.c.b16 %v7711, %v7710
        %v7750 = vsel %vm7376, %v7635, 0
        %v7753 = vand.u32 %v7730, %v7381
        %7755 = vmatpush.bf16.msra.mxu0 %v7719
        %7756 = vmatpush.bf16.msra.mxu0 %v7718
        %7757 = vmatpush.bf16.msra.mxu0 %v7717
        %7758 = vmatpush.bf16.msra.mxu0 %v7716
        %7759 = vmatpush.bf16.msra.mxu0 %v7715
        %7760 = vmatpush.bf16.msra.mxu0 %v7714
        %7761 = vmatpush.bf16.msra.mxu0 %v7713
        %7762 = vmatpush.bf16.msra.mxu0 %v7712
        %7763 = vmatmul.bf16.gmra.mxu0 %v7633
        %v7764 = vpop.f32.mrf.mxu0
        %v7765 = vadd.f32 0.0, %v7764
        %v7766 = vpop.f32.mrf.mxu0
        %v7767 = vadd.f32 0.0, %v7766
        %7768 = vdwg.mxu0
        %7769 = vmatpush.bf16.msra.mxu0 %v7727
        %7770 = vmatpush.bf16.msra.mxu0 %v7726
        %7771 = vmatpush.bf16.msra.mxu0 %v7725
        %7772 = vmatpush.bf16.msra.mxu0 %v7724
        %7773 = vmatpush.bf16.msra.mxu0 %v7723
        %7774 = vmatpush.bf16.msra.mxu0 %v7722
        %7775 = vmatpush.bf16.msra.mxu0 %v7721
        %7776 = vmatpush.bf16.msra.mxu0 %v7720
        %7777 = vmatmul.bf16.gmra.mxu0 %v7634
        %v7778 = vpop.f32.mrf.mxu0
        %v7779 = vadd.f32 %v7765, %v7778
        %v7780 = vpop.f32.mrf.mxu0
        %v7781 = vadd.f32 %v7767, %v7780
        %7782 = vdwg.mxu0
        %7783 = vmatpush.bf16.msra.mxu0 0
        %7784 = vmatpush.bf16.msra.mxu0 0
        %7785 = vmatpush.bf16.msra.mxu0 0
        %7786 = vmatpush.bf16.msra.mxu0 0
        %7787 = vmatpush.bf16.msra.mxu0 0
        %7788 = vmatpush.bf16.msra.mxu0 %v7753
        %7789 = vmatpush.bf16.msra.mxu0 %v7729
        %7790 = vmatpush.bf16.msra.mxu0 %v7728
        %7791 = vmatmul.bf16.gmra.mxu0 %v7750
        %v7792 = vpop.f32.mrf.mxu0
        %v7793 = vadd.f32 %v7779, %v7792
        %v7794 = vpop.f32.mrf.mxu0
        %v7795 = vadd.f32 %v7781, %v7794
        %7796 = vdwg.mxu0
        %v7797 = vmax.f32 %v7793, 0.0
        %v7798 = vmax.f32 %v7795, 0.0
        %v7799 = vperm.slane %v7026, 0
        %v7800 = vmul.f32 %v7797, %v7799
        %v7801 = vmul.f32 %v7798, %v7799
        %v7802 = vperm.slane %v7027, 0
        %v7803 = vadd.f32 %v7800, %v7802
        %v7804 = vadd.f32 %v7801, %v7802
        %v7807 = vrot.slane %v7803, 4
        %v7808 = vrot.slane %v7804, 4
        %v7811 = vmul.f32 %v7803, 0.05
        %v7812 = vmul.f32 %v7807, 0.05
        %v7813 = vmul.f32 %v7804, 0.05
        %v7814 = vmul.f32 %v7808, 0.05
        %v7815 = vadd.f32 %v7034, %v7811
        %v7816 = vadd.f32 %v7035, %v7812
        %v7817 = vadd.f32 %v7036, %v7813
        %v7818 = vadd.f32 %v7037, %v7814
      $region97: #{forward.1} parent=91 // loop_footer
        %s7033 = sadd.s32 1, %s7029
      $region98: #{forward.1} parent=91 // loop_footer_branch
        %7028 = sbr.rel target = $region94
      $region99: #{forward.1} parent=91 // loop_exit
        _
      %7823 = vst [vmem:[#allocation1] ss:$2 sm:$0xff] %v7034
      %s7824 = scalar_lea.vmem [#allocation1], 1
      %7825 = vst [vmem:[%s7824] ss:$2 sm:$0xff] %v7035
      %s7826 = scalar_lea.vmem [#allocation1], 16
      %7827 = vst [vmem:[%s7826] ss:$2 sm:$0xff] %v7036
      %s7828 = scalar_lea.vmem [#allocation1], 17
      %7829 = vst [vmem:[%s7828] ss:$2 sm:$0xff] %v7037
      %v7830 = vld.sshfl [vmem:[#allocation1] sm:$0xff pattern:$0x75316420]
      %v7831 = vld.sshfl [vmem:[#allocation1 + $0x10] sm:$0xff pattern:$0x75316420]
      %v7834 = vsel %vm3465, %v7830, 0.0
      %v7835 = vsel %vm3465, %v7831, 0.0
      %v7836 = vadd.f32 %v7834, %v7835
      %v7837 = vrot.slane %v7836, 4
      %v7838 = vadd.f32 %v7836, %v7837
      %v7839 = vrot.slane %v7838, 2
      %v7840 = vadd.f32 %v7838, %v7839
      %v7841 = vrot.slane %v7840, 1
      %v7842 = vadd.f32 %v7840, %v7841
      %v7843 = vrcp.pop 16.0
      %v7844 = vmul.f32 16.0, %v7843
      %v7845 = vsub.f32 1.0, %v7844
      %v7846 = vmul.f32 %v7843, %v7845
      %v7847 = vadd.f32 %v7843, %v7846
      %vm7848 = vweird.f32 %v7843
      %v7849 = vsel %vm7848, %v7843, %v7847
      %v7850 = vmul.f32 %v7842, %v7849
      %v7851 = vld [vmem:[%s15] sm:$0x1]
      %v7852 = vmul.f32 %v7850, %v7851
      %v7853 = vld [vmem:[%s15 + $0x1] sm:$0x1]
      %v7854 = vadd.f32 %v7852, %v7853
      %v7855 = vpack.c.bf16 %v7854, %v7854
      %v7856 = vld [vmem:[%s16] sm:$0xff]
      %v7857 = vld [vmem:[%s16 + $0x8] sm:$0xf]
      %v7858 = vld [vmem:[%s16 + $0xc] sm:$0xff]
      %v7859 = vld [vmem:[%s16 + $0x14] sm:$0xf]
      %v7860 = vld [vmem:[%s16 + $0x18] sm:$0xff]
      %v7861 = vld [vmem:[%s16 + $0x20] sm:$0xf]
      %v7862 = vld [vmem:[%s16 + $0x24] sm:$0xff]
      %v7863 = vld [vmem:[%s16 + $0x2c] sm:$0xf]
      %v7864 = vld [vmem:[%s17] sm:$0x7]
      %v7873 = vunpack.c.l.b16 %v7856
      %v7874 = vunpack.c.h.b16 %v7856
      %v7875 = vunpack.c.l.b16 %v7857
      %v7876 = vunpack.c.l.b16 %v7858
      %v7877 = vunpack.c.h.b16 %v7858
      %v7878 = vunpack.c.l.b16 %v7859
      %v7879 = vunpack.c.l.b16 %v7860
      %v7880 = vunpack.c.h.b16 %v7860
      %v7881 = vunpack.c.l.b16 %v7861
      %v7882 = vunpack.c.l.b16 %v7862
      %v7883 = vunpack.c.h.b16 %v7862
      %v7884 = vunpack.c.l.b16 %v7863
      %v7885 = vpack.c.b16 %v7876, %v7873
      %v7886 = vpack.c.b16 %v7877, %v7874
      %v7887 = vpack.c.b16 %v7878, %v7875
      %v7888 = vpack.c.b16 %v7882, %v7879
      %v7889 = vpack.c.b16 %v7883, %v7880
      %v7890 = vpack.c.b16 %v7884, %v7881
      %v7898 = vperm.slane %v7864, 0
      %v7899 = vperm.slane %v7864, 1
      %v7900 = vperm.slane %v7864, 2
      %v7905 = vsel %vm3465, %v7855, 0
      %7907 = vmatpush.bf16.msra.mxu0 0
      %7908 = vmatpush.bf16.msra.mxu0 0
      %7909 = vmatpush.bf16.msra.mxu0 0
      %7910 = vmatpush.bf16.msra.mxu0 0
      %7911 = vmatpush.bf16.msra.mxu0 0
      %7912 = vmatpush.bf16.msra.mxu0 0
      %7913 = vmatpush.bf16.msra.mxu0 %v7888
      %7914 = vmatpush.bf16.msra.mxu0 %v7885
      %7915 = vmatmul.bf16.gmra.mxu0 %v7905
      %v7916 = vpop.f32.mrf.mxu0
      %v7917 = vadd.f32 %v7898, %v7916
      %v7918 = vpop.f32.mrf.mxu0
      %7919 = vdwg.mxu0
      %7920 = vmatpush.bf16.msra.mxu0 0
      %7921 = vmatpush.bf16.msra.mxu0 0
      %7922 = vmatpush.bf16.msra.mxu0 0
      %7923 = vmatpush.bf16.msra.mxu0 0
      %7924 = vmatpush.bf16.msra.mxu0 0
      %7925 = vmatpush.bf16.msra.mxu0 0
      %7926 = vmatpush.bf16.msra.mxu0 %v7889
      %7927 = vmatpush.bf16.msra.mxu0 %v7886
      %7928 = vmatmul.bf16.gmra.mxu0 %v7905
      %v7929 = vpop.f32.mrf.mxu0
      %v7930 = vadd.f32 %v7899, %v7929
      %v7931 = vpop.f32.mrf.mxu0
      %7932 = vdwg.mxu0
      %7933 = vmatpush.bf16.msra.mxu0 0
      %7934 = vmatpush.bf16.msra.mxu0 0
      %7935 = vmatpush.bf16.msra.mxu0 0
      %7936 = vmatpush.bf16.msra.mxu0 0
      %7937 = vmatpush.bf16.msra.mxu0 0
      %7938 = vmatpush.bf16.msra.mxu0 0
      %7939 = vmatpush.bf16.msra.mxu0 %v7890
      %7940 = vmatpush.bf16.msra.mxu0 %v7887
      %7941 = vmatmul.bf16.gmra.mxu0 %v7905
      %v7942 = vpop.f32.mrf.mxu0
      %v7943 = vadd.f32 %v7900, %v7942
      %v7944 = vpop.f32.mrf.mxu0
      %7945 = vdwg.mxu0
      %v7949 = vrot.slane %v7930, 7
      %v7950 = vrot.slane %v7943, 6
      %v7951 = vsel %vm643, %v7917, %v7949
      %vm7952 = vcmask 1041408
      %v7953 = vsel %vm7952, %v7951, %v7950
      %v7955 = vlaneseq
      %vm7956 = vcmp.ge.s32.totalorder %v7955, 0
      %vm7957 = vcmp.lt.s32.totalorder %v7955, 300
      %vm7958 = vmand %vm7956, %vm7957
      %7959 = vst.msk [vmem:[%s573] sm:$0x7] %vm7958, %v7953
      %p7960 = scmp.lt.s32.totalorder %s29, 1
      %s7961 = scalar_select %p7960, %s29, 1
      %s7962 = smul.addr %s7961, 3
      %s7963 = scalar_lea.vmem %s18, %s7962
      // Predicated region
      $region100: #{forward.1} parent=91 // pred_check
        %p7964 = pneg %p430
      $region101: #{forward.1} parent=91 // pred_check_branch
        %7966 = sbr.rel (%p7964) target = $region103
      $region102: #{forward.1} parent=91 // pred_region
        _
      $region103: #{forward.1} parent=91 // pred_fallthru
        _
    $region92: #{forward.1} parent=5 // pred_fallthru
      _
    %p7967 = scmp.le.s32.totalorder 2, %s24
    // Predicated region
    $region104: #{forward.1} parent=5 // pred_check
      %p7968 = pneg %p7967
    $region105: #{forward.1} parent=5 // pred_check_branch
      %7970 = sbr.rel (%p7968) target = $region107
    $region106: #{forward.1} parent=5 // pred_region
      %s7971 = ssub.s32 %s24, 2
      // Predicated region
      $region108: #{forward.1} parent=106 // pred_check
        %p7972 = pneg %p436
      $region109: #{forward.1} parent=106 // pred_check_branch
        %7974 = sbr.rel (%p7972) target = $region111
      $region110: #{forward.1} parent=106 // pred_region
        %p7975 = scmp.lt.s32.totalorder %s30, 1
        %s7976 = scalar_select %p7975, %s30, 1
        %s7977 = smul.addr %s7976, 3
        %s7978 = scalar_lea.vmem %s18, %s7977
      $region111: #{forward.1} parent=106 // pred_fallthru
        _
    $region107: #{forward.1} parent=5 // pred_fallthru
      _
  $region6: #{forward.1} parent=0 // loop_footer
    %s28 = sadd.s32 1, %s24
  $region7: #{forward.1} parent=0 // loop_footer_branch
    %23 = sbr.rel target = $region3
  $region8: #{forward.1} parent=0 // loop_exit
    _

</llo_original>
